<compile_context>
chip_gen: v7x
topology: tpu7x:2x2x1
jax: 0.10.0
libtpu: 0.0.40
codegen_flags: <defaults>
</compile_context>

<pallas_src>
import functools

import numpy as np
import jax
import jax.numpy as jnp
from jax.experimental import pallas as pl
from jax.experimental.pallas import tpu as pltpu

NEG_INF = -1e9
MXU_DTYPE = jnp.bfloat16          # MXU operand dtype; f32 accumulation everywhere
# Attention-probability output dtype.  Kept f32 to match the reference module's outputs;
# set to jnp.bfloat16 in production to halve the dominant per-layer HBM writeback stream.
ATT_DTYPE = jnp.float32
VMEM_LIMIT_BYTES = 64 * 1024 * 1024


# ----------------------------------------------------------------------------
# In-kernel helpers (pure jnp on VMEM values)
# ----------------------------------------------------------------------------
def _ln(x, g, b, eps=1e-6):
    # x: (T, D) f32, g/b: (1, D) f32
    mean = jnp.mean(x, axis=-1, keepdims=True)
    c = x - mean
    var = jnp.mean(c * c, axis=-1, keepdims=True)
    return c * jax.lax.rsqrt(var + eps) * g + b


def _split_heads(x2d, n_heads):
    # (T, H*dh) -> (H, T, dh) via static lane slices + leading-dim stack
    # (avoids a minor-dim reshape/transpose inside the kernel).
    t, hd = x2d.shape
    dh = hd // n_heads
    return jnp.stack([x2d[:, h * dh:(h + 1) * dh] for h in range(n_heads)], axis=0)


def _merge_heads(ctx):
    # (H, T, dh) -> (T, H*dh) via leading-dim index + lane concatenation.
    h = ctx.shape[0]
    return jnp.concatenate([ctx[i] for i in range(h)], axis=-1)


def _mha_core(q, k, v, bias, scale):
    # q: (H, Tq, dh) bf16; k/v: (H, Tk, dh) bf16; bias broadcastable to (H, Tq, Tk).
    logits = jnp.einsum("hqd,hkd->hqk", q, k, preferred_element_type=jnp.float32)
    logits = logits * scale + bias
    m = jnp.max(logits, axis=-1, keepdims=True)
    e = jnp.exp(logits - m)
    s = jnp.sum(e, axis=-1, keepdims=True)
    p = e * pl.reciprocal(s, approx=True)          # EUP reciprocal (free slot) vs VALU divide
    ctx = jnp.einsum("hqk,hkd->hqd", p.astype(MXU_DTYPE), v,
                     preferred_element_type=jnp.float32)
    return ctx, p


def _self_attention_block(xn_bf, bias, wqkv, bqkv, wo, bo, n_heads, scale):
    # xn_bf: (T, D) bf16; wqkv: (D, 3D) bf16; bqkv: (1, 3D) f32; wo: (D, D) bf16; bo: (1, D).
    d = xn_bf.shape[1]
    qkv = jnp.dot(xn_bf, wqkv, preferred_element_type=jnp.float32) + bqkv   # one wide push
    qkv_bf = qkv.astype(MXU_DTYPE)                                          # cast once
    q = _split_heads(qkv_bf[:, :d], n_heads)
    k = _split_heads(qkv_bf[:, d:2 * d], n_heads)
    v = _split_heads(qkv_bf[:, 2 * d:], n_heads)
    ctx, p = _mha_core(q, k, v, bias, scale)
    out = jnp.dot(_merge_heads(ctx).astype(MXU_DTYPE), wo,
                  preferred_element_type=jnp.float32) + bo                  # one wide out-proj
    return out, p


def _cross_attention_block(xn_bf, mem_bf, bias, wq, bq, wkv, bkv, wo, bo, n_heads, scale):
    # xn_bf: (Tq, D) bf16; mem_bf: (Tk, D) bf16 (already bf16 — no per-layer cast).
    d = xn_bf.shape[1]
    q = jnp.dot(xn_bf, wq, preferred_element_type=jnp.float32) + bq          # (Tq, D)
    kv = jnp.dot(mem_bf, wkv, preferred_element_type=jnp.float32) + bkv      # (Tk, 2D)
    kv_bf = kv.astype(MXU_DTYPE)
    qh = _split_heads(q.astype(MXU_DTYPE), n_heads)
    kh = _split_heads(kv_bf[:, :d], n_heads)
    vh = _split_heads(kv_bf[:, d:], n_heads)
    ctx, p = _mha_core(qh, kh, vh, bias, scale)
    out = jnp.dot(_merge_heads(ctx).astype(MXU_DTYPE), wo,
                  preferred_element_type=jnp.float32) + bo
    return out, p


def _ffn(xn_bf, w1, b1, w2, b2):
    h = jnp.dot(xn_bf, w1, preferred_element_type=jnp.float32) + b1
    h = jnp.maximum(h, 0.0)                        # ReLU (dropout_relu identity in eval)
    return jnp.dot(h.astype(MXU_DTYPE), w2, preferred_element_type=jnp.float32) + b2


# ----------------------------------------------------------------------------
# Fused Pallas kernels
# ----------------------------------------------------------------------------
def _prepare_inputs_kernel(x_ref, w_ref, b_ref, tse_ref, pos_ref, o_ref):
    # fc_input + target-space embedding + positional encoding, per batch element.
    xh = jnp.dot(x_ref[...].astype(MXU_DTYPE), w_ref[...],
                 preferred_element_type=jnp.float32)
    o_ref[...] = (xh + b_ref[...] + tse_ref[...] + pos_ref[...]).astype(o_ref.dtype)


def _encoder_stack_kernel(x_ref, bias_ref,
                          ln1g_ref, ln1b_ref, wqkv_ref, bqkv_ref, wo_ref, bo_ref,
                          ln2g_ref, ln2b_ref, w1_ref, b1_ref, w2_ref, b2_ref,
                          lnfg_ref, lnfb_ref,
                          mem_ref, p_ref, acc_ref, *, n_heads, scale):
    # grid = (B, L); the residual stream stays resident in acc_ref across the L axis.
    l = pl.program_id(1)

    @pl.when(l == 0)
    def _():
        acc_ref[...] = x_ref[...].astype(jnp.float32)

    x = acc_ref[...]                                  # (T, D) f32
    bias = bias_ref[...][None]                        # (1, 1, T_k) additive padding bias

    # --- self attention (pre-norm + residual) ---
    xn = _ln(x, ln1g_ref[...], ln1b_ref[...]).astype(MXU_DTYPE)
    att, p = _self_attention_block(xn, bias, wqkv_ref[...], bqkv_ref[...],
                                   wo_ref[...], bo_ref[...], n_heads, scale)
    p_ref[...] = p.astype(p_ref.dtype)
    x = x + att                                       # dropout_postprocess identity (eval)

    # --- feed-forward (pre-norm + residual) ---
    xn = _ln(x, ln2g_ref[...], ln2b_ref[...]).astype(MXU_DTYPE)
    x = x + _ffn(xn, w1_ref[...], b1_ref[...], w2_ref[...], b2_ref[...])
    acc_ref[...] = x

    @pl.when(l == pl.num_programs(1) - 1)
    def _():
        # encoder final LayerNorm folded into the last layer iteration
        mem_ref[...] = _ln(x, lnfg_ref[...], lnfb_ref[...]).astype(mem_ref.dtype)


def _decoder_stack_kernel(z_ref, mem_ref, causal_ref, membias_ref,
                          ln1g_ref, ln1b_ref, s_wqkv_ref, s_bqkv_ref, s_wo_ref, s_bo_ref,
                          ln2g_ref, ln2b_ref, c_wq_ref, c_bq_ref, c_wkv_ref, c_bkv_ref,
                          c_wo_ref, c_bo_ref,
                          ln3g_ref, ln3b_ref, w1_ref, b1_ref, w2_ref, b2_ref,
                          zo_ref, sp_ref, cp_ref, acc_ref, *, n_heads, scale):
    l = pl.program_id(1)

    @pl.when(l == 0)
    def _():
        acc_ref[...] = z_ref[...].astype(jnp.float32)

    x = acc_ref[...]                                  # (T_out, D) f32
    mem = mem_ref[...]                                # (T_in, D) bf16
    causal = causal_ref[...]                          # (1, T_out, T_out)
    membias = membias_ref[...][None]                  # (1, 1, T_in)

    # --- masked self attention ---
    xn = _ln(x, ln1g_ref[...], ln1b_ref[...]).astype(MXU_DTYPE)
    att, sp = _self_attention_block(xn, causal, s_wqkv_ref[...], s_bqkv_ref[...],
                                    s_wo_ref[...], s_bo_ref[...], n_heads, scale)
    sp_ref[...] = sp.astype(sp_ref.dtype)
    x = x + att

    # --- cross attention over encoder memory ---
    xn = _ln(x, ln2g_ref[...], ln2b_ref[...]).astype(MXU_DTYPE)
    att, cp = _cross_attention_block(xn, mem, membias, c_wq_ref[...], c_bq_ref[...],
                                     c_wkv_ref[...], c_bkv_ref[...],
                                     c_wo_ref[...], c_bo_ref[...], n_heads, scale)
    cp_ref[...] = cp.astype(cp_ref.dtype)
    x = x + att

    # --- feed-forward ---
    xn = _ln(x, ln3g_ref[...], ln3b_ref[...]).astype(MXU_DTYPE)
    x = x + _ffn(xn, w1_ref[...], b1_ref[...], w2_ref[...], b2_ref[...])
    acc_ref[...] = x

    @pl.when(l == pl.num_programs(1) - 1)
    def _():
        # final decoder LayerNorm is fused into the output-head kernel
        zo_ref[...] = x.astype(zo_ref.dtype)


def _output_kernel(x_ref, g_ref, b_ref, w_ref, o_ref):
    # decoder final LN + fc_output (no bias) + log_softmax, fused, row-tiled.
    x = _ln(x_ref[...].astype(jnp.float32), g_ref[...], b_ref[...])
    logits = jnp.dot(x.astype(MXU_DTYPE), w_ref[...], preferred_element_type=jnp.float32)
    m = jnp.max(logits, axis=-1, keepdims=True)
    sh = logits - m
    lse = jnp.log(jnp.sum(jnp.exp(sh), axis=-1, keepdims=True))
    o_ref[...] = (sh - lse).astype(o_ref.dtype)


# ----------------------------------------------------------------------------
# pallas_call wrappers
# ----------------------------------------------------------------------------
def prepare_inputs_call(x, w, b, tse, pos):
    B, T, Din = x.shape
    D = w.shape[1]
    return pl.pallas_call(
        _prepare_inputs_kernel,
        grid=(B,),
        in_specs=[pl.BlockSpec((pl.Squeezed(), T, Din), lambda i: (i, 0, 0)),
                  pl.BlockSpec((Din, D), lambda i: (0, 0)),
                  pl.BlockSpec((1, D), lambda i: (0, 0)),
                  pl.BlockSpec((1, D), lambda i: (0, 0)),
                  pl.BlockSpec((T, D), lambda i: (0, 0))],
        out_specs=pl.BlockSpec((pl.Squeezed(), T, D), lambda i: (i, 0, 0)),
        out_shape=jax.ShapeDtypeStruct((B, T, D), jnp.float32),
        compiler_params=pltpu.CompilerParams(dimension_semantics=("parallel",)),
    )(x, w, b, tse, pos)


def encoder_stack_call(x, bias3, wts, lnf_g, lnf_b, n_heads):
    B, T, D = x.shape
    L = wts["ln1_g"].shape[0]
    F = wts["w1"].shape[-1]
    dh = D // n_heads
    kernel = functools.partial(_encoder_stack_kernel, n_heads=n_heads, scale=dh ** -0.5)

    def b_spec(d1, d2):                    # per-batch block, invariant across L
        return pl.BlockSpec((pl.Squeezed(), d1, d2), lambda b, l: (b, 0, 0))

    def l_spec(d1, d2):                    # per-layer block, streamed along L
        return pl.BlockSpec((pl.Squeezed(), d1, d2), lambda b, l: (l, 0, 0))

    def full_spec(d1, d2):                 # grid-invariant
        return pl.BlockSpec((d1, d2), lambda b, l: (0, 0))

    in_specs = [
        b_spec(T, D),                       # x
        b_spec(1, T),                       # padding bias
        l_spec(1, D), l_spec(1, D),         # ln1 g, b
        l_spec(D, 3 * D), l_spec(1, 3 * D), # wqkv, bqkv (lane-dense)
        l_spec(D, D), l_spec(1, D),         # wo, bo
        l_spec(1, D), l_spec(1, D),         # ln2 g, b
        l_spec(D, F), l_spec(1, F),         # ffn w1, b1
        l_spec(F, D), l_spec(1, D),         # ffn w2, b2
        full_spec(1, D), full_spec(1, D),   # final ln g, b
    ]
    out_specs = (
        pl.BlockSpec((pl.Squeezed(), T, D), lambda b, l: (b, 0, 0)),               # memory
        pl.BlockSpec((pl.Squeezed(), pl.Squeezed(), n_heads, T, T),
                     lambda b, l: (l, b, 0, 0, 0)),                                # probs
    )
    out_shape = (jax.ShapeDtypeStruct((B, T, D), jnp.float32),
                 jax.ShapeDtypeStruct((L, B, n_heads, T, T), ATT_DTYPE))
    return pl.pallas_call(
        kernel, grid=(B, L),
        in_specs=in_specs, out_specs=out_specs, out_shape=out_shape,
        scratch_shapes=[pltpu.VMEM((T, D), jnp.float32)],
        compiler_params=pltpu.CompilerParams(
            dimension_semantics=("parallel", "arbitrary"),
            vmem_limit_bytes=VMEM_LIMIT_BYTES),
    )(x, bias3,
      wts["ln1_g"], wts["ln1_b"], wts["wqkv"], wts["bqkv"], wts["wo"], wts["bo"],
      wts["ln2_g"], wts["ln2_b"], wts["w1"], wts["b1"], wts["w2"], wts["b2"],
      lnf_g, lnf_b)


def decoder_stack_call(z, memory_bf16, causal, membias3, wts, n_heads):
    B, Tq, D = z.shape
    Tk = memory_bf16.shape[1]
    L = wts["ln1_g"].shape[0]
    F = wts["w1"].shape[-1]
    dh = D // n_heads
    kernel = functools.partial(_decoder_stack_kernel, n_heads=n_heads, scale=dh ** -0.5)

    def b_spec(d1, d2):
        return pl.BlockSpec((pl.Squeezed(), d1, d2), lambda b, l: (b, 0, 0))

    def l_spec(d1, d2):
        return pl.BlockSpec((pl.Squeezed(), d1, d2), lambda b, l: (l, 0, 0))

    in_specs = [
        b_spec(Tq, D),                                 # z
        b_spec(Tk, D),                                 # encoder memory (bf16)
        pl.BlockSpec((1, Tq, Tq), lambda b, l: (0, 0, 0)),   # causal bias (shared)
        b_spec(1, Tk),                                 # memory padding bias
        l_spec(1, D), l_spec(1, D),                    # ln1
        l_spec(D, 3 * D), l_spec(1, 3 * D),            # self wqkv, bqkv
        l_spec(D, D), l_spec(1, D),                    # self wo, bo
        l_spec(1, D), l_spec(1, D),                    # ln2
        l_spec(D, D), l_spec(1, D),                    # cross wq, bq
        l_spec(D, 2 * D), l_spec(1, 2 * D),            # cross wkv, bkv
        l_spec(D, D), l_spec(1, D),                    # cross wo, bo
        l_spec(1, D), l_spec(1, D),                    # ln3
        l_spec(D, F), l_spec(1, F),                    # ffn w1, b1
        l_spec(F, D), l_spec(1, D),                    # ffn w2, b2
    ]
    out_specs = (
        pl.BlockSpec((pl.Squeezed(), Tq, D), lambda b, l: (b, 0, 0)),
        pl.BlockSpec((pl.Squeezed(), pl.Squeezed(), n_heads, Tq, Tq),
                     lambda b, l: (l, b, 0, 0, 0)),
        pl.BlockSpec((pl.Squeezed(), pl.Squeezed(), n_heads, Tq, Tk),
                     lambda b, l: (l, b, 0, 0, 0)),
    )
    out_shape = (jax.ShapeDtypeStruct((B, Tq, D), jnp.float32),
                 jax.ShapeDtypeStruct((L, B, n_heads, Tq, Tq), ATT_DTYPE),
                 jax.ShapeDtypeStruct((L, B, n_heads, Tq, Tk), ATT_DTYPE))
    return pl.pallas_call(
        kernel, grid=(B, L),
        in_specs=in_specs, out_specs=out_specs, out_shape=out_shape,
        scratch_shapes=[pltpu.VMEM((Tq, D), jnp.float32)],
        compiler_params=pltpu.CompilerParams(
            dimension_semantics=("parallel", "arbitrary"),
            vmem_limit_bytes=VMEM_LIMIT_BYTES),
    )(z, memory_bf16, causal, membias3,
      wts["ln1_g"], wts["ln1_b"], wts["s_wqkv"], wts["s_bqkv"], wts["s_wo"], wts["s_bo"],
      wts["ln2_g"], wts["ln2_b"], wts["c_wq"], wts["c_bq"], wts["c_wkv"], wts["c_bkv"],
      wts["c_wo"], wts["c_bo"],
      wts["ln3_g"], wts["ln3_b"], wts["w1"], wts["b1"], wts["w2"], wts["b2"])


def _row_tile(m):
    if m % 8 != 0:
        return m
    for t in (512, 256, 128, 64, 32, 16, 8):
        if m % t == 0:
            return t
    return m


def output_call(x2d, g, b, w_out):
    M, D = x2d.shape
    V = w_out.shape[1]
    tm = _row_tile(M)
    return pl.pallas_call(
        _output_kernel,
        grid=(M // tm,),
        in_specs=[pl.BlockSpec((tm, D), lambda i: (i, 0)),
                  pl.BlockSpec((1, D), lambda i: (0, 0)),
                  pl.BlockSpec((1, D), lambda i: (0, 0)),
                  pl.BlockSpec((D, V), lambda i: (0, 0))],
        out_specs=pl.BlockSpec((tm, V), lambda i: (i, 0)),
        out_shape=jax.ShapeDtypeStruct((M, V), jnp.float32),
        compiler_params=pltpu.CompilerParams(dimension_semantics=("parallel",),
                                             vmem_limit_bytes=VMEM_LIMIT_BYTES),
    )(x2d, g, b, w_out)


# ----------------------------------------------------------------------------
# JAX-side weight packing (flat lane-dense layouts, stacked along a leading L axis)
# ----------------------------------------------------------------------------
def _pack_encoder_weights(enc_params):
    layers = enc_params["layers"]

    def stack(fn):
        return jnp.stack([fn(p) for p in layers], axis=0)

    return dict(
        ln1_g=stack(lambda p: p["ln1_g"][None, :]),
        ln1_b=stack(lambda p: p["ln1_b"][None, :]),
        wqkv=stack(lambda p: jnp.concatenate(
            [p["att"]["wq"], p["att"]["wk"], p["att"]["wv"]], axis=1)).astype(MXU_DTYPE),
        bqkv=stack(lambda p: jnp.concatenate(
            [p["att"]["bq"], p["att"]["bk"], p["att"]["bv"]], axis=0)[None, :]),
        wo=stack(lambda p: p["att"]["wo"]).astype(MXU_DTYPE),
        bo=stack(lambda p: p["att"]["bo"][None, :]),
        ln2_g=stack(lambda p: p["ln2_g"][None, :]),
        ln2_b=stack(lambda p: p["ln2_b"][None, :]),
        w1=stack(lambda p: p["ff_w1"]).astype(MXU_DTYPE),
        b1=stack(lambda p: p["ff_b1"][None, :]),
        w2=stack(lambda p: p["ff_w2"]).astype(MXU_DTYPE),
        b2=stack(lambda p: p["ff_b2"][None, :]),
    )


def _pack_decoder_weights(dec_params):
    layers = dec_params["layers"]

    def stack(fn):
        return jnp.stack([fn(p) for p in layers], axis=0)

    return dict(
        ln1_g=stack(lambda p: p["ln1_g"][None, :]),
        ln1_b=stack(lambda p: p["ln1_b"][None, :]),
        s_wqkv=stack(lambda p: jnp.concatenate(
            [p["self_att"]["wq"], p["self_att"]["wk"], p["self_att"]["wv"]],
            axis=1)).astype(MXU_DTYPE),
        s_bqkv=stack(lambda p: jnp.concatenate(
            [p["self_att"]["bq"], p["self_att"]["bk"], p["self_att"]["bv"]],
            axis=0)[None, :]),
        s_wo=stack(lambda p: p["self_att"]["wo"]).astype(MXU_DTYPE),
        s_bo=stack(lambda p: p["self_att"]["bo"][None, :]),
        ln2_g=stack(lambda p: p["ln2_g"][None, :]),
        ln2_b=stack(lambda p: p["ln2_b"][None, :]),
        c_wq=stack(lambda p: p["cross_att"]["wq"]).astype(MXU_DTYPE),
        c_bq=stack(lambda p: p["cross_att"]["bq"][None, :]),
        c_wkv=stack(lambda p: jnp.concatenate(
            [p["cross_att"]["wk"], p["cross_att"]["wv"]], axis=1)).astype(MXU_DTYPE),
        c_bkv=stack(lambda p: jnp.concatenate(
            [p["cross_att"]["bk"], p["cross_att"]["bv"]], axis=0)[None, :]),
        c_wo=stack(lambda p: p["cross_att"]["wo"]).astype(MXU_DTYPE),
        c_bo=stack(lambda p: p["cross_att"]["bo"][None, :]),
        ln3_g=stack(lambda p: p["ln3_g"][None, :]),
        ln3_b=stack(lambda p: p["ln3_b"][None, :]),
        w1=stack(lambda p: p["ff_w1"]).astype(MXU_DTYPE),
        b1=stack(lambda p: p["ff_b1"][None, :]),
        w2=stack(lambda p: p["ff_w2"]).astype(MXU_DTYPE),
        b2=stack(lambda p: p["ff_b2"][None, :]),
    )


# ----------------------------------------------------------------------------
# Model glue (plain JAX: embedding gathers, masks, positional encoding)
# ----------------------------------------------------------------------------
def positional_signal(T, D):
    position = jnp.arange(T, dtype=jnp.float32)
    num_timescales = D // 2
    log_inc = np.log(1.0e4) / max(num_timescales - 1, 1)
    inv_timescales = jnp.exp(jnp.arange(num_timescales, dtype=jnp.float32) * -log_inc)
    scaled = position[:, None] * inv_timescales[None, :]
    signal = jnp.concatenate([jnp.sin(scaled), jnp.cos(scaled)], axis=1)
    if D % 2:
        signal = jnp.pad(signal, ((0, 0), (0, 1)))
    return signal                                   # (T, D)


def prepare_additive_padding_mask(ilens, max_len):
    idx = jnp.arange(max_len)[None, :]
    valid = (idx < ilens[:, None]).astype(jnp.float32)
    return (1.0 - valid) * NEG_INF                  # (B, T)


def prepare_additive_lower_triangular_mask(T):
    tri = jnp.tril(jnp.ones((T, T), jnp.float32))
    return (1.0 - tri) * NEG_INF                    # (T, T)


def transformer_forward(params, x, y, ilens, olens, target_space=3, *, cfg):
    # dropout_{att,relu,postprocess} are identity (inference / eval mode).
    del olens  # unused in the reference forward as well
    D = cfg["hidden_dim"]
    B, T_in, Din = x.shape
    N, T_out = y.shape

    # TODO(synk): the reference slices x[:, :max(ilens)] (data-dependent shape); we keep the
    # static T_in and rely on the additive padding mask so the whole forward stays jittable.
    enc_bias3 = prepare_additive_padding_mask(ilens, T_in)[:, None, :]      # (B, 1, T_in)

    # prepare_inputs: fc_input + target-space embedding + positional encoding (1 kernel)
    tse = params["tse_emb"][target_space][None, :]                          # (1, D)
    pos_in = positional_signal(T_in, D)                                     # (T_in, D)
    xh = prepare_inputs_call(x, params["fc_in_w"].astype(MXU_DTYPE),
                             params["fc_in_b"][None, :], tse, pos_in)       # (B, T_in, D)

    # prepare_targets: embedding gather + shift-right + positional encoding (JAX glue)
    z = params["tgt_emb"][y] * (D ** 0.5)
    z = jnp.pad(z, ((0, 0), (1, 0), (0, 0)))[:, :-1]
    z = z + positional_signal(T_out, D)[None]
    causal = prepare_additive_lower_triangular_mask(T_out)[None]            # (1, T, T)

    # encoder stack: one fused pallas_call for all layers (final LN folded in)
    enc_wts = _pack_encoder_weights(params["encoder"])
    x_enc, enc_p = encoder_stack_call(
        xh, enc_bias3, enc_wts,
        params["encoder"]["ln_g"][None, :], params["encoder"]["ln_b"][None, :],
        cfg["n_eheads"])

    # decoder stack: one fused pallas_call for all layers (memory passed as bf16)
    dec_wts = _pack_decoder_weights(params["decoder"])
    x_dec, self_p, cross_p = decoder_stack_call(
        z, x_enc.astype(MXU_DTYPE), causal, enc_bias3, dec_wts, cfg["n_dheads"])

    # decoder final LN + fc_output + log_softmax (1 fused, row-tiled kernel)
    out2d = output_call(x_dec.reshape(N * T_out, D),
                        params["decoder"]["ln_g"][None, :],
                        params["decoder"]["ln_b"][None, :],
                        params["fc_out_w"].astype(MXU_DTYPE))
    out = out2d.reshape(N, T_out, -1)

    enc_att = [enc_p[l] for l in range(cfg["n_encoder"])]
    dec_self_att = [self_p[l] for l in range(cfg["n_decoder"])]
    dec_cross_att = [cross_p[l] for l in range(cfg["n_decoder"])]
    return out, (enc_att, dec_self_att, dec_cross_att)


# ----------------------------------------------------------------------------
# Deterministic parameter initialization
# ----------------------------------------------------------------------------
def init_params(key, *, input_dim, hidden_dim, output_dim, embedding_dim,
                n_encoder, n_decoder, n_efilters, n_dfilters):
    keys = iter(jax.random.split(key, 4096))

    def dense(din, dout):
        w = jax.random.normal(next(keys), (din, dout), jnp.float32) * 0.02
        b = jnp.zeros((dout,), jnp.float32)
        return w, b

    def att_params():
        p = {}
        for name in ("q", "k", "v", "o"):
            w, b = dense(hidden_dim, hidden_dim)
            p["w" + name], p["b" + name] = w, b
        return p

    def enc_layer():
        w1, b1 = dense(hidden_dim, n_efilters)
        w2, b2 = dense(n_efilters, hidden_dim)
        return dict(
            ln1_g=jnp.ones((hidden_dim,)), ln1_b=jnp.zeros((hidden_dim,)),
            att=att_params(),
            ln2_g=jnp.ones((hidden_dim,)), ln2_b=jnp.zeros((hidden_dim,)),
            ff_w1=w1, ff_b1=b1, ff_w2=w2, ff_b2=b2,
        )

    def dec_layer():
        w1, b1 = dense(hidden_dim, n_dfilters)
        w2, b2 = dense(n_dfilters, hidden_dim)
        return dict(
            ln1_g=jnp.ones((hidden_dim,)), ln1_b=jnp.zeros((hidden_dim,)),
            self_att=att_params(),
            ln2_g=jnp.ones((hidden_dim,)), ln2_b=jnp.zeros((hidden_dim,)),
            cross_att=att_params(),
            ln3_g=jnp.ones((hidden_dim,)), ln3_b=jnp.zeros((hidden_dim,)),
            ff_w1=w1, ff_b1=b1, ff_w2=w2, ff_b2=b2,
        )

    fc_in_w, fc_in_b = dense(input_dim, hidden_dim)
    fc_out_w, _ = dense(hidden_dim, output_dim)     # bias=False
    return dict(
        fc_in_w=fc_in_w, fc_in_b=fc_in_b,
        tse_emb=jax.random.normal(next(keys), (embedding_dim, hidden_dim), jnp.float32) * 0.02,
        tgt_emb=jax.random.normal(next(keys), (output_dim, hidden_dim), jnp.float32) * 0.02,
        encoder=dict(layers=[enc_layer() for _ in range(n_encoder)],
                     ln_g=jnp.ones((hidden_dim,)), ln_b=jnp.zeros((hidden_dim,))),
        decoder=dict(layers=[dec_layer() for _ in range(n_decoder)],
                     ln_g=jnp.ones((hidden_dim,)), ln_b=jnp.zeros((hidden_dim,))),
        fc_out_w=fc_out_w,
    )


# ----------------------------------------------------------------------------
if __name__ == "__main__":
    cfg = dict(
        input_dim=6, output_dim=12, hidden_dim=32, embedding_dim=5,
        n_encoder=2, n_decoder=2, n_eheads=4, n_dheads=4,
        n_efilters=64, n_dfilters=64,
    )

    key = jax.random.PRNGKey(0)
    k_param, k_x, k_y = jax.random.split(key, 3)

    params = init_params(
        k_param,
        input_dim=cfg["input_dim"], hidden_dim=cfg["hidden_dim"],
        output_dim=cfg["output_dim"], embedding_dim=cfg["embedding_dim"],
        n_encoder=cfg["n_encoder"], n_decoder=cfg["n_decoder"],
        n_efilters=cfg["n_efilters"], n_dfilters=cfg["n_dfilters"],
    )

    B, T_in, T_out = 2, 8, 8
    x = jax.random.normal(k_x, (B, T_in, cfg["input_dim"]), jnp.float32)
    y = jax.random.randint(k_y, (B, T_out), 0, cfg["output_dim"], dtype=jnp.int32)
    ilens = jnp.array([8, 6], jnp.int32)
    olens = jnp.array([8, 7], jnp.int32)

    fwd = jax.jit(functools.partial(transformer_forward, target_space=3, cfg=cfg))
    out, (enc_att, dec_self_att, dec_cross_att) = fwd(params, x, y, ilens, olens)
    jax.block_until_ready(out)

    assert out.shape == (B, T_out, cfg["output_dim"])
    assert len(enc_att) == cfg["n_encoder"]
    assert len(dec_self_att) == cfg["n_decoder"]
    assert len(dec_cross_att) == cfg["n_decoder"]
    assert enc_att[0].shape == (B, cfg["n_eheads"], T_in, T_in)
    assert dec_self_att[0].shape == (B, cfg["n_dheads"], T_out, T_out)
    assert dec_cross_att[0].shape == (B, cfg["n_dheads"], T_out, T_in)
    assert bool(jnp.isfinite(out).all())
    print("KERNEL_OK")
</pallas_src>

<mosaic_0001>
module attributes {stable_mosaic.version = 11 : i64} {
  func.func @_prepare_inputs_kernel(%arg0: i32, %arg1: memref<1x8x6xf32, #tpu.memory_space<vmem>>, %arg2: memref<6x32xbf16, #tpu.memory_space<vmem>>, %arg3: memref<1x32xf32, #tpu.memory_space<vmem>>, %arg4: memref<1x32xf32, #tpu.memory_space<vmem>>, %arg5: memref<8x32xf32, #tpu.memory_space<vmem>>, %arg6: memref<1x8x32xf32, #tpu.memory_space<vmem>>) attributes {dimension_semantics = [#tpu.dimension_semantics<parallel>], iteration_bounds = array<i64: 2>, scalar_prefetch = 0 : i64, scratch_operands = 0 : i64, tpu.core_type = #tpu.core_type<tc>, window_params = [{transform_indices = @transform_0, window_bounds = array<i64: 1, 8, 6>}, {pipeline_mode = #tpu.pipeline_mode<synchronous>, transform_indices = @transform_1, window_bounds = array<i64: 6, 32>}, {pipeline_mode = #tpu.pipeline_mode<synchronous>, transform_indices = @transform_2, window_bounds = array<i64: 1, 32>}, {pipeline_mode = #tpu.pipeline_mode<synchronous>, transform_indices = @transform_3, window_bounds = array<i64: 1, 32>}, {pipeline_mode = #tpu.pipeline_mode<synchronous>, transform_indices = @transform_4, window_bounds = array<i64: 8, 32>}, {transform_indices = @transform_5, window_bounds = array<i64: 1, 8, 32>}]} {
    %c0 = arith.constant 0 : index
    %c0_0 = arith.constant 0 : index
    %c0_1 = arith.constant 0 : index
    %0 = vector.load %arg1[%c0, %c0_0, %c0_1] : memref<1x8x6xf32, #tpu.memory_space<vmem>>, vector<1x8x6xf32>
    %1 = vector.shape_cast %0 : vector<1x8x6xf32> to vector<8x6xf32>
    %2 = arith.truncf %1 : vector<8x6xf32> to vector<8x6xbf16>
    %c0_2 = arith.constant 0 : index
    %c0_3 = arith.constant 0 : index
    %3 = vector.load %arg2[%c0_2, %c0_3] : memref<6x32xbf16, #tpu.memory_space<vmem>>, vector<6x32xbf16>
    %cst = arith.constant dense<0.000000e+00> : vector<8x32xf32>
    %4 = tpu.matmul %2, %3, %cst {dimension_numbers = #tpu.dot_dimension_numbers<[1], [0], [0], [1], [0, 0, 1, 1], [], []>} : vector<8x6xbf16>, vector<6x32xbf16>, vector<8x32xf32> -> vector<8x32xf32>
    %c0_4 = arith.constant 0 : index
    %c0_5 = arith.constant 0 : index
    %5 = vector.load %arg3[%c0_4, %c0_5] : memref<1x32xf32, #tpu.memory_space<vmem>>, vector<1x32xf32>
    %6 = vector.broadcast %5 : vector<1x32xf32> to vector<8x32xf32>
    %7 = arith.addf %4, %6 : vector<8x32xf32>
    %c0_6 = arith.constant 0 : index
    %c0_7 = arith.constant 0 : index
    %8 = vector.load %arg4[%c0_6, %c0_7] : memref<1x32xf32, #tpu.memory_space<vmem>>, vector<1x32xf32>
    %9 = vector.broadcast %8 : vector<1x32xf32> to vector<8x32xf32>
    %10 = arith.addf %7, %9 : vector<8x32xf32>
    %c0_8 = arith.constant 0 : index
    %c0_9 = arith.constant 0 : index
    %11 = vector.load %arg5[%c0_8, %c0_9] : memref<8x32xf32, #tpu.memory_space<vmem>>, vector<8x32xf32>
    %12 = arith.addf %10, %11 : vector<8x32xf32>
    %c0_10 = arith.constant 0 : index
    %c0_11 = arith.constant 0 : index
    %c0_12 = arith.constant 0 : index
    %13 = vector.load %arg6[%c0_10, %c0_11, %c0_12] : memref<1x8x32xf32, #tpu.memory_space<vmem>>, vector<1x8x32xf32>
    %14 = vector.shape_cast %13 : vector<1x8x32xf32> to vector<8x32xf32>
    %15 = vector.shape_cast %12 : vector<8x32xf32> to vector<1x8x32xf32>
    tpu.vector_store %arg6[%c0_10, %c0_11, %c0_12], %15 {strides = array<i32>} : memref<1x8x32xf32, #tpu.memory_space<vmem>>, vector<1x8x32xf32>,
    return
  }
  func.func @transform_0(%arg0: i32) -> (i32, i32, i32) {
    %c0_i32 = arith.constant 0 : i32
    %c0_i32_0 = arith.constant 0 : i32
    %c0_i32_1 = arith.constant 0 : i32
    return %arg0, %c0_i32, %c0_i32_0 : i32, i32, i32
  }
  func.func @transform_1(%arg0: i32) -> (i32, i32) {
    %c0_i32 = arith.constant 0 : i32
    %c0_i32_0 = arith.constant 0 : i32
    %c0_i32_1 = arith.constant 0 : i32
    return %c0_i32, %c0_i32_0 : i32, i32
  }
  func.func @transform_2(%arg0: i32) -> (i32, i32) {
    %c0_i32 = arith.constant 0 : i32
    %c0_i32_0 = arith.constant 0 : i32
    %c0_i32_1 = arith.constant 0 : i32
    return %c0_i32, %c0_i32_0 : i32, i32
  }
  func.func @transform_3(%arg0: i32) -> (i32, i32) {
    %c0_i32 = arith.constant 0 : i32
    %c0_i32_0 = arith.constant 0 : i32
    %c0_i32_1 = arith.constant 0 : i32
    return %c0_i32, %c0_i32_0 : i32, i32
  }
  func.func @transform_4(%arg0: i32) -> (i32, i32) {
    %c0_i32 = arith.constant 0 : i32
    %c0_i32_0 = arith.constant 0 : i32
    %c0_i32_1 = arith.constant 0 : i32
    return %c0_i32, %c0_i32_0 : i32, i32
  }
  func.func @transform_5(%arg0: i32) -> (i32, i32, i32) {
    %c0_i32 = arith.constant 0 : i32
    %c0_i32_0 = arith.constant 0 : i32
    %c0_i32_1 = arith.constant 0 : i32
    return %arg0, %c0_i32, %c0_i32_0 : i32, i32, i32
  }
}

module attributes {stable_mosaic.version = 11 : i64} {
  func.func @_encoder_stack_kernel(%arg0: i32, %arg1: i32, %arg2: memref<1x8x32xf32, #tpu.memory_space<vmem>>, %arg3: memref<1x1x8xf32, #tpu.memory_space<vmem>>, %arg4: memref<1x1x32xf32, #tpu.memory_space<vmem>>, %arg5: memref<1x1x32xf32, #tpu.memory_space<vmem>>, %arg6: memref<1x32x96xbf16, #tpu.memory_space<vmem>>, %arg7: memref<1x1x96xf32, #tpu.memory_space<vmem>>, %arg8: memref<1x32x32xbf16, #tpu.memory_space<vmem>>, %arg9: memref<1x1x32xf32, #tpu.memory_space<vmem>>, %arg10: memref<1x1x32xf32, #tpu.memory_space<vmem>>, %arg11: memref<1x1x32xf32, #tpu.memory_space<vmem>>, %arg12: memref<1x32x64xbf16, #tpu.memory_space<vmem>>, %arg13: memref<1x1x64xf32, #tpu.memory_space<vmem>>, %arg14: memref<1x64x32xbf16, #tpu.memory_space<vmem>>, %arg15: memref<1x1x32xf32, #tpu.memory_space<vmem>>, %arg16: memref<1x32xf32, #tpu.memory_space<vmem>>, %arg17: memref<1x32xf32, #tpu.memory_space<vmem>>, %arg18: memref<1x8x32xf32, #tpu.memory_space<vmem>>, %arg19: memref<1x1x4x8x8xf32, #tpu.memory_space<vmem>>, %arg20: memref<8x32xf32, #tpu.memory_space<vmem>>) attributes {dimension_semantics = [#tpu.dimension_semantics<parallel>, #tpu.dimension_semantics<arbitrary>], iteration_bounds = array<i64: 2, 2>, scalar_prefetch = 0 : i64, scratch_operands = 1 : i64, tpu.core_type = #tpu.core_type<tc>, window_params = [{transform_indices = @transform_0, window_bounds = array<i64: 1, 8, 32>}, {transform_indices = @transform_1, window_bounds = array<i64: 1, 1, 8>}, {transform_indices = @transform_2, window_bounds = array<i64: 1, 1, 32>}, {transform_indices = @transform_3, window_bounds = array<i64: 1, 1, 32>}, {transform_indices = @transform_4, window_bounds = array<i64: 1, 32, 96>}, {transform_indices = @transform_5, window_bounds = array<i64: 1, 1, 96>}, {transform_indices = @transform_6, window_bounds = array<i64: 1, 32, 32>}, {transform_indices = @transform_7, window_bounds = array<i64: 1, 1, 32>}, {transform_indices = @transform_8, window_bounds = array<i64: 1, 1, 32>}, {transform_indices = @transform_9, window_bounds = array<i64: 1, 1, 32>}, {transform_indices = @transform_10, window_bounds = array<i64: 1, 32, 64>}, {transform_indices = @transform_11, window_bounds = array<i64: 1, 1, 64>}, {transform_indices = @transform_12, window_bounds = array<i64: 1, 64, 32>}, {transform_indices = @transform_13, window_bounds = array<i64: 1, 1, 32>}, {pipeline_mode = #tpu.pipeline_mode<synchronous>, transform_indices = @transform_14, window_bounds = array<i64: 1, 32>}, {pipeline_mode = #tpu.pipeline_mode<synchronous>, transform_indices = @transform_15, window_bounds = array<i64: 1, 32>}, {transform_indices = @transform_16, window_bounds = array<i64: 1, 8, 32>}, {transform_indices = @transform_17, window_bounds = array<i64: 1, 1, 4, 8, 8>}]} {
    %c0_i32 = arith.constant 0 : i32
    %0 = arith.cmpi eq, %arg1, %c0_i32 : i32
    %1 = arith.extui %0 : i1 to i32
    %c0_i32_0 = arith.constant 0 : i32
    %2 = arith.cmpi ne, %1, %c0_i32_0 : i32
    scf.if %2 {
      %c0_68 = arith.constant 0 : index
      %c0_69 = arith.constant 0 : index
      %c0_70 = arith.constant 0 : index
      %155 = vector.load %arg2[%c0_68, %c0_69, %c0_70] : memref<1x8x32xf32, #tpu.memory_space<vmem>>, vector<1x8x32xf32>
      %156 = vector.shape_cast %155 : vector<1x8x32xf32> to vector<8x32xf32>
      %c0_71 = arith.constant 0 : index
      %c0_72 = arith.constant 0 : index
      %157 = vector.load %arg20[%c0_71, %c0_72] : memref<8x32xf32, #tpu.memory_space<vmem>>, vector<8x32xf32>
      tpu.vector_store %arg20[%c0_71, %c0_72], %156 {strides = array<i32>} : memref<8x32xf32, #tpu.memory_space<vmem>>, vector<8x32xf32>,
    } else {
    }
    %c0 = arith.constant 0 : index
    %c0_1 = arith.constant 0 : index
    %3 = vector.load %arg20[%c0, %c0_1] : memref<8x32xf32, #tpu.memory_space<vmem>>, vector<8x32xf32>
    %c0_2 = arith.constant 0 : index
    %c0_3 = arith.constant 0 : index
    %c0_4 = arith.constant 0 : index
    %4 = vector.load %arg3[%c0_2, %c0_3, %c0_4] : memref<1x1x8xf32, #tpu.memory_space<vmem>>, vector<1x1x8xf32>
    %5 = vector.shape_cast %4 : vector<1x1x8xf32> to vector<1x8xf32>
    %6 = vector.shape_cast %5 : vector<1x8xf32> to vector<1x1x8xf32>
    %c0_5 = arith.constant 0 : index
    %c0_6 = arith.constant 0 : index
    %c0_7 = arith.constant 0 : index
    %7 = vector.load %arg4[%c0_5, %c0_6, %c0_7] : memref<1x1x32xf32, #tpu.memory_space<vmem>>, vector<1x1x32xf32>
    %8 = vector.shape_cast %7 : vector<1x1x32xf32> to vector<1x32xf32>
    %c0_8 = arith.constant 0 : index
    %c0_9 = arith.constant 0 : index
    %c0_10 = arith.constant 0 : index
    %9 = vector.load %arg5[%c0_8, %c0_9, %c0_10] : memref<1x1x32xf32, #tpu.memory_space<vmem>>, vector<1x1x32xf32>
    %10 = vector.shape_cast %9 : vector<1x1x32xf32> to vector<1x32xf32>
    %cst = arith.constant dense<0.000000e+00> : vector<8xf32>
    %11 = vector.multi_reduction <add>, %3, %cst [1] : vector<8x32xf32> to vector<8xf32>
    %12 = vector.shape_cast %11 : vector<8xf32> to vector<8x1xf32>
    %cst_11 = arith.constant 3.200000e+01 : f32
    %13 = vector.broadcast %cst_11 : f32 to vector<8x1xf32>
    %14 = arith.divf %12, %13 : vector<8x1xf32>
    %15 = vector.broadcast %14 : vector<8x1xf32> to vector<8x32xf32>
    %16 = arith.subf %3, %15 : vector<8x32xf32>
    %17 = arith.mulf %16, %16 : vector<8x32xf32>
    %cst_12 = arith.constant dense<0.000000e+00> : vector<8xf32>
    %18 = vector.multi_reduction <add>, %17, %cst_12 [1] : vector<8x32xf32> to vector<8xf32>
    %19 = vector.shape_cast %18 : vector<8xf32> to vector<8x1xf32>
    %cst_13 = arith.constant 3.200000e+01 : f32
    %20 = vector.broadcast %cst_13 : f32 to vector<8x1xf32>
    %21 = arith.divf %19, %20 : vector<8x1xf32>
    %cst_14 = arith.constant 9.99999997E-7 : f32
    %22 = vector.broadcast %cst_14 : f32 to vector<8x1xf32>
    %23 = arith.addf %21, %22 : vector<8x1xf32>
    %24 = math.rsqrt %23 : vector<8x1xf32>
    %25 = vector.broadcast %24 : vector<8x1xf32> to vector<8x32xf32>
    %26 = arith.mulf %16, %25 : vector<8x32xf32>
    %27 = vector.broadcast %8 : vector<1x32xf32> to vector<8x32xf32>
    %28 = arith.mulf %26, %27 : vector<8x32xf32>
    %29 = vector.broadcast %10 : vector<1x32xf32> to vector<8x32xf32>
    %30 = arith.addf %28, %29 : vector<8x32xf32>
    %31 = arith.truncf %30 : vector<8x32xf32> to vector<8x32xbf16>
    %c0_15 = arith.constant 0 : index
    %c0_16 = arith.constant 0 : index
    %c0_17 = arith.constant 0 : index
    %32 = vector.load %arg6[%c0_15, %c0_16, %c0_17] : memref<1x32x96xbf16, #tpu.memory_space<vmem>>, vector<1x32x96xbf16>
    %33 = vector.shape_cast %32 : vector<1x32x96xbf16> to vector<32x96xbf16>
    %c0_18 = arith.constant 0 : index
    %c0_19 = arith.constant 0 : index
    %c0_20 = arith.constant 0 : index
    %34 = vector.load %arg7[%c0_18, %c0_19, %c0_20] : memref<1x1x96xf32, #tpu.memory_space<vmem>>, vector<1x1x96xf32>
    %35 = vector.shape_cast %34 : vector<1x1x96xf32> to vector<1x96xf32>
    %c0_21 = arith.constant 0 : index
    %c0_22 = arith.constant 0 : index
    %c0_23 = arith.constant 0 : index
    %36 = vector.load %arg8[%c0_21, %c0_22, %c0_23] : memref<1x32x32xbf16, #tpu.memory_space<vmem>>, vector<1x32x32xbf16>
    %37 = vector.shape_cast %36 : vector<1x32x32xbf16> to vector<32x32xbf16>
    %c0_24 = arith.constant 0 : index
    %c0_25 = arith.constant 0 : index
    %c0_26 = arith.constant 0 : index
    %38 = vector.load %arg9[%c0_24, %c0_25, %c0_26] : memref<1x1x32xf32, #tpu.memory_space<vmem>>, vector<1x1x32xf32>
    %39 = vector.shape_cast %38 : vector<1x1x32xf32> to vector<1x32xf32>
    %cst_27 = arith.constant dense<0.000000e+00> : vector<8x96xf32>
    %40 = tpu.matmul %31, %33, %cst_27 {dimension_numbers = #tpu.dot_dimension_numbers<[1], [0], [0], [1], [0, 0, 1, 1], [], []>} : vector<8x32xbf16>, vector<32x96xbf16>, vector<8x96xf32> -> vector<8x96xf32>
    %41 = vector.broadcast %35 : vector<1x96xf32> to vector<8x96xf32>
    %42 = arith.addf %40, %41 : vector<8x96xf32>
    %43 = arith.truncf %42 : vector<8x96xf32> to vector<8x96xbf16>
    %44 = vector.extract_strided_slice %43 {offsets = [0, 0], sizes = [8, 32], strides = [1, 1]} : vector<8x96xbf16> to vector<8x32xbf16>
    %45 = vector.extract_strided_slice %44 {offsets = [0, 0], sizes = [8, 8], strides = [1, 1]} : vector<8x32xbf16> to vector<8x8xbf16>
    %46 = vector.extract_strided_slice %44 {offsets = [0, 8], sizes = [8, 8], strides = [1, 1]} : vector<8x32xbf16> to vector<8x8xbf16>
    %47 = vector.extract_strided_slice %44 {offsets = [0, 16], sizes = [8, 8], strides = [1, 1]} : vector<8x32xbf16> to vector<8x8xbf16>
    %48 = vector.extract_strided_slice %44 {offsets = [0, 24], sizes = [8, 8], strides = [1, 1]} : vector<8x32xbf16> to vector<8x8xbf16>
    %49 = vector.shape_cast %45 : vector<8x8xbf16> to vector<1x8x8xbf16>
    %50 = vector.shape_cast %46 : vector<8x8xbf16> to vector<1x8x8xbf16>
    %51 = vector.shape_cast %47 : vector<8x8xbf16> to vector<1x8x8xbf16>
    %52 = vector.shape_cast %48 : vector<8x8xbf16> to vector<1x8x8xbf16>
    %53 = tpu.concatenate %49, %50, %51, %52 in 0 : vector<1x8x8xbf16>, vector<1x8x8xbf16>, vector<1x8x8xbf16>, vector<1x8x8xbf16> -> vector<4x8x8xbf16>
    %54 = vector.extract_strided_slice %43 {offsets = [0, 32], sizes = [8, 32], strides = [1, 1]} : vector<8x96xbf16> to vector<8x32xbf16>
    %55 = vector.extract_strided_slice %54 {offsets = [0, 0], sizes = [8, 8], strides = [1, 1]} : vector<8x32xbf16> to vector<8x8xbf16>
    %56 = vector.extract_strided_slice %54 {offsets = [0, 8], sizes = [8, 8], strides = [1, 1]} : vector<8x32xbf16> to vector<8x8xbf16>
    %57 = vector.extract_strided_slice %54 {offsets = [0, 16], sizes = [8, 8], strides = [1, 1]} : vector<8x32xbf16> to vector<8x8xbf16>
    %58 = vector.extract_strided_slice %54 {offsets = [0, 24], sizes = [8, 8], strides = [1, 1]} : vector<8x32xbf16> to vector<8x8xbf16>
    %59 = vector.shape_cast %55 : vector<8x8xbf16> to vector<1x8x8xbf16>
    %60 = vector.shape_cast %56 : vector<8x8xbf16> to vector<1x8x8xbf16>
    %61 = vector.shape_cast %57 : vector<8x8xbf16> to vector<1x8x8xbf16>
    %62 = vector.shape_cast %58 : vector<8x8xbf16> to vector<1x8x8xbf16>
    %63 = tpu.concatenate %59, %60, %61, %62 in 0 : vector<1x8x8xbf16>, vector<1x8x8xbf16>, vector<1x8x8xbf16>, vector<1x8x8xbf16> -> vector<4x8x8xbf16>
    %64 = vector.extract_strided_slice %43 {offsets = [0, 64], sizes = [8, 32], strides = [1, 1]} : vector<8x96xbf16> to vector<8x32xbf16>
    %65 = vector.extract_strided_slice %64 {offsets = [0, 0], sizes = [8, 8], strides = [1, 1]} : vector<8x32xbf16> to vector<8x8xbf16>
    %66 = vector.extract_strided_slice %64 {offsets = [0, 8], sizes = [8, 8], strides = [1, 1]} : vector<8x32xbf16> to vector<8x8xbf16>
    %67 = vector.extract_strided_slice %64 {offsets = [0, 16], sizes = [8, 8], strides = [1, 1]} : vector<8x32xbf16> to vector<8x8xbf16>
    %68 = vector.extract_strided_slice %64 {offsets = [0, 24], sizes = [8, 8], strides = [1, 1]} : vector<8x32xbf16> to vector<8x8xbf16>
    %69 = vector.shape_cast %65 : vector<8x8xbf16> to vector<1x8x8xbf16>
    %70 = vector.shape_cast %66 : vector<8x8xbf16> to vector<1x8x8xbf16>
    %71 = vector.shape_cast %67 : vector<8x8xbf16> to vector<1x8x8xbf16>
    %72 = vector.shape_cast %68 : vector<8x8xbf16> to vector<1x8x8xbf16>
    %73 = tpu.concatenate %69, %70, %71, %72 in 0 : vector<1x8x8xbf16>, vector<1x8x8xbf16>, vector<1x8x8xbf16>, vector<1x8x8xbf16> -> vector<4x8x8xbf16>
    "tpu.trace_start"() <{level = 10 : i32, message = "hqd,hkd->hqk"}> : () -> ()
    %cst_28 = arith.constant dense<0.000000e+00> : vector<4x8x8xf32>
    %74 = tpu.matmul %53, %63, %cst_28 {dimension_numbers = #tpu.dot_dimension_numbers<[2], [2], [1], [1], [0, 0, 0, 1, 1, 1], [0], [0]>} : vector<4x8x8xbf16>, vector<4x8x8xbf16>, vector<4x8x8xf32> -> vector<4x8x8xf32>
    "tpu.trace_stop"() : () -> ()
    %cst_29 = arith.constant 0.353553385 : f32
    %75 = vector.broadcast %cst_29 : f32 to vector<4x8x8xf32>
    %76 = arith.mulf %74, %75 : vector<4x8x8xf32>
    %77 = vector.broadcast %6 : vector<1x1x8xf32> to vector<4x8x8xf32>
    %78 = arith.addf %76, %77 : vector<4x8x8xf32>
    %cst_30 = arith.constant dense<0xFF800000> : vector<4x8xf32>
    %79 = vector.multi_reduction <maximumf>, %78, %cst_30 [2] : vector<4x8x8xf32> to vector<4x8xf32>
    %80 = vector.shape_cast %79 : vector<4x8xf32> to vector<4x8x1xf32>
    %81 = vector.broadcast %80 : vector<4x8x1xf32> to vector<4x8x8xf32>
    %82 = arith.subf %78, %81 : vector<4x8x8xf32>
    %83 = math.exp %82 : vector<4x8x8xf32>
    %cst_31 = arith.constant dense<0.000000e+00> : vector<4x8xf32>
    %84 = vector.multi_reduction <add>, %83, %cst_31 [2] : vector<4x8x8xf32> to vector<4x8xf32>
    %85 = vector.shape_cast %84 : vector<4x8xf32> to vector<4x8x1xf32>
    %86 = tpu.reciprocal %85 {approx = true} : vector<4x8x1xf32> -> vector<4x8x1xf32>
    %87 = vector.broadcast %86 : vector<4x8x1xf32> to vector<4x8x8xf32>
    %88 = arith.mulf %83, %87 : vector<4x8x8xf32>
    %89 = arith.truncf %88 : vector<4x8x8xf32> to vector<4x8x8xbf16>
    "tpu.trace_start"() <{level = 10 : i32, message = "hqk,hkd->hqd"}> : () -> ()
    %cst_32 = arith.constant dense<0.000000e+00> : vector<4x8x8xf32>
    %90 = tpu.matmul %89, %73, %cst_32 {dimension_numbers = #tpu.dot_dimension_numbers<[2], [1], [1], [2], [0, 0, 0, 1, 1, 2], [0], [0]>} : vector<4x8x8xbf16>, vector<4x8x8xbf16>, vector<4x8x8xf32> -> vector<4x8x8xf32>
    "tpu.trace_stop"() : () -> ()
    %91 = vector.extract_strided_slice %90 {offsets = [0, 0, 0], sizes = [1, 8, 8], strides = [1, 1, 1]} : vector<4x8x8xf32> to vector<1x8x8xf32>
    %92 = vector.shape_cast %91 : vector<1x8x8xf32> to vector<8x8xf32>
    %93 = vector.extract_strided_slice %90 {offsets = [1, 0, 0], sizes = [1, 8, 8], strides = [1, 1, 1]} : vector<4x8x8xf32> to vector<1x8x8xf32>
    %94 = vector.shape_cast %93 : vector<1x8x8xf32> to vector<8x8xf32>
    %95 = vector.extract_strided_slice %90 {offsets = [2, 0, 0], sizes = [1, 8, 8], strides = [1, 1, 1]} : vector<4x8x8xf32> to vector<1x8x8xf32>
    %96 = vector.shape_cast %95 : vector<1x8x8xf32> to vector<8x8xf32>
    %97 = vector.extract_strided_slice %90 {offsets = [3, 0, 0], sizes = [1, 8, 8], strides = [1, 1, 1]} : vector<4x8x8xf32> to vector<1x8x8xf32>
    %98 = vector.shape_cast %97 : vector<1x8x8xf32> to vector<8x8xf32>
    %99 = tpu.concatenate %92, %94, %96, %98 in 1 : vector<8x8xf32>, vector<8x8xf32>, vector<8x8xf32>, vector<8x8xf32> -> vector<8x32xf32>
    %100 = arith.truncf %99 : vector<8x32xf32> to vector<8x32xbf16>
    %cst_33 = arith.constant dense<0.000000e+00> : vector<8x32xf32>
    %101 = tpu.matmul %100, %37, %cst_33 {dimension_numbers = #tpu.dot_dimension_numbers<[1], [0], [0], [1], [0, 0, 1, 1], [], []>} : vector<8x32xbf16>, vector<32x32xbf16>, vector<8x32xf32> -> vector<8x32xf32>
    %102 = vector.broadcast %39 : vector<1x32xf32> to vector<8x32xf32>
    %103 = arith.addf %101, %102 : vector<8x32xf32>
    %c0_34 = arith.constant 0 : index
    %c0_35 = arith.constant 0 : index
    %c0_36 = arith.constant 0 : index
    %c0_37 = arith.constant 0 : index
    %c0_38 = arith.constant 0 : index
    %104 = vector.load %arg19[%c0_34, %c0_35, %c0_36, %c0_37, %c0_38] : memref<1x1x4x8x8xf32, #tpu.memory_space<vmem>>, vector<1x1x4x8x8xf32>
    %105 = vector.shape_cast %104 : vector<1x1x4x8x8xf32> to vector<4x8x8xf32>
    %106 = vector.shape_cast %88 : vector<4x8x8xf32> to vector<1x1x4x8x8xf32>
    tpu.vector_store %arg19[%c0_34, %c0_35, %c0_36, %c0_37, %c0_38], %106 {strides = array<i32>} : memref<1x1x4x8x8xf32, #tpu.memory_space<vmem>>, vector<1x1x4x8x8xf32>,
    %107 = arith.addf %3, %103 : vector<8x32xf32>
    %c0_39 = arith.constant 0 : index
    %c0_40 = arith.constant 0 : index
    %c0_41 = arith.constant 0 : index
    %108 = vector.load %arg10[%c0_39, %c0_40, %c0_41] : memref<1x1x32xf32, #tpu.memory_space<vmem>>, vector<1x1x32xf32>
    %109 = vector.shape_cast %108 : vector<1x1x32xf32> to vector<1x32xf32>
    %c0_42 = arith.constant 0 : index
    %c0_43 = arith.constant 0 : index
    %c0_44 = arith.constant 0 : index
    %110 = vector.load %arg11[%c0_42, %c0_43, %c0_44] : memref<1x1x32xf32, #tpu.memory_space<vmem>>, vector<1x1x32xf32>
    %111 = vector.shape_cast %110 : vector<1x1x32xf32> to vector<1x32xf32>
    %cst_45 = arith.constant dense<0.000000e+00> : vector<8xf32>
    %112 = vector.multi_reduction <add>, %107, %cst_45 [1] : vector<8x32xf32> to vector<8xf32>
    %113 = vector.shape_cast %112 : vector<8xf32> to vector<8x1xf32>
    %cst_46 = arith.constant 3.200000e+01 : f32
    %114 = vector.broadcast %cst_46 : f32 to vector<8x1xf32>
    %115 = arith.divf %113, %114 : vector<8x1xf32>
    %116 = vector.broadcast %115 : vector<8x1xf32> to vector<8x32xf32>
    %117 = arith.subf %107, %116 : vector<8x32xf32>
    %118 = arith.mulf %117, %117 : vector<8x32xf32>
    %cst_47 = arith.constant dense<0.000000e+00> : vector<8xf32>
    %119 = vector.multi_reduction <add>, %118, %cst_47 [1] : vector<8x32xf32> to vector<8xf32>
    %120 = vector.shape_cast %119 : vector<8xf32> to vector<8x1xf32>
    %cst_48 = arith.constant 3.200000e+01 : f32
    %121 = vector.broadcast %cst_48 : f32 to vector<8x1xf32>
    %122 = arith.divf %120, %121 : vector<8x1xf32>
    %cst_49 = arith.constant 9.99999997E-7 : f32
    %123 = vector.broadcast %cst_49 : f32 to vector<8x1xf32>
    %124 = arith.addf %122, %123 : vector<8x1xf32>
    %125 = math.rsqrt %124 : vector<8x1xf32>
    %126 = vector.broadcast %125 : vector<8x1xf32> to vector<8x32xf32>
    %127 = arith.mulf %117, %126 : vector<8x32xf32>
    %128 = vector.broadcast %109 : vector<1x32xf32> to vector<8x32xf32>
    %129 = arith.mulf %127, %128 : vector<8x32xf32>
    %130 = vector.broadcast %111 : vector<1x32xf32> to vector<8x32xf32>
    %131 = arith.addf %129, %130 : vector<8x32xf32>
    %132 = arith.truncf %131 : vector<8x32xf32> to vector<8x32xbf16>
    %c0_50 = arith.constant 0 : index
    %c0_51 = arith.constant 0 : index
    %c0_52 = arith.constant 0 : index
    %133 = vector.load %arg12[%c0_50, %c0_51, %c0_52] : memref<1x32x64xbf16, #tpu.memory_space<vmem>>, vector<1x32x64xbf16>
    %134 = vector.shape_cast %133 : vector<1x32x64xbf16> to vector<32x64xbf16>
    %c0_53 = arith.constant 0 : index
    %c0_54 = arith.constant 0 : index
    %c0_55 = arith.constant 0 : index
    %135 = vector.load %arg13[%c0_53, %c0_54, %c0_55] : memref<1x1x64xf32, #tpu.memory_space<vmem>>, vector<1x1x64xf32>
    %136 = vector.shape_cast %135 : vector<1x1x64xf32> to vector<1x64xf32>
    %c0_56 = arith.constant 0 : index
    %c0_57 = arith.constant 0 : index
    %c0_58 = arith.constant 0 : index
    %137 = vector.load %arg14[%c0_56, %c0_57, %c0_58] : memref<1x64x32xbf16, #tpu.memory_space<vmem>>, vector<1x64x32xbf16>
    %138 = vector.shape_cast %137 : vector<1x64x32xbf16> to vector<64x32xbf16>
    %c0_59 = arith.constant 0 : index
    %c0_60 = arith.constant 0 : index
    %c0_61 = arith.constant 0 : index
    %139 = vector.load %arg15[%c0_59, %c0_60, %c0_61] : memref<1x1x32xf32, #tpu.memory_space<vmem>>, vector<1x1x32xf32>
    %140 = vector.shape_cast %139 : vector<1x1x32xf32> to vector<1x32xf32>
    %cst_62 = arith.constant dense<0.000000e+00> : vector<8x64xf32>
    %141 = tpu.matmul %132, %134, %cst_62 {dimension_numbers = #tpu.dot_dimension_numbers<[1], [0], [0], [1], [0, 0, 1, 1], [], []>} : vector<8x32xbf16>, vector<32x64xbf16>, vector<8x64xf32> -> vector<8x64xf32>
    %142 = vector.broadcast %136 : vector<1x64xf32> to vector<8x64xf32>
    %143 = arith.addf %141, %142 : vector<8x64xf32>
    %cst_63 = arith.constant 0.000000e+00 : f32
    %144 = vector.broadcast %cst_63 : f32 to vector<8x64xf32>
    %145 = arith.maximumf %143, %144 : vector<8x64xf32>
    %146 = arith.truncf %145 : vector<8x64xf32> to vector<8x64xbf16>
    %cst_64 = arith.constant dense<0.000000e+00> : vector<8x32xf32>
    %147 = tpu.matmul %146, %138, %cst_64 {dimension_numbers = #tpu.dot_dimension_numbers<[1], [0], [0], [1], [0, 0, 1, 1], [], []>} : vector<8x64xbf16>, vector<64x32xbf16>, vector<8x32xf32> -> vector<8x32xf32>
    %148 = vector.broadcast %140 : vector<1x32xf32> to vector<8x32xf32>
    %149 = arith.addf %147, %148 : vector<8x32xf32>
    %150 = arith.addf %107, %149 : vector<8x32xf32>
    %c0_65 = arith.constant 0 : index
    %c0_66 = arith.constant 0 : index
    %151 = vector.load %arg20[%c0_65, %c0_66] : memref<8x32xf32, #tpu.memory_space<vmem>>, vector<8x32xf32>
    tpu.vector_store %arg20[%c0_65, %c0_66], %150 {strides = array<i32>} : memref<8x32xf32, #tpu.memory_space<vmem>>, vector<8x32xf32>,
    %c1_i32 = arith.constant 1 : i32
    %152 = arith.cmpi eq, %arg1, %c1_i32 : i32
    %153 = arith.extui %152 : i1 to i32
    %c0_i32_67 = arith.constant 0 : i32
    %154 = arith.cmpi ne, %153, %c0_i32_67 : i32
    scf.if %154 {
      %c0_68 = arith.constant 0 : index
      %c0_69 = arith.constant 0 : index
      %155 = vector.load %arg16[%c0_68, %c0_69] : memref<1x32xf32, #tpu.memory_space<vmem>>, vector<1x32xf32>
      %c0_70 = arith.constant 0 : index
      %c0_71 = arith.constant 0 : index
      %156 = vector.load %arg17[%c0_70, %c0_71] : memref<1x32xf32, #tpu.memory_space<vmem>>, vector<1x32xf32>
      %cst_72 = arith.constant dense<0.000000e+00> : vector<8xf32>
      %157 = vector.multi_reduction <add>, %150, %cst_72 [1] : vector<8x32xf32> to vector<8xf32>
      %158 = vector.shape_cast %157 : vector<8xf32> to vector<8x1xf32>
      %cst_73 = arith.constant 3.200000e+01 : f32
      %159 = vector.broadcast %cst_73 : f32 to vector<8x1xf32>
      %160 = arith.divf %158, %159 : vector<8x1xf32>
      %161 = vector.broadcast %160 : vector<8x1xf32> to vector<8x32xf32>
      %162 = arith.subf %150, %161 : vector<8x32xf32>
      %163 = arith.mulf %162, %162 : vector<8x32xf32>
      %cst_74 = arith.constant dense<0.000000e+00> : vector<8xf32>
      %164 = vector.multi_reduction <add>, %163, %cst_74 [1] : vector<8x32xf32> to vector<8xf32>
      %165 = vector.shape_cast %164 : vector<8xf32> to vector<8x1xf32>
      %cst_75 = arith.constant 3.200000e+01 : f32
      %166 = vector.broadcast %cst_75 : f32 to vector<8x1xf32>
      %167 = arith.divf %165, %166 : vector<8x1xf32>
      %cst_76 = arith.constant 9.99999997E-7 : f32
      %168 = vector.broadcast %cst_76 : f32 to vector<8x1xf32>
      %169 = arith.addf %167, %168 : vector<8x1xf32>
      %170 = math.rsqrt %169 : vector<8x1xf32>
      %171 = vector.broadcast %170 : vector<8x1xf32> to vector<8x32xf32>
      %172 = arith.mulf %162, %171 : vector<8x32xf32>
      %173 = vector.broadcast %155 : vector<1x32xf32> to vector<8x32xf32>
      %174 = arith.mulf %172, %173 : vector<8x32xf32>
      %175 = vector.broadcast %156 : vector<1x32xf32> to vector<8x32xf32>
      %176 = arith.addf %174, %175 : vector<8x32xf32>
      %c0_77 = arith.constant 0 : index
      %c0_78 = arith.constant 0 : index
      %c0_79 = arith.constant 0 : index
      %177 = vector.load %arg18[%c0_77, %c0_78, %c0_79] : memref<1x8x32xf32, #tpu.memory_space<vmem>>, vector<1x8x32xf32>
      %178 = vector.shape_cast %177 : vector<1x8x32xf32> to vector<8x32xf32>
      %179 = vector.shape_cast %176 : vector<8x32xf32> to vector<1x8x32xf32>
      tpu.vector_store %arg18[%c0_77, %c0_78, %c0_79], %179 {strides = array<i32>} : memref<1x8x32xf32, #tpu.memory_space<vmem>>, vector<1x8x32xf32>,
    } else {
    }
    return
  }
  func.func @transform_0(%arg0: i32, %arg1: i32) -> (i32, i32, i32) {
    %c0_i32 = arith.constant 0 : i32
    %c0_i32_0 = arith.constant 0 : i32
    %c0_i32_1 = arith.constant 0 : i32
    return %arg0, %c0_i32, %c0_i32_0 : i32, i32, i32
  }
  func.func @transform_1(%arg0: i32, %arg1: i32) -> (i32, i32, i32) {
    %c0_i32 = arith.constant 0 : i32
    %c0_i32_0 = arith.constant 0 : i32
    %c0_i32_1 = arith.constant 0 : i32
    return %arg0, %c0_i32, %c0_i32_0 : i32, i32, i32
  }
  func.func @transform_2(%arg0: i32, %arg1: i32) -> (i32, i32, i32) {
    %c0_i32 = arith.constant 0 : i32
    %c0_i32_0 = arith.constant 0 : i32
    %c0_i32_1 = arith.constant 0 : i32
    return %arg1, %c0_i32, %c0_i32_0 : i32, i32, i32
  }
  func.func @transform_3(%arg0: i32, %arg1: i32) -> (i32, i32, i32) {
    %c0_i32 = arith.constant 0 : i32
    %c0_i32_0 = arith.constant 0 : i32
    %c0_i32_1 = arith.constant 0 : i32
    return %arg1, %c0_i32, %c0_i32_0 : i32, i32, i32
  }
  func.func @transform_4(%arg0: i32, %arg1: i32) -> (i32, i32, i32) {
    %c0_i32 = arith.constant 0 : i32
    %c0_i32_0 = arith.constant 0 : i32
    %c0_i32_1 = arith.constant 0 : i32
    return %arg1, %c0_i32, %c0_i32_0 : i32, i32, i32
  }
  func.func @transform_5(%arg0: i32, %arg1: i32) -> (i32, i32, i32) {
    %c0_i32 = arith.constant 0 : i32
    %c0_i32_0 = arith.constant 0 : i32
    %c0_i32_1 = arith.constant 0 : i32
    return %arg1, %c0_i32, %c0_i32_0 : i32, i32, i32
  }
  func.func @transform_6(%arg0: i32, %arg1: i32) -> (i32, i32, i32) {
    %c0_i32 = arith.constant 0 : i32
    %c0_i32_0 = arith.constant 0 : i32
    %c0_i32_1 = arith.constant 0 : i32
    return %arg1, %c0_i32, %c0_i32_0 : i32, i32, i32
  }
  func.func @transform_7(%arg0: i32, %arg1: i32) -> (i32, i32, i32) {
    %c0_i32 = arith.constant 0 : i32
    %c0_i32_0 = arith.constant 0 : i32
    %c0_i32_1 = arith.constant 0 : i32
    return %arg1, %c0_i32, %c0_i32_0 : i32, i32, i32
  }
  func.func @transform_8(%arg0: i32, %arg1: i32) -> (i32, i32, i32) {
    %c0_i32 = arith.constant 0 : i32
    %c0_i32_0 = arith.constant 0 : i32
    %c0_i32_1 = arith.constant 0 : i32
    return %arg1, %c0_i32, %c0_i32_0 : i32, i32, i32
  }
  func.func @transform_9(%arg0: i32, %arg1: i32) -> (i32, i32, i32) {
    %c0_i32 = arith.constant 0 : i32
    %c0_i32_0 = arith.constant 0 : i32
    %c0_i32_1 = arith.constant 0 : i32
    return %arg1, %c0_i32, %c0_i32_0 : i32, i32, i32
  }
  func.func @transform_10(%arg0: i32, %arg1: i32) -> (i32, i32, i32) {
    %c0_i32 = arith.constant 0 : i32
    %c0_i32_0 = arith.constant 0 : i32
    %c0_i32_1 = arith.constant 0 : i32
    return %arg1, %c0_i32, %c0_i32_0 : i32, i32, i32
  }
  func.func @transform_11(%arg0: i32, %arg1: i32) -> (i32, i32, i32) {
    %c0_i32 = arith.constant 0 : i32
    %c0_i32_0 = arith.constant 0 : i32
    %c0_i32_1 = arith.constant 0 : i32
    return %arg1, %c0_i32, %c0_i32_0 : i32, i32, i32
  }
  func.func @transform_12(%arg0: i32, %arg1: i32) -> (i32, i32, i32) {
    %c0_i32 = arith.constant 0 : i32
    %c0_i32_0 = arith.constant 0 : i32
    %c0_i32_1 = arith.constant 0 : i32
    return %arg1, %c0_i32, %c0_i32_0 : i32, i32, i32
  }
  func.func @transform_13(%arg0: i32, %arg1: i32) -> (i32, i32, i32) {
    %c0_i32 = arith.constant 0 : i32
    %c0_i32_0 = arith.constant 0 : i32
    %c0_i32_1 = arith.constant 0 : i32
    return %arg1, %c0_i32, %c0_i32_0 : i32, i32, i32
  }
  func.func @transform_14(%arg0: i32, %arg1: i32) -> (i32, i32) {
    %c0_i32 = arith.constant 0 : i32
    %c0_i32_0 = arith.constant 0 : i32
    %c0_i32_1 = arith.constant 0 : i32
    return %c0_i32, %c0_i32_0 : i32, i32
  }
  func.func @transform_15(%arg0: i32, %arg1: i32) -> (i32, i32) {
    %c0_i32 = arith.constant 0 : i32
    %c0_i32_0 = arith.constant 0 : i32
    %c0_i32_1 = arith.constant 0 : i32
    return %c0_i32, %c0_i32_0 : i32, i32
  }
  func.func @transform_16(%arg0: i32, %arg1: i32) -> (i32, i32, i32) {
    %c0_i32 = arith.constant 0 : i32
    %c0_i32_0 = arith.constant 0 : i32
    %c0_i32_1 = arith.constant 0 : i32
    return %arg0, %c0_i32, %c0_i32_0 : i32, i32, i32
  }
  func.func @transform_17(%arg0: i32, %arg1: i32) -> (i32, i32, i32, i32, i32) {
    %c0_i32 = arith.constant 0 : i32
    %c0_i32_0 = arith.constant 0 : i32
    %c0_i32_1 = arith.constant 0 : i32
    %c0_i32_2 = arith.constant 0 : i32
    return %arg1, %arg0, %c0_i32, %c0_i32_0, %c0_i32_1 : i32, i32, i32, i32, i32
  }
}

module attributes {stable_mosaic.version = 11 : i64} {
  func.func @_decoder_stack_kernel(%arg0: i32, %arg1: i32, %arg2: memref<1x8x32xf32, #tpu.memory_space<vmem>>, %arg3: memref<1x8x32xbf16, #tpu.memory_space<vmem>>, %arg4: memref<1x8x8xf32, #tpu.memory_space<vmem>>, %arg5: memref<1x1x8xf32, #tpu.memory_space<vmem>>, %arg6: memref<1x1x32xf32, #tpu.memory_space<vmem>>, %arg7: memref<1x1x32xf32, #tpu.memory_space<vmem>>, %arg8: memref<1x32x96xbf16, #tpu.memory_space<vmem>>, %arg9: memref<1x1x96xf32, #tpu.memory_space<vmem>>, %arg10: memref<1x32x32xbf16, #tpu.memory_space<vmem>>, %arg11: memref<1x1x32xf32, #tpu.memory_space<vmem>>, %arg12: memref<1x1x32xf32, #tpu.memory_space<vmem>>, %arg13: memref<1x1x32xf32, #tpu.memory_space<vmem>>, %arg14: memref<1x32x32xbf16, #tpu.memory_space<vmem>>, %arg15: memref<1x1x32xf32, #tpu.memory_space<vmem>>, %arg16: memref<1x32x64xbf16, #tpu.memory_space<vmem>>, %arg17: memref<1x1x64xf32, #tpu.memory_space<vmem>>, %arg18: memref<1x32x32xbf16, #tpu.memory_space<vmem>>, %arg19: memref<1x1x32xf32, #tpu.memory_space<vmem>>, %arg20: memref<1x1x32xf32, #tpu.memory_space<vmem>>, %arg21: memref<1x1x32xf32, #tpu.memory_space<vmem>>, %arg22: memref<1x32x64xbf16, #tpu.memory_space<vmem>>, %arg23: memref<1x1x64xf32, #tpu.memory_space<vmem>>, %arg24: memref<1x64x32xbf16, #tpu.memory_space<vmem>>, %arg25: memref<1x1x32xf32, #tpu.memory_space<vmem>>, %arg26: memref<1x8x32xf32, #tpu.memory_space<vmem>>, %arg27: memref<1x1x4x8x8xf32, #tpu.memory_space<vmem>>, %arg28: memref<1x1x4x8x8xf32, #tpu.memory_space<vmem>>, %arg29: memref<8x32xf32, #tpu.memory_space<vmem>>) attributes {dimension_semantics = [#tpu.dimension_semantics<parallel>, #tpu.dimension_semantics<arbitrary>], iteration_bounds = array<i64: 2, 2>, scalar_prefetch = 0 : i64, scratch_operands = 1 : i64, tpu.core_type = #tpu.core_type<tc>, window_params = [{transform_indices = @transform_0, window_bounds = array<i64: 1, 8, 32>}, {transform_indices = @transform_1, window_bounds = array<i64: 1, 8, 32>}, {pipeline_mode = #tpu.pipeline_mode<synchronous>, transform_indices = @transform_2, window_bounds = array<i64: 1, 8, 8>}, {transform_indices = @transform_3, window_bounds = array<i64: 1, 1, 8>}, {transform_indices = @transform_4, window_bounds = array<i64: 1, 1, 32>}, {transform_indices = @transform_5, window_bounds = array<i64: 1, 1, 32>}, {transform_indices = @transform_6, window_bounds = array<i64: 1, 32, 96>}, {transform_indices = @transform_7, window_bounds = array<i64: 1, 1, 96>}, {transform_indices = @transform_8, window_bounds = array<i64: 1, 32, 32>}, {transform_indices = @transform_9, window_bounds = array<i64: 1, 1, 32>}, {transform_indices = @transform_10, window_bounds = array<i64: 1, 1, 32>}, {transform_indices = @transform_11, window_bounds = array<i64: 1, 1, 32>}, {transform_indices = @transform_12, window_bounds = array<i64: 1, 32, 32>}, {transform_indices = @transform_13, window_bounds = array<i64: 1, 1, 32>}, {transform_indices = @transform_14, window_bounds = array<i64: 1, 32, 64>}, {transform_indices = @transform_15, window_bounds = array<i64: 1, 1, 64>}, {transform_indices = @transform_16, window_bounds = array<i64: 1, 32, 32>}, {transform_indices = @transform_17, window_bounds = array<i64: 1, 1, 32>}, {transform_indices = @transform_18, window_bounds = array<i64: 1, 1, 32>}, {transform_indices = @transform_19, window_bounds = array<i64: 1, 1, 32>}, {transform_indices = @transform_20, window_bounds = array<i64: 1, 32, 64>}, {transform_indices = @transform_21, window_bounds = array<i64: 1, 1, 64>}, {transform_indices = @transform_22, window_bounds = array<i64: 1, 64, 32>}, {transform_indices = @transform_23, window_bounds = array<i64: 1, 1, 32>}, {transform_indices = @transform_24, window_bounds = array<i64: 1, 8, 32>}, {transform_indices = @transform_25, window_bounds = array<i64: 1, 1, 4, 8, 8>}, {transform_indices = @transform_26, window_bounds = array<i64: 1, 1, 4, 8, 8>}]} {
    %c0_i32 = arith.constant 0 : i32
    %0 = arith.cmpi eq, %arg1, %c0_i32 : i32
    %1 = arith.extui %0 : i1 to i32
    %c0_i32_0 = arith.constant 0 : i32
    %2 = arith.cmpi ne, %1, %c0_i32_0 : i32
    scf.if %2 {
      %c0_116 = arith.constant 0 : index
      %c0_117 = arith.constant 0 : index
      %c0_118 = arith.constant 0 : index
      %266 = vector.load %arg2[%c0_116, %c0_117, %c0_118] : memref<1x8x32xf32, #tpu.memory_space<vmem>>, vector<1x8x32xf32>
      %267 = vector.shape_cast %266 : vector<1x8x32xf32> to vector<8x32xf32>
      %c0_119 = arith.constant 0 : index
      %c0_120 = arith.constant 0 : index
      %268 = vector.load %arg29[%c0_119, %c0_120] : memref<8x32xf32, #tpu.memory_space<vmem>>, vector<8x32xf32>
      tpu.vector_store %arg29[%c0_119, %c0_120], %267 {strides = array<i32>} : memref<8x32xf32, #tpu.memory_space<vmem>>, vector<8x32xf32>,
    } else {
    }
    %c0 = arith.constant 0 : index
    %c0_1 = arith.constant 0 : index
    %3 = vector.load %arg29[%c0, %c0_1] : memref<8x32xf32, #tpu.memory_space<vmem>>, vector<8x32xf32>
    %c0_2 = arith.constant 0 : index
    %c0_3 = arith.constant 0 : index
    %c0_4 = arith.constant 0 : index
    %4 = vector.load %arg3[%c0_2, %c0_3, %c0_4] : memref<1x8x32xbf16, #tpu.memory_space<vmem>>, vector<1x8x32xbf16>
    %5 = vector.shape_cast %4 : vector<1x8x32xbf16> to vector<8x32xbf16>
    %c0_5 = arith.constant 0 : index
    %c0_6 = arith.constant 0 : index
    %c0_7 = arith.constant 0 : index
    %6 = vector.load %arg4[%c0_5, %c0_6, %c0_7] : memref<1x8x8xf32, #tpu.memory_space<vmem>>, vector<1x8x8xf32>
    %c0_8 = arith.constant 0 : index
    %c0_9 = arith.constant 0 : index
    %c0_10 = arith.constant 0 : index
    %7 = vector.load %arg5[%c0_8, %c0_9, %c0_10] : memref<1x1x8xf32, #tpu.memory_space<vmem>>, vector<1x1x8xf32>
    %8 = vector.shape_cast %7 : vector<1x1x8xf32> to vector<1x8xf32>
    %9 = vector.shape_cast %8 : vector<1x8xf32> to vector<1x1x8xf32>
    %c0_11 = arith.constant 0 : index
    %c0_12 = arith.constant 0 : index
    %c0_13 = arith.constant 0 : index
    %10 = vector.load %arg6[%c0_11, %c0_12, %c0_13] : memref<1x1x32xf32, #tpu.memory_space<vmem>>, vector<1x1x32xf32>
    %11 = vector.shape_cast %10 : vector<1x1x32xf32> to vector<1x32xf32>
    %c0_14 = arith.constant 0 : index
    %c0_15 = arith.constant 0 : index
    %c0_16 = arith.constant 0 : index
    %12 = vector.load %arg7[%c0_14, %c0_15, %c0_16] : memref<1x1x32xf32, #tpu.memory_space<vmem>>, vector<1x1x32xf32>
    %13 = vector.shape_cast %12 : vector<1x1x32xf32> to vector<1x32xf32>
    %cst = arith.constant dense<0.000000e+00> : vector<8xf32>
    %14 = vector.multi_reduction <add>, %3, %cst [1] : vector<8x32xf32> to vector<8xf32>
    %15 = vector.shape_cast %14 : vector<8xf32> to vector<8x1xf32>
    %cst_17 = arith.constant 3.200000e+01 : f32
    %16 = vector.broadcast %cst_17 : f32 to vector<8x1xf32>
    %17 = arith.divf %15, %16 : vector<8x1xf32>
    %18 = vector.broadcast %17 : vector<8x1xf32> to vector<8x32xf32>
    %19 = arith.subf %3, %18 : vector<8x32xf32>
    %20 = arith.mulf %19, %19 : vector<8x32xf32>
    %cst_18 = arith.constant dense<0.000000e+00> : vector<8xf32>
    %21 = vector.multi_reduction <add>, %20, %cst_18 [1] : vector<8x32xf32> to vector<8xf32>
    %22 = vector.shape_cast %21 : vector<8xf32> to vector<8x1xf32>
    %cst_19 = arith.constant 3.200000e+01 : f32
    %23 = vector.broadcast %cst_19 : f32 to vector<8x1xf32>
    %24 = arith.divf %22, %23 : vector<8x1xf32>
    %cst_20 = arith.constant 9.99999997E-7 : f32
    %25 = vector.broadcast %cst_20 : f32 to vector<8x1xf32>
    %26 = arith.addf %24, %25 : vector<8x1xf32>
    %27 = math.rsqrt %26 : vector<8x1xf32>
    %28 = vector.broadcast %27 : vector<8x1xf32> to vector<8x32xf32>
    %29 = arith.mulf %19, %28 : vector<8x32xf32>
    %30 = vector.broadcast %11 : vector<1x32xf32> to vector<8x32xf32>
    %31 = arith.mulf %29, %30 : vector<8x32xf32>
    %32 = vector.broadcast %13 : vector<1x32xf32> to vector<8x32xf32>
    %33 = arith.addf %31, %32 : vector<8x32xf32>
    %34 = arith.truncf %33 : vector<8x32xf32> to vector<8x32xbf16>
    %c0_21 = arith.constant 0 : index
    %c0_22 = arith.constant 0 : index
    %c0_23 = arith.constant 0 : index
    %35 = vector.load %arg8[%c0_21, %c0_22, %c0_23] : memref<1x32x96xbf16, #tpu.memory_space<vmem>>, vector<1x32x96xbf16>
    %36 = vector.shape_cast %35 : vector<1x32x96xbf16> to vector<32x96xbf16>
    %c0_24 = arith.constant 0 : index
    %c0_25 = arith.constant 0 : index
    %c0_26 = arith.constant 0 : index
    %37 = vector.load %arg9[%c0_24, %c0_25, %c0_26] : memref<1x1x96xf32, #tpu.memory_space<vmem>>, vector<1x1x96xf32>
    %38 = vector.shape_cast %37 : vector<1x1x96xf32> to vector<1x96xf32>
    %c0_27 = arith.constant 0 : index
    %c0_28 = arith.constant 0 : index
    %c0_29 = arith.constant 0 : index
    %39 = vector.load %arg10[%c0_27, %c0_28, %c0_29] : memref<1x32x32xbf16, #tpu.memory_space<vmem>>, vector<1x32x32xbf16>
    %40 = vector.shape_cast %39 : vector<1x32x32xbf16> to vector<32x32xbf16>
    %c0_30 = arith.constant 0 : index
    %c0_31 = arith.constant 0 : index
    %c0_32 = arith.constant 0 : index
    %41 = vector.load %arg11[%c0_30, %c0_31, %c0_32] : memref<1x1x32xf32, #tpu.memory_space<vmem>>, vector<1x1x32xf32>
    %42 = vector.shape_cast %41 : vector<1x1x32xf32> to vector<1x32xf32>
    %cst_33 = arith.constant dense<0.000000e+00> : vector<8x96xf32>
    %43 = tpu.matmul %34, %36, %cst_33 {dimension_numbers = #tpu.dot_dimension_numbers<[1], [0], [0], [1], [0, 0, 1, 1], [], []>} : vector<8x32xbf16>, vector<32x96xbf16>, vector<8x96xf32> -> vector<8x96xf32>
    %44 = vector.broadcast %38 : vector<1x96xf32> to vector<8x96xf32>
    %45 = arith.addf %43, %44 : vector<8x96xf32>
    %46 = arith.truncf %45 : vector<8x96xf32> to vector<8x96xbf16>
    %47 = vector.extract_strided_slice %46 {offsets = [0, 0], sizes = [8, 32], strides = [1, 1]} : vector<8x96xbf16> to vector<8x32xbf16>
    %48 = vector.extract_strided_slice %47 {offsets = [0, 0], sizes = [8, 8], strides = [1, 1]} : vector<8x32xbf16> to vector<8x8xbf16>
    %49 = vector.extract_strided_slice %47 {offsets = [0, 8], sizes = [8, 8], strides = [1, 1]} : vector<8x32xbf16> to vector<8x8xbf16>
    %50 = vector.extract_strided_slice %47 {offsets = [0, 16], sizes = [8, 8], strides = [1, 1]} : vector<8x32xbf16> to vector<8x8xbf16>
    %51 = vector.extract_strided_slice %47 {offsets = [0, 24], sizes = [8, 8], strides = [1, 1]} : vector<8x32xbf16> to vector<8x8xbf16>
    %52 = vector.shape_cast %48 : vector<8x8xbf16> to vector<1x8x8xbf16>
    %53 = vector.shape_cast %49 : vector<8x8xbf16> to vector<1x8x8xbf16>
    %54 = vector.shape_cast %50 : vector<8x8xbf16> to vector<1x8x8xbf16>
    %55 = vector.shape_cast %51 : vector<8x8xbf16> to vector<1x8x8xbf16>
    %56 = tpu.concatenate %52, %53, %54, %55 in 0 : vector<1x8x8xbf16>, vector<1x8x8xbf16>, vector<1x8x8xbf16>, vector<1x8x8xbf16> -> vector<4x8x8xbf16>
    %57 = vector.extract_strided_slice %46 {offsets = [0, 32], sizes = [8, 32], strides = [1, 1]} : vector<8x96xbf16> to vector<8x32xbf16>
    %58 = vector.extract_strided_slice %57 {offsets = [0, 0], sizes = [8, 8], strides = [1, 1]} : vector<8x32xbf16> to vector<8x8xbf16>
    %59 = vector.extract_strided_slice %57 {offsets = [0, 8], sizes = [8, 8], strides = [1, 1]} : vector<8x32xbf16> to vector<8x8xbf16>
    %60 = vector.extract_strided_slice %57 {offsets = [0, 16], sizes = [8, 8], strides = [1, 1]} : vector<8x32xbf16> to vector<8x8xbf16>
    %61 = vector.extract_strided_slice %57 {offsets = [0, 24], sizes = [8, 8], strides = [1, 1]} : vector<8x32xbf16> to vector<8x8xbf16>
    %62 = vector.shape_cast %58 : vector<8x8xbf16> to vector<1x8x8xbf16>
    %63 = vector.shape_cast %59 : vector<8x8xbf16> to vector<1x8x8xbf16>
    %64 = vector.shape_cast %60 : vector<8x8xbf16> to vector<1x8x8xbf16>
    %65 = vector.shape_cast %61 : vector<8x8xbf16> to vector<1x8x8xbf16>
    %66 = tpu.concatenate %62, %63, %64, %65 in 0 : vector<1x8x8xbf16>, vector<1x8x8xbf16>, vector<1x8x8xbf16>, vector<1x8x8xbf16> -> vector<4x8x8xbf16>
    %67 = vector.extract_strided_slice %46 {offsets = [0, 64], sizes = [8, 32], strides = [1, 1]} : vector<8x96xbf16> to vector<8x32xbf16>
    %68 = vector.extract_strided_slice %67 {offsets = [0, 0], sizes = [8, 8], strides = [1, 1]} : vector<8x32xbf16> to vector<8x8xbf16>
    %69 = vector.extract_strided_slice %67 {offsets = [0, 8], sizes = [8, 8], strides = [1, 1]} : vector<8x32xbf16> to vector<8x8xbf16>
    %70 = vector.extract_strided_slice %67 {offsets = [0, 16], sizes = [8, 8], strides = [1, 1]} : vector<8x32xbf16> to vector<8x8xbf16>
    %71 = vector.extract_strided_slice %67 {offsets = [0, 24], sizes = [8, 8], strides = [1, 1]} : vector<8x32xbf16> to vector<8x8xbf16>
    %72 = vector.shape_cast %68 : vector<8x8xbf16> to vector<1x8x8xbf16>
    %73 = vector.shape_cast %69 : vector<8x8xbf16> to vector<1x8x8xbf16>
    %74 = vector.shape_cast %70 : vector<8x8xbf16> to vector<1x8x8xbf16>
    %75 = vector.shape_cast %71 : vector<8x8xbf16> to vector<1x8x8xbf16>
    %76 = tpu.concatenate %72, %73, %74, %75 in 0 : vector<1x8x8xbf16>, vector<1x8x8xbf16>, vector<1x8x8xbf16>, vector<1x8x8xbf16> -> vector<4x8x8xbf16>
    "tpu.trace_start"() <{level = 10 : i32, message = "hqd,hkd->hqk"}> : () -> ()
    %cst_34 = arith.constant dense<0.000000e+00> : vector<4x8x8xf32>
    %77 = tpu.matmul %56, %66, %cst_34 {dimension_numbers = #tpu.dot_dimension_numbers<[2], [2], [1], [1], [0, 0, 0, 1, 1, 1], [0], [0]>} : vector<4x8x8xbf16>, vector<4x8x8xbf16>, vector<4x8x8xf32> -> vector<4x8x8xf32>
    "tpu.trace_stop"() : () -> ()
    %cst_35 = arith.constant 0.353553385 : f32
    %78 = vector.broadcast %cst_35 : f32 to vector<4x8x8xf32>
    %79 = arith.mulf %77, %78 : vector<4x8x8xf32>
    %80 = vector.broadcast %6 : vector<1x8x8xf32> to vector<4x8x8xf32>
    %81 = arith.addf %79, %80 : vector<4x8x8xf32>
    %cst_36 = arith.constant dense<0xFF800000> : vector<4x8xf32>
    %82 = vector.multi_reduction <maximumf>, %81, %cst_36 [2] : vector<4x8x8xf32> to vector<4x8xf32>
    %83 = vector.shape_cast %82 : vector<4x8xf32> to vector<4x8x1xf32>
    %84 = vector.broadcast %83 : vector<4x8x1xf32> to vector<4x8x8xf32>
    %85 = arith.subf %81, %84 : vector<4x8x8xf32>
    %86 = math.exp %85 : vector<4x8x8xf32>
    %cst_37 = arith.constant dense<0.000000e+00> : vector<4x8xf32>
    %87 = vector.multi_reduction <add>, %86, %cst_37 [2] : vector<4x8x8xf32> to vector<4x8xf32>
    %88 = vector.shape_cast %87 : vector<4x8xf32> to vector<4x8x1xf32>
    %89 = tpu.reciprocal %88 {approx = true} : vector<4x8x1xf32> -> vector<4x8x1xf32>
    %90 = vector.broadcast %89 : vector<4x8x1xf32> to vector<4x8x8xf32>
    %91 = arith.mulf %86, %90 : vector<4x8x8xf32>
    %92 = arith.truncf %91 : vector<4x8x8xf32> to vector<4x8x8xbf16>
    "tpu.trace_start"() <{level = 10 : i32, message = "hqk,hkd->hqd"}> : () -> ()
    %cst_38 = arith.constant dense<0.000000e+00> : vector<4x8x8xf32>
    %93 = tpu.matmul %92, %76, %cst_38 {dimension_numbers = #tpu.dot_dimension_numbers<[2], [1], [1], [2], [0, 0, 0, 1, 1, 2], [0], [0]>} : vector<4x8x8xbf16>, vector<4x8x8xbf16>, vector<4x8x8xf32> -> vector<4x8x8xf32>
    "tpu.trace_stop"() : () -> ()
    %94 = vector.extract_strided_slice %93 {offsets = [0, 0, 0], sizes = [1, 8, 8], strides = [1, 1, 1]} : vector<4x8x8xf32> to vector<1x8x8xf32>
    %95 = vector.shape_cast %94 : vector<1x8x8xf32> to vector<8x8xf32>
    %96 = vector.extract_strided_slice %93 {offsets = [1, 0, 0], sizes = [1, 8, 8], strides = [1, 1, 1]} : vector<4x8x8xf32> to vector<1x8x8xf32>
    %97 = vector.shape_cast %96 : vector<1x8x8xf32> to vector<8x8xf32>
    %98 = vector.extract_strided_slice %93 {offsets = [2, 0, 0], sizes = [1, 8, 8], strides = [1, 1, 1]} : vector<4x8x8xf32> to vector<1x8x8xf32>
    %99 = vector.shape_cast %98 : vector<1x8x8xf32> to vector<8x8xf32>
    %100 = vector.extract_strided_slice %93 {offsets = [3, 0, 0], sizes = [1, 8, 8], strides = [1, 1, 1]} : vector<4x8x8xf32> to vector<1x8x8xf32>
    %101 = vector.shape_cast %100 : vector<1x8x8xf32> to vector<8x8xf32>
    %102 = tpu.concatenate %95, %97, %99, %101 in 1 : vector<8x8xf32>, vector<8x8xf32>, vector<8x8xf32>, vector<8x8xf32> -> vector<8x32xf32>
    %103 = arith.truncf %102 : vector<8x32xf32> to vector<8x32xbf16>
    %cst_39 = arith.constant dense<0.000000e+00> : vector<8x32xf32>
    %104 = tpu.matmul %103, %40, %cst_39 {dimension_numbers = #tpu.dot_dimension_numbers<[1], [0], [0], [1], [0, 0, 1, 1], [], []>} : vector<8x32xbf16>, vector<32x32xbf16>, vector<8x32xf32> -> vector<8x32xf32>
    %105 = vector.broadcast %42 : vector<1x32xf32> to vector<8x32xf32>
    %106 = arith.addf %104, %105 : vector<8x32xf32>
    %c0_40 = arith.constant 0 : index
    %c0_41 = arith.constant 0 : index
    %c0_42 = arith.constant 0 : index
    %c0_43 = arith.constant 0 : index
    %c0_44 = arith.constant 0 : index
    %107 = vector.load %arg27[%c0_40, %c0_41, %c0_42, %c0_43, %c0_44] : memref<1x1x4x8x8xf32, #tpu.memory_space<vmem>>, vector<1x1x4x8x8xf32>
    %108 = vector.shape_cast %107 : vector<1x1x4x8x8xf32> to vector<4x8x8xf32>
    %109 = vector.shape_cast %91 : vector<4x8x8xf32> to vector<1x1x4x8x8xf32>
    tpu.vector_store %arg27[%c0_40, %c0_41, %c0_42, %c0_43, %c0_44], %109 {strides = array<i32>} : memref<1x1x4x8x8xf32, #tpu.memory_space<vmem>>, vector<1x1x4x8x8xf32>,
    %110 = arith.addf %3, %106 : vector<8x32xf32>
    %c0_45 = arith.constant 0 : index
    %c0_46 = arith.constant 0 : index
    %c0_47 = arith.constant 0 : index
    %111 = vector.load %arg12[%c0_45, %c0_46, %c0_47] : memref<1x1x32xf32, #tpu.memory_space<vmem>>, vector<1x1x32xf32>
    %112 = vector.shape_cast %111 : vector<1x1x32xf32> to vector<1x32xf32>
    %c0_48 = arith.constant 0 : index
    %c0_49 = arith.constant 0 : index
    %c0_50 = arith.constant 0 : index
    %113 = vector.load %arg13[%c0_48, %c0_49, %c0_50] : memref<1x1x32xf32, #tpu.memory_space<vmem>>, vector<1x1x32xf32>
    %114 = vector.shape_cast %113 : vector<1x1x32xf32> to vector<1x32xf32>
    %cst_51 = arith.constant dense<0.000000e+00> : vector<8xf32>
    %115 = vector.multi_reduction <add>, %110, %cst_51 [1] : vector<8x32xf32> to vector<8xf32>
    %116 = vector.shape_cast %115 : vector<8xf32> to vector<8x1xf32>
    %cst_52 = arith.constant 3.200000e+01 : f32
    %117 = vector.broadcast %cst_52 : f32 to vector<8x1xf32>
    %118 = arith.divf %116, %117 : vector<8x1xf32>
    %119 = vector.broadcast %118 : vector<8x1xf32> to vector<8x32xf32>
    %120 = arith.subf %110, %119 : vector<8x32xf32>
    %121 = arith.mulf %120, %120 : vector<8x32xf32>
    %cst_53 = arith.constant dense<0.000000e+00> : vector<8xf32>
    %122 = vector.multi_reduction <add>, %121, %cst_53 [1] : vector<8x32xf32> to vector<8xf32>
    %123 = vector.shape_cast %122 : vector<8xf32> to vector<8x1xf32>
    %cst_54 = arith.constant 3.200000e+01 : f32
    %124 = vector.broadcast %cst_54 : f32 to vector<8x1xf32>
    %125 = arith.divf %123, %124 : vector<8x1xf32>
    %cst_55 = arith.constant 9.99999997E-7 : f32
    %126 = vector.broadcast %cst_55 : f32 to vector<8x1xf32>
    %127 = arith.addf %125, %126 : vector<8x1xf32>
    %128 = math.rsqrt %127 : vector<8x1xf32>
    %129 = vector.broadcast %128 : vector<8x1xf32> to vector<8x32xf32>
    %130 = arith.mulf %120, %129 : vector<8x32xf32>
    %131 = vector.broadcast %112 : vector<1x32xf32> to vector<8x32xf32>
    %132 = arith.mulf %130, %131 : vector<8x32xf32>
    %133 = vector.broadcast %114 : vector<1x32xf32> to vector<8x32xf32>
    %134 = arith.addf %132, %133 : vector<8x32xf32>
    %135 = arith.truncf %134 : vector<8x32xf32> to vector<8x32xbf16>
    %c0_56 = arith.constant 0 : index
    %c0_57 = arith.constant 0 : index
    %c0_58 = arith.constant 0 : index
    %136 = vector.load %arg14[%c0_56, %c0_57, %c0_58] : memref<1x32x32xbf16, #tpu.memory_space<vmem>>, vector<1x32x32xbf16>
    %137 = vector.shape_cast %136 : vector<1x32x32xbf16> to vector<32x32xbf16>
    %c0_59 = arith.constant 0 : index
    %c0_60 = arith.constant 0 : index
    %c0_61 = arith.constant 0 : index
    %138 = vector.load %arg15[%c0_59, %c0_60, %c0_61] : memref<1x1x32xf32, #tpu.memory_space<vmem>>, vector<1x1x32xf32>
    %139 = vector.shape_cast %138 : vector<1x1x32xf32> to vector<1x32xf32>
    %c0_62 = arith.constant 0 : index
    %c0_63 = arith.constant 0 : index
    %c0_64 = arith.constant 0 : index
    %140 = vector.load %arg16[%c0_62, %c0_63, %c0_64] : memref<1x32x64xbf16, #tpu.memory_space<vmem>>, vector<1x32x64xbf16>
    %141 = vector.shape_cast %140 : vector<1x32x64xbf16> to vector<32x64xbf16>
    %c0_65 = arith.constant 0 : index
    %c0_66 = arith.constant 0 : index
    %c0_67 = arith.constant 0 : index
    %142 = vector.load %arg17[%c0_65, %c0_66, %c0_67] : memref<1x1x64xf32, #tpu.memory_space<vmem>>, vector<1x1x64xf32>
    %143 = vector.shape_cast %142 : vector<1x1x64xf32> to vector<1x64xf32>
    %c0_68 = arith.constant 0 : index
    %c0_69 = arith.constant 0 : index
    %c0_70 = arith.constant 0 : index
    %144 = vector.load %arg18[%c0_68, %c0_69, %c0_70] : memref<1x32x32xbf16, #tpu.memory_space<vmem>>, vector<1x32x32xbf16>
    %145 = vector.shape_cast %144 : vector<1x32x32xbf16> to vector<32x32xbf16>
    %c0_71 = arith.constant 0 : index
    %c0_72 = arith.constant 0 : index
    %c0_73 = arith.constant 0 : index
    %146 = vector.load %arg19[%c0_71, %c0_72, %c0_73] : memref<1x1x32xf32, #tpu.memory_space<vmem>>, vector<1x1x32xf32>
    %147 = vector.shape_cast %146 : vector<1x1x32xf32> to vector<1x32xf32>
    %cst_74 = arith.constant dense<0.000000e+00> : vector<8x32xf32>
    %148 = tpu.matmul %135, %137, %cst_74 {dimension_numbers = #tpu.dot_dimension_numbers<[1], [0], [0], [1], [0, 0, 1, 1], [], []>} : vector<8x32xbf16>, vector<32x32xbf16>, vector<8x32xf32> -> vector<8x32xf32>
    %149 = vector.broadcast %139 : vector<1x32xf32> to vector<8x32xf32>
    %150 = arith.addf %148, %149 : vector<8x32xf32>
    %cst_75 = arith.constant dense<0.000000e+00> : vector<8x64xf32>
    %151 = tpu.matmul %5, %141, %cst_75 {dimension_numbers = #tpu.dot_dimension_numbers<[1], [0], [0], [1], [0, 0, 1, 1], [], []>} : vector<8x32xbf16>, vector<32x64xbf16>, vector<8x64xf32> -> vector<8x64xf32>
    %152 = vector.broadcast %143 : vector<1x64xf32> to vector<8x64xf32>
    %153 = arith.addf %151, %152 : vector<8x64xf32>
    %154 = arith.truncf %153 : vector<8x64xf32> to vector<8x64xbf16>
    %155 = arith.truncf %150 : vector<8x32xf32> to vector<8x32xbf16>
    %156 = vector.extract_strided_slice %155 {offsets = [0, 0], sizes = [8, 8], strides = [1, 1]} : vector<8x32xbf16> to vector<8x8xbf16>
    %157 = vector.extract_strided_slice %155 {offsets = [0, 8], sizes = [8, 8], strides = [1, 1]} : vector<8x32xbf16> to vector<8x8xbf16>
    %158 = vector.extract_strided_slice %155 {offsets = [0, 16], sizes = [8, 8], strides = [1, 1]} : vector<8x32xbf16> to vector<8x8xbf16>
    %159 = vector.extract_strided_slice %155 {offsets = [0, 24], sizes = [8, 8], strides = [1, 1]} : vector<8x32xbf16> to vector<8x8xbf16>
    %160 = vector.shape_cast %156 : vector<8x8xbf16> to vector<1x8x8xbf16>
    %161 = vector.shape_cast %157 : vector<8x8xbf16> to vector<1x8x8xbf16>
    %162 = vector.shape_cast %158 : vector<8x8xbf16> to vector<1x8x8xbf16>
    %163 = vector.shape_cast %159 : vector<8x8xbf16> to vector<1x8x8xbf16>
    %164 = tpu.concatenate %160, %161, %162, %163 in 0 : vector<1x8x8xbf16>, vector<1x8x8xbf16>, vector<1x8x8xbf16>, vector<1x8x8xbf16> -> vector<4x8x8xbf16>
    %165 = vector.extract_strided_slice %154 {offsets = [0, 0], sizes = [8, 32], strides = [1, 1]} : vector<8x64xbf16> to vector<8x32xbf16>
    %166 = vector.extract_strided_slice %165 {offsets = [0, 0], sizes = [8, 8], strides = [1, 1]} : vector<8x32xbf16> to vector<8x8xbf16>
    %167 = vector.extract_strided_slice %165 {offsets = [0, 8], sizes = [8, 8], strides = [1, 1]} : vector<8x32xbf16> to vector<8x8xbf16>
    %168 = vector.extract_strided_slice %165 {offsets = [0, 16], sizes = [8, 8], strides = [1, 1]} : vector<8x32xbf16> to vector<8x8xbf16>
    %169 = vector.extract_strided_slice %165 {offsets = [0, 24], sizes = [8, 8], strides = [1, 1]} : vector<8x32xbf16> to vector<8x8xbf16>
    %170 = vector.shape_cast %166 : vector<8x8xbf16> to vector<1x8x8xbf16>
    %171 = vector.shape_cast %167 : vector<8x8xbf16> to vector<1x8x8xbf16>
    %172 = vector.shape_cast %168 : vector<8x8xbf16> to vector<1x8x8xbf16>
    %173 = vector.shape_cast %169 : vector<8x8xbf16> to vector<1x8x8xbf16>
    %174 = tpu.concatenate %170, %171, %172, %173 in 0 : vector<1x8x8xbf16>, vector<1x8x8xbf16>, vector<1x8x8xbf16>, vector<1x8x8xbf16> -> vector<4x8x8xbf16>
    %175 = vector.extract_strided_slice %154 {offsets = [0, 32], sizes = [8, 32], strides = [1, 1]} : vector<8x64xbf16> to vector<8x32xbf16>
    %176 = vector.extract_strided_slice %175 {offsets = [0, 0], sizes = [8, 8], strides = [1, 1]} : vector<8x32xbf16> to vector<8x8xbf16>
    %177 = vector.extract_strided_slice %175 {offsets = [0, 8], sizes = [8, 8], strides = [1, 1]} : vector<8x32xbf16> to vector<8x8xbf16>
    %178 = vector.extract_strided_slice %175 {offsets = [0, 16], sizes = [8, 8], strides = [1, 1]} : vector<8x32xbf16> to vector<8x8xbf16>
    %179 = vector.extract_strided_slice %175 {offsets = [0, 24], sizes = [8, 8], strides = [1, 1]} : vector<8x32xbf16> to vector<8x8xbf16>
    %180 = vector.shape_cast %176 : vector<8x8xbf16> to vector<1x8x8xbf16>
    %181 = vector.shape_cast %177 : vector<8x8xbf16> to vector<1x8x8xbf16>
    %182 = vector.shape_cast %178 : vector<8x8xbf16> to vector<1x8x8xbf16>
    %183 = vector.shape_cast %179 : vector<8x8xbf16> to vector<1x8x8xbf16>
    %184 = tpu.concatenate %180, %181, %182, %183 in 0 : vector<1x8x8xbf16>, vector<1x8x8xbf16>, vector<1x8x8xbf16>, vector<1x8x8xbf16> -> vector<4x8x8xbf16>
    "tpu.trace_start"() <{level = 10 : i32, message = "hqd,hkd->hqk"}> : () -> ()
    %cst_76 = arith.constant dense<0.000000e+00> : vector<4x8x8xf32>
    %185 = tpu.matmul %164, %174, %cst_76 {dimension_numbers = #tpu.dot_dimension_numbers<[2], [2], [1], [1], [0, 0, 0, 1, 1, 1], [0], [0]>} : vector<4x8x8xbf16>, vector<4x8x8xbf16>, vector<4x8x8xf32> -> vector<4x8x8xf32>
    "tpu.trace_stop"() : () -> ()
    %cst_77 = arith.constant 0.353553385 : f32
    %186 = vector.broadcast %cst_77 : f32 to vector<4x8x8xf32>
    %187 = arith.mulf %185, %186 : vector<4x8x8xf32>
    %188 = vector.broadcast %9 : vector<1x1x8xf32> to vector<4x8x8xf32>
    %189 = arith.addf %187, %188 : vector<4x8x8xf32>
    %cst_78 = arith.constant dense<0xFF800000> : vector<4x8xf32>
    %190 = vector.multi_reduction <maximumf>, %189, %cst_78 [2] : vector<4x8x8xf32> to vector<4x8xf32>
    %191 = vector.shape_cast %190 : vector<4x8xf32> to vector<4x8x1xf32>
    %192 = vector.broadcast %191 : vector<4x8x1xf32> to vector<4x8x8xf32>
    %193 = arith.subf %189, %192 : vector<4x8x8xf32>
    %194 = math.exp %193 : vector<4x8x8xf32>
    %cst_79 = arith.constant dense<0.000000e+00> : vector<4x8xf32>
    %195 = vector.multi_reduction <add>, %194, %cst_79 [2] : vector<4x8x8xf32> to vector<4x8xf32>
    %196 = vector.shape_cast %195 : vector<4x8xf32> to vector<4x8x1xf32>
    %197 = tpu.reciprocal %196 {approx = true} : vector<4x8x1xf32> -> vector<4x8x1xf32>
    %198 = vector.broadcast %197 : vector<4x8x1xf32> to vector<4x8x8xf32>
    %199 = arith.mulf %194, %198 : vector<4x8x8xf32>
    %200 = arith.truncf %199 : vector<4x8x8xf32> to vector<4x8x8xbf16>
    "tpu.trace_start"() <{level = 10 : i32, message = "hqk,hkd->hqd"}> : () -> ()
    %cst_80 = arith.constant dense<0.000000e+00> : vector<4x8x8xf32>
    %201 = tpu.matmul %200, %184, %cst_80 {dimension_numbers = #tpu.dot_dimension_numbers<[2], [1], [1], [2], [0, 0, 0, 1, 1, 2], [0], [0]>} : vector<4x8x8xbf16>, vector<4x8x8xbf16>, vector<4x8x8xf32> -> vector<4x8x8xf32>
    "tpu.trace_stop"() : () -> ()
    %202 = vector.extract_strided_slice %201 {offsets = [0, 0, 0], sizes = [1, 8, 8], strides = [1, 1, 1]} : vector<4x8x8xf32> to vector<1x8x8xf32>
    %203 = vector.shape_cast %202 : vector<1x8x8xf32> to vector<8x8xf32>
    %204 = vector.extract_strided_slice %201 {offsets = [1, 0, 0], sizes = [1, 8, 8], strides = [1, 1, 1]} : vector<4x8x8xf32> to vector<1x8x8xf32>
    %205 = vector.shape_cast %204 : vector<1x8x8xf32> to vector<8x8xf32>
    %206 = vector.extract_strided_slice %201 {offsets = [2, 0, 0], sizes = [1, 8, 8], strides = [1, 1, 1]} : vector<4x8x8xf32> to vector<1x8x8xf32>
    %207 = vector.shape_cast %206 : vector<1x8x8xf32> to vector<8x8xf32>
    %208 = vector.extract_strided_slice %201 {offsets = [3, 0, 0], sizes = [1, 8, 8], strides = [1, 1, 1]} : vector<4x8x8xf32> to vector<1x8x8xf32>
    %209 = vector.shape_cast %208 : vector<1x8x8xf32> to vector<8x8xf32>
    %210 = tpu.concatenate %203, %205, %207, %209 in 1 : vector<8x8xf32>, vector<8x8xf32>, vector<8x8xf32>, vector<8x8xf32> -> vector<8x32xf32>
    %211 = arith.truncf %210 : vector<8x32xf32> to vector<8x32xbf16>
    %cst_81 = arith.constant dense<0.000000e+00> : vector<8x32xf32>
    %212 = tpu.matmul %211, %145, %cst_81 {dimension_numbers = #tpu.dot_dimension_numbers<[1], [0], [0], [1], [0, 0, 1, 1], [], []>} : vector<8x32xbf16>, vector<32x32xbf16>, vector<8x32xf32> -> vector<8x32xf32>
    %213 = vector.broadcast %147 : vector<1x32xf32> to vector<8x32xf32>
    %214 = arith.addf %212, %213 : vector<8x32xf32>
    %c0_82 = arith.constant 0 : index
    %c0_83 = arith.constant 0 : index
    %c0_84 = arith.constant 0 : index
    %c0_85 = arith.constant 0 : index
    %c0_86 = arith.constant 0 : index
    %215 = vector.load %arg28[%c0_82, %c0_83, %c0_84, %c0_85, %c0_86] : memref<1x1x4x8x8xf32, #tpu.memory_space<vmem>>, vector<1x1x4x8x8xf32>
    %216 = vector.shape_cast %215 : vector<1x1x4x8x8xf32> to vector<4x8x8xf32>
    %217 = vector.shape_cast %199 : vector<4x8x8xf32> to vector<1x1x4x8x8xf32>
    tpu.vector_store %arg28[%c0_82, %c0_83, %c0_84, %c0_85, %c0_86], %217 {strides = array<i32>} : memref<1x1x4x8x8xf32, #tpu.memory_space<vmem>>, vector<1x1x4x8x8xf32>,
    %218 = arith.addf %110, %214 : vector<8x32xf32>
    %c0_87 = arith.constant 0 : index
    %c0_88 = arith.constant 0 : index
    %c0_89 = arith.constant 0 : index
    %219 = vector.load %arg20[%c0_87, %c0_88, %c0_89] : memref<1x1x32xf32, #tpu.memory_space<vmem>>, vector<1x1x32xf32>
    %220 = vector.shape_cast %219 : vector<1x1x32xf32> to vector<1x32xf32>
    %c0_90 = arith.constant 0 : index
    %c0_91 = arith.constant 0 : index
    %c0_92 = arith.constant 0 : index
    %221 = vector.load %arg21[%c0_90, %c0_91, %c0_92] : memref<1x1x32xf32, #tpu.memory_space<vmem>>, vector<1x1x32xf32>
    %222 = vector.shape_cast %221 : vector<1x1x32xf32> to vector<1x32xf32>
    %cst_93 = arith.constant dense<0.000000e+00> : vector<8xf32>
    %223 = vector.multi_reduction <add>, %218, %cst_93 [1] : vector<8x32xf32> to vector<8xf32>
    %224 = vector.shape_cast %223 : vector<8xf32> to vector<8x1xf32>
    %cst_94 = arith.constant 3.200000e+01 : f32
    %225 = vector.broadcast %cst_94 : f32 to vector<8x1xf32>
    %226 = arith.divf %224, %225 : vector<8x1xf32>
    %227 = vector.broadcast %226 : vector<8x1xf32> to vector<8x32xf32>
    %228 = arith.subf %218, %227 : vector<8x32xf32>
    %229 = arith.mulf %228, %228 : vector<8x32xf32>
    %cst_95 = arith.constant dense<0.000000e+00> : vector<8xf32>
    %230 = vector.multi_reduction <add>, %229, %cst_95 [1] : vector<8x32xf32> to vector<8xf32>
    %231 = vector.shape_cast %230 : vector<8xf32> to vector<8x1xf32>
    %cst_96 = arith.constant 3.200000e+01 : f32
    %232 = vector.broadcast %cst_96 : f32 to vector<8x1xf32>
    %233 = arith.divf %231, %232 : vector<8x1xf32>
    %cst_97 = arith.constant 9.99999997E-7 : f32
    %234 = vector.broadcast %cst_97 : f32 to vector<8x1xf32>
    %235 = arith.addf %233, %234 : vector<8x1xf32>
    %236 = math.rsqrt %235 : vector<8x1xf32>
    %237 = vector.broadcast %236 : vector<8x1xf32> to vector<8x32xf32>
    %238 = arith.mulf %228, %237 : vector<8x32xf32>
    %239 = vector.broadcast %220 : vector<1x32xf32> to vector<8x32xf32>
    %240 = arith.mulf %238, %239 : vector<8x32xf32>
    %241 = vector.broadcast %222 : vector<1x32xf32> to vector<8x32xf32>
    %242 = arith.addf %240, %241 : vector<8x32xf32>
    %243 = arith.truncf %242 : vector<8x32xf32> to vector<8x32xbf16>
    %c0_98 = arith.constant 0 : index
    %c0_99 = arith.constant 0 : index
    %c0_100 = arith.constant 0 : index
    %244 = vector.load %arg22[%c0_98, %c0_99, %c0_100] : memref<1x32x64xbf16, #tpu.memory_space<vmem>>, vector<1x32x64xbf16>
    %245 = vector.shape_cast %244 : vector<1x32x64xbf16> to vector<32x64xbf16>
    %c0_101 = arith.constant 0 : index
    %c0_102 = arith.constant 0 : index
    %c0_103 = arith.constant 0 : index
    %246 = vector.load %arg23[%c0_101, %c0_102, %c0_103] : memref<1x1x64xf32, #tpu.memory_space<vmem>>, vector<1x1x64xf32>
    %247 = vector.shape_cast %246 : vector<1x1x64xf32> to vector<1x64xf32>
    %c0_104 = arith.constant 0 : index
    %c0_105 = arith.constant 0 : index
    %c0_106 = arith.constant 0 : index
    %248 = vector.load %arg24[%c0_104, %c0_105, %c0_106] : memref<1x64x32xbf16, #tpu.memory_space<vmem>>, vector<1x64x32xbf16>
    %249 = vector.shape_cast %248 : vector<1x64x32xbf16> to vector<64x32xbf16>
    %c0_107 = arith.constant 0 : index
    %c0_108 = arith.constant 0 : index
    %c0_109 = arith.constant 0 : index
    %250 = vector.load %arg25[%c0_107, %c0_108, %c0_109] : memref<1x1x32xf32, #tpu.memory_space<vmem>>, vector<1x1x32xf32>
    %251 = vector.shape_cast %250 : vector<1x1x32xf32> to vector<1x32xf32>
    %cst_110 = arith.constant dense<0.000000e+00> : vector<8x64xf32>
    %252 = tpu.matmul %243, %245, %cst_110 {dimension_numbers = #tpu.dot_dimension_numbers<[1], [0], [0], [1], [0, 0, 1, 1], [], []>} : vector<8x32xbf16>, vector<32x64xbf16>, vector<8x64xf32> -> vector<8x64xf32>
    %253 = vector.broadcast %247 : vector<1x64xf32> to vector<8x64xf32>
    %254 = arith.addf %252, %253 : vector<8x64xf32>
    %cst_111 = arith.constant 0.000000e+00 : f32
    %255 = vector.broadcast %cst_111 : f32 to vector<8x64xf32>
    %256 = arith.maximumf %254, %255 : vector<8x64xf32>
    %257 = arith.truncf %256 : vector<8x64xf32> to vector<8x64xbf16>
    %cst_112 = arith.constant dense<0.000000e+00> : vector<8x32xf32>
    %258 = tpu.matmul %257, %249, %cst_112 {dimension_numbers = #tpu.dot_dimension_numbers<[1], [0], [0], [1], [0, 0, 1, 1], [], []>} : vector<8x64xbf16>, vector<64x32xbf16>, vector<8x32xf32> -> vector<8x32xf32>
    %259 = vector.broadcast %251 : vector<1x32xf32> to vector<8x32xf32>
    %260 = arith.addf %258, %259 : vector<8x32xf32>
    %261 = arith.addf %218, %260 : vector<8x32xf32>
    %c0_113 = arith.constant 0 : index
    %c0_114 = arith.constant 0 : index
    %262 = vector.load %arg29[%c0_113, %c0_114] : memref<8x32xf32, #tpu.memory_space<vmem>>, vector<8x32xf32>
    tpu.vector_store %arg29[%c0_113, %c0_114], %261 {strides = array<i32>} : memref<8x32xf32, #tpu.memory_space<vmem>>, vector<8x32xf32>,
    %c1_i32 = arith.constant 1 : i32
    %263 = arith.cmpi eq, %arg1, %c1_i32 : i32
    %264 = arith.extui %263 : i1 to i32
    %c0_i32_115 = arith.constant 0 : i32
    %265 = arith.cmpi ne, %264, %c0_i32_115 : i32
    scf.if %265 {
      %c0_116 = arith.constant 0 : index
      %c0_117 = arith.constant 0 : index
      %c0_118 = arith.constant 0 : index
      %266 = vector.load %arg26[%c0_116, %c0_117, %c0_118] : memref<1x8x32xf32, #tpu.memory_space<vmem>>, vector<1x8x32xf32>
      %267 = vector.shape_cast %266 : vector<1x8x32xf32> to vector<8x32xf32>
      %268 = vector.shape_cast %261 : vector<8x32xf32> to vector<1x8x32xf32>
      tpu.vector_store %arg26[%c0_116, %c0_117, %c0_118], %268 {strides = array<i32>} : memref<1x8x32xf32, #tpu.memory_space<vmem>>, vector<1x8x32xf32>,
    } else {
    }
    return
  }
  func.func @transform_0(%arg0: i32, %arg1: i32) -> (i32, i32, i32) {
    %c0_i32 = arith.constant 0 : i32
    %c0_i32_0 = arith.constant 0 : i32
    %c0_i32_1 = arith.constant 0 : i32
    return %arg0, %c0_i32, %c0_i32_0 : i32, i32, i32
  }
  func.func @transform_1(%arg0: i32, %arg1: i32) -> (i32, i32, i32) {
    %c0_i32 = arith.constant 0 : i32
    %c0_i32_0 = arith.constant 0 : i32
    %c0_i32_1 = arith.constant 0 : i32
    return %arg0, %c0_i32, %c0_i32_0 : i32, i32, i32
  }
  func.func @transform_2(%arg0: i32, %arg1: i32) -> (i32, i32, i32) {
    %c0_i32 = arith.constant 0 : i32
    %c0_i32_0 = arith.constant 0 : i32
    %c0_i32_1 = arith.constant 0 : i32
    %c0_i32_2 = arith.constant 0 : i32
    return %c0_i32, %c0_i32_0, %c0_i32_1 : i32, i32, i32
  }
  func.func @transform_3(%arg0: i32, %arg1: i32) -> (i32, i32, i32) {
    %c0_i32 = arith.constant 0 : i32
    %c0_i32_0 = arith.constant 0 : i32
    %c0_i32_1 = arith.constant 0 : i32
    return %arg0, %c0_i32, %c0_i32_0 : i32, i32, i32
  }
  func.func @transform_4(%arg0: i32, %arg1: i32) -> (i32, i32, i32) {
    %c0_i32 = arith.constant 0 : i32
    %c0_i32_0 = arith.constant 0 : i32
    %c0_i32_1 = arith.constant 0 : i32
    return %arg1, %c0_i32, %c0_i32_0 : i32, i32, i32
  }
  func.func @transform_5(%arg0: i32, %arg1: i32) -> (i32, i32, i32) {
    %c0_i32 = arith.constant 0 : i32
    %c0_i32_0 = arith.constant 0 : i32
    %c0_i32_1 = arith.constant 0 : i32
    return %arg1, %c0_i32, %c0_i32_0 : i32, i32, i32
  }
  func.func @transform_6(%arg0: i32, %arg1: i32) -> (i32, i32, i32) {
    %c0_i32 = arith.constant 0 : i32
    %c0_i32_0 = arith.constant 0 : i32
    %c0_i32_1 = arith.constant 0 : i32
    return %arg1, %c0_i32, %c0_i32_0 : i32, i32, i32
  }
  func.func @transform_7(%arg0: i32, %arg1: i32) -> (i32, i32, i32) {
    %c0_i32 = arith.constant 0 : i32
    %c0_i32_0 = arith.constant 0 : i32
    %c0_i32_1 = arith.constant 0 : i32
    return %arg1, %c0_i32, %c0_i32_0 : i32, i32, i32
  }
  func.func @transform_8(%arg0: i32, %arg1: i32) -> (i32, i32, i32) {
    %c0_i32 = arith.constant 0 : i32
    %c0_i32_0 = arith.constant 0 : i32
    %c0_i32_1 = arith.constant 0 : i32
    return %arg1, %c0_i32, %c0_i32_0 : i32, i32, i32
  }
  func.func @transform_9(%arg0: i32, %arg1: i32) -> (i32, i32, i32) {
    %c0_i32 = arith.constant 0 : i32
    %c0_i32_0 = arith.constant 0 : i32
    %c0_i32_1 = arith.constant 0 : i32
    return %arg1, %c0_i32, %c0_i32_0 : i32, i32, i32
  }
  func.func @transform_10(%arg0: i32, %arg1: i32) -> (i32, i32, i32) {
    %c0_i32 = arith.constant 0 : i32
    %c0_i32_0 = arith.constant 0 : i32
    %c0_i32_1 = arith.constant 0 : i32
    return %arg1, %c0_i32, %c0_i32_0 : i32, i32, i32
  }
  func.func @transform_11(%arg0: i32, %arg1: i32) -> (i32, i32, i32) {
    %c0_i32 = arith.constant 0 : i32
    %c0_i32_0 = arith.constant 0 : i32
    %c0_i32_1 = arith.constant 0 : i32
    return %arg1, %c0_i32, %c0_i32_0 : i32, i32, i32
  }
  func.func @transform_12(%arg0: i32, %arg1: i32) -> (i32, i32, i32) {
    %c0_i32 = arith.constant 0 : i32
    %c0_i32_0 = arith.constant 0 : i32
    %c0_i32_1 = arith.constant 0 : i32
    return %arg1, %c0_i32, %c0_i32_0 : i32, i32, i32
  }
  func.func @transform_13(%arg0: i32, %arg1: i32) -> (i32, i32, i32) {
    %c0_i32 = arith.constant 0 : i32
    %c0_i32_0 = arith.constant 0 : i32
    %c0_i32_1 = arith.constant 0 : i32
    return %arg1, %c0_i32, %c0_i32_0 : i32, i32, i32
  }
  func.func @transform_14(%arg0: i32, %arg1: i32) -> (i32, i32, i32) {
    %c0_i32 = arith.constant 0 : i32
    %c0_i32_0 = arith.constant 0 : i32
    %c0_i32_1 = arith.constant 0 : i32
    return %arg1, %c0_i32, %c0_i32_0 : i32, i32, i32
  }
  func.func @transform_15(%arg0: i32, %arg1: i32) -> (i32, i32, i32) {
    %c0_i32 = arith.constant 0 : i32
    %c0_i32_0 = arith.constant 0 : i32
    %c0_i32_1 = arith.constant 0 : i32
    return %arg1, %c0_i32, %c0_i32_0 : i32, i32, i32
  }
  func.func @transform_16(%arg0: i32, %arg1: i32) -> (i32, i32, i32) {
    %c0_i32 = arith.constant 0 : i32
    %c0_i32_0 = arith.constant 0 : i32
    %c0_i32_1 = arith.constant 0 : i32
    return %arg1, %c0_i32, %c0_i32_0 : i32, i32, i32
  }
  func.func @transform_17(%arg0: i32, %arg1: i32) -> (i32, i32, i32) {
    %c0_i32 = arith.constant 0 : i32
    %c0_i32_0 = arith.constant 0 : i32
    %c0_i32_1 = arith.constant 0 : i32
    return %arg1, %c0_i32, %c0_i32_0 : i32, i32, i32
  }
  func.func @transform_18(%arg0: i32, %arg1: i32) -> (i32, i32, i32) {
    %c0_i32 = arith.constant 0 : i32
    %c0_i32_0 = arith.constant 0 : i32
    %c0_i32_1 = arith.constant 0 : i32
    return %arg1, %c0_i32, %c0_i32_0 : i32, i32, i32
  }
  func.func @transform_19(%arg0: i32, %arg1: i32) -> (i32, i32, i32) {
    %c0_i32 = arith.constant 0 : i32
    %c0_i32_0 = arith.constant 0 : i32
    %c0_i32_1 = arith.constant 0 : i32
    return %arg1, %c0_i32, %c0_i32_0 : i32, i32, i32
  }
  func.func @transform_20(%arg0: i32, %arg1: i32) -> (i32, i32, i32) {
    %c0_i32 = arith.constant 0 : i32
    %c0_i32_0 = arith.constant 0 : i32
    %c0_i32_1 = arith.constant 0 : i32
    return %arg1, %c0_i32, %c0_i32_0 : i32, i32, i32
  }
  func.func @transform_21(%arg0: i32, %arg1: i32) -> (i32, i32, i32) {
    %c0_i32 = arith.constant 0 : i32
    %c0_i32_0 = arith.constant 0 : i32
    %c0_i32_1 = arith.constant 0 : i32
    return %arg1, %c0_i32, %c0_i32_0 : i32, i32, i32
  }
  func.func @transform_22(%arg0: i32, %arg1: i32) -> (i32, i32, i32) {
    %c0_i32 = arith.constant 0 : i32
    %c0_i32_0 = arith.constant 0 : i32
    %c0_i32_1 = arith.constant 0 : i32
    return %arg1, %c0_i32, %c0_i32_0 : i32, i32, i32
  }
  func.func @transform_23(%arg0: i32, %arg1: i32) -> (i32, i32, i32) {
    %c0_i32 = arith.constant 0 : i32
    %c0_i32_0 = arith.constant 0 : i32
    %c0_i32_1 = arith.constant 0 : i32
    return %arg1, %c0_i32, %c0_i32_0 : i32, i32, i32
  }
  func.func @transform_24(%arg0: i32, %arg1: i32) -> (i32, i32, i32) {
    %c0_i32 = arith.constant 0 : i32
    %c0_i32_0 = arith.constant 0 : i32
    %c0_i32_1 = arith.constant 0 : i32
    return %arg0, %c0_i32, %c0_i32_0 : i32, i32, i32
  }
  func.func @transform_25(%arg0: i32, %arg1: i32) -> (i32, i32, i32, i32, i32) {
    %c0_i32 = arith.constant 0 : i32
    %c0_i32_0 = arith.constant 0 : i32
    %c0_i32_1 = arith.constant 0 : i32
    %c0_i32_2 = arith.constant 0 : i32
    return %arg1, %arg0, %c0_i32, %c0_i32_0, %c0_i32_1 : i32, i32, i32, i32, i32
  }
  func.func @transform_26(%arg0: i32, %arg1: i32) -> (i32, i32, i32, i32, i32) {
    %c0_i32 = arith.constant 0 : i32
    %c0_i32_0 = arith.constant 0 : i32
    %c0_i32_1 = arith.constant 0 : i32
    %c0_i32_2 = arith.constant 0 : i32
    return %arg1, %arg0, %c0_i32, %c0_i32_0, %c0_i32_1 : i32, i32, i32, i32, i32
  }
}

module attributes {stable_mosaic.version = 11 : i64} {
  func.func @_output_kernel(%arg0: i32, %arg1: memref<16x32xf32, #tpu.memory_space<vmem>>, %arg2: memref<1x32xf32, #tpu.memory_space<vmem>>, %arg3: memref<1x32xf32, #tpu.memory_space<vmem>>, %arg4: memref<32x12xbf16, #tpu.memory_space<vmem>>, %arg5: memref<16x12xf32, #tpu.memory_space<vmem>>) attributes {dimension_semantics = [#tpu.dimension_semantics<parallel>], iteration_bounds = array<i64: 1>, scalar_prefetch = 0 : i64, scratch_operands = 0 : i64, tpu.core_type = #tpu.core_type<tc>, window_params = [{transform_indices = @transform_0, window_bounds = array<i64: 16, 32>}, {pipeline_mode = #tpu.pipeline_mode<synchronous>, transform_indices = @transform_1, window_bounds = array<i64: 1, 32>}, {pipeline_mode = #tpu.pipeline_mode<synchronous>, transform_indices = @transform_2, window_bounds = array<i64: 1, 32>}, {pipeline_mode = #tpu.pipeline_mode<synchronous>, transform_indices = @transform_3, window_bounds = array<i64: 32, 12>}, {transform_indices = @transform_4, window_bounds = array<i64: 16, 12>}]} {
    %c0 = arith.constant 0 : index
    %c0_0 = arith.constant 0 : index
    %0 = vector.load %arg1[%c0, %c0_0] : memref<16x32xf32, #tpu.memory_space<vmem>>, vector<16x32xf32>
    %c0_1 = arith.constant 0 : index
    %c0_2 = arith.constant 0 : index
    %1 = vector.load %arg2[%c0_1, %c0_2] : memref<1x32xf32, #tpu.memory_space<vmem>>, vector<1x32xf32>
    %c0_3 = arith.constant 0 : index
    %c0_4 = arith.constant 0 : index
    %2 = vector.load %arg3[%c0_3, %c0_4] : memref<1x32xf32, #tpu.memory_space<vmem>>, vector<1x32xf32>
    %cst = arith.constant dense<0.000000e+00> : vector<16xf32>
    %3 = vector.multi_reduction <add>, %0, %cst [1] : vector<16x32xf32> to vector<16xf32>
    %4 = vector.shape_cast %3 : vector<16xf32> to vector<16x1xf32>
    %cst_5 = arith.constant 3.200000e+01 : f32
    %5 = vector.broadcast %cst_5 : f32 to vector<16x1xf32>
    %6 = arith.divf %4, %5 : vector<16x1xf32>
    %7 = vector.broadcast %6 : vector<16x1xf32> to vector<16x32xf32>
    %8 = arith.subf %0, %7 : vector<16x32xf32>
    %9 = arith.mulf %8, %8 : vector<16x32xf32>
    %cst_6 = arith.constant dense<0.000000e+00> : vector<16xf32>
    %10 = vector.multi_reduction <add>, %9, %cst_6 [1] : vector<16x32xf32> to vector<16xf32>
    %11 = vector.shape_cast %10 : vector<16xf32> to vector<16x1xf32>
    %cst_7 = arith.constant 3.200000e+01 : f32
    %12 = vector.broadcast %cst_7 : f32 to vector<16x1xf32>
    %13 = arith.divf %11, %12 : vector<16x1xf32>
    %cst_8 = arith.constant 9.99999997E-7 : f32
    %14 = vector.broadcast %cst_8 : f32 to vector<16x1xf32>
    %15 = arith.addf %13, %14 : vector<16x1xf32>
    %16 = math.rsqrt %15 : vector<16x1xf32>
    %17 = vector.broadcast %16 : vector<16x1xf32> to vector<16x32xf32>
    %18 = arith.mulf %8, %17 : vector<16x32xf32>
    %19 = vector.broadcast %1 : vector<1x32xf32> to vector<16x32xf32>
    %20 = arith.mulf %18, %19 : vector<16x32xf32>
    %21 = vector.broadcast %2 : vector<1x32xf32> to vector<16x32xf32>
    %22 = arith.addf %20, %21 : vector<16x32xf32>
    %23 = arith.truncf %22 : vector<16x32xf32> to vector<16x32xbf16>
    %c0_9 = arith.constant 0 : index
    %c0_10 = arith.constant 0 : index
    %24 = vector.load %arg4[%c0_9, %c0_10] : memref<32x12xbf16, #tpu.memory_space<vmem>>, vector<32x12xbf16>
    %cst_11 = arith.constant dense<0.000000e+00> : vector<16x12xf32>
    %25 = tpu.matmul %23, %24, %cst_11 {dimension_numbers = #tpu.dot_dimension_numbers<[1], [0], [0], [1], [0, 0, 1, 1], [], []>} : vector<16x32xbf16>, vector<32x12xbf16>, vector<16x12xf32> -> vector<16x12xf32>
    %cst_12 = arith.constant dense<0xFF800000> : vector<16xf32>
    %26 = vector.multi_reduction <maximumf>, %25, %cst_12 [1] : vector<16x12xf32> to vector<16xf32>
    %27 = vector.shape_cast %26 : vector<16xf32> to vector<16x1xf32>
    %28 = vector.broadcast %27 : vector<16x1xf32> to vector<16x12xf32>
    %29 = arith.subf %25, %28 : vector<16x12xf32>
    %30 = math.exp %29 : vector<16x12xf32>
    %cst_13 = arith.constant dense<0.000000e+00> : vector<16xf32>
    %31 = vector.multi_reduction <add>, %30, %cst_13 [1] : vector<16x12xf32> to vector<16xf32>
    %32 = vector.shape_cast %31 : vector<16xf32> to vector<16x1xf32>
    %33 = math.log %32 : vector<16x1xf32>
    %34 = vector.broadcast %33 : vector<16x1xf32> to vector<16x12xf32>
    %35 = arith.subf %29, %34 : vector<16x12xf32>
    %c0_14 = arith.constant 0 : index
    %c0_15 = arith.constant 0 : index
    %36 = vector.load %arg5[%c0_14, %c0_15] : memref<16x12xf32, #tpu.memory_space<vmem>>, vector<16x12xf32>
    tpu.vector_store %arg5[%c0_14, %c0_15], %35 {strides = array<i32>} : memref<16x12xf32, #tpu.memory_space<vmem>>, vector<16x12xf32>,
    return
  }
  func.func @transform_0(%arg0: i32) -> (i32, i32) {
    %c0_i32 = arith.constant 0 : i32
    %c0_i32_0 = arith.constant 0 : i32
    return %arg0, %c0_i32 : i32, i32
  }
  func.func @transform_1(%arg0: i32) -> (i32, i32) {
    %c0_i32 = arith.constant 0 : i32
    %c0_i32_0 = arith.constant 0 : i32
    %c0_i32_1 = arith.constant 0 : i32
    return %c0_i32, %c0_i32_0 : i32, i32
  }
  func.func @transform_2(%arg0: i32) -> (i32, i32) {
    %c0_i32 = arith.constant 0 : i32
    %c0_i32_0 = arith.constant 0 : i32
    %c0_i32_1 = arith.constant 0 : i32
    return %c0_i32, %c0_i32_0 : i32, i32
  }
  func.func @transform_3(%arg0: i32) -> (i32, i32) {
    %c0_i32 = arith.constant 0 : i32
    %c0_i32_0 = arith.constant 0 : i32
    %c0_i32_1 = arith.constant 0 : i32
    return %c0_i32, %c0_i32_0 : i32, i32
  }
  func.func @transform_4(%arg0: i32) -> (i32, i32) {
    %c0_i32 = arith.constant 0 : i32
    %c0_i32_0 = arith.constant 0 : i32
    return %arg0, %c0_i32 : i32, i32
  }
}

</mosaic_0001>

<llo_original>
// kernel: transformer_forward.4
$region0: #{transformer_forward.4}
  #allocation0 [shape = 'u32[]', space=smem, size = 0x4, offset = 0x4, fixed_abs, tag = 'smem constant byte address 0x4 - core index']
  #allocation1 [shape = 'u32[144,128]{1,0:T(1,128)}', space=vmem, size = 0x12000, scoped, tag = 'internal scratch']
  %s0 = inlined_call_operand.vmem [shape: f32[2,8,6], index: 0, kind: input, shape index: {}]
  %s1 = inlined_call_operand.vmem [shape: bf16[6,32], index: 1, kind: input, shape index: {}]
  %s2 = inlined_call_operand.vmem [shape: f32[1,32], index: 2, kind: input, shape index: {}]
  %s3 = inlined_call_operand.vmem [shape: f32[1,32], index: 3, kind: input, shape index: {}]
  %s4 = inlined_call_operand.vmem [shape: f32[8,32], index: 4, kind: input, shape index: {}]
  %s5 = inlined_call_operand.hbm [shape: f32[2,8,32], index: 5, kind: output, shape index: {}]
  %s6 = sld [smem:[#allocation0]]
  $region53: #{transformer_forward.4} parent=0
    _
  %s8 = ssub.s32 1, %s6
  %s9 = scalar_select 0, %s8, %s6
  $region1: #{transformer_forward.4} parent=0
    #allocation2 [shape = 'u8[8192]{0}', space=vmem, size = 0x2000, scoped, tag = 'output window, operand 0']
    #allocation3 [shape = 's32[2]{0}', space=sflag, size = 0x8, scoped, tag = 'scoped memory for transformer_forward.4']
    %10 = vsyncpa [#allocation3], 0
    %s11 = scalar_lea.sflag [#allocation3], 1
    %12 = vsyncpa %s11, 0
    loop: start=0, step=1, limit=4
    $region2: #{transformer_forward.4} parent=1 // loop_pre_header
      _
    $region3: #{transformer_forward.4} parent=1 // loop_header
      %s14 = sphi 0, %s18
      %p15 = scmp.ge.s32.totalorder %s14, 4
      %s24 = sphi 0, %s26
      %s27 = sphi 0, %s24
      %s28 = sphi 0, %s27
      %s44 = sphi 0, %s28
      %s48 = sphi 0, %s48
      %s50 = sphi 0, %s48
      %s51 = sphi 0, %s50
      %s65 = sphi 0, %s51
      %s69 = sphi 0, %s69
      %s71 = sphi 0, %s69
      %s72 = sphi 0, %s71
      %s86 = sphi 0, %s72
      %s90 = sphi 0, %s90
      %s92 = sphi 0, %s90
      %s93 = sphi 0, %s92
      %s107 = sphi 0, %s93
      %s111 = sphi 0, %s111
      %s113 = sphi 0, %s111
      %s114 = sphi 0, %s113
      %s128 = sphi 0, %s114
      %s134 = sphi 0, %s136
      %s137 = sphi 0, %s134
      %s138 = sphi 0, %s137
      %s154 = sphi 0, %s138
    $region4: #{transformer_forward.4} parent=1 // loop_header_branch
      %17 = sbr.rel (%p15) target = $region8
    $region5: #{transformer_forward.4} parent=1 // loop_body
      %s19 = ssub.s32 %s14, 1
      %s20 = ssub.s32 %s14, 2
      %s21 = sadd.s32 %s14, 1
      %s22 = ssub.s32 %s14, %s21
      %p23 = scmp.eq.s32.totalorder %s22, 0
      %s25 = sadd.s32 %s24, 1
      %s26 = scalar_select %p23, %s24, %s25
      %p29 = pneg %p23
      %p30 = scmp.eq.s32.totalorder %s14, 1
      %p31 = por %p29, %p30
      %p32 = scmp.ne.s32.totalorder %s24, %s27
      %p33 = scmp.eq.s32.totalorder %s14, 0
      %p34 = por %p32, %p33
      %p35 = scmp.ne.s32.totalorder %s24, %s27
      %p36 = scmp.eq.s32.totalorder %s19, 1
      %p37 = por %p35, %p36
      %p38 = scmp.ne.s32.totalorder %s27, %s28
      %p39 = scmp.eq.s32.totalorder %s19, 0
      %p40 = por %p38, %p39
      %p41 = scmp.ne.s32.totalorder %s27, %s28
      %p42 = scmp.eq.s32.totalorder %s20, 1
      %p43 = por %p41, %p42
      %p45 = scmp.ne.s32.totalorder %s28, %s44
      %p46 = scmp.eq.s32.totalorder %s20, 0
      %p47 = por %p45, %p46
      %s49 = sadd.s32 %s48, 1
      %p52 = scmp.eq.s32.totalorder %s14, 1
      %p53 = scmp.ne.s32.totalorder %s48, %s50
      %p54 = scmp.eq.s32.totalorder %s14, 0
      %p55 = por %p53, %p54
      %p56 = scmp.ne.s32.totalorder %s48, %s50
      %p57 = scmp.eq.s32.totalorder %s19, 1
      %p58 = por %p56, %p57
      %p59 = scmp.ne.s32.totalorder %s50, %s51
      %p60 = scmp.eq.s32.totalorder %s19, 0
      %p61 = por %p59, %p60
      %p62 = scmp.ne.s32.totalorder %s50, %s51
      %p63 = scmp.eq.s32.totalorder %s20, 1
      %p64 = por %p62, %p63
      %p66 = scmp.ne.s32.totalorder %s51, %s65
      %p67 = scmp.eq.s32.totalorder %s20, 0
      %p68 = por %p66, %p67
      %s70 = sadd.s32 %s69, 1
      %p73 = scmp.eq.s32.totalorder %s14, 1
      %p74 = scmp.ne.s32.totalorder %s69, %s71
      %p75 = scmp.eq.s32.totalorder %s14, 0
      %p76 = por %p74, %p75
      %p77 = scmp.ne.s32.totalorder %s69, %s71
      %p78 = scmp.eq.s32.totalorder %s19, 1
      %p79 = por %p77, %p78
      %p80 = scmp.ne.s32.totalorder %s71, %s72
      %p81 = scmp.eq.s32.totalorder %s19, 0
      %p82 = por %p80, %p81
      %p83 = scmp.ne.s32.totalorder %s71, %s72
      %p84 = scmp.eq.s32.totalorder %s20, 1
      %p85 = por %p83, %p84
      %p87 = scmp.ne.s32.totalorder %s72, %s86
      %p88 = scmp.eq.s32.totalorder %s20, 0
      %p89 = por %p87, %p88
      %s91 = sadd.s32 %s90, 1
      %p94 = scmp.eq.s32.totalorder %s14, 1
      %p95 = scmp.ne.s32.totalorder %s90, %s92
      %p96 = scmp.eq.s32.totalorder %s14, 0
      %p97 = por %p95, %p96
      %p98 = scmp.ne.s32.totalorder %s90, %s92
      %p99 = scmp.eq.s32.totalorder %s19, 1
      %p100 = por %p98, %p99
      %p101 = scmp.ne.s32.totalorder %s92, %s93
      %p102 = scmp.eq.s32.totalorder %s19, 0
      %p103 = por %p101, %p102
      %p104 = scmp.ne.s32.totalorder %s92, %s93
      %p105 = scmp.eq.s32.totalorder %s20, 1
      %p106 = por %p104, %p105
      %p108 = scmp.ne.s32.totalorder %s93, %s107
      %p109 = scmp.eq.s32.totalorder %s20, 0
      %p110 = por %p108, %p109
      %s112 = sadd.s32 %s111, 1
      %p115 = scmp.eq.s32.totalorder %s14, 1
      %p116 = scmp.ne.s32.totalorder %s111, %s113
      %p117 = scmp.eq.s32.totalorder %s14, 0
      %p118 = por %p116, %p117
      %p119 = scmp.ne.s32.totalorder %s111, %s113
      %p120 = scmp.eq.s32.totalorder %s19, 1
      %p121 = por %p119, %p120
      %p122 = scmp.ne.s32.totalorder %s113, %s114
      %p123 = scmp.eq.s32.totalorder %s19, 0
      %p124 = por %p122, %p123
      %p125 = scmp.ne.s32.totalorder %s113, %s114
      %p126 = scmp.eq.s32.totalorder %s20, 1
      %p127 = por %p125, %p126
      %p129 = scmp.ne.s32.totalorder %s114, %s128
      %p130 = scmp.eq.s32.totalorder %s20, 0
      %p131 = por %p129, %p130
      %s132 = ssub.s32 %s14, %s21
      %p133 = scmp.eq.s32.totalorder %s132, 0
      %s135 = sadd.s32 %s134, 1
      %s136 = scalar_select %p133, %s134, %s135
      %p139 = pneg %p133
      %p140 = scmp.eq.s32.totalorder %s14, 1
      %p141 = por %p139, %p140
      %p142 = scmp.ne.s32.totalorder %s134, %s137
      %p143 = scmp.eq.s32.totalorder %s14, 0
      %p144 = por %p142, %p143
      %p145 = scmp.ne.s32.totalorder %s134, %s137
      %p146 = scmp.eq.s32.totalorder %s19, 1
      %p147 = por %p145, %p146
      %p148 = scmp.ne.s32.totalorder %s137, %s138
      %p149 = scmp.eq.s32.totalorder %s19, 0
      %p150 = por %p148, %p149
      %p151 = scmp.ne.s32.totalorder %s137, %s138
      %p152 = scmp.eq.s32.totalorder %s20, 1
      %p153 = por %p151, %p152
      %p155 = scmp.ne.s32.totalorder %s138, %s154
      %p156 = scmp.eq.s32.totalorder %s20, 0
      %p157 = por %p155, %p156
      %p158 = scmp.le.s32.totalorder 1, %s14
      %p159 = scmp.lt.s32.totalorder %s14, 3
      %p160 = pnand %p158, %p159
      %p161 = pneg %p160
      // Predicated region
      $region9: #{transformer_forward.4} parent=5 // pred_check
        _
      $region10: #{transformer_forward.4} parent=5 // pred_check_branch
        %163 = sbr.rel (%p160) target = $region12
      $region11: #{transformer_forward.4} parent=5 // pred_region
        %s164 = ssub.s32 %s14, 1
        // Predicated region
        $region13: #{transformer_forward.4} parent=11 // pred_check
          %p165 = pneg %p61
        $region14: #{transformer_forward.4} parent=11 // pred_check_branch
          %167 = sbr.rel (%p165) target = $region16
        $region15: #{transformer_forward.4} parent=11 // pred_region
          _
        $region16: #{transformer_forward.4} parent=11 // pred_fallthru
          _
        // Predicated region
        $region17: #{transformer_forward.4} parent=11 // pred_check
          %p168 = pneg %p82
        $region18: #{transformer_forward.4} parent=11 // pred_check_branch
          %170 = sbr.rel (%p168) target = $region20
        $region19: #{transformer_forward.4} parent=11 // pred_region
          _
        $region20: #{transformer_forward.4} parent=11 // pred_fallthru
          _
        // Predicated region
        $region21: #{transformer_forward.4} parent=11 // pred_check
          %p171 = pneg %p103
        $region22: #{transformer_forward.4} parent=11 // pred_check_branch
          %173 = sbr.rel (%p171) target = $region24
        $region23: #{transformer_forward.4} parent=11 // pred_region
          _
        $region24: #{transformer_forward.4} parent=11 // pred_fallthru
          _
        // Predicated region
        $region25: #{transformer_forward.4} parent=11 // pred_check
          %p174 = pneg %p124
        $region26: #{transformer_forward.4} parent=11 // pred_check_branch
          %176 = sbr.rel (%p174) target = $region28
        $region27: #{transformer_forward.4} parent=11 // pred_region
          _
        $region28: #{transformer_forward.4} parent=11 // pred_fallthru
          _
      $region12: #{transformer_forward.4} parent=5 // pred_fallthru
        _
      %p177 = scmp.lt.s32.totalorder %s14, 2
      // Predicated region
      $region29: #{transformer_forward.4} parent=5 // pred_check
        %p178 = pneg %p177
      $region30: #{transformer_forward.4} parent=5 // pred_check_branch
        %180 = sbr.rel (%p178) target = $region32
      $region31: #{transformer_forward.4} parent=5 // pred_region
        // Predicated region
        $region33: #{transformer_forward.4} parent=31 // pred_check
          %p181 = pneg %p34
        $region34: #{transformer_forward.4} parent=31 // pred_check_branch
          %183 = sbr.rel (%p181) target = $region36
        $region35: #{transformer_forward.4} parent=31 // pred_region
          %p184 = scmp.lt.s32.totalorder %s14, 1
          %s185 = scalar_select %p184, %s14, 1
          %s186 = smul.addr %s185, 8
          %s187 = scalar_lea.vmem %s0, %s186
        $region36: #{transformer_forward.4} parent=31 // pred_fallthru
          _
      $region32: #{transformer_forward.4} parent=5 // pred_fallthru
        _
      %p188 = scmp.le.s32.totalorder 1, %s14
      %p189 = scmp.lt.s32.totalorder %s14, 3
      %p190 = pnand %p188, %p189
      %p191 = pneg %p190
      // Predicated region
      $region37: #{transformer_forward.4} parent=5 // pred_check
        _
      $region38: #{transformer_forward.4} parent=5 // pred_check_branch
        %193 = sbr.rel (%p190) target = $region40
      $region39: #{transformer_forward.4} parent=5 // pred_region
        %s194 = ssub.s32 %s14, 1
        %p195 = scmp.lt.s32.totalorder %s19, 1
        %s196 = scalar_select %p195, %s19, 1
        %s197 = smul.addr %s196, 8
        %s198 = scalar_lea.vmem %s0, %s197
        %p199 = pneg %p40
        %p200 = pneg %p37
        %p201 = pneg %p61
        %p202 = pneg %p58
        %p203 = pneg %p82
        %p204 = pneg %p79
        %p205 = pneg %p103
        %p206 = pneg %p100
        %p207 = pneg %p124
        %p208 = pneg %p121
        %p209 = pneg %p150
        %p210 = pneg %p147
        %s211 = sand.u32 %s137, 1
        %s212 = scalar_lea.sflag [#allocation3], %s211
        %s213 = sand.u32 %s137, 1
        %s214 = smul.addr %s213, 8
        %s215 = scalar_lea.vmem [#allocation2], %s214
        %p216 = scmp.lt.s32.totalorder %s19, 1
        %s217 = scalar_select %p216, %s19, 1
        %s218 = smul.addr %s217, 8
        %s219 = scalar_lea.vmem %s0, %s218
        %v221 = vld [vmem:[%s219] sm:$0xff]
        %v222 = vpack.c.bf16 %v221, %v221
        %v223 = vld [vmem:[%s1] sm:$0x7]
        %v224 = vld [vmem:[%s2] sm:$0x1]
        %v226 = vlaneseq
        %v227 = vshrl.u32 %v226, 7
        %v228 = vsub.s32 0, %v227
        %v229 = vrot.slane %v224, %v228
        %vm231 = vcmask 48128
        %v233 = vsel %vm231, %v222, 0
        %vm235 = vcmask 1042432
        %v237 = vsel %vm235, %v223, 0
        %239 = vmatprep.subr.bf16.mxu0 0
        %240 = vmatpush1.bf16.msra.mxu0 %v237
        %241 = vmatprep.subr.bf16.mxu0 0
        %242 = vmatpush1.bf16.msra.mxu0 0
        %243 = vmatprep.subr.bf16.mxu0 0
        %244 = vmatpush1.bf16.msra.mxu0 0
        %245 = vmatprep.subr.bf16.mxu0 0
        %246 = vmatpush1.bf16.msra.mxu0 0
        %247 = vmatprep.subr.bf16.mxu0 0
        %248 = vmatpush1.bf16.msra.mxu0 0
        %249 = vmatprep.subr.bf16.mxu0 0
        %250 = vmatpush1.bf16.msra.mxu0 0
        %251 = vmatprep.subr.bf16.mxu0 0
        %252 = vmatpush1.bf16.msra.mxu0 0
        %253 = vmatprep.subr.bf16.mxu0 0
        %254 = vmatpush1.bf16.msra.mxu0 0
        %255 = vmatprep.subr.bf16.mxu0 0
        %256 = vmatpush1.bf16.msra.mxu0 0
        %257 = vmatprep.subr.bf16.mxu0 0
        %258 = vmatpush1.bf16.msra.mxu0 0
        %259 = vmatprep.subr.bf16.mxu0 0
        %260 = vmatpush1.bf16.msra.mxu0 0
        %261 = vmatprep.subr.bf16.mxu0 0
        %262 = vmatpush1.bf16.msra.mxu0 0
        %263 = vmatprep.subr.bf16.mxu0 0
        %264 = vmatpush1.bf16.msra.mxu0 0
        %265 = vmatprep.subr.bf16.mxu0 0
        %266 = vmatpush1.bf16.msra.mxu0 0
        %267 = vmatprep.subr.bf16.mxu0 0
        %268 = vmatpush1.bf16.msra.mxu0 0
        %269 = vmatprep.subr.bf16.mxu0 0
        %270 = vmatpush1.bf16.msra.mxu0 0
        %271 = vmatprep.mubr.bf16.mxu0 0
        %272 = vmatmul.mubr.bf16.gmra.mrb[0].mxu0 %v233
        %v273 = vpop.f32.mrb[0].mxu0
        %v274 = vadd.f32 %v229, %v273
        %v275 = vpop.f32.mrb[0].mxu0
        %v276 = vpop.f32.mrb[0].mxu0
        %v277 = vpop.f32.mrb[0].mxu0
        %278 = vdwg.mxu0
        %v279 = vld [vmem:[%s3] sm:$0x1]
        %v281 = vlaneseq
        %v282 = vshrl.u32 %v281, 7
        %v283 = vsub.s32 0, %v282
        %v284 = vrot.slane %v279, %v283
        %v286 = vadd.f32 %v274, %v284
        %v287 = vld [vmem:[%s4] sm:$0xff]
        %v288 = vadd.f32 %v286, %v287
        %vm289 = vcmask 261120
        %290 = vst.msk [vmem:[%s215] sm:$0xff] %vm289, %v288
        %s291 = sand.u32 %s137, 1
        %s292 = scalar_lea.sflag [#allocation3], %s291
        %s293 = sand.u32 %s137, 1
        %s294 = smul.addr %s293, 8
        %s295 = scalar_lea.vmem [#allocation2], %s294
        // Predicated region
        $region41: #{transformer_forward.4} parent=39 // pred_check
          %p296 = pneg %p147
        $region42: #{transformer_forward.4} parent=39 // pred_check_branch
          %298 = sbr.rel (%p296) target = $region44
        $region43: #{transformer_forward.4} parent=39 // pred_region
          %s300 = ssub.s32 128, 128
          %301 = vsyncadd %s292, %s300
          %s302 = smul.addr %s19, 128
          %s303 = scalar_lea.hbm %s5, %s302
          %s305 = sshll.u32 %s295, 4
          %s306 = int_to_ptr.vmem [resolvable:$true] %s305
          %308 = dma.vmem_to_hbm [thread:$0]  %s306, 128, %s303, %s292
        $region44: #{transformer_forward.4} parent=39 // pred_fallthru
          _
      $region40: #{transformer_forward.4} parent=5 // pred_fallthru
        _
      %p309 = scmp.le.s32.totalorder 2, %s14
      // Predicated region
      $region45: #{transformer_forward.4} parent=5 // pred_check
        %p310 = pneg %p309
      $region46: #{transformer_forward.4} parent=5 // pred_check_branch
        %312 = sbr.rel (%p310) target = $region48
      $region47: #{transformer_forward.4} parent=5 // pred_region
        %s313 = ssub.s32 %s14, 2
        // Predicated region
        $region49: #{transformer_forward.4} parent=47 // pred_check
          %p314 = pneg %p153
        $region50: #{transformer_forward.4} parent=47 // pred_check_branch
          %316 = sbr.rel (%p314) target = $region52
        $region51: #{transformer_forward.4} parent=47 // pred_region
          %s317 = sand.u32 %s138, 1
          %s318 = scalar_lea.sflag [#allocation3], %s317
          %s319 = sand.u32 %s138, 1
          %s320 = smul.addr %s319, 8
          %s321 = scalar_lea.vmem [#allocation2], %s320
          %322 = dma.done %s318, 128
        $region52: #{transformer_forward.4} parent=47 // pred_fallthru
          _
      $region48: #{transformer_forward.4} parent=5 // pred_fallthru
        _
    $region6: #{transformer_forward.4} parent=1 // loop_footer
      %s18 = sadd.s32 1, %s14
    $region7: #{transformer_forward.4} parent=1 // loop_footer_branch
      %13 = sbr.rel target = $region3
    $region8: #{transformer_forward.4} parent=1 // loop_exit
      _
    %323 = vsyncpa [#allocation3], 1
    %s324 = scalar_lea.sflag [#allocation3], 1
    %325 = vsyncpa %s324, 1

// kernel: transformer_forward.5
$region0: #{transformer_forward.5}
  #allocation0 [shape = 'u32[]', space=smem, size = 0x4, offset = 0x4, fixed_abs, tag = 'smem constant byte address 0x4 - core index']
  #allocation1 [shape = 'u32[144,128]{1,0:T(1,128)}', space=vmem, size = 0x12000, scoped, tag = 'internal scratch']
  #allocation2 [shape = 'f32[8,32]{1,0:T(8,128)}', space=vmem, size = 0x1000, scoped, tag = 'scratch operand']
  %s0 = inlined_call_operand.hbm [shape: f32[2,8,32], index: 0, kind: input, shape index: {}]
  %s1 = inlined_call_operand.hbm [shape: f32[2,1,8], index: 1, kind: input, shape index: {}]
  %s2 = inlined_call_operand.hbm [shape: f32[2,1,32], index: 2, kind: input, shape index: {}]
  %s3 = inlined_call_operand.hbm [shape: f32[2,1,32], index: 3, kind: input, shape index: {}]
  %s4 = inlined_call_operand.hbm [shape: bf16[2,32,96], index: 4, kind: input, shape index: {}]
  %s5 = inlined_call_operand.hbm [shape: f32[2,1,96], index: 5, kind: input, shape index: {}]
  %s6 = inlined_call_operand.hbm [shape: bf16[2,32,32], index: 6, kind: input, shape index: {}]
  %s7 = inlined_call_operand.hbm [shape: f32[2,1,32], index: 7, kind: input, shape index: {}]
  %s8 = inlined_call_operand.hbm [shape: f32[2,1,32], index: 8, kind: input, shape index: {}]
  %s9 = inlined_call_operand.hbm [shape: f32[2,1,32], index: 9, kind: input, shape index: {}]
  %s10 = inlined_call_operand.hbm [shape: bf16[2,32,64], index: 10, kind: input, shape index: {}]
  %s11 = inlined_call_operand.hbm [shape: f32[2,1,64], index: 11, kind: input, shape index: {}]
  %s12 = inlined_call_operand.hbm [shape: bf16[2,64,32], index: 12, kind: input, shape index: {}]
  %s13 = inlined_call_operand.hbm [shape: f32[2,1,32], index: 13, kind: input, shape index: {}]
  %s14 = inlined_call_operand.hbm [shape: f32[1,32], index: 14, kind: input, shape index: {}]
  %s15 = inlined_call_operand.hbm [shape: f32[1,32], index: 15, kind: input, shape index: {}]
  %s16 = inlined_call_operand.hbm [shape: f32[2,8,32], index: 16, kind: output, shape index: {0}]
  %s17 = inlined_call_operand.hbm [shape: f32[2,2,4,8,8], index: 17, kind: output, shape index: {1}]
  %18 = xla_tuple %s16, %s17
  %s19 = sld [smem:[#allocation0]]
  $region177: #{transformer_forward.5} parent=0
    _
  %s21 = ssub.s32 1, %s19
  %s22 = scalar_select 0, %s21, %s19
  $region1: #{transformer_forward.5} parent=0
    #allocation3 [shape = 'u8[8192]{0}', space=vmem, size = 0x2000, scoped, tag = 'input window, operand 0']
    #allocation4 [shape = 's32[2]{0}', space=sflag, size = 0x8, scoped, tag = 'scoped memory for transformer_forward.5']
    #allocation5 [shape = 's32[2]{0}', space=sflag, size = 0x8, scoped, tag = 'scoped memory for transformer_forward.5']
    #allocation6 [shape = 'u8[1024]{0}', space=vmem, size = 0x400, scoped, tag = 'input window, operand 1']
    #allocation7 [shape = 's32[2]{0}', space=sflag, size = 0x8, scoped, tag = 'scoped memory for transformer_forward.5']
    #allocation8 [shape = 'u8[1024]{0}', space=vmem, size = 0x400, scoped, tag = 'input window, operand 2']
    #allocation9 [shape = 'u8[1024]{0}', space=vmem, size = 0x400, scoped, tag = 'input window, operand 3']
    #allocation10 [shape = 's32[2]{0}', space=sflag, size = 0x8, scoped, tag = 'scoped memory for transformer_forward.5']
    #allocation11 [shape = 'u8[16384]{0}', space=vmem, size = 0x4000, scoped, tag = 'input window, operand 4']
    #allocation12 [shape = 'u8[1024]{0}', space=vmem, size = 0x400, scoped, tag = 'input window, operand 5']
    #allocation13 [shape = 's32[2]{0}', space=sflag, size = 0x8, scoped, tag = 'scoped memory for transformer_forward.5']
    #allocation14 [shape = 'u8[16384]{0}', space=vmem, size = 0x4000, scoped, tag = 'input window, operand 6']
    #allocation15 [shape = 'u8[1024]{0}', space=vmem, size = 0x400, scoped, tag = 'input window, operand 7']
    #allocation16 [shape = 's32[2]{0}', space=sflag, size = 0x8, scoped, tag = 'scoped memory for transformer_forward.5']
    #allocation17 [shape = 'u8[1024]{0}', space=vmem, size = 0x400, scoped, tag = 'input window, operand 8']
    #allocation18 [shape = 'u8[1024]{0}', space=vmem, size = 0x400, scoped, tag = 'input window, operand 9']
    #allocation19 [shape = 's32[2]{0}', space=sflag, size = 0x8, scoped, tag = 'scoped memory for transformer_forward.5']
    #allocation20 [shape = 'u8[16384]{0}', space=vmem, size = 0x4000, scoped, tag = 'input window, operand 10']
    #allocation21 [shape = 'u8[1024]{0}', space=vmem, size = 0x400, scoped, tag = 'input window, operand 11']
    #allocation22 [shape = 's32[2]{0}', space=sflag, size = 0x8, scoped, tag = 'scoped memory for transformer_forward.5']
    #allocation23 [shape = 'u8[32768]{0}', space=vmem, size = 0x8000, scoped, tag = 'input window, operand 12']
    #allocation24 [shape = 'u8[1024]{0}', space=vmem, size = 0x400, scoped, tag = 'input window, operand 13']
    #allocation25 [shape = 's32[2]{0}', space=sflag, size = 0x8, scoped, tag = 'scoped memory for transformer_forward.5']
    #allocation26 [shape = 'u8[512]{0}', space=vmem, size = 0x400, scoped, tag = 'input window, operand 14, single buffered']
    #allocation27 [shape = 'u8[512]{0}', space=vmem, size = 0x400, scoped, tag = 'input window, operand 15, single buffered']
    #allocation28 [shape = 's32[1]{0}', space=sflag, size = 0x4, scoped, tag = 'scoped memory for transformer_forward.5']
    #allocation29 [shape = 'u8[8192]{0}', space=vmem, size = 0x2000, scoped, tag = 'output window, operand 0']
    #allocation30 [shape = 'u8[32768]{0}', space=vmem, size = 0x8000, scoped, tag = 'output window, operand 1']
    #allocation31 [shape = 's32[2]{0}', space=sflag, size = 0x8, scoped, tag = 'scoped memory for transformer_forward.5']
    %23 = vsyncpa [#allocation4], 0
    %s24 = scalar_lea.sflag [#allocation4], 1
    %25 = vsyncpa %s24, 0
    %26 = vsyncpa [#allocation7], 0
    %s27 = scalar_lea.sflag [#allocation7], 1
    %28 = vsyncpa %s27, 0
    %29 = vsyncpa [#allocation10], 0
    %s30 = scalar_lea.sflag [#allocation10], 1
    %31 = vsyncpa %s30, 0
    %32 = vsyncpa [#allocation13], 0
    %s33 = scalar_lea.sflag [#allocation13], 1
    %34 = vsyncpa %s33, 0
    %35 = vsyncpa [#allocation16], 0
    %s36 = scalar_lea.sflag [#allocation16], 1
    %37 = vsyncpa %s36, 0
    %38 = vsyncpa [#allocation19], 0
    %s39 = scalar_lea.sflag [#allocation19], 1
    %40 = vsyncpa %s39, 0
    %41 = vsyncpa [#allocation22], 0
    %s42 = scalar_lea.sflag [#allocation22], 1
    %43 = vsyncpa %s42, 0
    %44 = vsyncpa [#allocation25], 0
    %s45 = scalar_lea.sflag [#allocation25], 1
    %46 = vsyncpa %s45, 0
    %47 = vsyncpa [#allocation28], 0
    %48 = vsyncpa [#allocation5], 0
    %s49 = scalar_lea.sflag [#allocation5], 1
    %50 = vsyncpa %s49, 0
    %51 = vsyncpa [#allocation31], 0
    %s52 = scalar_lea.sflag [#allocation31], 1
    %53 = vsyncpa %s52, 0
    loop: start=0, step=1, limit=6
    $region2: #{transformer_forward.5} parent=1 // loop_pre_header
      _
    $region3: #{transformer_forward.5} parent=1 // loop_header
      %s55 = sphi 0, %s59
      %p56 = scmp.ge.s32.totalorder %s55, 6
      %s62 = sphi 0, %s74
      %s63 = sphi 0, %s70
      %s64 = sphi 0, %s62
      %s65 = sphi 0, %s63
      %s66 = sphi 0, %s64
      %s67 = sphi 0, %s65
      %s77 = sphi 0, %s79
      %s80 = sphi 0, %s77
      %s81 = sphi 0, %s80
      %s97 = sphi 0, %s81
      %s103 = sphi 0, %s105
      %s106 = sphi 0, %s103
      %s107 = sphi 0, %s106
      %s123 = sphi 0, %s107
      %s129 = sphi 0, %s131
      %s132 = sphi 0, %s129
      %s133 = sphi 0, %s132
      %s149 = sphi 0, %s133
      %s155 = sphi 0, %s157
      %s158 = sphi 0, %s155
      %s159 = sphi 0, %s158
      %s175 = sphi 0, %s159
      %s181 = sphi 0, %s183
      %s184 = sphi 0, %s181
      %s185 = sphi 0, %s184
      %s201 = sphi 0, %s185
      %s207 = sphi 0, %s209
      %s210 = sphi 0, %s207
      %s211 = sphi 0, %s210
      %s227 = sphi 0, %s211
      %s233 = sphi 0, %s235
      %s236 = sphi 0, %s233
      %s237 = sphi 0, %s236
      %s253 = sphi 0, %s237
      %s259 = sphi 0, %s261
      %s262 = sphi 0, %s259
      %s263 = sphi 0, %s262
      %s279 = sphi 0, %s263
      %s285 = sphi 0, %s287
      %s288 = sphi 0, %s285
      %s289 = sphi 0, %s288
      %s305 = sphi 0, %s289
      %s311 = sphi 0, %s313
      %s314 = sphi 0, %s311
      %s315 = sphi 0, %s314
      %s331 = sphi 0, %s315
      %s337 = sphi 0, %s339
      %s340 = sphi 0, %s337
      %s341 = sphi 0, %s340
      %s357 = sphi 0, %s341
      %s363 = sphi 0, %s365
      %s366 = sphi 0, %s363
      %s367 = sphi 0, %s366
      %s383 = sphi 0, %s367
      %s389 = sphi 0, %s391
      %s392 = sphi 0, %s389
      %s393 = sphi 0, %s392
      %s409 = sphi 0, %s393
      %s415 = sphi 0, %s417
      %s418 = sphi 0, %s415
      %s419 = sphi 0, %s418
      %s435 = sphi 0, %s419
      %s439 = sphi 0, %s439
      %s441 = sphi 0, %s439
      %s442 = sphi 0, %s441
      %s456 = sphi 0, %s442
      %s460 = sphi 0, %s460
      %s462 = sphi 0, %s460
      %s463 = sphi 0, %s462
      %s477 = sphi 0, %s463
      %s483 = sphi 0, %s485
      %s486 = sphi 0, %s483
      %s487 = sphi 0, %s486
      %s503 = sphi 0, %s487
      %s511 = sphi 0, %s513
      %s514 = sphi 0, %s511
      %s515 = sphi 0, %s514
      %s531 = sphi 0, %s515
    $region4: #{transformer_forward.5} parent=1 // loop_header_branch
      %58 = sbr.rel (%p56) target = $region8
    $region5: #{transformer_forward.5} parent=1 // loop_body
      %s60 = ssub.s32 %s55, 1
      %s61 = ssub.s32 %s55, 2
      %s68 = sadd.s32 1, %s63
      %p69 = scmp.ge.s32.totalorder %s68, 2
      %s70 = scalar_select %p69, 0, %s68
      %s71 = sadd.s32 1, %s62
      %s72 = scalar_select %p69, %s71, %s62
      %p73 = scmp.ge.s32.totalorder %s72, 2
      %s74 = scalar_select %p73, 0, %s72
      %s75 = ssub.s32 %s62, %s74
      %p76 = scmp.eq.s32.totalorder %s75, 0
      %s78 = sadd.s32 %s77, 1
      %s79 = scalar_select %p76, %s77, %s78
      %p82 = pneg %p76
      %p83 = scmp.eq.s32.totalorder %s55, 3
      %p84 = por %p82, %p83
      %p85 = scmp.ne.s32.totalorder %s77, %s80
      %p86 = scmp.eq.s32.totalorder %s55, 0
      %p87 = por %p85, %p86
      %p88 = scmp.ne.s32.totalorder %s77, %s80
      %p89 = scmp.eq.s32.totalorder %s60, 3
      %p90 = por %p88, %p89
      %p91 = scmp.ne.s32.totalorder %s80, %s81
      %p92 = scmp.eq.s32.totalorder %s60, 0
      %p93 = por %p91, %p92
      %p94 = scmp.ne.s32.totalorder %s80, %s81
      %p95 = scmp.eq.s32.totalorder %s61, 3
      %p96 = por %p94, %p95
      %p98 = scmp.ne.s32.totalorder %s81, %s97
      %p99 = scmp.eq.s32.totalorder %s61, 0
      %p100 = por %p98, %p99
      %s101 = ssub.s32 %s62, %s74
      %p102 = scmp.eq.s32.totalorder %s101, 0
      %s104 = sadd.s32 %s103, 1
      %s105 = scalar_select %p102, %s103, %s104
      %p108 = pneg %p102
      %p109 = scmp.eq.s32.totalorder %s55, 3
      %p110 = por %p108, %p109
      %p111 = scmp.ne.s32.totalorder %s103, %s106
      %p112 = scmp.eq.s32.totalorder %s55, 0
      %p113 = por %p111, %p112
      %p114 = scmp.ne.s32.totalorder %s103, %s106
      %p115 = scmp.eq.s32.totalorder %s60, 3
      %p116 = por %p114, %p115
      %p117 = scmp.ne.s32.totalorder %s106, %s107
      %p118 = scmp.eq.s32.totalorder %s60, 0
      %p119 = por %p117, %p118
      %p120 = scmp.ne.s32.totalorder %s106, %s107
      %p121 = scmp.eq.s32.totalorder %s61, 3
      %p122 = por %p120, %p121
      %p124 = scmp.ne.s32.totalorder %s107, %s123
      %p125 = scmp.eq.s32.totalorder %s61, 0
      %p126 = por %p124, %p125
      %s127 = ssub.s32 %s63, %s70
      %p128 = scmp.eq.s32.totalorder %s127, 0
      %s130 = sadd.s32 %s129, 1
      %s131 = scalar_select %p128, %s129, %s130
      %p134 = pneg %p128
      %p135 = scmp.eq.s32.totalorder %s55, 3
      %p136 = por %p134, %p135
      %p137 = scmp.ne.s32.totalorder %s129, %s132
      %p138 = scmp.eq.s32.totalorder %s55, 0
      %p139 = por %p137, %p138
      %p140 = scmp.ne.s32.totalorder %s129, %s132
      %p141 = scmp.eq.s32.totalorder %s60, 3
      %p142 = por %p140, %p141
      %p143 = scmp.ne.s32.totalorder %s132, %s133
      %p144 = scmp.eq.s32.totalorder %s60, 0
      %p145 = por %p143, %p144
      %p146 = scmp.ne.s32.totalorder %s132, %s133
      %p147 = scmp.eq.s32.totalorder %s61, 3
      %p148 = por %p146, %p147
      %p150 = scmp.ne.s32.totalorder %s133, %s149
      %p151 = scmp.eq.s32.totalorder %s61, 0
      %p152 = por %p150, %p151
      %s153 = ssub.s32 %s63, %s70
      %p154 = scmp.eq.s32.totalorder %s153, 0
      %s156 = sadd.s32 %s155, 1
      %s157 = scalar_select %p154, %s155, %s156
      %p160 = pneg %p154
      %p161 = scmp.eq.s32.totalorder %s55, 3
      %p162 = por %p160, %p161
      %p163 = scmp.ne.s32.totalorder %s155, %s158
      %p164 = scmp.eq.s32.totalorder %s55, 0
      %p165 = por %p163, %p164
      %p166 = scmp.ne.s32.totalorder %s155, %s158
      %p167 = scmp.eq.s32.totalorder %s60, 3
      %p168 = por %p166, %p167
      %p169 = scmp.ne.s32.totalorder %s158, %s159
      %p170 = scmp.eq.s32.totalorder %s60, 0
      %p171 = por %p169, %p170
      %p172 = scmp.ne.s32.totalorder %s158, %s159
      %p173 = scmp.eq.s32.totalorder %s61, 3
      %p174 = por %p172, %p173
      %p176 = scmp.ne.s32.totalorder %s159, %s175
      %p177 = scmp.eq.s32.totalorder %s61, 0
      %p178 = por %p176, %p177
      %s179 = ssub.s32 %s63, %s70
      %p180 = scmp.eq.s32.totalorder %s179, 0
      %s182 = sadd.s32 %s181, 1
      %s183 = scalar_select %p180, %s181, %s182
      %p186 = pneg %p180
      %p187 = scmp.eq.s32.totalorder %s55, 3
      %p188 = por %p186, %p187
      %p189 = scmp.ne.s32.totalorder %s181, %s184
      %p190 = scmp.eq.s32.totalorder %s55, 0
      %p191 = por %p189, %p190
      %p192 = scmp.ne.s32.totalorder %s181, %s184
      %p193 = scmp.eq.s32.totalorder %s60, 3
      %p194 = por %p192, %p193
      %p195 = scmp.ne.s32.totalorder %s184, %s185
      %p196 = scmp.eq.s32.totalorder %s60, 0
      %p197 = por %p195, %p196
      %p198 = scmp.ne.s32.totalorder %s184, %s185
      %p199 = scmp.eq.s32.totalorder %s61, 3
      %p200 = por %p198, %p199
      %p202 = scmp.ne.s32.totalorder %s185, %s201
      %p203 = scmp.eq.s32.totalorder %s61, 0
      %p204 = por %p202, %p203
      %s205 = ssub.s32 %s63, %s70
      %p206 = scmp.eq.s32.totalorder %s205, 0
      %s208 = sadd.s32 %s207, 1
      %s209 = scalar_select %p206, %s207, %s208
      %p212 = pneg %p206
      %p213 = scmp.eq.s32.totalorder %s55, 3
      %p214 = por %p212, %p213
      %p215 = scmp.ne.s32.totalorder %s207, %s210
      %p216 = scmp.eq.s32.totalorder %s55, 0
      %p217 = por %p215, %p216
      %p218 = scmp.ne.s32.totalorder %s207, %s210
      %p219 = scmp.eq.s32.totalorder %s60, 3
      %p220 = por %p218, %p219
      %p221 = scmp.ne.s32.totalorder %s210, %s211
      %p222 = scmp.eq.s32.totalorder %s60, 0
      %p223 = por %p221, %p222
      %p224 = scmp.ne.s32.totalorder %s210, %s211
      %p225 = scmp.eq.s32.totalorder %s61, 3
      %p226 = por %p224, %p225
      %p228 = scmp.ne.s32.totalorder %s211, %s227
      %p229 = scmp.eq.s32.totalorder %s61, 0
      %p230 = por %p228, %p229
      %s231 = ssub.s32 %s63, %s70
      %p232 = scmp.eq.s32.totalorder %s231, 0
      %s234 = sadd.s32 %s233, 1
      %s235 = scalar_select %p232, %s233, %s234
      %p238 = pneg %p232
      %p239 = scmp.eq.s32.totalorder %s55, 3
      %p240 = por %p238, %p239
      %p241 = scmp.ne.s32.totalorder %s233, %s236
      %p242 = scmp.eq.s32.totalorder %s55, 0
      %p243 = por %p241, %p242
      %p244 = scmp.ne.s32.totalorder %s233, %s236
      %p245 = scmp.eq.s32.totalorder %s60, 3
      %p246 = por %p244, %p245
      %p247 = scmp.ne.s32.totalorder %s236, %s237
      %p248 = scmp.eq.s32.totalorder %s60, 0
      %p249 = por %p247, %p248
      %p250 = scmp.ne.s32.totalorder %s236, %s237
      %p251 = scmp.eq.s32.totalorder %s61, 3
      %p252 = por %p250, %p251
      %p254 = scmp.ne.s32.totalorder %s237, %s253
      %p255 = scmp.eq.s32.totalorder %s61, 0
      %p256 = por %p254, %p255
      %s257 = ssub.s32 %s63, %s70
      %p258 = scmp.eq.s32.totalorder %s257, 0
      %s260 = sadd.s32 %s259, 1
      %s261 = scalar_select %p258, %s259, %s260
      %p264 = pneg %p258
      %p265 = scmp.eq.s32.totalorder %s55, 3
      %p266 = por %p264, %p265
      %p267 = scmp.ne.s32.totalorder %s259, %s262
      %p268 = scmp.eq.s32.totalorder %s55, 0
      %p269 = por %p267, %p268
      %p270 = scmp.ne.s32.totalorder %s259, %s262
      %p271 = scmp.eq.s32.totalorder %s60, 3
      %p272 = por %p270, %p271
      %p273 = scmp.ne.s32.totalorder %s262, %s263
      %p274 = scmp.eq.s32.totalorder %s60, 0
      %p275 = por %p273, %p274
      %p276 = scmp.ne.s32.totalorder %s262, %s263
      %p277 = scmp.eq.s32.totalorder %s61, 3
      %p278 = por %p276, %p277
      %p280 = scmp.ne.s32.totalorder %s263, %s279
      %p281 = scmp.eq.s32.totalorder %s61, 0
      %p282 = por %p280, %p281
      %s283 = ssub.s32 %s63, %s70
      %p284 = scmp.eq.s32.totalorder %s283, 0
      %s286 = sadd.s32 %s285, 1
      %s287 = scalar_select %p284, %s285, %s286
      %p290 = pneg %p284
      %p291 = scmp.eq.s32.totalorder %s55, 3
      %p292 = por %p290, %p291
      %p293 = scmp.ne.s32.totalorder %s285, %s288
      %p294 = scmp.eq.s32.totalorder %s55, 0
      %p295 = por %p293, %p294
      %p296 = scmp.ne.s32.totalorder %s285, %s288
      %p297 = scmp.eq.s32.totalorder %s60, 3
      %p298 = por %p296, %p297
      %p299 = scmp.ne.s32.totalorder %s288, %s289
      %p300 = scmp.eq.s32.totalorder %s60, 0
      %p301 = por %p299, %p300
      %p302 = scmp.ne.s32.totalorder %s288, %s289
      %p303 = scmp.eq.s32.totalorder %s61, 3
      %p304 = por %p302, %p303
      %p306 = scmp.ne.s32.totalorder %s289, %s305
      %p307 = scmp.eq.s32.totalorder %s61, 0
      %p308 = por %p306, %p307
      %s309 = ssub.s32 %s63, %s70
      %p310 = scmp.eq.s32.totalorder %s309, 0
      %s312 = sadd.s32 %s311, 1
      %s313 = scalar_select %p310, %s311, %s312
      %p316 = pneg %p310
      %p317 = scmp.eq.s32.totalorder %s55, 3
      %p318 = por %p316, %p317
      %p319 = scmp.ne.s32.totalorder %s311, %s314
      %p320 = scmp.eq.s32.totalorder %s55, 0
      %p321 = por %p319, %p320
      %p322 = scmp.ne.s32.totalorder %s311, %s314
      %p323 = scmp.eq.s32.totalorder %s60, 3
      %p324 = por %p322, %p323
      %p325 = scmp.ne.s32.totalorder %s314, %s315
      %p326 = scmp.eq.s32.totalorder %s60, 0
      %p327 = por %p325, %p326
      %p328 = scmp.ne.s32.totalorder %s314, %s315
      %p329 = scmp.eq.s32.totalorder %s61, 3
      %p330 = por %p328, %p329
      %p332 = scmp.ne.s32.totalorder %s315, %s331
      %p333 = scmp.eq.s32.totalorder %s61, 0
      %p334 = por %p332, %p333
      %s335 = ssub.s32 %s63, %s70
      %p336 = scmp.eq.s32.totalorder %s335, 0
      %s338 = sadd.s32 %s337, 1
      %s339 = scalar_select %p336, %s337, %s338
      %p342 = pneg %p336
      %p343 = scmp.eq.s32.totalorder %s55, 3
      %p344 = por %p342, %p343
      %p345 = scmp.ne.s32.totalorder %s337, %s340
      %p346 = scmp.eq.s32.totalorder %s55, 0
      %p347 = por %p345, %p346
      %p348 = scmp.ne.s32.totalorder %s337, %s340
      %p349 = scmp.eq.s32.totalorder %s60, 3
      %p350 = por %p348, %p349
      %p351 = scmp.ne.s32.totalorder %s340, %s341
      %p352 = scmp.eq.s32.totalorder %s60, 0
      %p353 = por %p351, %p352
      %p354 = scmp.ne.s32.totalorder %s340, %s341
      %p355 = scmp.eq.s32.totalorder %s61, 3
      %p356 = por %p354, %p355
      %p358 = scmp.ne.s32.totalorder %s341, %s357
      %p359 = scmp.eq.s32.totalorder %s61, 0
      %p360 = por %p358, %p359
      %s361 = ssub.s32 %s63, %s70
      %p362 = scmp.eq.s32.totalorder %s361, 0
      %s364 = sadd.s32 %s363, 1
      %s365 = scalar_select %p362, %s363, %s364
      %p368 = pneg %p362
      %p369 = scmp.eq.s32.totalorder %s55, 3
      %p370 = por %p368, %p369
      %p371 = scmp.ne.s32.totalorder %s363, %s366
      %p372 = scmp.eq.s32.totalorder %s55, 0
      %p373 = por %p371, %p372
      %p374 = scmp.ne.s32.totalorder %s363, %s366
      %p375 = scmp.eq.s32.totalorder %s60, 3
      %p376 = por %p374, %p375
      %p377 = scmp.ne.s32.totalorder %s366, %s367
      %p378 = scmp.eq.s32.totalorder %s60, 0
      %p379 = por %p377, %p378
      %p380 = scmp.ne.s32.totalorder %s366, %s367
      %p381 = scmp.eq.s32.totalorder %s61, 3
      %p382 = por %p380, %p381
      %p384 = scmp.ne.s32.totalorder %s367, %s383
      %p385 = scmp.eq.s32.totalorder %s61, 0
      %p386 = por %p384, %p385
      %s387 = ssub.s32 %s63, %s70
      %p388 = scmp.eq.s32.totalorder %s387, 0
      %s390 = sadd.s32 %s389, 1
      %s391 = scalar_select %p388, %s389, %s390
      %p394 = pneg %p388
      %p395 = scmp.eq.s32.totalorder %s55, 3
      %p396 = por %p394, %p395
      %p397 = scmp.ne.s32.totalorder %s389, %s392
      %p398 = scmp.eq.s32.totalorder %s55, 0
      %p399 = por %p397, %p398
      %p400 = scmp.ne.s32.totalorder %s389, %s392
      %p401 = scmp.eq.s32.totalorder %s60, 3
      %p402 = por %p400, %p401
      %p403 = scmp.ne.s32.totalorder %s392, %s393
      %p404 = scmp.eq.s32.totalorder %s60, 0
      %p405 = por %p403, %p404
      %p406 = scmp.ne.s32.totalorder %s392, %s393
      %p407 = scmp.eq.s32.totalorder %s61, 3
      %p408 = por %p406, %p407
      %p410 = scmp.ne.s32.totalorder %s393, %s409
      %p411 = scmp.eq.s32.totalorder %s61, 0
      %p412 = por %p410, %p411
      %s413 = ssub.s32 %s63, %s70
      %p414 = scmp.eq.s32.totalorder %s413, 0
      %s416 = sadd.s32 %s415, 1
      %s417 = scalar_select %p414, %s415, %s416
      %p420 = pneg %p414
      %p421 = scmp.eq.s32.totalorder %s55, 3
      %p422 = por %p420, %p421
      %p423 = scmp.ne.s32.totalorder %s415, %s418
      %p424 = scmp.eq.s32.totalorder %s55, 0
      %p425 = por %p423, %p424
      %p426 = scmp.ne.s32.totalorder %s415, %s418
      %p427 = scmp.eq.s32.totalorder %s60, 3
      %p428 = por %p426, %p427
      %p429 = scmp.ne.s32.totalorder %s418, %s419
      %p430 = scmp.eq.s32.totalorder %s60, 0
      %p431 = por %p429, %p430
      %p432 = scmp.ne.s32.totalorder %s418, %s419
      %p433 = scmp.eq.s32.totalorder %s61, 3
      %p434 = por %p432, %p433
      %p436 = scmp.ne.s32.totalorder %s419, %s435
      %p437 = scmp.eq.s32.totalorder %s61, 0
      %p438 = por %p436, %p437
      %s440 = sadd.s32 %s439, 1
      %p443 = scmp.eq.s32.totalorder %s55, 3
      %p444 = scmp.ne.s32.totalorder %s439, %s441
      %p445 = scmp.eq.s32.totalorder %s55, 0
      %p446 = por %p444, %p445
      %p447 = scmp.ne.s32.totalorder %s439, %s441
      %p448 = scmp.eq.s32.totalorder %s60, 3
      %p449 = por %p447, %p448
      %p450 = scmp.ne.s32.totalorder %s441, %s442
      %p451 = scmp.eq.s32.totalorder %s60, 0
      %p452 = por %p450, %p451
      %p453 = scmp.ne.s32.totalorder %s441, %s442
      %p454 = scmp.eq.s32.totalorder %s61, 3
      %p455 = por %p453, %p454
      %p457 = scmp.ne.s32.totalorder %s442, %s456
      %p458 = scmp.eq.s32.totalorder %s61, 0
      %p459 = por %p457, %p458
      %s461 = sadd.s32 %s460, 1
      %p464 = scmp.eq.s32.totalorder %s55, 3
      %p465 = scmp.ne.s32.totalorder %s460, %s462
      %p466 = scmp.eq.s32.totalorder %s55, 0
      %p467 = por %p465, %p466
      %p468 = scmp.ne.s32.totalorder %s460, %s462
      %p469 = scmp.eq.s32.totalorder %s60, 3
      %p470 = por %p468, %p469
      %p471 = scmp.ne.s32.totalorder %s462, %s463
      %p472 = scmp.eq.s32.totalorder %s60, 0
      %p473 = por %p471, %p472
      %p474 = scmp.ne.s32.totalorder %s462, %s463
      %p475 = scmp.eq.s32.totalorder %s61, 3
      %p476 = por %p474, %p475
      %p478 = scmp.ne.s32.totalorder %s463, %s477
      %p479 = scmp.eq.s32.totalorder %s61, 0
      %p480 = por %p478, %p479
      %s481 = ssub.s32 %s62, %s74
      %p482 = scmp.eq.s32.totalorder %s481, 0
      %s484 = sadd.s32 %s483, 1
      %s485 = scalar_select %p482, %s483, %s484
      %p488 = pneg %p482
      %p489 = scmp.eq.s32.totalorder %s55, 3
      %p490 = por %p488, %p489
      %p491 = scmp.ne.s32.totalorder %s483, %s486
      %p492 = scmp.eq.s32.totalorder %s55, 0
      %p493 = por %p491, %p492
      %p494 = scmp.ne.s32.totalorder %s483, %s486
      %p495 = scmp.eq.s32.totalorder %s60, 3
      %p496 = por %p494, %p495
      %p497 = scmp.ne.s32.totalorder %s486, %s487
      %p498 = scmp.eq.s32.totalorder %s60, 0
      %p499 = por %p497, %p498
      %p500 = scmp.ne.s32.totalorder %s486, %s487
      %p501 = scmp.eq.s32.totalorder %s61, 3
      %p502 = por %p500, %p501
      %p504 = scmp.ne.s32.totalorder %s487, %s503
      %p505 = scmp.eq.s32.totalorder %s61, 0
      %p506 = por %p504, %p505
      %s507 = ssub.s32 %s63, %s70
      %s508 = ssub.s32 %s62, %s74
      %s509 = sor.u32 %s507, %s508
      %p510 = scmp.eq.s32.totalorder %s509, 0
      %s512 = sadd.s32 %s511, 1
      %s513 = scalar_select %p510, %s511, %s512
      %p516 = pneg %p510
      %p517 = scmp.eq.s32.totalorder %s55, 3
      %p518 = por %p516, %p517
      %p519 = scmp.ne.s32.totalorder %s511, %s514
      %p520 = scmp.eq.s32.totalorder %s55, 0
      %p521 = por %p519, %p520
      %p522 = scmp.ne.s32.totalorder %s511, %s514
      %p523 = scmp.eq.s32.totalorder %s60, 3
      %p524 = por %p522, %p523
      %p525 = scmp.ne.s32.totalorder %s514, %s515
      %p526 = scmp.eq.s32.totalorder %s60, 0
      %p527 = por %p525, %p526
      %p528 = scmp.ne.s32.totalorder %s514, %s515
      %p529 = scmp.eq.s32.totalorder %s61, 3
      %p530 = por %p528, %p529
      %p532 = scmp.ne.s32.totalorder %s515, %s531
      %p533 = scmp.eq.s32.totalorder %s61, 0
      %p534 = por %p532, %p533
      %p535 = scmp.le.s32.totalorder 1, %s55
      %p536 = scmp.lt.s32.totalorder %s55, 5
      %p537 = pnand %p535, %p536
      %p538 = pneg %p537
      // Predicated region
      $region9: #{transformer_forward.5} parent=5 // pred_check
        _
      $region10: #{transformer_forward.5} parent=5 // pred_check_branch
        %540 = sbr.rel (%p537) target = $region12
      $region11: #{transformer_forward.5} parent=5 // pred_region
        %s541 = ssub.s32 %s55, 1
        // Predicated region
        $region13: #{transformer_forward.5} parent=11 // pred_check
          %p542 = pneg %p452
        $region14: #{transformer_forward.5} parent=11 // pred_check_branch
          %544 = sbr.rel (%p542) target = $region16
        $region15: #{transformer_forward.5} parent=11 // pred_region
          %s546 = ssub.s32 16, 16
          %547 = vsyncadd [#allocation25], %s546
          %s549 = sshll.u32 [#allocation26], 4
          %s550 = int_to_ptr.vmem [resolvable:$true] %s549
          %552 = dma.hbm_to_vmem [thread:$0]  %s14, 16, %s550, [#allocation25]
        $region16: #{transformer_forward.5} parent=11 // pred_fallthru
          _
        // Predicated region
        $region17: #{transformer_forward.5} parent=11 // pred_check
          %p553 = pneg %p473
        $region18: #{transformer_forward.5} parent=11 // pred_check_branch
          %555 = sbr.rel (%p553) target = $region20
        $region19: #{transformer_forward.5} parent=11 // pred_region
          %s557 = ssub.s32 16, 16
          %558 = vsyncadd [#allocation28], %s557
          %s560 = sshll.u32 [#allocation27], 4
          %s561 = int_to_ptr.vmem [resolvable:$true] %s560
          %563 = dma.hbm_to_vmem [thread:$0]  %s15, 16, %s561, [#allocation28]
        $region20: #{transformer_forward.5} parent=11 // pred_fallthru
          _
      $region12: #{transformer_forward.5} parent=5 // pred_fallthru
        _
      %p564 = scmp.lt.s32.totalorder %s55, 4
      // Predicated region
      $region21: #{transformer_forward.5} parent=5 // pred_check
        %p565 = pneg %p564
      $region22: #{transformer_forward.5} parent=5 // pred_check_branch
        %567 = sbr.rel (%p565) target = $region24
      $region23: #{transformer_forward.5} parent=5 // pred_region
        // Predicated region
        $region25: #{transformer_forward.5} parent=23 // pred_check
          %p568 = pneg %p87
        $region26: #{transformer_forward.5} parent=23 // pred_check_branch
          %570 = sbr.rel (%p568) target = $region28
        $region27: #{transformer_forward.5} parent=23 // pred_region
          %s571 = sand.u32 %s77, 1
          %s572 = scalar_lea.sflag [#allocation4], %s571
          %s573 = sand.u32 %s77, 1
          %s574 = smul.addr %s573, 8
          %s575 = scalar_lea.vmem [#allocation3], %s574
          %s577 = ssub.s32 128, 128
          %578 = vsyncadd %s572, %s577
          %s579 = smul.addr %s62, 128
          %s580 = scalar_lea.hbm %s0, %s579
          %s582 = sshll.u32 %s575, 4
          %s583 = int_to_ptr.vmem [resolvable:$true] %s582
          %585 = dma.hbm_to_vmem [thread:$0]  %s580, 128, %s583, %s572
        $region28: #{transformer_forward.5} parent=23 // pred_fallthru
          _
        // Predicated region
        $region29: #{transformer_forward.5} parent=23 // pred_check
          %p586 = pneg %p113
        $region30: #{transformer_forward.5} parent=23 // pred_check_branch
          %588 = sbr.rel (%p586) target = $region32
        $region31: #{transformer_forward.5} parent=23 // pred_region
          %s589 = sand.u32 %s55, 1
          %s590 = scalar_lea.sflag [#allocation7], %s589
          %s591 = sand.u32 %s103, 1
          %s592 = scalar_lea.vmem [#allocation6], %s591
          %s594 = ssub.s32 16, 16
          %595 = vsyncadd %s590, %s594
          %s596 = smul.addr %s62, 16
          %s597 = scalar_lea.hbm %s1, %s596
          %s599 = sshll.u32 %s592, 4
          %s600 = int_to_ptr.vmem [resolvable:$true] %s599
          %602 = dma.hbm_to_vmem [thread:$0]  %s597, 16, %s600, %s590
        $region32: #{transformer_forward.5} parent=23 // pred_fallthru
          _
        // Predicated region
        $region33: #{transformer_forward.5} parent=23 // pred_check
          %p603 = pneg %p139
        $region34: #{transformer_forward.5} parent=23 // pred_check_branch
          %605 = sbr.rel (%p603) target = $region36
        $region35: #{transformer_forward.5} parent=23 // pred_region
          %s606 = sand.u32 %s55, 1
          %s607 = scalar_lea.sflag [#allocation7], %s606
          %s608 = sand.u32 %s129, 1
          %s609 = scalar_lea.vmem [#allocation8], %s608
          %s611 = ssub.s32 16, 16
          %612 = vsyncadd %s607, %s611
          %s613 = smul.addr %s63, 16
          %s614 = scalar_lea.hbm %s2, %s613
          %s616 = sshll.u32 %s609, 4
          %s617 = int_to_ptr.vmem [resolvable:$true] %s616
          %619 = dma.hbm_to_vmem [thread:$0]  %s614, 16, %s617, %s607
        $region36: #{transformer_forward.5} parent=23 // pred_fallthru
          _
        // Predicated region
        $region37: #{transformer_forward.5} parent=23 // pred_check
          %p620 = pneg %p165
        $region38: #{transformer_forward.5} parent=23 // pred_check_branch
          %622 = sbr.rel (%p620) target = $region40
        $region39: #{transformer_forward.5} parent=23 // pred_region
          %s623 = sand.u32 %s55, 1
          %s624 = scalar_lea.sflag [#allocation10], %s623
          %s625 = sand.u32 %s155, 1
          %s626 = scalar_lea.vmem [#allocation9], %s625
          %s628 = ssub.s32 16, 16
          %629 = vsyncadd %s624, %s628
          %s630 = smul.addr %s63, 16
          %s631 = scalar_lea.hbm %s3, %s630
          %s633 = sshll.u32 %s626, 4
          %s634 = int_to_ptr.vmem [resolvable:$true] %s633
          %636 = dma.hbm_to_vmem [thread:$0]  %s631, 16, %s634, %s624
        $region40: #{transformer_forward.5} parent=23 // pred_fallthru
          _
        // Predicated region
        $region41: #{transformer_forward.5} parent=23 // pred_check
          %p637 = pneg %p191
        $region42: #{transformer_forward.5} parent=23 // pred_check_branch
          %639 = sbr.rel (%p637) target = $region44
        $region43: #{transformer_forward.5} parent=23 // pred_region
          %s640 = sand.u32 %s55, 1
          %s641 = scalar_lea.sflag [#allocation10], %s640
          %s642 = sand.u32 %s181, 1
          %s643 = smul.addr %s642, 16
          %s644 = scalar_lea.vmem [#allocation11], %s643
          %s646 = ssub.s32 256, 256
          %647 = vsyncadd %s641, %s646
          %s648 = smul.addr %s63, 4
          %s649 = smul.addr %s648, 64
          %s650 = scalar_lea.hbm %s4, %s649
          %s651 = sshll.u32 %s644, 4
          %s652 = int_to_ptr.vmem [resolvable:$true] %s651
          %657 = dma.hbm_to_vmem [thread:$0]  %s650, 256, %s652, %s641, 64, 64, 4
        $region44: #{transformer_forward.5} parent=23 // pred_fallthru
          _
        // Predicated region
        $region45: #{transformer_forward.5} parent=23 // pred_check
          %p658 = pneg %p217
        $region46: #{transformer_forward.5} parent=23 // pred_check_branch
          %660 = sbr.rel (%p658) target = $region48
        $region47: #{transformer_forward.5} parent=23 // pred_region
          %s661 = sand.u32 %s55, 1
          %s662 = scalar_lea.sflag [#allocation13], %s661
          %s663 = sand.u32 %s207, 1
          %s664 = scalar_lea.vmem [#allocation12], %s663
          %s666 = ssub.s32 16, 16
          %667 = vsyncadd %s662, %s666
          %s668 = smul.addr %s63, 16
          %s669 = scalar_lea.hbm %s5, %s668
          %s671 = sshll.u32 %s664, 4
          %s672 = int_to_ptr.vmem [resolvable:$true] %s671
          %674 = dma.hbm_to_vmem [thread:$0]  %s669, 16, %s672, %s662
        $region48: #{transformer_forward.5} parent=23 // pred_fallthru
          _
        // Predicated region
        $region49: #{transformer_forward.5} parent=23 // pred_check
          %p675 = pneg %p243
        $region50: #{transformer_forward.5} parent=23 // pred_check_branch
          %677 = sbr.rel (%p675) target = $region52
        $region51: #{transformer_forward.5} parent=23 // pred_region
          %s678 = sand.u32 %s55, 1
          %s679 = scalar_lea.sflag [#allocation13], %s678
          %s680 = sand.u32 %s233, 1
          %s681 = smul.addr %s680, 16
          %s682 = scalar_lea.vmem [#allocation14], %s681
          %s684 = ssub.s32 256, 256
          %685 = vsyncadd %s679, %s684
          %s686 = smul.addr %s63, 4
          %s687 = smul.addr %s686, 64
          %s688 = scalar_lea.hbm %s6, %s687
          %s689 = sshll.u32 %s682, 4
          %s690 = int_to_ptr.vmem [resolvable:$true] %s689
          %695 = dma.hbm_to_vmem [thread:$0]  %s688, 256, %s690, %s679, 64, 64, 4
        $region52: #{transformer_forward.5} parent=23 // pred_fallthru
          _
        // Predicated region
        $region53: #{transformer_forward.5} parent=23 // pred_check
          %p696 = pneg %p269
        $region54: #{transformer_forward.5} parent=23 // pred_check_branch
          %698 = sbr.rel (%p696) target = $region56
        $region55: #{transformer_forward.5} parent=23 // pred_region
          %s699 = sand.u32 %s55, 1
          %s700 = scalar_lea.sflag [#allocation16], %s699
          %s701 = sand.u32 %s259, 1
          %s702 = scalar_lea.vmem [#allocation15], %s701
          %s704 = ssub.s32 16, 16
          %705 = vsyncadd %s700, %s704
          %s706 = smul.addr %s63, 16
          %s707 = scalar_lea.hbm %s7, %s706
          %s709 = sshll.u32 %s702, 4
          %s710 = int_to_ptr.vmem [resolvable:$true] %s709
          %712 = dma.hbm_to_vmem [thread:$0]  %s707, 16, %s710, %s700
        $region56: #{transformer_forward.5} parent=23 // pred_fallthru
          _
        // Predicated region
        $region57: #{transformer_forward.5} parent=23 // pred_check
          %p713 = pneg %p295
        $region58: #{transformer_forward.5} parent=23 // pred_check_branch
          %715 = sbr.rel (%p713) target = $region60
        $region59: #{transformer_forward.5} parent=23 // pred_region
          %s716 = sand.u32 %s55, 1
          %s717 = scalar_lea.sflag [#allocation16], %s716
          %s718 = sand.u32 %s285, 1
          %s719 = scalar_lea.vmem [#allocation17], %s718
          %s721 = ssub.s32 16, 16
          %722 = vsyncadd %s717, %s721
          %s723 = smul.addr %s63, 16
          %s724 = scalar_lea.hbm %s8, %s723
          %s726 = sshll.u32 %s719, 4
          %s727 = int_to_ptr.vmem [resolvable:$true] %s726
          %729 = dma.hbm_to_vmem [thread:$0]  %s724, 16, %s727, %s717
        $region60: #{transformer_forward.5} parent=23 // pred_fallthru
          _
        // Predicated region
        $region61: #{transformer_forward.5} parent=23 // pred_check
          %p730 = pneg %p321
        $region62: #{transformer_forward.5} parent=23 // pred_check_branch
          %732 = sbr.rel (%p730) target = $region64
        $region63: #{transformer_forward.5} parent=23 // pred_region
          %s733 = sand.u32 %s55, 1
          %s734 = scalar_lea.sflag [#allocation19], %s733
          %s735 = sand.u32 %s311, 1
          %s736 = scalar_lea.vmem [#allocation18], %s735
          %s738 = ssub.s32 16, 16
          %739 = vsyncadd %s734, %s738
          %s740 = smul.addr %s63, 16
          %s741 = scalar_lea.hbm %s9, %s740
          %s743 = sshll.u32 %s736, 4
          %s744 = int_to_ptr.vmem [resolvable:$true] %s743
          %746 = dma.hbm_to_vmem [thread:$0]  %s741, 16, %s744, %s734
        $region64: #{transformer_forward.5} parent=23 // pred_fallthru
          _
        // Predicated region
        $region65: #{transformer_forward.5} parent=23 // pred_check
          %p747 = pneg %p347
        $region66: #{transformer_forward.5} parent=23 // pred_check_branch
          %749 = sbr.rel (%p747) target = $region68
        $region67: #{transformer_forward.5} parent=23 // pred_region
          %s750 = sand.u32 %s55, 1
          %s751 = scalar_lea.sflag [#allocation19], %s750
          %s752 = sand.u32 %s337, 1
          %s753 = smul.addr %s752, 16
          %s754 = scalar_lea.vmem [#allocation20], %s753
          %s756 = ssub.s32 256, 256
          %757 = vsyncadd %s751, %s756
          %s758 = smul.addr %s63, 4
          %s759 = smul.addr %s758, 64
          %s760 = scalar_lea.hbm %s10, %s759
          %s761 = sshll.u32 %s754, 4
          %s762 = int_to_ptr.vmem [resolvable:$true] %s761
          %767 = dma.hbm_to_vmem [thread:$0]  %s760, 256, %s762, %s751, 64, 64, 4
        $region68: #{transformer_forward.5} parent=23 // pred_fallthru
          _
        // Predicated region
        $region69: #{transformer_forward.5} parent=23 // pred_check
          %p768 = pneg %p373
        $region70: #{transformer_forward.5} parent=23 // pred_check_branch
          %770 = sbr.rel (%p768) target = $region72
        $region71: #{transformer_forward.5} parent=23 // pred_region
          %s771 = sand.u32 %s55, 1
          %s772 = scalar_lea.sflag [#allocation22], %s771
          %s773 = sand.u32 %s363, 1
          %s774 = scalar_lea.vmem [#allocation21], %s773
          %s776 = ssub.s32 16, 16
          %777 = vsyncadd %s772, %s776
          %s778 = smul.addr %s63, 16
          %s779 = scalar_lea.hbm %s11, %s778
          %s781 = sshll.u32 %s774, 4
          %s782 = int_to_ptr.vmem [resolvable:$true] %s781
          %784 = dma.hbm_to_vmem [thread:$0]  %s779, 16, %s782, %s772
        $region72: #{transformer_forward.5} parent=23 // pred_fallthru
          _
        // Predicated region
        $region73: #{transformer_forward.5} parent=23 // pred_check
          %p785 = pneg %p399
        $region74: #{transformer_forward.5} parent=23 // pred_check_branch
          %787 = sbr.rel (%p785) target = $region76
        $region75: #{transformer_forward.5} parent=23 // pred_region
          %s788 = sand.u32 %s55, 1
          %s789 = scalar_lea.sflag [#allocation22], %s788
          %s790 = sand.u32 %s389, 1
          %s791 = smul.addr %s790, 32
          %s792 = scalar_lea.vmem [#allocation23], %s791
          %s794 = ssub.s32 512, 512
          %795 = vsyncadd %s789, %s794
          %s796 = smul.addr %s63, 8
          %s797 = smul.addr %s796, 64
          %s798 = scalar_lea.hbm %s12, %s797
          %s799 = sshll.u32 %s792, 4
          %s800 = int_to_ptr.vmem [resolvable:$true] %s799
          %805 = dma.hbm_to_vmem [thread:$0]  %s798, 512, %s800, %s789, 64, 64, 4
        $region76: #{transformer_forward.5} parent=23 // pred_fallthru
          _
        // Predicated region
        $region77: #{transformer_forward.5} parent=23 // pred_check
          %p806 = pneg %p425
        $region78: #{transformer_forward.5} parent=23 // pred_check_branch
          %808 = sbr.rel (%p806) target = $region80
        $region79: #{transformer_forward.5} parent=23 // pred_region
          %s809 = sand.u32 %s55, 1
          %s810 = scalar_lea.sflag [#allocation25], %s809
          %s811 = sand.u32 %s415, 1
          %s812 = scalar_lea.vmem [#allocation24], %s811
          %s814 = ssub.s32 16, 16
          %815 = vsyncadd %s810, %s814
          %s816 = smul.addr %s63, 16
          %s817 = scalar_lea.hbm %s13, %s816
          %s819 = sshll.u32 %s812, 4
          %s820 = int_to_ptr.vmem [resolvable:$true] %s819
          %822 = dma.hbm_to_vmem [thread:$0]  %s817, 16, %s820, %s810
        $region80: #{transformer_forward.5} parent=23 // pred_fallthru
          _
      $region24: #{transformer_forward.5} parent=5 // pred_fallthru
        _
      %p823 = scmp.le.s32.totalorder 1, %s55
      %p824 = scmp.lt.s32.totalorder %s55, 5
      %p825 = pnand %p823, %p824
      %p826 = pneg %p825
      // Predicated region
      $region81: #{transformer_forward.5} parent=5 // pred_check
        _
      $region82: #{transformer_forward.5} parent=5 // pred_check_branch
        %828 = sbr.rel (%p825) target = $region84
      $region83: #{transformer_forward.5} parent=5 // pred_region
        %s829 = ssub.s32 %s55, 1
        %s830 = sand.u32 %s80, 1
        %s831 = scalar_lea.sflag [#allocation4], %s830
        %s832 = sand.u32 %s80, 1
        %s833 = smul.addr %s832, 8
        %s834 = scalar_lea.vmem [#allocation3], %s833
        // Predicated region
        $region85: #{transformer_forward.5} parent=83 // pred_check
          %p835 = pneg %p93
        $region86: #{transformer_forward.5} parent=83 // pred_check_branch
          %837 = sbr.rel (%p835) target = $region88
        $region87: #{transformer_forward.5} parent=83 // pred_region
          %838 = dma.done %s831, 128
        $region88: #{transformer_forward.5} parent=83 // pred_fallthru
          _
        %s839 = sand.u32 %s60, 1
        %s840 = scalar_lea.sflag [#allocation7], %s839
        %s841 = sand.u32 %s106, 1
        %s842 = scalar_lea.vmem [#allocation6], %s841
        // Predicated region
        $region89: #{transformer_forward.5} parent=83 // pred_check
          %p843 = pneg %p119
        $region90: #{transformer_forward.5} parent=83 // pred_check_branch
          %845 = sbr.rel (%p843) target = $region92
        $region91: #{transformer_forward.5} parent=83 // pred_region
          %846 = dma.done %s840, 16
        $region92: #{transformer_forward.5} parent=83 // pred_fallthru
          _
        %s847 = sand.u32 %s60, 1
        %s848 = scalar_lea.sflag [#allocation7], %s847
        %s849 = sand.u32 %s132, 1
        %s850 = scalar_lea.vmem [#allocation8], %s849
        // Predicated region
        $region93: #{transformer_forward.5} parent=83 // pred_check
          %p851 = pneg %p145
        $region94: #{transformer_forward.5} parent=83 // pred_check_branch
          %853 = sbr.rel (%p851) target = $region96
        $region95: #{transformer_forward.5} parent=83 // pred_region
          %854 = dma.done %s848, 16
        $region96: #{transformer_forward.5} parent=83 // pred_fallthru
          _
        %s855 = sand.u32 %s60, 1
        %s856 = scalar_lea.sflag [#allocation10], %s855
        %s857 = sand.u32 %s158, 1
        %s858 = scalar_lea.vmem [#allocation9], %s857
        // Predicated region
        $region97: #{transformer_forward.5} parent=83 // pred_check
          %p859 = pneg %p171
        $region98: #{transformer_forward.5} parent=83 // pred_check_branch
          %861 = sbr.rel (%p859) target = $region100
        $region99: #{transformer_forward.5} parent=83 // pred_region
          %862 = dma.done %s856, 16
        $region100: #{transformer_forward.5} parent=83 // pred_fallthru
          _
        %s863 = sand.u32 %s60, 1
        %s864 = scalar_lea.sflag [#allocation10], %s863
        %s865 = sand.u32 %s184, 1
        %s866 = smul.addr %s865, 16
        %s867 = scalar_lea.vmem [#allocation11], %s866
        // Predicated region
        $region101: #{transformer_forward.5} parent=83 // pred_check
          %p868 = pneg %p197
        $region102: #{transformer_forward.5} parent=83 // pred_check_branch
          %870 = sbr.rel (%p868) target = $region104
        $region103: #{transformer_forward.5} parent=83 // pred_region
          %871 = dma.done %s864, 256
        $region104: #{transformer_forward.5} parent=83 // pred_fallthru
          _
        %s872 = sand.u32 %s60, 1
        %s873 = scalar_lea.sflag [#allocation13], %s872
        %s874 = sand.u32 %s210, 1
        %s875 = scalar_lea.vmem [#allocation12], %s874
        // Predicated region
        $region105: #{transformer_forward.5} parent=83 // pred_check
          %p876 = pneg %p223
        $region106: #{transformer_forward.5} parent=83 // pred_check_branch
          %878 = sbr.rel (%p876) target = $region108
        $region107: #{transformer_forward.5} parent=83 // pred_region
          %879 = dma.done %s873, 16
        $region108: #{transformer_forward.5} parent=83 // pred_fallthru
          _
        %s880 = sand.u32 %s60, 1
        %s881 = scalar_lea.sflag [#allocation13], %s880
        %s882 = sand.u32 %s236, 1
        %s883 = smul.addr %s882, 16
        %s884 = scalar_lea.vmem [#allocation14], %s883
        // Predicated region
        $region109: #{transformer_forward.5} parent=83 // pred_check
          %p885 = pneg %p249
        $region110: #{transformer_forward.5} parent=83 // pred_check_branch
          %887 = sbr.rel (%p885) target = $region112
        $region111: #{transformer_forward.5} parent=83 // pred_region
          %888 = dma.done %s881, 256
        $region112: #{transformer_forward.5} parent=83 // pred_fallthru
          _
        %s889 = sand.u32 %s60, 1
        %s890 = scalar_lea.sflag [#allocation16], %s889
        %s891 = sand.u32 %s262, 1
        %s892 = scalar_lea.vmem [#allocation15], %s891
        // Predicated region
        $region113: #{transformer_forward.5} parent=83 // pred_check
          %p893 = pneg %p275
        $region114: #{transformer_forward.5} parent=83 // pred_check_branch
          %895 = sbr.rel (%p893) target = $region116
        $region115: #{transformer_forward.5} parent=83 // pred_region
          %896 = dma.done %s890, 16
        $region116: #{transformer_forward.5} parent=83 // pred_fallthru
          _
        %s897 = sand.u32 %s60, 1
        %s898 = scalar_lea.sflag [#allocation16], %s897
        %s899 = sand.u32 %s288, 1
        %s900 = scalar_lea.vmem [#allocation17], %s899
        // Predicated region
        $region117: #{transformer_forward.5} parent=83 // pred_check
          %p901 = pneg %p301
        $region118: #{transformer_forward.5} parent=83 // pred_check_branch
          %903 = sbr.rel (%p901) target = $region120
        $region119: #{transformer_forward.5} parent=83 // pred_region
          %904 = dma.done %s898, 16
        $region120: #{transformer_forward.5} parent=83 // pred_fallthru
          _
        %s905 = sand.u32 %s60, 1
        %s906 = scalar_lea.sflag [#allocation19], %s905
        %s907 = sand.u32 %s314, 1
        %s908 = scalar_lea.vmem [#allocation18], %s907
        // Predicated region
        $region121: #{transformer_forward.5} parent=83 // pred_check
          %p909 = pneg %p327
        $region122: #{transformer_forward.5} parent=83 // pred_check_branch
          %911 = sbr.rel (%p909) target = $region124
        $region123: #{transformer_forward.5} parent=83 // pred_region
          %912 = dma.done %s906, 16
        $region124: #{transformer_forward.5} parent=83 // pred_fallthru
          _
        %s913 = sand.u32 %s60, 1
        %s914 = scalar_lea.sflag [#allocation19], %s913
        %s915 = sand.u32 %s340, 1
        %s916 = smul.addr %s915, 16
        %s917 = scalar_lea.vmem [#allocation20], %s916
        // Predicated region
        $region125: #{transformer_forward.5} parent=83 // pred_check
          %p918 = pneg %p353
        $region126: #{transformer_forward.5} parent=83 // pred_check_branch
          %920 = sbr.rel (%p918) target = $region128
        $region127: #{transformer_forward.5} parent=83 // pred_region
          %921 = dma.done %s914, 256
        $region128: #{transformer_forward.5} parent=83 // pred_fallthru
          _
        %s922 = sand.u32 %s60, 1
        %s923 = scalar_lea.sflag [#allocation22], %s922
        %s924 = sand.u32 %s366, 1
        %s925 = scalar_lea.vmem [#allocation21], %s924
        // Predicated region
        $region129: #{transformer_forward.5} parent=83 // pred_check
          %p926 = pneg %p379
        $region130: #{transformer_forward.5} parent=83 // pred_check_branch
          %928 = sbr.rel (%p926) target = $region132
        $region131: #{transformer_forward.5} parent=83 // pred_region
          %929 = dma.done %s923, 16
        $region132: #{transformer_forward.5} parent=83 // pred_fallthru
          _
        %s930 = sand.u32 %s60, 1
        %s931 = scalar_lea.sflag [#allocation22], %s930
        %s932 = sand.u32 %s392, 1
        %s933 = smul.addr %s932, 32
        %s934 = scalar_lea.vmem [#allocation23], %s933
        // Predicated region
        $region133: #{transformer_forward.5} parent=83 // pred_check
          %p935 = pneg %p405
        $region134: #{transformer_forward.5} parent=83 // pred_check_branch
          %937 = sbr.rel (%p935) target = $region136
        $region135: #{transformer_forward.5} parent=83 // pred_region
          %938 = dma.done %s931, 512
        $region136: #{transformer_forward.5} parent=83 // pred_fallthru
          _
        %s939 = sand.u32 %s60, 1
        %s940 = scalar_lea.sflag [#allocation25], %s939
        %s941 = sand.u32 %s418, 1
        %s942 = scalar_lea.vmem [#allocation24], %s941
        // Predicated region
        $region137: #{transformer_forward.5} parent=83 // pred_check
          %p943 = pneg %p431
        $region138: #{transformer_forward.5} parent=83 // pred_check_branch
          %945 = sbr.rel (%p943) target = $region140
        $region139: #{transformer_forward.5} parent=83 // pred_region
          %946 = dma.done %s940, 16
        $region140: #{transformer_forward.5} parent=83 // pred_fallthru
          _
        // Predicated region
        $region141: #{transformer_forward.5} parent=83 // pred_check
          %p947 = pneg %p452
        $region142: #{transformer_forward.5} parent=83 // pred_check_branch
          %949 = sbr.rel (%p947) target = $region144
        $region143: #{transformer_forward.5} parent=83 // pred_region
          %950 = dma.done [#allocation25], 16
        $region144: #{transformer_forward.5} parent=83 // pred_fallthru
          _
        // Predicated region
        $region145: #{transformer_forward.5} parent=83 // pred_check
          %p951 = pneg %p473
        $region146: #{transformer_forward.5} parent=83 // pred_check_branch
          %953 = sbr.rel (%p951) target = $region148
        $region147: #{transformer_forward.5} parent=83 // pred_region
          %954 = dma.done [#allocation28], 16
        $region148: #{transformer_forward.5} parent=83 // pred_fallthru
          _
        %s955 = sand.u32 %s80, 1
        %s956 = scalar_lea.sflag [#allocation4], %s955
        %s957 = sand.u32 %s80, 1
        %s958 = smul.addr %s957, 8
        %s959 = scalar_lea.vmem [#allocation3], %s958
        %p960 = pneg %p93
        %p961 = pneg %p90
        %s962 = sand.u32 %s60, 1
        %s963 = scalar_lea.sflag [#allocation7], %s962
        %s964 = sand.u32 %s106, 1
        %s965 = scalar_lea.vmem [#allocation6], %s964
        %p966 = pneg %p119
        %p967 = pneg %p116
        %s968 = sand.u32 %s60, 1
        %s969 = scalar_lea.sflag [#allocation7], %s968
        %s970 = sand.u32 %s132, 1
        %s971 = scalar_lea.vmem [#allocation8], %s970
        %p972 = pneg %p145
        %p973 = pneg %p142
        %s974 = sand.u32 %s60, 1
        %s975 = scalar_lea.sflag [#allocation10], %s974
        %s976 = sand.u32 %s158, 1
        %s977 = scalar_lea.vmem [#allocation9], %s976
        %p978 = pneg %p171
        %p979 = pneg %p168
        %s980 = sand.u32 %s60, 1
        %s981 = scalar_lea.sflag [#allocation10], %s980
        %s982 = sand.u32 %s184, 1
        %s983 = smul.addr %s982, 16
        %s984 = scalar_lea.vmem [#allocation11], %s983
        %p985 = pneg %p197
        %p986 = pneg %p194
        %s987 = sand.u32 %s60, 1
        %s988 = scalar_lea.sflag [#allocation13], %s987
        %s989 = sand.u32 %s210, 1
        %s990 = scalar_lea.vmem [#allocation12], %s989
        %p991 = pneg %p223
        %p992 = pneg %p220
        %s993 = sand.u32 %s60, 1
        %s994 = scalar_lea.sflag [#allocation13], %s993
        %s995 = sand.u32 %s236, 1
        %s996 = smul.addr %s995, 16
        %s997 = scalar_lea.vmem [#allocation14], %s996
        %p998 = pneg %p249
        %p999 = pneg %p246
        %s1000 = sand.u32 %s60, 1
        %s1001 = scalar_lea.sflag [#allocation16], %s1000
        %s1002 = sand.u32 %s262, 1
        %s1003 = scalar_lea.vmem [#allocation15], %s1002
        %p1004 = pneg %p275
        %p1005 = pneg %p272
        %s1006 = sand.u32 %s60, 1
        %s1007 = scalar_lea.sflag [#allocation16], %s1006
        %s1008 = sand.u32 %s288, 1
        %s1009 = scalar_lea.vmem [#allocation17], %s1008
        %p1010 = pneg %p301
        %p1011 = pneg %p298
        %s1012 = sand.u32 %s60, 1
        %s1013 = scalar_lea.sflag [#allocation19], %s1012
        %s1014 = sand.u32 %s314, 1
        %s1015 = scalar_lea.vmem [#allocation18], %s1014
        %p1016 = pneg %p327
        %p1017 = pneg %p324
        %s1018 = sand.u32 %s60, 1
        %s1019 = scalar_lea.sflag [#allocation19], %s1018
        %s1020 = sand.u32 %s340, 1
        %s1021 = smul.addr %s1020, 16
        %s1022 = scalar_lea.vmem [#allocation20], %s1021
        %p1023 = pneg %p353
        %p1024 = pneg %p350
        %s1025 = sand.u32 %s60, 1
        %s1026 = scalar_lea.sflag [#allocation22], %s1025
        %s1027 = sand.u32 %s366, 1
        %s1028 = scalar_lea.vmem [#allocation21], %s1027
        %p1029 = pneg %p379
        %p1030 = pneg %p376
        %s1031 = sand.u32 %s60, 1
        %s1032 = scalar_lea.sflag [#allocation22], %s1031
        %s1033 = sand.u32 %s392, 1
        %s1034 = smul.addr %s1033, 32
        %s1035 = scalar_lea.vmem [#allocation23], %s1034
        %p1036 = pneg %p405
        %p1037 = pneg %p402
        %s1038 = sand.u32 %s60, 1
        %s1039 = scalar_lea.sflag [#allocation25], %s1038
        %s1040 = sand.u32 %s418, 1
        %s1041 = scalar_lea.vmem [#allocation24], %s1040
        %p1042 = pneg %p431
        %p1043 = pneg %p428
        %p1044 = pneg %p452
        %p1045 = pneg %p449
        %p1046 = pneg %p473
        %p1047 = pneg %p470
        %p1048 = pneg %p499
        %p1049 = pneg %p496
        %s1050 = sand.u32 %s486, 1
        %s1051 = scalar_lea.sflag [#allocation5], %s1050
        %s1052 = sand.u32 %s486, 1
        %s1053 = smul.addr %s1052, 8
        %s1054 = scalar_lea.vmem [#allocation29], %s1053
        %p1055 = pneg %p527
        %p1056 = pneg %p524
        %s1057 = sand.u32 %s514, 1
        %s1058 = scalar_lea.sflag [#allocation31], %s1057
        %s1059 = sand.u32 %s514, 1
        %s1060 = smul.addr %s1059, 32
        %s1061 = scalar_lea.vmem [#allocation30], %s1060
        %p1063 = scmp.eq.s32.totalorder %s65, 0
        // Predicated region
        $region149: #{transformer_forward.5} parent=83 // pred_check
          %p1064 = pneg %p1063
        $region150: #{transformer_forward.5} parent=83 // pred_check_branch
          %1066 = sbr.rel (%p1064) target = $region152
        $region151: #{transformer_forward.5} parent=83 // pred_region
          %v1067 = vld [vmem:[%s834] sm:$0xff]
          %vm1068 = vcmask 261120
          %1069 = vst.msk [vmem:[#allocation2] sm:$0xff] %vm1068, %v1067
        $region152: #{transformer_forward.5} parent=83 // pred_fallthru
          _
        %v1070 = vld [vmem:[#allocation2] sm:$0xff]
        %v1071 = vld [vmem:[%s842] sm:$0x1]
        %v1072 = vld [vmem:[%s850] sm:$0x1]
        %v1073 = vld [vmem:[%s858] sm:$0x1]
        %vm1074 = vcmask 261120
        %v1075 = vsel %vm1074, %v1070, 0.0
        %1076 = vadd.xlane.f32.xlu0 %v1075
        %v1077 = vpop.xlane.xlu0 %1076
        %v1078 = vrcp.pop 32.0
        %v1079 = vmul.f32 %v1077, %v1078
        %v1080 = vsub.f32 %v1070, %v1079
        %v1081 = vmul.f32 %v1080, %v1080
        %v1082 = vsel %vm1074, %v1081, 0.0
        %1083 = vadd.xlane.f32.xlu0 %v1082
        %v1084 = vpop.xlane.xlu0 %1083
        %v1085 = vmul.f32 %v1084, %v1078
        %v1086 = vadd.f32 %v1085, 1e-06
        %v1087 = vrsqrt.pop %v1086
        %v1088 = vmul.f32 %v1080, %v1087
        %v1090 = vlaneseq
        %v1091 = vshrl.u32 %v1090, 7
        %v1092 = vsub.s32 0, %v1091
        %v1093 = vrot.slane %v1072, %v1092
        %v1095 = vmul.f32 %v1088, %v1093
        %v1097 = vlaneseq
        %v1098 = vshrl.u32 %v1097, 7
        %v1099 = vsub.s32 0, %v1098
        %v1100 = vrot.slane %v1073, %v1099
        %v1102 = vadd.f32 %v1095, %v1100
        %v1103 = vpack.c.bf16 %v1102, %v1102
        %v1104 = vld [vmem:[%s867] sm:$0xf]
        %v1105 = vld [vmem:[%s867 + $0x4] sm:$0xf]
        %v1106 = vld [vmem:[%s867 + $0x8] sm:$0xf]
        %v1107 = vld [vmem:[%s867 + $0xc] sm:$0xf]
        %v1108 = vld [vmem:[%s875] sm:$0x1]
        %v1109 = vld [vmem:[%s884] sm:$0xf]
        %v1110 = vld [vmem:[%s884 + $0x4] sm:$0xf]
        %v1111 = vld [vmem:[%s884 + $0x8] sm:$0xf]
        %v1112 = vld [vmem:[%s884 + $0xc] sm:$0xf]
        %v1113 = vld [vmem:[%s892] sm:$0x1]
        %v1115 = vlaneseq
        %v1116 = vshrl.u32 %v1115, 7
        %v1117 = vsub.s32 0, %v1116
        %v1118 = vrot.slane %v1108, %v1117
        %v1124 = vunpack.c.l.b16 %v1104
        %v1125 = vunpack.c.l.b16 %v1105
        %v1126 = vunpack.c.l.b16 %v1106
        %v1127 = vunpack.c.l.b16 %v1107
        %v1128 = vpack.c.b16 %v1125, %v1124
        %v1129 = vpack.c.b16 %v1127, %v1126
        %v1133 = vsel %vm1074, %v1103, 0
        %1135 = vmatprep.subr.bf16.mxu0 0
        %1136 = vmatpush1.bf16.msra.mxu0 %v1128
        %1137 = vmatprep.subr.bf16.mxu0 0
        %1138 = vmatpush1.bf16.msra.mxu0 %v1129
        %1139 = vmatprep.subr.bf16.mxu0 0
        %1140 = vmatpush1.bf16.msra.mxu0 0
        %1141 = vmatprep.subr.bf16.mxu0 0
        %1142 = vmatpush1.bf16.msra.mxu0 0
        %1143 = vmatprep.subr.bf16.mxu0 0
        %1144 = vmatpush1.bf16.msra.mxu0 0
        %1145 = vmatprep.subr.bf16.mxu0 0
        %1146 = vmatpush1.bf16.msra.mxu0 0
        %1147 = vmatprep.subr.bf16.mxu0 0
        %1148 = vmatpush1.bf16.msra.mxu0 0
        %1149 = vmatprep.subr.bf16.mxu0 0
        %1150 = vmatpush1.bf16.msra.mxu0 0
        %1151 = vmatprep.subr.bf16.mxu0 0
        %1152 = vmatpush1.bf16.msra.mxu0 0
        %1153 = vmatprep.subr.bf16.mxu0 0
        %1154 = vmatpush1.bf16.msra.mxu0 0
        %1155 = vmatprep.subr.bf16.mxu0 0
        %1156 = vmatpush1.bf16.msra.mxu0 0
        %1157 = vmatprep.subr.bf16.mxu0 0
        %1158 = vmatpush1.bf16.msra.mxu0 0
        %1159 = vmatprep.subr.bf16.mxu0 0
        %1160 = vmatpush1.bf16.msra.mxu0 0
        %1161 = vmatprep.subr.bf16.mxu0 0
        %1162 = vmatpush1.bf16.msra.mxu0 0
        %1163 = vmatprep.subr.bf16.mxu0 0
        %1164 = vmatpush1.bf16.msra.mxu0 0
        %1165 = vmatprep.subr.bf16.mxu0 0
        %1166 = vmatpush1.bf16.msra.mxu0 0
        %1167 = vmatprep.mubr.bf16.mxu0 0
        %1168 = vmatmul.mubr.bf16.gmra.mrb[0].mxu0 %v1133
        %v1169 = vpop.f32.mrb[0].mxu0
        %v1170 = vadd.f32 %v1118, %v1169
        %v1171 = vpop.f32.mrb[0].mxu0
        %v1172 = vpop.f32.mrb[0].mxu0
        %v1173 = vpop.f32.mrb[0].mxu0
        %1174 = vdwg.mxu0
        %v1175 = vpack.c.bf16 %v1170, %v1170
        %1177 = vrot.lane.b32.xlu0 %v1175, 120
        %v1178 = vpop.permute.xlu0 %1177
        %1179 = vrot.lane.b32.xlu0 %v1175, 112
        %v1180 = vpop.permute.xlu0 %1179
        %1181 = vrot.lane.b32.xlu0 %v1175, 104
        %v1182 = vpop.permute.xlu0 %1181
        %1183 = vrot.lane.b32.xlu0 %v1175, 96
        %v1184 = vpop.permute.xlu0 %1183
        %vm1185 = vcmask 64512
        %v1187 = vsel %vm1185, %v1175, 0
        %v1190 = vsel %vm1185, %v1184, 0
        %1192 = vmatprep.subr.bf16.mxu0 0
        %1193 = vmatpush1.bf16.xpose.msra.mxu0 %v1190
        %1194 = vmatprep.subr.bf16.mxu0 0
        %1195 = vmatpush1.bf16.xpose.msra.mxu0 0
        %1196 = vmatprep.subr.bf16.mxu0 0
        %1197 = vmatpush1.bf16.xpose.msra.mxu0 0
        %1198 = vmatprep.subr.bf16.mxu0 0
        %1199 = vmatpush1.bf16.xpose.msra.mxu0 0
        %1200 = vmatprep.subr.bf16.mxu0 0
        %1201 = vmatpush1.bf16.xpose.msra.mxu0 0
        %1202 = vmatprep.subr.bf16.mxu0 0
        %1203 = vmatpush1.bf16.xpose.msra.mxu0 0
        %1204 = vmatprep.subr.bf16.mxu0 0
        %1205 = vmatpush1.bf16.xpose.msra.mxu0 0
        %1206 = vmatprep.subr.bf16.mxu0 0
        %1207 = vmatpush1.bf16.xpose.msra.mxu0 0
        %1208 = vmatprep.subr.bf16.mxu0 0
        %1209 = vmatpush1.bf16.xpose.msra.mxu0 0
        %1210 = vmatprep.subr.bf16.mxu0 0
        %1211 = vmatpush1.bf16.xpose.msra.mxu0 0
        %1212 = vmatprep.subr.bf16.mxu0 0
        %1213 = vmatpush1.bf16.xpose.msra.mxu0 0
        %1214 = vmatprep.subr.bf16.mxu0 0
        %1215 = vmatpush1.bf16.xpose.msra.mxu0 0
        %1216 = vmatprep.subr.bf16.mxu0 0
        %1217 = vmatpush1.bf16.xpose.msra.mxu0 0
        %1218 = vmatprep.subr.bf16.mxu0 0
        %1219 = vmatpush1.bf16.xpose.msra.mxu0 0
        %1220 = vmatprep.subr.bf16.mxu0 0
        %1221 = vmatpush1.bf16.xpose.msra.mxu0 0
        %1222 = vmatprep.subr.bf16.mxu0 0
        %1223 = vmatpush1.bf16.xpose.msra.mxu0 0
        %1224 = vmatprep.mubr.bf16.mxu0 0
        %1225 = vmatmul.mubr.bf16.gmra.mrb[0].mxu0 %v1187
        %v1226 = vpop.f32.mrb[0].mxu0
        %v1227 = vadd.f32 0.0, %v1226
        %v1228 = vpop.f32.mrb[0].mxu0
        %v1229 = vpop.f32.mrb[0].mxu0
        %v1230 = vpop.f32.mrb[0].mxu0
        %1231 = vdwg.mxu0
        %1232 = vrot.lane.b32.xlu0 %v1178, 96
        %v1233 = vpop.permute.xlu0 %1232
        %v1235 = vsel %vm1185, %v1178, 0
        %v1238 = vsel %vm1185, %v1233, 0
        %1240 = vmatprep.subr.bf16.mxu0 0
        %1241 = vmatpush1.bf16.xpose.msra.mxu0 %v1238
        %1242 = vmatprep.subr.bf16.mxu0 0
        %1243 = vmatpush1.bf16.xpose.msra.mxu0 0
        %1244 = vmatprep.subr.bf16.mxu0 0
        %1245 = vmatpush1.bf16.xpose.msra.mxu0 0
        %1246 = vmatprep.subr.bf16.mxu0 0
        %1247 = vmatpush1.bf16.xpose.msra.mxu0 0
        %1248 = vmatprep.subr.bf16.mxu0 0
        %1249 = vmatpush1.bf16.xpose.msra.mxu0 0
        %1250 = vmatprep.subr.bf16.mxu0 0
        %1251 = vmatpush1.bf16.xpose.msra.mxu0 0
        %1252 = vmatprep.subr.bf16.mxu0 0
        %1253 = vmatpush1.bf16.xpose.msra.mxu0 0
        %1254 = vmatprep.subr.bf16.mxu0 0
        %1255 = vmatpush1.bf16.xpose.msra.mxu0 0
        %1256 = vmatprep.subr.bf16.mxu0 0
        %1257 = vmatpush1.bf16.xpose.msra.mxu0 0
        %1258 = vmatprep.subr.bf16.mxu0 0
        %1259 = vmatpush1.bf16.xpose.msra.mxu0 0
        %1260 = vmatprep.subr.bf16.mxu0 0
        %1261 = vmatpush1.bf16.xpose.msra.mxu0 0
        %1262 = vmatprep.subr.bf16.mxu0 0
        %1263 = vmatpush1.bf16.xpose.msra.mxu0 0
        %1264 = vmatprep.subr.bf16.mxu0 0
        %1265 = vmatpush1.bf16.xpose.msra.mxu0 0
        %1266 = vmatprep.subr.bf16.mxu0 0
        %1267 = vmatpush1.bf16.xpose.msra.mxu0 0
        %1268 = vmatprep.subr.bf16.mxu0 0
        %1269 = vmatpush1.bf16.xpose.msra.mxu0 0
        %1270 = vmatprep.subr.bf16.mxu0 0
        %1271 = vmatpush1.bf16.xpose.msra.mxu0 0
        %1272 = vmatprep.mubr.bf16.mxu0 0
        %1273 = vmatmul.mubr.bf16.gmra.mrb[0].mxu0 %v1235
        %v1274 = vpop.f32.mrb[0].mxu0
        %v1275 = vadd.f32 0.0, %v1274
        %v1276 = vpop.f32.mrb[0].mxu0
        %v1277 = vpop.f32.mrb[0].mxu0
        %v1278 = vpop.f32.mrb[0].mxu0
        %1279 = vdwg.mxu0
        %1280 = vrot.lane.b32.xlu0 %v1180, 96
        %v1281 = vpop.permute.xlu0 %1280
        %v1283 = vsel %vm1185, %v1180, 0
        %v1286 = vsel %vm1185, %v1281, 0
        %1288 = vmatprep.subr.bf16.mxu0 0
        %1289 = vmatpush1.bf16.xpose.msra.mxu0 %v1286
        %1290 = vmatprep.subr.bf16.mxu0 0
        %1291 = vmatpush1.bf16.xpose.msra.mxu0 0
        %1292 = vmatprep.subr.bf16.mxu0 0
        %1293 = vmatpush1.bf16.xpose.msra.mxu0 0
        %1294 = vmatprep.subr.bf16.mxu0 0
        %1295 = vmatpush1.bf16.xpose.msra.mxu0 0
        %1296 = vmatprep.subr.bf16.mxu0 0
        %1297 = vmatpush1.bf16.xpose.msra.mxu0 0
        %1298 = vmatprep.subr.bf16.mxu0 0
        %1299 = vmatpush1.bf16.xpose.msra.mxu0 0
        %1300 = vmatprep.subr.bf16.mxu0 0
        %1301 = vmatpush1.bf16.xpose.msra.mxu0 0
        %1302 = vmatprep.subr.bf16.mxu0 0
        %1303 = vmatpush1.bf16.xpose.msra.mxu0 0
        %1304 = vmatprep.subr.bf16.mxu0 0
        %1305 = vmatpush1.bf16.xpose.msra.mxu0 0
        %1306 = vmatprep.subr.bf16.mxu0 0
        %1307 = vmatpush1.bf16.xpose.msra.mxu0 0
        %1308 = vmatprep.subr.bf16.mxu0 0
        %1309 = vmatpush1.bf16.xpose.msra.mxu0 0
        %1310 = vmatprep.subr.bf16.mxu0 0
        %1311 = vmatpush1.bf16.xpose.msra.mxu0 0
        %1312 = vmatprep.subr.bf16.mxu0 0
        %1313 = vmatpush1.bf16.xpose.msra.mxu0 0
        %1314 = vmatprep.subr.bf16.mxu0 0
        %1315 = vmatpush1.bf16.xpose.msra.mxu0 0
        %1316 = vmatprep.subr.bf16.mxu0 0
        %1317 = vmatpush1.bf16.xpose.msra.mxu0 0
        %1318 = vmatprep.subr.bf16.mxu0 0
        %1319 = vmatpush1.bf16.xpose.msra.mxu0 0
        %1320 = vmatprep.mubr.bf16.mxu0 0
        %1321 = vmatmul.mubr.bf16.gmra.mrb[0].mxu0 %v1283
        %v1322 = vpop.f32.mrb[0].mxu0
        %v1323 = vadd.f32 0.0, %v1322
        %v1324 = vpop.f32.mrb[0].mxu0
        %v1325 = vpop.f32.mrb[0].mxu0
        %v1326 = vpop.f32.mrb[0].mxu0
        %1327 = vdwg.mxu0
        %1328 = vrot.lane.b32.xlu0 %v1182, 96
        %v1329 = vpop.permute.xlu0 %1328
        %v1331 = vsel %vm1185, %v1182, 0
        %v1334 = vsel %vm1185, %v1329, 0
        %1336 = vmatprep.subr.bf16.mxu0 0
        %1337 = vmatpush1.bf16.xpose.msra.mxu0 %v1334
        %1338 = vmatprep.subr.bf16.mxu0 0
        %1339 = vmatpush1.bf16.xpose.msra.mxu0 0
        %1340 = vmatprep.subr.bf16.mxu0 0
        %1341 = vmatpush1.bf16.xpose.msra.mxu0 0
        %1342 = vmatprep.subr.bf16.mxu0 0
        %1343 = vmatpush1.bf16.xpose.msra.mxu0 0
        %1344 = vmatprep.subr.bf16.mxu0 0
        %1345 = vmatpush1.bf16.xpose.msra.mxu0 0
        %1346 = vmatprep.subr.bf16.mxu0 0
        %1347 = vmatpush1.bf16.xpose.msra.mxu0 0
        %1348 = vmatprep.subr.bf16.mxu0 0
        %1349 = vmatpush1.bf16.xpose.msra.mxu0 0
        %1350 = vmatprep.subr.bf16.mxu0 0
        %1351 = vmatpush1.bf16.xpose.msra.mxu0 0
        %1352 = vmatprep.subr.bf16.mxu0 0
        %1353 = vmatpush1.bf16.xpose.msra.mxu0 0
        %1354 = vmatprep.subr.bf16.mxu0 0
        %1355 = vmatpush1.bf16.xpose.msra.mxu0 0
        %1356 = vmatprep.subr.bf16.mxu0 0
        %1357 = vmatpush1.bf16.xpose.msra.mxu0 0
        %1358 = vmatprep.subr.bf16.mxu0 0
        %1359 = vmatpush1.bf16.xpose.msra.mxu0 0
        %1360 = vmatprep.subr.bf16.mxu0 0
        %1361 = vmatpush1.bf16.xpose.msra.mxu0 0
        %1362 = vmatprep.subr.bf16.mxu0 0
        %1363 = vmatpush1.bf16.xpose.msra.mxu0 0
        %1364 = vmatprep.subr.bf16.mxu0 0
        %1365 = vmatpush1.bf16.xpose.msra.mxu0 0
        %1366 = vmatprep.subr.bf16.mxu0 0
        %1367 = vmatpush1.bf16.xpose.msra.mxu0 0
        %1368 = vmatprep.mubr.bf16.mxu0 0
        %1369 = vmatmul.mubr.bf16.gmra.mrb[0].mxu0 %v1331
        %v1370 = vpop.f32.mrb[0].mxu0
        %v1371 = vadd.f32 0.0, %v1370
        %v1372 = vpop.f32.mrb[0].mxu0
        %v1373 = vpop.f32.mrb[0].mxu0
        %v1374 = vpop.f32.mrb[0].mxu0
        %1375 = vdwg.mxu0
        %v1376 = vmul.f32 %v1227, 0.35355338
        %v1377 = vmul.f32 %v1275, 0.35355338
        %v1378 = vmul.f32 %v1323, 0.35355338
        %v1379 = vmul.f32 %v1371, 0.35355338
        %v1381 = vlaneseq
        %v1382 = vshrl.u32 %v1381, 7
        %v1383 = vsub.s32 0, %v1382
        %v1384 = vrot.slane %v1071, %v1383
        %v1386 = vadd.f32 %v1376, %v1384
        %v1387 = vadd.f32 %v1377, %v1384
        %v1388 = vadd.f32 %v1378, %v1384
        %v1389 = vadd.f32 %v1379, %v1384
        %v1390 = vsel %vm1185, %v1386, -inf
        %1391 = vmax.xlane.f32.xlu0 %v1390
        %v1392 = vpop.xlane.xlu0 %1391
        %v1393 = vsel %vm1185, %v1387, -inf
        %1394 = vmax.xlane.f32.xlu0 %v1393
        %v1395 = vpop.xlane.xlu0 %1394
        %v1396 = vsel %vm1185, %v1388, -inf
        %1397 = vmax.xlane.f32.xlu0 %v1396
        %v1398 = vpop.xlane.xlu0 %1397
        %v1399 = vsel %vm1185, %v1389, -inf
        %1400 = vmax.xlane.f32.xlu0 %v1399
        %v1401 = vpop.xlane.xlu0 %1400
        %v1402 = vsub.f32 %v1386, %v1392
        %v1403 = vsub.f32 %v1387, %v1395
        %v1404 = vsub.f32 %v1388, %v1398
        %v1405 = vsub.f32 %v1389, %v1401
        %v1406 = vmul.f32 %v1402, 1.442695
        %v1407 = vpow.pop %v1406
        %v1408 = vmul.f32 %v1403, 1.442695
        %v1409 = vpow.pop %v1408
        %v1410 = vmul.f32 %v1404, 1.442695
        %v1411 = vpow.pop %v1410
        %v1412 = vmul.f32 %v1405, 1.442695
        %v1413 = vpow.pop %v1412
        %v1414 = vsel %vm1185, %v1407, 0.0
        %1415 = vadd.xlane.f32.xlu0 %v1414
        %v1416 = vpop.xlane.xlu0 %1415
        %v1417 = vsel %vm1185, %v1409, 0.0
        %1418 = vadd.xlane.f32.xlu0 %v1417
        %v1419 = vpop.xlane.xlu0 %1418
        %v1420 = vsel %vm1185, %v1411, 0.0
        %1421 = vadd.xlane.f32.xlu0 %v1420
        %v1422 = vpop.xlane.xlu0 %1421
        %v1423 = vsel %vm1185, %v1413, 0.0
        %1424 = vadd.xlane.f32.xlu0 %v1423
        %v1425 = vpop.xlane.xlu0 %1424
        %v1426 = vrcp.pop %v1416
        %v1427 = vrcp.pop %v1419
        %v1428 = vrcp.pop %v1422
        %v1429 = vrcp.pop %v1425
        %v1430 = vmul.f32 %v1407, %v1426
        %v1431 = vmul.f32 %v1409, %v1427
        %v1432 = vmul.f32 %v1411, %v1428
        %v1433 = vmul.f32 %v1413, %v1429
        %v1434 = vpack.c.bf16 %v1430, %v1430
        %v1435 = vpack.c.bf16 %v1431, %v1431
        %v1436 = vpack.c.bf16 %v1432, %v1432
        %v1437 = vpack.c.bf16 %v1433, %v1433
        %1438 = vrot.lane.b32.xlu0 %v1175, 64
        %v1439 = vpop.permute.xlu0 %1438
        %v1441 = vsel %vm1185, %v1434, 0
        %vm1443 = vcmask 1043456
        %v1445 = vsel %vm1443, %v1439, 0
        %1447 = vmatprep.subr.bf16.mxu0 0
        %1448 = vmatpush1.bf16.msra.mxu0 %v1445
        %1449 = vmatprep.subr.bf16.mxu0 0
        %1450 = vmatpush1.bf16.msra.mxu0 0
        %1451 = vmatprep.subr.bf16.mxu0 0
        %1452 = vmatpush1.bf16.msra.mxu0 0
        %1453 = vmatprep.subr.bf16.mxu0 0
        %1454 = vmatpush1.bf16.msra.mxu0 0
        %1455 = vmatprep.subr.bf16.mxu0 0
        %1456 = vmatpush1.bf16.msra.mxu0 0
        %1457 = vmatprep.subr.bf16.mxu0 0
        %1458 = vmatpush1.bf16.msra.mxu0 0
        %1459 = vmatprep.subr.bf16.mxu0 0
        %1460 = vmatpush1.bf16.msra.mxu0 0
        %1461 = vmatprep.subr.bf16.mxu0 0
        %1462 = vmatpush1.bf16.msra.mxu0 0
        %1463 = vmatprep.subr.bf16.mxu0 0
        %1464 = vmatpush1.bf16.msra.mxu0 0
        %1465 = vmatprep.subr.bf16.mxu0 0
        %1466 = vmatpush1.bf16.msra.mxu0 0
        %1467 = vmatprep.subr.bf16.mxu0 0
        %1468 = vmatpush1.bf16.msra.mxu0 0
        %1469 = vmatprep.subr.bf16.mxu0 0
        %1470 = vmatpush1.bf16.msra.mxu0 0
        %1471 = vmatprep.subr.bf16.mxu0 0
        %1472 = vmatpush1.bf16.msra.mxu0 0
        %1473 = vmatprep.subr.bf16.mxu0 0
        %1474 = vmatpush1.bf16.msra.mxu0 0
        %1475 = vmatprep.subr.bf16.mxu0 0
        %1476 = vmatpush1.bf16.msra.mxu0 0
        %1477 = vmatprep.subr.bf16.mxu0 0
        %1478 = vmatpush1.bf16.msra.mxu0 0
        %1479 = vmatprep.mubr.bf16.mxu0 0
        %1480 = vmatmul.mubr.bf16.gmra.mrb[0].mxu0 %v1441
        %v1481 = vpop.f32.mrb[0].mxu0
        %v1482 = vadd.f32 0.0, %v1481
        %v1483 = vpop.f32.mrb[0].mxu0
        %v1484 = vpop.f32.mrb[0].mxu0
        %v1485 = vpop.f32.mrb[0].mxu0
        %1486 = vdwg.mxu0
        %1487 = vrot.lane.b32.xlu0 %v1178, 64
        %v1488 = vpop.permute.xlu0 %1487
        %v1490 = vsel %vm1185, %v1435, 0
        %v1493 = vsel %vm1443, %v1488, 0
        %1495 = vmatprep.subr.bf16.mxu0 0
        %1496 = vmatpush1.bf16.msra.mxu0 %v1493
        %1497 = vmatprep.subr.bf16.mxu0 0
        %1498 = vmatpush1.bf16.msra.mxu0 0
        %1499 = vmatprep.subr.bf16.mxu0 0
        %1500 = vmatpush1.bf16.msra.mxu0 0
        %1501 = vmatprep.subr.bf16.mxu0 0
        %1502 = vmatpush1.bf16.msra.mxu0 0
        %1503 = vmatprep.subr.bf16.mxu0 0
        %1504 = vmatpush1.bf16.msra.mxu0 0
        %1505 = vmatprep.subr.bf16.mxu0 0
        %1506 = vmatpush1.bf16.msra.mxu0 0
        %1507 = vmatprep.subr.bf16.mxu0 0
        %1508 = vmatpush1.bf16.msra.mxu0 0
        %1509 = vmatprep.subr.bf16.mxu0 0
        %1510 = vmatpush1.bf16.msra.mxu0 0
        %1511 = vmatprep.subr.bf16.mxu0 0
        %1512 = vmatpush1.bf16.msra.mxu0 0
        %1513 = vmatprep.subr.bf16.mxu0 0
        %1514 = vmatpush1.bf16.msra.mxu0 0
        %1515 = vmatprep.subr.bf16.mxu0 0
        %1516 = vmatpush1.bf16.msra.mxu0 0
        %1517 = vmatprep.subr.bf16.mxu0 0
        %1518 = vmatpush1.bf16.msra.mxu0 0
        %1519 = vmatprep.subr.bf16.mxu0 0
        %1520 = vmatpush1.bf16.msra.mxu0 0
        %1521 = vmatprep.subr.bf16.mxu0 0
        %1522 = vmatpush1.bf16.msra.mxu0 0
        %1523 = vmatprep.subr.bf16.mxu0 0
        %1524 = vmatpush1.bf16.msra.mxu0 0
        %1525 = vmatprep.subr.bf16.mxu0 0
        %1526 = vmatpush1.bf16.msra.mxu0 0
        %1527 = vmatprep.mubr.bf16.mxu0 0
        %1528 = vmatmul.mubr.bf16.gmra.mrb[0].mxu0 %v1490
        %v1529 = vpop.f32.mrb[0].mxu0
        %v1530 = vadd.f32 0.0, %v1529
        %v1531 = vpop.f32.mrb[0].mxu0
        %v1532 = vpop.f32.mrb[0].mxu0
        %v1533 = vpop.f32.mrb[0].mxu0
        %1534 = vdwg.mxu0
        %1535 = vrot.lane.b32.xlu0 %v1180, 64
        %v1536 = vpop.permute.xlu0 %1535
        %v1538 = vsel %vm1185, %v1436, 0
        %v1541 = vsel %vm1443, %v1536, 0
        %1543 = vmatprep.subr.bf16.mxu0 0
        %1544 = vmatpush1.bf16.msra.mxu0 %v1541
        %1545 = vmatprep.subr.bf16.mxu0 0
        %1546 = vmatpush1.bf16.msra.mxu0 0
        %1547 = vmatprep.subr.bf16.mxu0 0
        %1548 = vmatpush1.bf16.msra.mxu0 0
        %1549 = vmatprep.subr.bf16.mxu0 0
        %1550 = vmatpush1.bf16.msra.mxu0 0
        %1551 = vmatprep.subr.bf16.mxu0 0
        %1552 = vmatpush1.bf16.msra.mxu0 0
        %1553 = vmatprep.subr.bf16.mxu0 0
        %1554 = vmatpush1.bf16.msra.mxu0 0
        %1555 = vmatprep.subr.bf16.mxu0 0
        %1556 = vmatpush1.bf16.msra.mxu0 0
        %1557 = vmatprep.subr.bf16.mxu0 0
        %1558 = vmatpush1.bf16.msra.mxu0 0
        %1559 = vmatprep.subr.bf16.mxu0 0
        %1560 = vmatpush1.bf16.msra.mxu0 0
        %1561 = vmatprep.subr.bf16.mxu0 0
        %1562 = vmatpush1.bf16.msra.mxu0 0
        %1563 = vmatprep.subr.bf16.mxu0 0
        %1564 = vmatpush1.bf16.msra.mxu0 0
        %1565 = vmatprep.subr.bf16.mxu0 0
        %1566 = vmatpush1.bf16.msra.mxu0 0
        %1567 = vmatprep.subr.bf16.mxu0 0
        %1568 = vmatpush1.bf16.msra.mxu0 0
        %1569 = vmatprep.subr.bf16.mxu0 0
        %1570 = vmatpush1.bf16.msra.mxu0 0
        %1571 = vmatprep.subr.bf16.mxu0 0
        %1572 = vmatpush1.bf16.msra.mxu0 0
        %1573 = vmatprep.subr.bf16.mxu0 0
        %1574 = vmatpush1.bf16.msra.mxu0 0
        %1575 = vmatprep.mubr.bf16.mxu0 0
        %1576 = vmatmul.mubr.bf16.gmra.mrb[0].mxu0 %v1538
        %v1577 = vpop.f32.mrb[0].mxu0
        %v1578 = vadd.f32 0.0, %v1577
        %v1579 = vpop.f32.mrb[0].mxu0
        %v1580 = vpop.f32.mrb[0].mxu0
        %v1581 = vpop.f32.mrb[0].mxu0
        %1582 = vdwg.mxu0
        %1583 = vrot.lane.b32.xlu0 %v1182, 64
        %v1584 = vpop.permute.xlu0 %1583
        %v1586 = vsel %vm1185, %v1437, 0
        %v1589 = vsel %vm1443, %v1584, 0
        %1591 = vmatprep.subr.bf16.mxu0 0
        %1592 = vmatpush1.bf16.msra.mxu0 %v1589
        %1593 = vmatprep.subr.bf16.mxu0 0
        %1594 = vmatpush1.bf16.msra.mxu0 0
        %1595 = vmatprep.subr.bf16.mxu0 0
        %1596 = vmatpush1.bf16.msra.mxu0 0
        %1597 = vmatprep.subr.bf16.mxu0 0
        %1598 = vmatpush1.bf16.msra.mxu0 0
        %1599 = vmatprep.subr.bf16.mxu0 0
        %1600 = vmatpush1.bf16.msra.mxu0 0
        %1601 = vmatprep.subr.bf16.mxu0 0
        %1602 = vmatpush1.bf16.msra.mxu0 0
        %1603 = vmatprep.subr.bf16.mxu0 0
        %1604 = vmatpush1.bf16.msra.mxu0 0
        %1605 = vmatprep.subr.bf16.mxu0 0
        %1606 = vmatpush1.bf16.msra.mxu0 0
        %1607 = vmatprep.subr.bf16.mxu0 0
        %1608 = vmatpush1.bf16.msra.mxu0 0
        %1609 = vmatprep.subr.bf16.mxu0 0
        %1610 = vmatpush1.bf16.msra.mxu0 0
        %1611 = vmatprep.subr.bf16.mxu0 0
        %1612 = vmatpush1.bf16.msra.mxu0 0
        %1613 = vmatprep.subr.bf16.mxu0 0
        %1614 = vmatpush1.bf16.msra.mxu0 0
        %1615 = vmatprep.subr.bf16.mxu0 0
        %1616 = vmatpush1.bf16.msra.mxu0 0
        %1617 = vmatprep.subr.bf16.mxu0 0
        %1618 = vmatpush1.bf16.msra.mxu0 0
        %1619 = vmatprep.subr.bf16.mxu0 0
        %1620 = vmatpush1.bf16.msra.mxu0 0
        %1621 = vmatprep.subr.bf16.mxu0 0
        %1622 = vmatpush1.bf16.msra.mxu0 0
        %1623 = vmatprep.mubr.bf16.mxu0 0
        %1624 = vmatmul.mubr.bf16.gmra.mrb[0].mxu0 %v1586
        %v1625 = vpop.f32.mrb[0].mxu0
        %v1626 = vadd.f32 0.0, %v1625
        %v1627 = vpop.f32.mrb[0].mxu0
        %v1628 = vpop.f32.mrb[0].mxu0
        %v1629 = vpop.f32.mrb[0].mxu0
        %1630 = vdwg.mxu0
        %1632 = vrot.lane.b32.xlu0 %v1530, 8
        %v1633 = vpop.permute.xlu0 %1632
        %1636 = vrot.lane.b32.xlu0 %v1578, 16
        %v1637 = vpop.permute.xlu0 %1636
        %1640 = vrot.lane.b32.xlu0 %v1626, 24
        %v1641 = vpop.permute.xlu0 %1640
        %v1643 = vsel %vm1185, %v1482, %v1633
        %vm1644 = vcmask 130048
        %v1645 = vsel %vm1644, %v1643, %v1637
        %vm1646 = vcmask 195584
        %v1647 = vsel %vm1646, %v1645, %v1641
        %v1648 = vpack.c.bf16 %v1647, %v1647
        %v1650 = vlaneseq
        %v1651 = vshrl.u32 %v1650, 7
        %v1652 = vsub.s32 0, %v1651
        %v1653 = vrot.slane %v1113, %v1652
        %v1659 = vunpack.c.l.b16 %v1109
        %v1660 = vunpack.c.l.b16 %v1110
        %v1661 = vunpack.c.l.b16 %v1111
        %v1662 = vunpack.c.l.b16 %v1112
        %v1663 = vpack.c.b16 %v1660, %v1659
        %v1664 = vpack.c.b16 %v1662, %v1661
        %v1668 = vsel %vm1074, %v1648, 0
        %1670 = vmatprep.subr.bf16.mxu0 0
        %1671 = vmatpush1.bf16.msra.mxu0 %v1663
        %1672 = vmatprep.subr.bf16.mxu0 0
        %1673 = vmatpush1.bf16.msra.mxu0 %v1664
        %1674 = vmatprep.subr.bf16.mxu0 0
        %1675 = vmatpush1.bf16.msra.mxu0 0
        %1676 = vmatprep.subr.bf16.mxu0 0
        %1677 = vmatpush1.bf16.msra.mxu0 0
        %1678 = vmatprep.subr.bf16.mxu0 0
        %1679 = vmatpush1.bf16.msra.mxu0 0
        %1680 = vmatprep.subr.bf16.mxu0 0
        %1681 = vmatpush1.bf16.msra.mxu0 0
        %1682 = vmatprep.subr.bf16.mxu0 0
        %1683 = vmatpush1.bf16.msra.mxu0 0
        %1684 = vmatprep.subr.bf16.mxu0 0
        %1685 = vmatpush1.bf16.msra.mxu0 0
        %1686 = vmatprep.subr.bf16.mxu0 0
        %1687 = vmatpush1.bf16.msra.mxu0 0
        %1688 = vmatprep.subr.bf16.mxu0 0
        %1689 = vmatpush1.bf16.msra.mxu0 0
        %1690 = vmatprep.subr.bf16.mxu0 0
        %1691 = vmatpush1.bf16.msra.mxu0 0
        %1692 = vmatprep.subr.bf16.mxu0 0
        %1693 = vmatpush1.bf16.msra.mxu0 0
        %1694 = vmatprep.subr.bf16.mxu0 0
        %1695 = vmatpush1.bf16.msra.mxu0 0
        %1696 = vmatprep.subr.bf16.mxu0 0
        %1697 = vmatpush1.bf16.msra.mxu0 0
        %1698 = vmatprep.subr.bf16.mxu0 0
        %1699 = vmatpush1.bf16.msra.mxu0 0
        %1700 = vmatprep.subr.bf16.mxu0 0
        %1701 = vmatpush1.bf16.msra.mxu0 0
        %1702 = vmatprep.mubr.bf16.mxu0 0
        %1703 = vmatmul.mubr.bf16.gmra.mrb[0].mxu0 %v1668
        %v1704 = vpop.f32.mrb[0].mxu0
        %v1705 = vadd.f32 %v1653, %v1704
        %v1706 = vpop.f32.mrb[0].mxu0
        %v1707 = vpop.f32.mrb[0].mxu0
        %v1708 = vpop.f32.mrb[0].mxu0
        %1709 = vdwg.mxu0
        %1710 = vst.msk [vmem:[%s1061] sm:$0xff] %vm1185, %v1430
        %1711 = vst.msk [vmem:[%s1061 + $0x8] sm:$0xff] %vm1185, %v1431
        %1712 = vst.msk [vmem:[%s1061 + $0x10] sm:$0xff] %vm1185, %v1432
        %1713 = vst.msk [vmem:[%s1061 + $0x18] sm:$0xff] %vm1185, %v1433
        %v1714 = vadd.f32 %v1070, %v1705
        %v1715 = vld [vmem:[%s900] sm:$0x1]
        %v1716 = vld [vmem:[%s908] sm:$0x1]
        %v1717 = vsel %vm1074, %v1714, 0.0
        %1718 = vadd.xlane.f32.xlu0 %v1717
        %v1719 = vpop.xlane.xlu0 %1718
        %v1720 = vmul.f32 %v1719, %v1078
        %v1721 = vsub.f32 %v1714, %v1720
        %v1722 = vmul.f32 %v1721, %v1721
        %v1723 = vsel %vm1074, %v1722, 0.0
        %1724 = vadd.xlane.f32.xlu0 %v1723
        %v1725 = vpop.xlane.xlu0 %1724
        %v1726 = vmul.f32 %v1725, %v1078
        %v1727 = vadd.f32 %v1726, 1e-06
        %v1728 = vrsqrt.pop %v1727
        %v1729 = vmul.f32 %v1721, %v1728
        %v1731 = vlaneseq
        %v1732 = vshrl.u32 %v1731, 7
        %v1733 = vsub.s32 0, %v1732
        %v1734 = vrot.slane %v1715, %v1733
        %v1736 = vmul.f32 %v1729, %v1734
        %v1738 = vlaneseq
        %v1739 = vshrl.u32 %v1738, 7
        %v1740 = vsub.s32 0, %v1739
        %v1741 = vrot.slane %v1716, %v1740
        %v1743 = vadd.f32 %v1736, %v1741
        %v1744 = vpack.c.bf16 %v1743, %v1743
        %v1745 = vld [vmem:[%s917] sm:$0xf]
        %v1746 = vld [vmem:[%s917 + $0x4] sm:$0xf]
        %v1747 = vld [vmem:[%s917 + $0x8] sm:$0xf]
        %v1748 = vld [vmem:[%s917 + $0xc] sm:$0xf]
        %v1749 = vld [vmem:[%s925] sm:$0x1]
        %v1750 = vld [vmem:[%s934] sm:$0xf]
        %v1751 = vld [vmem:[%s934 + $0x4] sm:$0xf]
        %v1752 = vld [vmem:[%s934 + $0x8] sm:$0xf]
        %v1753 = vld [vmem:[%s934 + $0xc] sm:$0xf]
        %v1754 = vld [vmem:[%s934 + $0x10] sm:$0xf]
        %v1755 = vld [vmem:[%s934 + $0x14] sm:$0xf]
        %v1756 = vld [vmem:[%s934 + $0x18] sm:$0xf]
        %v1757 = vld [vmem:[%s934 + $0x1c] sm:$0xf]
        %v1758 = vld [vmem:[%s942] sm:$0x1]
        %v1760 = vlaneseq
        %v1761 = vshrl.u32 %v1760, 7
        %v1762 = vsub.s32 0, %v1761
        %v1763 = vrot.slane %v1749, %v1762
        %v1769 = vunpack.c.l.b16 %v1745
        %v1770 = vunpack.c.l.b16 %v1746
        %v1771 = vunpack.c.l.b16 %v1747
        %v1772 = vunpack.c.l.b16 %v1748
        %v1773 = vpack.c.b16 %v1770, %v1769
        %v1774 = vpack.c.b16 %v1772, %v1771
        %v1778 = vsel %vm1074, %v1744, 0
        %1780 = vmatprep.subr.bf16.mxu0 0
        %1781 = vmatpush1.bf16.msra.mxu0 %v1773
        %1782 = vmatprep.subr.bf16.mxu0 0
        %1783 = vmatpush1.bf16.msra.mxu0 %v1774
        %1784 = vmatprep.subr.bf16.mxu0 0
        %1785 = vmatpush1.bf16.msra.mxu0 0
        %1786 = vmatprep.subr.bf16.mxu0 0
        %1787 = vmatpush1.bf16.msra.mxu0 0
        %1788 = vmatprep.subr.bf16.mxu0 0
        %1789 = vmatpush1.bf16.msra.mxu0 0
        %1790 = vmatprep.subr.bf16.mxu0 0
        %1791 = vmatpush1.bf16.msra.mxu0 0
        %1792 = vmatprep.subr.bf16.mxu0 0
        %1793 = vmatpush1.bf16.msra.mxu0 0
        %1794 = vmatprep.subr.bf16.mxu0 0
        %1795 = vmatpush1.bf16.msra.mxu0 0
        %1796 = vmatprep.subr.bf16.mxu0 0
        %1797 = vmatpush1.bf16.msra.mxu0 0
        %1798 = vmatprep.subr.bf16.mxu0 0
        %1799 = vmatpush1.bf16.msra.mxu0 0
        %1800 = vmatprep.subr.bf16.mxu0 0
        %1801 = vmatpush1.bf16.msra.mxu0 0
        %1802 = vmatprep.subr.bf16.mxu0 0
        %1803 = vmatpush1.bf16.msra.mxu0 0
        %1804 = vmatprep.subr.bf16.mxu0 0
        %1805 = vmatpush1.bf16.msra.mxu0 0
        %1806 = vmatprep.subr.bf16.mxu0 0
        %1807 = vmatpush1.bf16.msra.mxu0 0
        %1808 = vmatprep.subr.bf16.mxu0 0
        %1809 = vmatpush1.bf16.msra.mxu0 0
        %1810 = vmatprep.subr.bf16.mxu0 0
        %1811 = vmatpush1.bf16.msra.mxu0 0
        %1812 = vmatprep.mubr.bf16.mxu0 0
        %1813 = vmatmul.mubr.bf16.gmra.mrb[0].mxu0 %v1778
        %v1814 = vpop.f32.mrb[0].mxu0
        %v1815 = vadd.f32 %v1763, %v1814
        %v1816 = vpop.f32.mrb[0].mxu0
        %v1817 = vpop.f32.mrb[0].mxu0
        %v1818 = vpop.f32.mrb[0].mxu0
        %1819 = vdwg.mxu0
        %v1820 = vmax.f32 %v1815, 0.0
        %v1821 = vpack.c.bf16 %v1820, %v1820
        %v1823 = vlaneseq
        %v1824 = vshrl.u32 %v1823, 7
        %v1825 = vsub.s32 0, %v1824
        %v1826 = vrot.slane %v1758, %v1825
        %v1836 = vunpack.c.l.b16 %v1750
        %v1837 = vunpack.c.l.b16 %v1751
        %v1838 = vunpack.c.l.b16 %v1752
        %v1839 = vunpack.c.l.b16 %v1753
        %v1840 = vunpack.c.l.b16 %v1754
        %v1841 = vunpack.c.l.b16 %v1755
        %v1842 = vunpack.c.l.b16 %v1756
        %v1843 = vunpack.c.l.b16 %v1757
        %v1844 = vpack.c.b16 %v1837, %v1836
        %v1845 = vpack.c.b16 %v1839, %v1838
        %v1846 = vpack.c.b16 %v1841, %v1840
        %v1847 = vpack.c.b16 %v1843, %v1842
        %vm1852 = vcmask 523264
        %v1854 = vsel %vm1852, %v1821, 0
        %1856 = vmatprep.subr.bf16.mxu0 0
        %1857 = vmatpush1.bf16.msra.mxu0 %v1844
        %1858 = vmatprep.subr.bf16.mxu0 0
        %1859 = vmatpush1.bf16.msra.mxu0 %v1845
        %1860 = vmatprep.subr.bf16.mxu0 0
        %1861 = vmatpush1.bf16.msra.mxu0 %v1846
        %1862 = vmatprep.subr.bf16.mxu0 0
        %1863 = vmatpush1.bf16.msra.mxu0 %v1847
        %1864 = vmatprep.subr.bf16.mxu0 0
        %1865 = vmatpush1.bf16.msra.mxu0 0
        %1866 = vmatprep.subr.bf16.mxu0 0
        %1867 = vmatpush1.bf16.msra.mxu0 0
        %1868 = vmatprep.subr.bf16.mxu0 0
        %1869 = vmatpush1.bf16.msra.mxu0 0
        %1870 = vmatprep.subr.bf16.mxu0 0
        %1871 = vmatpush1.bf16.msra.mxu0 0
        %1872 = vmatprep.subr.bf16.mxu0 0
        %1873 = vmatpush1.bf16.msra.mxu0 0
        %1874 = vmatprep.subr.bf16.mxu0 0
        %1875 = vmatpush1.bf16.msra.mxu0 0
        %1876 = vmatprep.subr.bf16.mxu0 0
        %1877 = vmatpush1.bf16.msra.mxu0 0
        %1878 = vmatprep.subr.bf16.mxu0 0
        %1879 = vmatpush1.bf16.msra.mxu0 0
        %1880 = vmatprep.subr.bf16.mxu0 0
        %1881 = vmatpush1.bf16.msra.mxu0 0
        %1882 = vmatprep.subr.bf16.mxu0 0
        %1883 = vmatpush1.bf16.msra.mxu0 0
        %1884 = vmatprep.subr.bf16.mxu0 0
        %1885 = vmatpush1.bf16.msra.mxu0 0
        %1886 = vmatprep.subr.bf16.mxu0 0
        %1887 = vmatpush1.bf16.msra.mxu0 0
        %1888 = vmatprep.mubr.bf16.mxu0 0
        %1889 = vmatmul.mubr.bf16.gmra.mrb[0].mxu0 %v1854
        %v1890 = vpop.f32.mrb[0].mxu0
        %v1891 = vadd.f32 %v1826, %v1890
        %v1892 = vpop.f32.mrb[0].mxu0
        %v1893 = vpop.f32.mrb[0].mxu0
        %v1894 = vpop.f32.mrb[0].mxu0
        %1895 = vdwg.mxu0
        %v1896 = vadd.f32 %v1714, %v1891
        %1897 = vst.msk [vmem:[#allocation2] sm:$0xff] %vm1074, %v1896
        %p1898 = scmp.eq.s32.totalorder %s65, 1
        // Predicated region
        $region153: #{transformer_forward.5} parent=83 // pred_check
          %p1899 = pneg %p1898
        $region154: #{transformer_forward.5} parent=83 // pred_check_branch
          %1901 = sbr.rel (%p1899) target = $region156
        $region155: #{transformer_forward.5} parent=83 // pred_region
          %v1902 = vld [vmem:[#allocation26] sm:$0x1]
          %v1903 = vld [vmem:[#allocation27] sm:$0x1]
          %v1904 = vsel %vm1074, %v1896, 0.0
          %1905 = vadd.xlane.f32.xlu0 %v1904
          %v1906 = vpop.xlane.xlu0 %1905
          %v1907 = vmul.f32 %v1906, %v1078
          %v1908 = vsub.f32 %v1896, %v1907
          %v1909 = vmul.f32 %v1908, %v1908
          %v1910 = vsel %vm1074, %v1909, 0.0
          %1911 = vadd.xlane.f32.xlu0 %v1910
          %v1912 = vpop.xlane.xlu0 %1911
          %v1913 = vmul.f32 %v1912, %v1078
          %v1914 = vadd.f32 %v1913, 1e-06
          %v1915 = vrsqrt.pop %v1914
          %v1916 = vmul.f32 %v1908, %v1915
          %v1918 = vlaneseq
          %v1919 = vshrl.u32 %v1918, 7
          %v1920 = vsub.s32 0, %v1919
          %v1921 = vrot.slane %v1902, %v1920
          %v1923 = vmul.f32 %v1916, %v1921
          %v1925 = vlaneseq
          %v1926 = vshrl.u32 %v1925, 7
          %v1927 = vsub.s32 0, %v1926
          %v1928 = vrot.slane %v1903, %v1927
          %v1930 = vadd.f32 %v1923, %v1928
          %1931 = vst.msk [vmem:[%s1054] sm:$0xff] %vm1074, %v1930
        $region156: #{transformer_forward.5} parent=83 // pred_fallthru
          _
        %s1932 = sand.u32 %s486, 1
        %s1933 = scalar_lea.sflag [#allocation5], %s1932
        %s1934 = sand.u32 %s486, 1
        %s1935 = smul.addr %s1934, 8
        %s1936 = scalar_lea.vmem [#allocation29], %s1935
        %s1937 = sand.u32 %s514, 1
        %s1938 = scalar_lea.sflag [#allocation31], %s1937
        %s1939 = sand.u32 %s514, 1
        %s1940 = smul.addr %s1939, 32
        %s1941 = scalar_lea.vmem [#allocation30], %s1940
        // Predicated region
        $region157: #{transformer_forward.5} parent=83 // pred_check
          %p1942 = pneg %p496
        $region158: #{transformer_forward.5} parent=83 // pred_check_branch
          %1944 = sbr.rel (%p1942) target = $region160
        $region159: #{transformer_forward.5} parent=83 // pred_region
          %s1946 = ssub.s32 128, 128
          %1947 = vsyncadd %s1933, %s1946
          %s1948 = smul.addr %s64, 128
          %s1949 = scalar_lea.hbm %s16, %s1948
          %s1951 = sshll.u32 %s1936, 4
          %s1952 = int_to_ptr.vmem [resolvable:$true] %s1951
          %1954 = dma.vmem_to_hbm [thread:$0]  %s1952, 128, %s1949, %s1933
        $region160: #{transformer_forward.5} parent=83 // pred_fallthru
          _
        // Predicated region
        $region161: #{transformer_forward.5} parent=83 // pred_check
          %p1955 = pneg %p524
        $region162: #{transformer_forward.5} parent=83 // pred_check_branch
          %1957 = sbr.rel (%p1955) target = $region164
        $region163: #{transformer_forward.5} parent=83 // pred_region
          %s1959 = ssub.s32 512, 512
          %1960 = vsyncadd %s1938, %s1959
          %s1961 = smul.addr %s64, 4
          %s1962 = smul.addr %s65, 8
          %s1963 = sadd.s32 %s1961, %s1962
          %s1964 = smul.addr %s1963, 128
          %s1965 = scalar_lea.hbm %s17, %s1964
          %s1966 = sshll.u32 %s1941, 4
          %s1967 = int_to_ptr.vmem [resolvable:$true] %s1966
          %1972 = dma.vmem_to_hbm [thread:$0]  %s1967, 512, %s1965, %s1938, 128, 128, 8
        $region164: #{transformer_forward.5} parent=83 // pred_fallthru
          _
      $region84: #{transformer_forward.5} parent=5 // pred_fallthru
        _
      %p1973 = scmp.le.s32.totalorder 2, %s55
      // Predicated region
      $region165: #{transformer_forward.5} parent=5 // pred_check
        %p1974 = pneg %p1973
      $region166: #{transformer_forward.5} parent=5 // pred_check_branch
        %1976 = sbr.rel (%p1974) target = $region168
      $region167: #{transformer_forward.5} parent=5 // pred_region
        %s1977 = ssub.s32 %s55, 2
        // Predicated region
        $region169: #{transformer_forward.5} parent=167 // pred_check
          %p1978 = pneg %p502
        $region170: #{transformer_forward.5} parent=167 // pred_check_branch
          %1980 = sbr.rel (%p1978) target = $region172
        $region171: #{transformer_forward.5} parent=167 // pred_region
          %s1981 = sand.u32 %s487, 1
          %s1982 = scalar_lea.sflag [#allocation5], %s1981
          %s1983 = sand.u32 %s487, 1
          %s1984 = smul.addr %s1983, 8
          %s1985 = scalar_lea.vmem [#allocation29], %s1984
          %1986 = dma.done %s1982, 128
        $region172: #{transformer_forward.5} parent=167 // pred_fallthru
          _
        // Predicated region
        $region173: #{transformer_forward.5} parent=167 // pred_check
          %p1987 = pneg %p530
        $region174: #{transformer_forward.5} parent=167 // pred_check_branch
          %1989 = sbr.rel (%p1987) target = $region176
        $region175: #{transformer_forward.5} parent=167 // pred_region
          %s1990 = sand.u32 %s515, 1
          %s1991 = scalar_lea.sflag [#allocation31], %s1990
          %s1992 = sand.u32 %s515, 1
          %s1993 = smul.addr %s1992, 32
          %s1994 = scalar_lea.vmem [#allocation30], %s1993
          %1995 = dma.done %s1991, 512
        $region176: #{transformer_forward.5} parent=167 // pred_fallthru
          _
      $region168: #{transformer_forward.5} parent=5 // pred_fallthru
        _
    $region6: #{transformer_forward.5} parent=1 // loop_footer
      %s59 = sadd.s32 1, %s55
    $region7: #{transformer_forward.5} parent=1 // loop_footer_branch
      %54 = sbr.rel target = $region3
    $region8: #{transformer_forward.5} parent=1 // loop_exit
      _
    %1996 = vsyncpa [#allocation4], 1
    %s1997 = scalar_lea.sflag [#allocation4], 1
    %1998 = vsyncpa %s1997, 1
    %1999 = vsyncpa [#allocation7], 1
    %s2000 = scalar_lea.sflag [#allocation7], 1
    %2001 = vsyncpa %s2000, 1
    %2002 = vsyncpa [#allocation10], 1
    %s2003 = scalar_lea.sflag [#allocation10], 1
    %2004 = vsyncpa %s2003, 1
    %2005 = vsyncpa [#allocation13], 1
    %s2006 = scalar_lea.sflag [#allocation13], 1
    %2007 = vsyncpa %s2006, 1
    %2008 = vsyncpa [#allocation16], 1
    %s2009 = scalar_lea.sflag [#allocation16], 1
    %2010 = vsyncpa %s2009, 1
    %2011 = vsyncpa [#allocation19], 1
    %s2012 = scalar_lea.sflag [#allocation19], 1
    %2013 = vsyncpa %s2012, 1
    %2014 = vsyncpa [#allocation22], 1
    %s2015 = scalar_lea.sflag [#allocation22], 1
    %2016 = vsyncpa %s2015, 1
    %2017 = vsyncpa [#allocation25], 1
    %s2018 = scalar_lea.sflag [#allocation25], 1
    %2019 = vsyncpa %s2018, 1
    %2020 = vsyncpa [#allocation28], 1
    %2021 = vsyncpa [#allocation5], 1
    %s2022 = scalar_lea.sflag [#allocation5], 1
    %2023 = vsyncpa %s2022, 1
    %2024 = vsyncpa [#allocation31], 1
    %s2025 = scalar_lea.sflag [#allocation31], 1
    %2026 = vsyncpa %s2025, 1

// kernel: transformer_forward.7
$region0: #{transformer_forward.7}
  #allocation0 [shape = 'u32[]', space=smem, size = 0x4, offset = 0x4, fixed_abs, tag = 'smem constant byte address 0x4 - core index']
  #allocation1 [shape = 'u32[144,128]{1,0:T(1,128)}', space=vmem, size = 0x12000, scoped, tag = 'internal scratch']
  %s0 = inlined_call_operand.hbm [shape: f32[16,32], index: 0, kind: input, shape index: {}]
  %s1 = inlined_call_operand.hbm [shape: f32[1,32], index: 1, kind: input, shape index: {}]
  %s2 = inlined_call_operand.hbm [shape: f32[1,32], index: 2, kind: input, shape index: {}]
  %s3 = inlined_call_operand.hbm [shape: bf16[32,12], index: 3, kind: input, shape index: {}]
  %s4 = inlined_call_operand.hbm [shape: f32[16,12], index: 4, kind: output, shape index: {}]
  %s5 = sld [smem:[#allocation0]]
  $region42: #{transformer_forward.7} parent=0
    _
  %s7 = ssub.s32 1, %s5
  %s8 = scalar_select 0, %s7, %s5
  $region1: #{transformer_forward.7} parent=0
    #allocation2 [shape = 'u8[8192]{0}', space=vmem, size = 0x2000, scoped, tag = 'input window, operand 0, single buffered']
    #allocation3 [shape = 's32[1]{0}', space=sflag, size = 0x4, scoped, tag = 'scoped memory for transformer_forward.7']
    #allocation4 [shape = 's32[1]{0}', space=sflag, size = 0x4, scoped, tag = 'scoped memory for transformer_forward.7']
    #allocation5 [shape = 'u8[512]{0}', space=vmem, size = 0x400, scoped, tag = 'input window, operand 1, single buffered']
    #allocation6 [shape = 's32[1]{0}', space=sflag, size = 0x4, scoped, tag = 'scoped memory for transformer_forward.7']
    #allocation7 [shape = 'u8[512]{0}', space=vmem, size = 0x400, scoped, tag = 'input window, operand 2, single buffered']
    #allocation8 [shape = 'u8[8192]{0}', space=vmem, size = 0x2000, scoped, tag = 'input window, operand 3, single buffered']
    #allocation9 [shape = 's32[1]{0}', space=sflag, size = 0x4, scoped, tag = 'scoped memory for transformer_forward.7']
    #allocation10 [shape = 'u8[8192]{0}', space=vmem, size = 0x2000, scoped, tag = 'output window, operand 0, single buffered']
    %9 = vsyncpa [#allocation3], 0
    %10 = vsyncpa [#allocation6], 0
    %11 = vsyncpa [#allocation9], 0
    %12 = vsyncpa [#allocation4], 0
    // Predicated region
    $region2: #{transformer_forward.7} parent=1 // pred_check
      _
    $region3: #{transformer_forward.7} parent=1 // pred_check_branch
      %14 = sbr.rel (0) target = $region5
    $region4: #{transformer_forward.7} parent=1 // pred_region
      %s16 = ssub.s32 256, 256
      %17 = vsyncadd [#allocation3], %s16
      %s18 = sshll.u32 [#allocation2], 4
      %s19 = int_to_ptr.vmem [resolvable:$true] %s18
      %24 = dma.hbm_to_vmem [thread:$0]  %s0, 256, %s19, [#allocation3], 128, 128, 8
    $region5: #{transformer_forward.7} parent=1 // pred_fallthru
      _
    // Predicated region
    $region6: #{transformer_forward.7} parent=1 // pred_check
      _
    $region7: #{transformer_forward.7} parent=1 // pred_check_branch
      %26 = sbr.rel (0) target = $region9
    $region8: #{transformer_forward.7} parent=1 // pred_region
      %s28 = ssub.s32 16, 16
      %29 = vsyncadd [#allocation6], %s28
      %s31 = sshll.u32 [#allocation5], 4
      %s32 = int_to_ptr.vmem [resolvable:$true] %s31
      %34 = dma.hbm_to_vmem [thread:$0]  %s1, 16, %s32, [#allocation6]
    $region9: #{transformer_forward.7} parent=1 // pred_fallthru
      _
    // Predicated region
    $region10: #{transformer_forward.7} parent=1 // pred_check
      _
    $region11: #{transformer_forward.7} parent=1 // pred_check_branch
      %36 = sbr.rel (0) target = $region13
    $region12: #{transformer_forward.7} parent=1 // pred_region
      %s38 = ssub.s32 16, 16
      %39 = vsyncadd [#allocation6], %s38
      %s41 = sshll.u32 [#allocation7], 4
      %s42 = int_to_ptr.vmem [resolvable:$true] %s41
      %44 = dma.hbm_to_vmem [thread:$0]  %s2, 16, %s42, [#allocation6]
    $region13: #{transformer_forward.7} parent=1 // pred_fallthru
      _
    // Predicated region
    $region14: #{transformer_forward.7} parent=1 // pred_check
      _
    $region15: #{transformer_forward.7} parent=1 // pred_check_branch
      %46 = sbr.rel (0) target = $region17
    $region16: #{transformer_forward.7} parent=1 // pred_region
      %s48 = ssub.s32 256, 256
      %49 = vsyncadd [#allocation9], %s48
      %s50 = sshll.u32 [#allocation8], 4
      %s51 = int_to_ptr.vmem [resolvable:$true] %s50
      %56 = dma.hbm_to_vmem [thread:$0]  %s3, 256, %s51, [#allocation9], 64, 64, 4
    $region17: #{transformer_forward.7} parent=1 // pred_fallthru
      _
    // Predicated region
    $region18: #{transformer_forward.7} parent=1 // pred_check
      _
    $region19: #{transformer_forward.7} parent=1 // pred_check_branch
      %58 = sbr.rel (0) target = $region21
    $region20: #{transformer_forward.7} parent=1 // pred_region
      %59 = dma.done [#allocation3], 256
    $region21: #{transformer_forward.7} parent=1 // pred_fallthru
      _
    // Predicated region
    $region22: #{transformer_forward.7} parent=1 // pred_check
      _
    $region23: #{transformer_forward.7} parent=1 // pred_check_branch
      %61 = sbr.rel (0) target = $region25
    $region24: #{transformer_forward.7} parent=1 // pred_region
      %62 = dma.done [#allocation6], 16
    $region25: #{transformer_forward.7} parent=1 // pred_fallthru
      _
    // Predicated region
    $region26: #{transformer_forward.7} parent=1 // pred_check
      _
    $region27: #{transformer_forward.7} parent=1 // pred_check_branch
      %64 = sbr.rel (0) target = $region29
    $region28: #{transformer_forward.7} parent=1 // pred_region
      %65 = dma.done [#allocation6], 16
    $region29: #{transformer_forward.7} parent=1 // pred_fallthru
      _
    // Predicated region
    $region30: #{transformer_forward.7} parent=1 // pred_check
      _
    $region31: #{transformer_forward.7} parent=1 // pred_check_branch
      %67 = sbr.rel (0) target = $region33
    $region32: #{transformer_forward.7} parent=1 // pred_region
      %68 = dma.done [#allocation9], 256
    $region33: #{transformer_forward.7} parent=1 // pred_fallthru
      _
    %v70 = vld [vmem:[#allocation2] sm:$0xff]
    %v71 = vld [vmem:[#allocation2 + $0x8] sm:$0xff]
    %v72 = vld [vmem:[#allocation5] sm:$0x1]
    %v73 = vld [vmem:[#allocation7] sm:$0x1]
    %vm74 = vcmask 261120
    %v75 = vsel %vm74, %v70, 0.0
    %76 = vadd.xlane.f32.xlu0 %v75
    %v77 = vpop.xlane.xlu0 %76
    %v78 = vsel %vm74, %v71, 0.0
    %79 = vadd.xlane.f32.xlu0 %v78
    %v80 = vpop.xlane.xlu0 %79
    %v81 = vrcp.pop 32.0
    %v82 = vmul.f32 %v77, %v81
    %v83 = vmul.f32 %v80, %v81
    %v84 = vsub.f32 %v70, %v82
    %v85 = vsub.f32 %v71, %v83
    %v86 = vmul.f32 %v84, %v84
    %v87 = vmul.f32 %v85, %v85
    %v88 = vsel %vm74, %v86, 0.0
    %89 = vadd.xlane.f32.xlu0 %v88
    %v90 = vpop.xlane.xlu0 %89
    %v91 = vsel %vm74, %v87, 0.0
    %92 = vadd.xlane.f32.xlu0 %v91
    %v93 = vpop.xlane.xlu0 %92
    %v94 = vmul.f32 %v90, %v81
    %v95 = vmul.f32 %v93, %v81
    %v96 = vadd.f32 %v94, 1e-06
    %v97 = vadd.f32 %v95, 1e-06
    %v98 = vrsqrt.pop %v96
    %v99 = vrsqrt.pop %v97
    %v100 = vmul.f32 %v84, %v98
    %v101 = vmul.f32 %v85, %v99
    %v103 = vlaneseq
    %v104 = vshrl.u32 %v103, 7
    %v105 = vsub.s32 0, %v104
    %v106 = vrot.slane %v72, %v105
    %v108 = vmul.f32 %v100, %v106
    %v109 = vmul.f32 %v101, %v106
    %v111 = vlaneseq
    %v112 = vshrl.u32 %v111, 7
    %v113 = vsub.s32 0, %v112
    %v114 = vrot.slane %v73, %v113
    %v116 = vadd.f32 %v108, %v114
    %v117 = vadd.f32 %v109, %v114
    %v118 = vpack.c.bf16 %v117, %v116
    %v119 = vld [vmem:[#allocation8] sm:$0xf]
    %v120 = vld [vmem:[#allocation8 + $0x4] sm:$0xf]
    %v121 = vld [vmem:[#allocation8 + $0x8] sm:$0xf]
    %v122 = vld [vmem:[#allocation8 + $0xc] sm:$0xf]
    %v127 = vunpack.c.l.b16 %v119
    %v128 = vunpack.c.l.b16 %v120
    %v129 = vunpack.c.l.b16 %v121
    %v130 = vunpack.c.l.b16 %v122
    %v131 = vpack.c.b16 %v128, %v127
    %v132 = vpack.c.b16 %v130, %v129
    %v136 = vsel %vm74, %v118, 0
    %138 = vmatprep.subr.bf16.mxu0 0
    %139 = vmatpush1.bf16.msra.mxu0 %v131
    %140 = vmatprep.subr.bf16.mxu0 0
    %141 = vmatpush1.bf16.msra.mxu0 %v132
    %142 = vmatprep.subr.bf16.mxu0 0
    %143 = vmatpush1.bf16.msra.mxu0 0
    %144 = vmatprep.subr.bf16.mxu0 0
    %145 = vmatpush1.bf16.msra.mxu0 0
    %146 = vmatprep.subr.bf16.mxu0 0
    %147 = vmatpush1.bf16.msra.mxu0 0
    %148 = vmatprep.subr.bf16.mxu0 0
    %149 = vmatpush1.bf16.msra.mxu0 0
    %150 = vmatprep.subr.bf16.mxu0 0
    %151 = vmatpush1.bf16.msra.mxu0 0
    %152 = vmatprep.subr.bf16.mxu0 0
    %153 = vmatpush1.bf16.msra.mxu0 0
    %154 = vmatprep.subr.bf16.mxu0 0
    %155 = vmatpush1.bf16.msra.mxu0 0
    %156 = vmatprep.subr.bf16.mxu0 0
    %157 = vmatpush1.bf16.msra.mxu0 0
    %158 = vmatprep.subr.bf16.mxu0 0
    %159 = vmatpush1.bf16.msra.mxu0 0
    %160 = vmatprep.subr.bf16.mxu0 0
    %161 = vmatpush1.bf16.msra.mxu0 0
    %162 = vmatprep.subr.bf16.mxu0 0
    %163 = vmatpush1.bf16.msra.mxu0 0
    %164 = vmatprep.subr.bf16.mxu0 0
    %165 = vmatpush1.bf16.msra.mxu0 0
    %166 = vmatprep.subr.bf16.mxu0 0
    %167 = vmatpush1.bf16.msra.mxu0 0
    %168 = vmatprep.subr.bf16.mxu0 0
    %169 = vmatpush1.bf16.msra.mxu0 0
    %170 = vmatprep.mubr.bf16.mxu0 0
    %171 = vmatmul.mubr.bf16.gmra.mrb[0].mxu0 %v136
    %v172 = vpop.f32.mrb[0].mxu0
    %v173 = vadd.f32 0.0, %v172
    %v174 = vpop.f32.mrb[0].mxu0
    %v175 = vpop.f32.mrb[0].mxu0
    %v176 = vadd.f32 0.0, %v175
    %v177 = vpop.f32.mrb[0].mxu0
    %178 = vdwg.mxu0
    %vm179 = vcmask 97280
    %v180 = vsel %vm179, %v173, -inf
    %181 = vmax.xlane.f32.xlu0 %v180
    %v182 = vpop.xlane.xlu0 %181
    %v183 = vsel %vm179, %v176, -inf
    %184 = vmax.xlane.f32.xlu0 %v183
    %v185 = vpop.xlane.xlu0 %184
    %v186 = vsub.f32 %v173, %v182
    %v187 = vsub.f32 %v176, %v185
    %v188 = vmul.f32 %v186, 1.442695
    %v189 = vpow.pop %v188
    %v190 = vmul.f32 %v187, 1.442695
    %v191 = vpow.pop %v190
    %v192 = vsel %vm179, %v189, 0.0
    %193 = vadd.xlane.f32.xlu0 %v192
    %v194 = vpop.xlane.xlu0 %193
    %v195 = vsel %vm179, %v191, 0.0
    %196 = vadd.xlane.f32.xlu0 %v195
    %v197 = vpop.xlane.xlu0 %196
    %v198 = vlog2.pop %v194
    %v199 = vmul.f32 %v198, 0.6931472
    %v200 = vlog2.pop %v197
    %v201 = vmul.f32 %v200, 0.6931472
    %v202 = vsub.f32 %v186, %v199
    %v203 = vsub.f32 %v187, %v201
    %204 = vst.msk [vmem:[#allocation10] sm:$0xff] %vm179, %v202
    %205 = vst.msk [vmem:[#allocation10 + $0x8] sm:$0xff] %vm179, %v203
    // Predicated region
    $region34: #{transformer_forward.7} parent=1 // pred_check
      _
    $region35: #{transformer_forward.7} parent=1 // pred_check_branch
      %207 = sbr.rel (0) target = $region37
    $region36: #{transformer_forward.7} parent=1 // pred_region
      %s209 = ssub.s32 256, 256
      %210 = vsyncadd [#allocation4], %s209
      %s211 = sshll.u32 [#allocation10], 4
      %s212 = int_to_ptr.vmem [resolvable:$true] %s211
      %217 = dma.vmem_to_hbm [thread:$0]  %s212, 256, %s4, [#allocation4], 128, 128, 8
    $region37: #{transformer_forward.7} parent=1 // pred_fallthru
      _
    // Predicated region
    $region38: #{transformer_forward.7} parent=1 // pred_check
      _
    $region39: #{transformer_forward.7} parent=1 // pred_check_branch
      %219 = sbr.rel (0) target = $region41
    $region40: #{transformer_forward.7} parent=1 // pred_region
      %220 = dma.done [#allocation4], 256
    $region41: #{transformer_forward.7} parent=1 // pred_fallthru
      _
    %221 = vsyncpa [#allocation3], 1
    %222 = vsyncpa [#allocation6], 1
    %223 = vsyncpa [#allocation9], 1
    %224 = vsyncpa [#allocation4], 1

// kernel: transformer_forward.6
$region0: #{transformer_forward.6}
  #allocation0 [shape = 'u32[]', space=smem, size = 0x4, offset = 0x4, fixed_abs, tag = 'smem constant byte address 0x4 - core index']
  #allocation1 [shape = 'u32[144,128]{1,0:T(1,128)}', space=vmem, size = 0x12000, scoped, tag = 'internal scratch']
  #allocation2 [shape = 'f32[8,32]{1,0:T(8,128)}', space=vmem, size = 0x1000, scoped, tag = 'scratch operand']
  %s0 = inlined_call_operand.hbm [shape: f32[2,8,32], index: 0, kind: input, shape index: {}]
  %s1 = inlined_call_operand.hbm [shape: bf16[2,8,32], index: 1, kind: input, shape index: {}]
  %s2 = inlined_call_operand.hbm [shape: f32[1,8,8], index: 2, kind: input, shape index: {}]
  %s3 = inlined_call_operand.hbm [shape: f32[2,1,8], index: 3, kind: input, shape index: {}]
  %s4 = inlined_call_operand.hbm [shape: f32[2,1,32], index: 4, kind: input, shape index: {}]
  %s5 = inlined_call_operand.hbm [shape: f32[2,1,32], index: 5, kind: input, shape index: {}]
  %s6 = inlined_call_operand.hbm [shape: bf16[2,32,96], index: 6, kind: input, shape index: {}]
  %s7 = inlined_call_operand.hbm [shape: f32[2,1,96], index: 7, kind: input, shape index: {}]
  %s8 = inlined_call_operand.hbm [shape: bf16[2,32,32], index: 8, kind: input, shape index: {}]
  %s9 = inlined_call_operand.hbm [shape: f32[2,1,32], index: 9, kind: input, shape index: {}]
  %s10 = inlined_call_operand.hbm [shape: f32[2,1,32], index: 10, kind: input, shape index: {}]
  %s11 = inlined_call_operand.hbm [shape: f32[2,1,32], index: 11, kind: input, shape index: {}]
  %s12 = inlined_call_operand.hbm [shape: bf16[2,32,32], index: 12, kind: input, shape index: {}]
  %s13 = inlined_call_operand.hbm [shape: f32[2,1,32], index: 13, kind: input, shape index: {}]
  %s14 = inlined_call_operand.hbm [shape: bf16[2,32,64], index: 14, kind: input, shape index: {}]
  %s15 = inlined_call_operand.hbm [shape: f32[2,1,64], index: 15, kind: input, shape index: {}]
  %s16 = inlined_call_operand.hbm [shape: bf16[2,32,32], index: 16, kind: input, shape index: {}]
  %s17 = inlined_call_operand.hbm [shape: f32[2,1,32], index: 17, kind: input, shape index: {}]
  %s18 = inlined_call_operand.hbm [shape: f32[2,1,32], index: 18, kind: input, shape index: {}]
  %s19 = inlined_call_operand.hbm [shape: f32[2,1,32], index: 19, kind: input, shape index: {}]
  %s20 = inlined_call_operand.hbm [shape: bf16[2,32,64], index: 20, kind: input, shape index: {}]
  %s21 = inlined_call_operand.hbm [shape: f32[2,1,64], index: 21, kind: input, shape index: {}]
  %s22 = inlined_call_operand.hbm [shape: bf16[2,64,32], index: 22, kind: input, shape index: {}]
  %s23 = inlined_call_operand.hbm [shape: f32[2,1,32], index: 23, kind: input, shape index: {}]
  %s24 = inlined_call_operand.hbm [shape: f32[2,8,32], index: 24, kind: output, shape index: {0}]
  %s25 = inlined_call_operand.hbm [shape: f32[2,2,4,8,8], index: 25, kind: output, shape index: {1}]
  %s26 = inlined_call_operand.hbm [shape: f32[2,2,4,8,8], index: 26, kind: output, shape index: {2}]
  %27 = xla_tuple %s24, %s25, %s26
  %s28 = sld [smem:[#allocation0]]
  $region249: #{transformer_forward.6} parent=0
    _
  %s30 = ssub.s32 1, %s28
  %s31 = scalar_select 0, %s30, %s28
  $region1: #{transformer_forward.6} parent=0
    #allocation3 [shape = 'u8[8192]{0}', space=vmem, size = 0x2000, scoped, tag = 'input window, operand 0']
    #allocation4 [shape = 's32[2]{0}', space=sflag, size = 0x8, scoped, tag = 'scoped memory for transformer_forward.6']
    #allocation5 [shape = 's32[2]{0}', space=sflag, size = 0x8, scoped, tag = 'scoped memory for transformer_forward.6']
    #allocation6 [shape = 'u8[4096]{0}', space=vmem, size = 0x1000, scoped, tag = 'input window, operand 1']
    #allocation7 [shape = 's32[2]{0}', space=sflag, size = 0x8, scoped, tag = 'scoped memory for transformer_forward.6']
    #allocation8 [shape = 'u8[4096]{0}', space=vmem, size = 0x1000, scoped, tag = 'input window, operand 2, single buffered']
    #allocation9 [shape = 'u8[1024]{0}', space=vmem, size = 0x400, scoped, tag = 'input window, operand 3']
    #allocation10 [shape = 's32[2]{0}', space=sflag, size = 0x8, scoped, tag = 'scoped memory for transformer_forward.6']
    #allocation11 [shape = 'u8[1024]{0}', space=vmem, size = 0x400, scoped, tag = 'input window, operand 4']
    #allocation12 [shape = 'u8[1024]{0}', space=vmem, size = 0x400, scoped, tag = 'input window, operand 5']
    #allocation13 [shape = 's32[2]{0}', space=sflag, size = 0x8, scoped, tag = 'scoped memory for transformer_forward.6']
    #allocation14 [shape = 'u8[16384]{0}', space=vmem, size = 0x4000, scoped, tag = 'input window, operand 6']
    #allocation15 [shape = 'u8[1024]{0}', space=vmem, size = 0x400, scoped, tag = 'input window, operand 7']
    #allocation16 [shape = 's32[2]{0}', space=sflag, size = 0x8, scoped, tag = 'scoped memory for transformer_forward.6']
    #allocation17 [shape = 'u8[16384]{0}', space=vmem, size = 0x4000, scoped, tag = 'input window, operand 8']
    #allocation18 [shape = 'u8[1024]{0}', space=vmem, size = 0x400, scoped, tag = 'input window, operand 9']
    #allocation19 [shape = 's32[2]{0}', space=sflag, size = 0x8, scoped, tag = 'scoped memory for transformer_forward.6']
    #allocation20 [shape = 'u8[1024]{0}', space=vmem, size = 0x400, scoped, tag = 'input window, operand 10']
    #allocation21 [shape = 'u8[1024]{0}', space=vmem, size = 0x400, scoped, tag = 'input window, operand 11']
    #allocation22 [shape = 's32[2]{0}', space=sflag, size = 0x8, scoped, tag = 'scoped memory for transformer_forward.6']
    #allocation23 [shape = 'u8[16384]{0}', space=vmem, size = 0x4000, scoped, tag = 'input window, operand 12']
    #allocation24 [shape = 'u8[1024]{0}', space=vmem, size = 0x400, scoped, tag = 'input window, operand 13']
    #allocation25 [shape = 's32[2]{0}', space=sflag, size = 0x8, scoped, tag = 'scoped memory for transformer_forward.6']
    #allocation26 [shape = 'u8[16384]{0}', space=vmem, size = 0x4000, scoped, tag = 'input window, operand 14']
    #allocation27 [shape = 'u8[1024]{0}', space=vmem, size = 0x400, scoped, tag = 'input window, operand 15']
    #allocation28 [shape = 's32[2]{0}', space=sflag, size = 0x8, scoped, tag = 'scoped memory for transformer_forward.6']
    #allocation29 [shape = 'u8[16384]{0}', space=vmem, size = 0x4000, scoped, tag = 'input window, operand 16']
    #allocation30 [shape = 'u8[1024]{0}', space=vmem, size = 0x400, scoped, tag = 'input window, operand 17']
    #allocation31 [shape = 's32[2]{0}', space=sflag, size = 0x8, scoped, tag = 'scoped memory for transformer_forward.6']
    #allocation32 [shape = 'u8[1024]{0}', space=vmem, size = 0x400, scoped, tag = 'input window, operand 18']
    #allocation33 [shape = 'u8[1024]{0}', space=vmem, size = 0x400, scoped, tag = 'input window, operand 19']
    #allocation34 [shape = 's32[2]{0}', space=sflag, size = 0x8, scoped, tag = 'scoped memory for transformer_forward.6']
    #allocation35 [shape = 'u8[16384]{0}', space=vmem, size = 0x4000, scoped, tag = 'input window, operand 20']
    #allocation36 [shape = 'u8[1024]{0}', space=vmem, size = 0x400, scoped, tag = 'input window, operand 21']
    #allocation37 [shape = 's32[2]{0}', space=sflag, size = 0x8, scoped, tag = 'scoped memory for transformer_forward.6']
    #allocation38 [shape = 'u8[32768]{0}', space=vmem, size = 0x8000, scoped, tag = 'input window, operand 22']
    #allocation39 [shape = 'u8[1024]{0}', space=vmem, size = 0x400, scoped, tag = 'input window, operand 23']
    #allocation40 [shape = 's32[2]{0}', space=sflag, size = 0x8, scoped, tag = 'scoped memory for transformer_forward.6']
    #allocation41 [shape = 'u8[8192]{0}', space=vmem, size = 0x2000, scoped, tag = 'output window, operand 0']
    #allocation42 [shape = 'u8[32768]{0}', space=vmem, size = 0x8000, scoped, tag = 'output window, operand 1']
    #allocation43 [shape = 's32[2]{0}', space=sflag, size = 0x8, scoped, tag = 'scoped memory for transformer_forward.6']
    #allocation44 [shape = 'u8[32768]{0}', space=vmem, size = 0x8000, scoped, tag = 'output window, operand 2']
    %32 = vsyncpa [#allocation4], 0
    %s33 = scalar_lea.sflag [#allocation4], 1
    %34 = vsyncpa %s33, 0
    %35 = vsyncpa [#allocation7], 0
    %s36 = scalar_lea.sflag [#allocation7], 1
    %37 = vsyncpa %s36, 0
    %38 = vsyncpa [#allocation10], 0
    %s39 = scalar_lea.sflag [#allocation10], 1
    %40 = vsyncpa %s39, 0
    %41 = vsyncpa [#allocation13], 0
    %s42 = scalar_lea.sflag [#allocation13], 1
    %43 = vsyncpa %s42, 0
    %44 = vsyncpa [#allocation16], 0
    %s45 = scalar_lea.sflag [#allocation16], 1
    %46 = vsyncpa %s45, 0
    %47 = vsyncpa [#allocation19], 0
    %s48 = scalar_lea.sflag [#allocation19], 1
    %49 = vsyncpa %s48, 0
    %50 = vsyncpa [#allocation22], 0
    %s51 = scalar_lea.sflag [#allocation22], 1
    %52 = vsyncpa %s51, 0
    %53 = vsyncpa [#allocation25], 0
    %s54 = scalar_lea.sflag [#allocation25], 1
    %55 = vsyncpa %s54, 0
    %56 = vsyncpa [#allocation28], 0
    %s57 = scalar_lea.sflag [#allocation28], 1
    %58 = vsyncpa %s57, 0
    %59 = vsyncpa [#allocation31], 0
    %s60 = scalar_lea.sflag [#allocation31], 1
    %61 = vsyncpa %s60, 0
    %62 = vsyncpa [#allocation34], 0
    %s63 = scalar_lea.sflag [#allocation34], 1
    %64 = vsyncpa %s63, 0
    %65 = vsyncpa [#allocation37], 0
    %s66 = scalar_lea.sflag [#allocation37], 1
    %67 = vsyncpa %s66, 0
    %68 = vsyncpa [#allocation40], 0
    %s69 = scalar_lea.sflag [#allocation40], 1
    %70 = vsyncpa %s69, 0
    %71 = vsyncpa [#allocation5], 0
    %s72 = scalar_lea.sflag [#allocation5], 1
    %73 = vsyncpa %s72, 0
    %74 = vsyncpa [#allocation43], 0
    %s75 = scalar_lea.sflag [#allocation43], 1
    %76 = vsyncpa %s75, 0
    loop: start=0, step=1, limit=6
    $region2: #{transformer_forward.6} parent=1 // loop_pre_header
      _
    $region3: #{transformer_forward.6} parent=1 // loop_header
      %s78 = sphi 0, %s82
      %p79 = scmp.ge.s32.totalorder %s78, 6
      %s85 = sphi 0, %s97
      %s86 = sphi 0, %s93
      %s87 = sphi 0, %s85
      %s88 = sphi 0, %s86
      %s89 = sphi 0, %s87
      %s90 = sphi 0, %s88
      %s100 = sphi 0, %s102
      %s103 = sphi 0, %s100
      %s104 = sphi 0, %s103
      %s120 = sphi 0, %s104
      %s126 = sphi 0, %s128
      %s129 = sphi 0, %s126
      %s130 = sphi 0, %s129
      %s146 = sphi 0, %s130
      %s150 = sphi 0, %s150
      %s152 = sphi 0, %s150
      %s153 = sphi 0, %s152
      %s167 = sphi 0, %s153
      %s173 = sphi 0, %s175
      %s176 = sphi 0, %s173
      %s177 = sphi 0, %s176
      %s193 = sphi 0, %s177
      %s199 = sphi 0, %s201
      %s202 = sphi 0, %s199
      %s203 = sphi 0, %s202
      %s219 = sphi 0, %s203
      %s225 = sphi 0, %s227
      %s228 = sphi 0, %s225
      %s229 = sphi 0, %s228
      %s245 = sphi 0, %s229
      %s251 = sphi 0, %s253
      %s254 = sphi 0, %s251
      %s255 = sphi 0, %s254
      %s271 = sphi 0, %s255
      %s277 = sphi 0, %s279
      %s280 = sphi 0, %s277
      %s281 = sphi 0, %s280
      %s297 = sphi 0, %s281
      %s303 = sphi 0, %s305
      %s306 = sphi 0, %s303
      %s307 = sphi 0, %s306
      %s323 = sphi 0, %s307
      %s329 = sphi 0, %s331
      %s332 = sphi 0, %s329
      %s333 = sphi 0, %s332
      %s349 = sphi 0, %s333
      %s355 = sphi 0, %s357
      %s358 = sphi 0, %s355
      %s359 = sphi 0, %s358
      %s375 = sphi 0, %s359
      %s381 = sphi 0, %s383
      %s384 = sphi 0, %s381
      %s385 = sphi 0, %s384
      %s401 = sphi 0, %s385
      %s407 = sphi 0, %s409
      %s410 = sphi 0, %s407
      %s411 = sphi 0, %s410
      %s427 = sphi 0, %s411
      %s433 = sphi 0, %s435
      %s436 = sphi 0, %s433
      %s437 = sphi 0, %s436
      %s453 = sphi 0, %s437
      %s459 = sphi 0, %s461
      %s462 = sphi 0, %s459
      %s463 = sphi 0, %s462
      %s479 = sphi 0, %s463
      %s485 = sphi 0, %s487
      %s488 = sphi 0, %s485
      %s489 = sphi 0, %s488
      %s505 = sphi 0, %s489
      %s511 = sphi 0, %s513
      %s514 = sphi 0, %s511
      %s515 = sphi 0, %s514
      %s531 = sphi 0, %s515
      %s537 = sphi 0, %s539
      %s540 = sphi 0, %s537
      %s541 = sphi 0, %s540
      %s557 = sphi 0, %s541
      %s563 = sphi 0, %s565
      %s566 = sphi 0, %s563
      %s567 = sphi 0, %s566
      %s583 = sphi 0, %s567
      %s589 = sphi 0, %s591
      %s592 = sphi 0, %s589
      %s593 = sphi 0, %s592
      %s609 = sphi 0, %s593
      %s615 = sphi 0, %s617
      %s618 = sphi 0, %s615
      %s619 = sphi 0, %s618
      %s635 = sphi 0, %s619
      %s641 = sphi 0, %s643
      %s644 = sphi 0, %s641
      %s645 = sphi 0, %s644
      %s661 = sphi 0, %s645
      %s667 = sphi 0, %s669
      %s670 = sphi 0, %s667
      %s671 = sphi 0, %s670
      %s687 = sphi 0, %s671
      %s693 = sphi 0, %s695
      %s696 = sphi 0, %s693
      %s697 = sphi 0, %s696
      %s713 = sphi 0, %s697
      %s719 = sphi 0, %s721
      %s722 = sphi 0, %s719
      %s723 = sphi 0, %s722
      %s739 = sphi 0, %s723
      %s747 = sphi 0, %s749
      %s750 = sphi 0, %s747
      %s751 = sphi 0, %s750
      %s767 = sphi 0, %s751
      %s775 = sphi 0, %s777
      %s778 = sphi 0, %s775
      %s779 = sphi 0, %s778
      %s795 = sphi 0, %s779
    $region4: #{transformer_forward.6} parent=1 // loop_header_branch
      %81 = sbr.rel (%p79) target = $region8
    $region5: #{transformer_forward.6} parent=1 // loop_body
      %s83 = ssub.s32 %s78, 1
      %s84 = ssub.s32 %s78, 2
      %s91 = sadd.s32 1, %s86
      %p92 = scmp.ge.s32.totalorder %s91, 2
      %s93 = scalar_select %p92, 0, %s91
      %s94 = sadd.s32 1, %s85
      %s95 = scalar_select %p92, %s94, %s85
      %p96 = scmp.ge.s32.totalorder %s95, 2
      %s97 = scalar_select %p96, 0, %s95
      %s98 = ssub.s32 %s85, %s97
      %p99 = scmp.eq.s32.totalorder %s98, 0
      %s101 = sadd.s32 %s100, 1
      %s102 = scalar_select %p99, %s100, %s101
      %p105 = pneg %p99
      %p106 = scmp.eq.s32.totalorder %s78, 3
      %p107 = por %p105, %p106
      %p108 = scmp.ne.s32.totalorder %s100, %s103
      %p109 = scmp.eq.s32.totalorder %s78, 0
      %p110 = por %p108, %p109
      %p111 = scmp.ne.s32.totalorder %s100, %s103
      %p112 = scmp.eq.s32.totalorder %s83, 3
      %p113 = por %p111, %p112
      %p114 = scmp.ne.s32.totalorder %s103, %s104
      %p115 = scmp.eq.s32.totalorder %s83, 0
      %p116 = por %p114, %p115
      %p117 = scmp.ne.s32.totalorder %s103, %s104
      %p118 = scmp.eq.s32.totalorder %s84, 3
      %p119 = por %p117, %p118
      %p121 = scmp.ne.s32.totalorder %s104, %s120
      %p122 = scmp.eq.s32.totalorder %s84, 0
      %p123 = por %p121, %p122
      %s124 = ssub.s32 %s85, %s97
      %p125 = scmp.eq.s32.totalorder %s124, 0
      %s127 = sadd.s32 %s126, 1
      %s128 = scalar_select %p125, %s126, %s127
      %p131 = pneg %p125
      %p132 = scmp.eq.s32.totalorder %s78, 3
      %p133 = por %p131, %p132
      %p134 = scmp.ne.s32.totalorder %s126, %s129
      %p135 = scmp.eq.s32.totalorder %s78, 0
      %p136 = por %p134, %p135
      %p137 = scmp.ne.s32.totalorder %s126, %s129
      %p138 = scmp.eq.s32.totalorder %s83, 3
      %p139 = por %p137, %p138
      %p140 = scmp.ne.s32.totalorder %s129, %s130
      %p141 = scmp.eq.s32.totalorder %s83, 0
      %p142 = por %p140, %p141
      %p143 = scmp.ne.s32.totalorder %s129, %s130
      %p144 = scmp.eq.s32.totalorder %s84, 3
      %p145 = por %p143, %p144
      %p147 = scmp.ne.s32.totalorder %s130, %s146
      %p148 = scmp.eq.s32.totalorder %s84, 0
      %p149 = por %p147, %p148
      %s151 = sadd.s32 %s150, 1
      %p154 = scmp.eq.s32.totalorder %s78, 3
      %p155 = scmp.ne.s32.totalorder %s150, %s152
      %p156 = scmp.eq.s32.totalorder %s78, 0
      %p157 = por %p155, %p156
      %p158 = scmp.ne.s32.totalorder %s150, %s152
      %p159 = scmp.eq.s32.totalorder %s83, 3
      %p160 = por %p158, %p159
      %p161 = scmp.ne.s32.totalorder %s152, %s153
      %p162 = scmp.eq.s32.totalorder %s83, 0
      %p163 = por %p161, %p162
      %p164 = scmp.ne.s32.totalorder %s152, %s153
      %p165 = scmp.eq.s32.totalorder %s84, 3
      %p166 = por %p164, %p165
      %p168 = scmp.ne.s32.totalorder %s153, %s167
      %p169 = scmp.eq.s32.totalorder %s84, 0
      %p170 = por %p168, %p169
      %s171 = ssub.s32 %s85, %s97
      %p172 = scmp.eq.s32.totalorder %s171, 0
      %s174 = sadd.s32 %s173, 1
      %s175 = scalar_select %p172, %s173, %s174
      %p178 = pneg %p172
      %p179 = scmp.eq.s32.totalorder %s78, 3
      %p180 = por %p178, %p179
      %p181 = scmp.ne.s32.totalorder %s173, %s176
      %p182 = scmp.eq.s32.totalorder %s78, 0
      %p183 = por %p181, %p182
      %p184 = scmp.ne.s32.totalorder %s173, %s176
      %p185 = scmp.eq.s32.totalorder %s83, 3
      %p186 = por %p184, %p185
      %p187 = scmp.ne.s32.totalorder %s176, %s177
      %p188 = scmp.eq.s32.totalorder %s83, 0
      %p189 = por %p187, %p188
      %p190 = scmp.ne.s32.totalorder %s176, %s177
      %p191 = scmp.eq.s32.totalorder %s84, 3
      %p192 = por %p190, %p191
      %p194 = scmp.ne.s32.totalorder %s177, %s193
      %p195 = scmp.eq.s32.totalorder %s84, 0
      %p196 = por %p194, %p195
      %s197 = ssub.s32 %s86, %s93
      %p198 = scmp.eq.s32.totalorder %s197, 0
      %s200 = sadd.s32 %s199, 1
      %s201 = scalar_select %p198, %s199, %s200
      %p204 = pneg %p198
      %p205 = scmp.eq.s32.totalorder %s78, 3
      %p206 = por %p204, %p205
      %p207 = scmp.ne.s32.totalorder %s199, %s202
      %p208 = scmp.eq.s32.totalorder %s78, 0
      %p209 = por %p207, %p208
      %p210 = scmp.ne.s32.totalorder %s199, %s202
      %p211 = scmp.eq.s32.totalorder %s83, 3
      %p212 = por %p210, %p211
      %p213 = scmp.ne.s32.totalorder %s202, %s203
      %p214 = scmp.eq.s32.totalorder %s83, 0
      %p215 = por %p213, %p214
      %p216 = scmp.ne.s32.totalorder %s202, %s203
      %p217 = scmp.eq.s32.totalorder %s84, 3
      %p218 = por %p216, %p217
      %p220 = scmp.ne.s32.totalorder %s203, %s219
      %p221 = scmp.eq.s32.totalorder %s84, 0
      %p222 = por %p220, %p221
      %s223 = ssub.s32 %s86, %s93
      %p224 = scmp.eq.s32.totalorder %s223, 0
      %s226 = sadd.s32 %s225, 1
      %s227 = scalar_select %p224, %s225, %s226
      %p230 = pneg %p224
      %p231 = scmp.eq.s32.totalorder %s78, 3
      %p232 = por %p230, %p231
      %p233 = scmp.ne.s32.totalorder %s225, %s228
      %p234 = scmp.eq.s32.totalorder %s78, 0
      %p235 = por %p233, %p234
      %p236 = scmp.ne.s32.totalorder %s225, %s228
      %p237 = scmp.eq.s32.totalorder %s83, 3
      %p238 = por %p236, %p237
      %p239 = scmp.ne.s32.totalorder %s228, %s229
      %p240 = scmp.eq.s32.totalorder %s83, 0
      %p241 = por %p239, %p240
      %p242 = scmp.ne.s32.totalorder %s228, %s229
      %p243 = scmp.eq.s32.totalorder %s84, 3
      %p244 = por %p242, %p243
      %p246 = scmp.ne.s32.totalorder %s229, %s245
      %p247 = scmp.eq.s32.totalorder %s84, 0
      %p248 = por %p246, %p247
      %s249 = ssub.s32 %s86, %s93
      %p250 = scmp.eq.s32.totalorder %s249, 0
      %s252 = sadd.s32 %s251, 1
      %s253 = scalar_select %p250, %s251, %s252
      %p256 = pneg %p250
      %p257 = scmp.eq.s32.totalorder %s78, 3
      %p258 = por %p256, %p257
      %p259 = scmp.ne.s32.totalorder %s251, %s254
      %p260 = scmp.eq.s32.totalorder %s78, 0
      %p261 = por %p259, %p260
      %p262 = scmp.ne.s32.totalorder %s251, %s254
      %p263 = scmp.eq.s32.totalorder %s83, 3
      %p264 = por %p262, %p263
      %p265 = scmp.ne.s32.totalorder %s254, %s255
      %p266 = scmp.eq.s32.totalorder %s83, 0
      %p267 = por %p265, %p266
      %p268 = scmp.ne.s32.totalorder %s254, %s255
      %p269 = scmp.eq.s32.totalorder %s84, 3
      %p270 = por %p268, %p269
      %p272 = scmp.ne.s32.totalorder %s255, %s271
      %p273 = scmp.eq.s32.totalorder %s84, 0
      %p274 = por %p272, %p273
      %s275 = ssub.s32 %s86, %s93
      %p276 = scmp.eq.s32.totalorder %s275, 0
      %s278 = sadd.s32 %s277, 1
      %s279 = scalar_select %p276, %s277, %s278
      %p282 = pneg %p276
      %p283 = scmp.eq.s32.totalorder %s78, 3
      %p284 = por %p282, %p283
      %p285 = scmp.ne.s32.totalorder %s277, %s280
      %p286 = scmp.eq.s32.totalorder %s78, 0
      %p287 = por %p285, %p286
      %p288 = scmp.ne.s32.totalorder %s277, %s280
      %p289 = scmp.eq.s32.totalorder %s83, 3
      %p290 = por %p288, %p289
      %p291 = scmp.ne.s32.totalorder %s280, %s281
      %p292 = scmp.eq.s32.totalorder %s83, 0
      %p293 = por %p291, %p292
      %p294 = scmp.ne.s32.totalorder %s280, %s281
      %p295 = scmp.eq.s32.totalorder %s84, 3
      %p296 = por %p294, %p295
      %p298 = scmp.ne.s32.totalorder %s281, %s297
      %p299 = scmp.eq.s32.totalorder %s84, 0
      %p300 = por %p298, %p299
      %s301 = ssub.s32 %s86, %s93
      %p302 = scmp.eq.s32.totalorder %s301, 0
      %s304 = sadd.s32 %s303, 1
      %s305 = scalar_select %p302, %s303, %s304
      %p308 = pneg %p302
      %p309 = scmp.eq.s32.totalorder %s78, 3
      %p310 = por %p308, %p309
      %p311 = scmp.ne.s32.totalorder %s303, %s306
      %p312 = scmp.eq.s32.totalorder %s78, 0
      %p313 = por %p311, %p312
      %p314 = scmp.ne.s32.totalorder %s303, %s306
      %p315 = scmp.eq.s32.totalorder %s83, 3
      %p316 = por %p314, %p315
      %p317 = scmp.ne.s32.totalorder %s306, %s307
      %p318 = scmp.eq.s32.totalorder %s83, 0
      %p319 = por %p317, %p318
      %p320 = scmp.ne.s32.totalorder %s306, %s307
      %p321 = scmp.eq.s32.totalorder %s84, 3
      %p322 = por %p320, %p321
      %p324 = scmp.ne.s32.totalorder %s307, %s323
      %p325 = scmp.eq.s32.totalorder %s84, 0
      %p326 = por %p324, %p325
      %s327 = ssub.s32 %s86, %s93
      %p328 = scmp.eq.s32.totalorder %s327, 0
      %s330 = sadd.s32 %s329, 1
      %s331 = scalar_select %p328, %s329, %s330
      %p334 = pneg %p328
      %p335 = scmp.eq.s32.totalorder %s78, 3
      %p336 = por %p334, %p335
      %p337 = scmp.ne.s32.totalorder %s329, %s332
      %p338 = scmp.eq.s32.totalorder %s78, 0
      %p339 = por %p337, %p338
      %p340 = scmp.ne.s32.totalorder %s329, %s332
      %p341 = scmp.eq.s32.totalorder %s83, 3
      %p342 = por %p340, %p341
      %p343 = scmp.ne.s32.totalorder %s332, %s333
      %p344 = scmp.eq.s32.totalorder %s83, 0
      %p345 = por %p343, %p344
      %p346 = scmp.ne.s32.totalorder %s332, %s333
      %p347 = scmp.eq.s32.totalorder %s84, 3
      %p348 = por %p346, %p347
      %p350 = scmp.ne.s32.totalorder %s333, %s349
      %p351 = scmp.eq.s32.totalorder %s84, 0
      %p352 = por %p350, %p351
      %s353 = ssub.s32 %s86, %s93
      %p354 = scmp.eq.s32.totalorder %s353, 0
      %s356 = sadd.s32 %s355, 1
      %s357 = scalar_select %p354, %s355, %s356
      %p360 = pneg %p354
      %p361 = scmp.eq.s32.totalorder %s78, 3
      %p362 = por %p360, %p361
      %p363 = scmp.ne.s32.totalorder %s355, %s358
      %p364 = scmp.eq.s32.totalorder %s78, 0
      %p365 = por %p363, %p364
      %p366 = scmp.ne.s32.totalorder %s355, %s358
      %p367 = scmp.eq.s32.totalorder %s83, 3
      %p368 = por %p366, %p367
      %p369 = scmp.ne.s32.totalorder %s358, %s359
      %p370 = scmp.eq.s32.totalorder %s83, 0
      %p371 = por %p369, %p370
      %p372 = scmp.ne.s32.totalorder %s358, %s359
      %p373 = scmp.eq.s32.totalorder %s84, 3
      %p374 = por %p372, %p373
      %p376 = scmp.ne.s32.totalorder %s359, %s375
      %p377 = scmp.eq.s32.totalorder %s84, 0
      %p378 = por %p376, %p377
      %s379 = ssub.s32 %s86, %s93
      %p380 = scmp.eq.s32.totalorder %s379, 0
      %s382 = sadd.s32 %s381, 1
      %s383 = scalar_select %p380, %s381, %s382
      %p386 = pneg %p380
      %p387 = scmp.eq.s32.totalorder %s78, 3
      %p388 = por %p386, %p387
      %p389 = scmp.ne.s32.totalorder %s381, %s384
      %p390 = scmp.eq.s32.totalorder %s78, 0
      %p391 = por %p389, %p390
      %p392 = scmp.ne.s32.totalorder %s381, %s384
      %p393 = scmp.eq.s32.totalorder %s83, 3
      %p394 = por %p392, %p393
      %p395 = scmp.ne.s32.totalorder %s384, %s385
      %p396 = scmp.eq.s32.totalorder %s83, 0
      %p397 = por %p395, %p396
      %p398 = scmp.ne.s32.totalorder %s384, %s385
      %p399 = scmp.eq.s32.totalorder %s84, 3
      %p400 = por %p398, %p399
      %p402 = scmp.ne.s32.totalorder %s385, %s401
      %p403 = scmp.eq.s32.totalorder %s84, 0
      %p404 = por %p402, %p403
      %s405 = ssub.s32 %s86, %s93
      %p406 = scmp.eq.s32.totalorder %s405, 0
      %s408 = sadd.s32 %s407, 1
      %s409 = scalar_select %p406, %s407, %s408
      %p412 = pneg %p406
      %p413 = scmp.eq.s32.totalorder %s78, 3
      %p414 = por %p412, %p413
      %p415 = scmp.ne.s32.totalorder %s407, %s410
      %p416 = scmp.eq.s32.totalorder %s78, 0
      %p417 = por %p415, %p416
      %p418 = scmp.ne.s32.totalorder %s407, %s410
      %p419 = scmp.eq.s32.totalorder %s83, 3
      %p420 = por %p418, %p419
      %p421 = scmp.ne.s32.totalorder %s410, %s411
      %p422 = scmp.eq.s32.totalorder %s83, 0
      %p423 = por %p421, %p422
      %p424 = scmp.ne.s32.totalorder %s410, %s411
      %p425 = scmp.eq.s32.totalorder %s84, 3
      %p426 = por %p424, %p425
      %p428 = scmp.ne.s32.totalorder %s411, %s427
      %p429 = scmp.eq.s32.totalorder %s84, 0
      %p430 = por %p428, %p429
      %s431 = ssub.s32 %s86, %s93
      %p432 = scmp.eq.s32.totalorder %s431, 0
      %s434 = sadd.s32 %s433, 1
      %s435 = scalar_select %p432, %s433, %s434
      %p438 = pneg %p432
      %p439 = scmp.eq.s32.totalorder %s78, 3
      %p440 = por %p438, %p439
      %p441 = scmp.ne.s32.totalorder %s433, %s436
      %p442 = scmp.eq.s32.totalorder %s78, 0
      %p443 = por %p441, %p442
      %p444 = scmp.ne.s32.totalorder %s433, %s436
      %p445 = scmp.eq.s32.totalorder %s83, 3
      %p446 = por %p444, %p445
      %p447 = scmp.ne.s32.totalorder %s436, %s437
      %p448 = scmp.eq.s32.totalorder %s83, 0
      %p449 = por %p447, %p448
      %p450 = scmp.ne.s32.totalorder %s436, %s437
      %p451 = scmp.eq.s32.totalorder %s84, 3
      %p452 = por %p450, %p451
      %p454 = scmp.ne.s32.totalorder %s437, %s453
      %p455 = scmp.eq.s32.totalorder %s84, 0
      %p456 = por %p454, %p455
      %s457 = ssub.s32 %s86, %s93
      %p458 = scmp.eq.s32.totalorder %s457, 0
      %s460 = sadd.s32 %s459, 1
      %s461 = scalar_select %p458, %s459, %s460
      %p464 = pneg %p458
      %p465 = scmp.eq.s32.totalorder %s78, 3
      %p466 = por %p464, %p465
      %p467 = scmp.ne.s32.totalorder %s459, %s462
      %p468 = scmp.eq.s32.totalorder %s78, 0
      %p469 = por %p467, %p468
      %p470 = scmp.ne.s32.totalorder %s459, %s462
      %p471 = scmp.eq.s32.totalorder %s83, 3
      %p472 = por %p470, %p471
      %p473 = scmp.ne.s32.totalorder %s462, %s463
      %p474 = scmp.eq.s32.totalorder %s83, 0
      %p475 = por %p473, %p474
      %p476 = scmp.ne.s32.totalorder %s462, %s463
      %p477 = scmp.eq.s32.totalorder %s84, 3
      %p478 = por %p476, %p477
      %p480 = scmp.ne.s32.totalorder %s463, %s479
      %p481 = scmp.eq.s32.totalorder %s84, 0
      %p482 = por %p480, %p481
      %s483 = ssub.s32 %s86, %s93
      %p484 = scmp.eq.s32.totalorder %s483, 0
      %s486 = sadd.s32 %s485, 1
      %s487 = scalar_select %p484, %s485, %s486
      %p490 = pneg %p484
      %p491 = scmp.eq.s32.totalorder %s78, 3
      %p492 = por %p490, %p491
      %p493 = scmp.ne.s32.totalorder %s485, %s488
      %p494 = scmp.eq.s32.totalorder %s78, 0
      %p495 = por %p493, %p494
      %p496 = scmp.ne.s32.totalorder %s485, %s488
      %p497 = scmp.eq.s32.totalorder %s83, 3
      %p498 = por %p496, %p497
      %p499 = scmp.ne.s32.totalorder %s488, %s489
      %p500 = scmp.eq.s32.totalorder %s83, 0
      %p501 = por %p499, %p500
      %p502 = scmp.ne.s32.totalorder %s488, %s489
      %p503 = scmp.eq.s32.totalorder %s84, 3
      %p504 = por %p502, %p503
      %p506 = scmp.ne.s32.totalorder %s489, %s505
      %p507 = scmp.eq.s32.totalorder %s84, 0
      %p508 = por %p506, %p507
      %s509 = ssub.s32 %s86, %s93
      %p510 = scmp.eq.s32.totalorder %s509, 0
      %s512 = sadd.s32 %s511, 1
      %s513 = scalar_select %p510, %s511, %s512
      %p516 = pneg %p510
      %p517 = scmp.eq.s32.totalorder %s78, 3
      %p518 = por %p516, %p517
      %p519 = scmp.ne.s32.totalorder %s511, %s514
      %p520 = scmp.eq.s32.totalorder %s78, 0
      %p521 = por %p519, %p520
      %p522 = scmp.ne.s32.totalorder %s511, %s514
      %p523 = scmp.eq.s32.totalorder %s83, 3
      %p524 = por %p522, %p523
      %p525 = scmp.ne.s32.totalorder %s514, %s515
      %p526 = scmp.eq.s32.totalorder %s83, 0
      %p527 = por %p525, %p526
      %p528 = scmp.ne.s32.totalorder %s514, %s515
      %p529 = scmp.eq.s32.totalorder %s84, 3
      %p530 = por %p528, %p529
      %p532 = scmp.ne.s32.totalorder %s515, %s531
      %p533 = scmp.eq.s32.totalorder %s84, 0
      %p534 = por %p532, %p533
      %s535 = ssub.s32 %s86, %s93
      %p536 = scmp.eq.s32.totalorder %s535, 0
      %s538 = sadd.s32 %s537, 1
      %s539 = scalar_select %p536, %s537, %s538
      %p542 = pneg %p536
      %p543 = scmp.eq.s32.totalorder %s78, 3
      %p544 = por %p542, %p543
      %p545 = scmp.ne.s32.totalorder %s537, %s540
      %p546 = scmp.eq.s32.totalorder %s78, 0
      %p547 = por %p545, %p546
      %p548 = scmp.ne.s32.totalorder %s537, %s540
      %p549 = scmp.eq.s32.totalorder %s83, 3
      %p550 = por %p548, %p549
      %p551 = scmp.ne.s32.totalorder %s540, %s541
      %p552 = scmp.eq.s32.totalorder %s83, 0
      %p553 = por %p551, %p552
      %p554 = scmp.ne.s32.totalorder %s540, %s541
      %p555 = scmp.eq.s32.totalorder %s84, 3
      %p556 = por %p554, %p555
      %p558 = scmp.ne.s32.totalorder %s541, %s557
      %p559 = scmp.eq.s32.totalorder %s84, 0
      %p560 = por %p558, %p559
      %s561 = ssub.s32 %s86, %s93
      %p562 = scmp.eq.s32.totalorder %s561, 0
      %s564 = sadd.s32 %s563, 1
      %s565 = scalar_select %p562, %s563, %s564
      %p568 = pneg %p562
      %p569 = scmp.eq.s32.totalorder %s78, 3
      %p570 = por %p568, %p569
      %p571 = scmp.ne.s32.totalorder %s563, %s566
      %p572 = scmp.eq.s32.totalorder %s78, 0
      %p573 = por %p571, %p572
      %p574 = scmp.ne.s32.totalorder %s563, %s566
      %p575 = scmp.eq.s32.totalorder %s83, 3
      %p576 = por %p574, %p575
      %p577 = scmp.ne.s32.totalorder %s566, %s567
      %p578 = scmp.eq.s32.totalorder %s83, 0
      %p579 = por %p577, %p578
      %p580 = scmp.ne.s32.totalorder %s566, %s567
      %p581 = scmp.eq.s32.totalorder %s84, 3
      %p582 = por %p580, %p581
      %p584 = scmp.ne.s32.totalorder %s567, %s583
      %p585 = scmp.eq.s32.totalorder %s84, 0
      %p586 = por %p584, %p585
      %s587 = ssub.s32 %s86, %s93
      %p588 = scmp.eq.s32.totalorder %s587, 0
      %s590 = sadd.s32 %s589, 1
      %s591 = scalar_select %p588, %s589, %s590
      %p594 = pneg %p588
      %p595 = scmp.eq.s32.totalorder %s78, 3
      %p596 = por %p594, %p595
      %p597 = scmp.ne.s32.totalorder %s589, %s592
      %p598 = scmp.eq.s32.totalorder %s78, 0
      %p599 = por %p597, %p598
      %p600 = scmp.ne.s32.totalorder %s589, %s592
      %p601 = scmp.eq.s32.totalorder %s83, 3
      %p602 = por %p600, %p601
      %p603 = scmp.ne.s32.totalorder %s592, %s593
      %p604 = scmp.eq.s32.totalorder %s83, 0
      %p605 = por %p603, %p604
      %p606 = scmp.ne.s32.totalorder %s592, %s593
      %p607 = scmp.eq.s32.totalorder %s84, 3
      %p608 = por %p606, %p607
      %p610 = scmp.ne.s32.totalorder %s593, %s609
      %p611 = scmp.eq.s32.totalorder %s84, 0
      %p612 = por %p610, %p611
      %s613 = ssub.s32 %s86, %s93
      %p614 = scmp.eq.s32.totalorder %s613, 0
      %s616 = sadd.s32 %s615, 1
      %s617 = scalar_select %p614, %s615, %s616
      %p620 = pneg %p614
      %p621 = scmp.eq.s32.totalorder %s78, 3
      %p622 = por %p620, %p621
      %p623 = scmp.ne.s32.totalorder %s615, %s618
      %p624 = scmp.eq.s32.totalorder %s78, 0
      %p625 = por %p623, %p624
      %p626 = scmp.ne.s32.totalorder %s615, %s618
      %p627 = scmp.eq.s32.totalorder %s83, 3
      %p628 = por %p626, %p627
      %p629 = scmp.ne.s32.totalorder %s618, %s619
      %p630 = scmp.eq.s32.totalorder %s83, 0
      %p631 = por %p629, %p630
      %p632 = scmp.ne.s32.totalorder %s618, %s619
      %p633 = scmp.eq.s32.totalorder %s84, 3
      %p634 = por %p632, %p633
      %p636 = scmp.ne.s32.totalorder %s619, %s635
      %p637 = scmp.eq.s32.totalorder %s84, 0
      %p638 = por %p636, %p637
      %s639 = ssub.s32 %s86, %s93
      %p640 = scmp.eq.s32.totalorder %s639, 0
      %s642 = sadd.s32 %s641, 1
      %s643 = scalar_select %p640, %s641, %s642
      %p646 = pneg %p640
      %p647 = scmp.eq.s32.totalorder %s78, 3
      %p648 = por %p646, %p647
      %p649 = scmp.ne.s32.totalorder %s641, %s644
      %p650 = scmp.eq.s32.totalorder %s78, 0
      %p651 = por %p649, %p650
      %p652 = scmp.ne.s32.totalorder %s641, %s644
      %p653 = scmp.eq.s32.totalorder %s83, 3
      %p654 = por %p652, %p653
      %p655 = scmp.ne.s32.totalorder %s644, %s645
      %p656 = scmp.eq.s32.totalorder %s83, 0
      %p657 = por %p655, %p656
      %p658 = scmp.ne.s32.totalorder %s644, %s645
      %p659 = scmp.eq.s32.totalorder %s84, 3
      %p660 = por %p658, %p659
      %p662 = scmp.ne.s32.totalorder %s645, %s661
      %p663 = scmp.eq.s32.totalorder %s84, 0
      %p664 = por %p662, %p663
      %s665 = ssub.s32 %s86, %s93
      %p666 = scmp.eq.s32.totalorder %s665, 0
      %s668 = sadd.s32 %s667, 1
      %s669 = scalar_select %p666, %s667, %s668
      %p672 = pneg %p666
      %p673 = scmp.eq.s32.totalorder %s78, 3
      %p674 = por %p672, %p673
      %p675 = scmp.ne.s32.totalorder %s667, %s670
      %p676 = scmp.eq.s32.totalorder %s78, 0
      %p677 = por %p675, %p676
      %p678 = scmp.ne.s32.totalorder %s667, %s670
      %p679 = scmp.eq.s32.totalorder %s83, 3
      %p680 = por %p678, %p679
      %p681 = scmp.ne.s32.totalorder %s670, %s671
      %p682 = scmp.eq.s32.totalorder %s83, 0
      %p683 = por %p681, %p682
      %p684 = scmp.ne.s32.totalorder %s670, %s671
      %p685 = scmp.eq.s32.totalorder %s84, 3
      %p686 = por %p684, %p685
      %p688 = scmp.ne.s32.totalorder %s671, %s687
      %p689 = scmp.eq.s32.totalorder %s84, 0
      %p690 = por %p688, %p689
      %s691 = ssub.s32 %s86, %s93
      %p692 = scmp.eq.s32.totalorder %s691, 0
      %s694 = sadd.s32 %s693, 1
      %s695 = scalar_select %p692, %s693, %s694
      %p698 = pneg %p692
      %p699 = scmp.eq.s32.totalorder %s78, 3
      %p700 = por %p698, %p699
      %p701 = scmp.ne.s32.totalorder %s693, %s696
      %p702 = scmp.eq.s32.totalorder %s78, 0
      %p703 = por %p701, %p702
      %p704 = scmp.ne.s32.totalorder %s693, %s696
      %p705 = scmp.eq.s32.totalorder %s83, 3
      %p706 = por %p704, %p705
      %p707 = scmp.ne.s32.totalorder %s696, %s697
      %p708 = scmp.eq.s32.totalorder %s83, 0
      %p709 = por %p707, %p708
      %p710 = scmp.ne.s32.totalorder %s696, %s697
      %p711 = scmp.eq.s32.totalorder %s84, 3
      %p712 = por %p710, %p711
      %p714 = scmp.ne.s32.totalorder %s697, %s713
      %p715 = scmp.eq.s32.totalorder %s84, 0
      %p716 = por %p714, %p715
      %s717 = ssub.s32 %s85, %s97
      %p718 = scmp.eq.s32.totalorder %s717, 0
      %s720 = sadd.s32 %s719, 1
      %s721 = scalar_select %p718, %s719, %s720
      %p724 = pneg %p718
      %p725 = scmp.eq.s32.totalorder %s78, 3
      %p726 = por %p724, %p725
      %p727 = scmp.ne.s32.totalorder %s719, %s722
      %p728 = scmp.eq.s32.totalorder %s78, 0
      %p729 = por %p727, %p728
      %p730 = scmp.ne.s32.totalorder %s719, %s722
      %p731 = scmp.eq.s32.totalorder %s83, 3
      %p732 = por %p730, %p731
      %p733 = scmp.ne.s32.totalorder %s722, %s723
      %p734 = scmp.eq.s32.totalorder %s83, 0
      %p735 = por %p733, %p734
      %p736 = scmp.ne.s32.totalorder %s722, %s723
      %p737 = scmp.eq.s32.totalorder %s84, 3
      %p738 = por %p736, %p737
      %p740 = scmp.ne.s32.totalorder %s723, %s739
      %p741 = scmp.eq.s32.totalorder %s84, 0
      %p742 = por %p740, %p741
      %s743 = ssub.s32 %s86, %s93
      %s744 = ssub.s32 %s85, %s97
      %s745 = sor.u32 %s743, %s744
      %p746 = scmp.eq.s32.totalorder %s745, 0
      %s748 = sadd.s32 %s747, 1
      %s749 = scalar_select %p746, %s747, %s748
      %p752 = pneg %p746
      %p753 = scmp.eq.s32.totalorder %s78, 3
      %p754 = por %p752, %p753
      %p755 = scmp.ne.s32.totalorder %s747, %s750
      %p756 = scmp.eq.s32.totalorder %s78, 0
      %p757 = por %p755, %p756
      %p758 = scmp.ne.s32.totalorder %s747, %s750
      %p759 = scmp.eq.s32.totalorder %s83, 3
      %p760 = por %p758, %p759
      %p761 = scmp.ne.s32.totalorder %s750, %s751
      %p762 = scmp.eq.s32.totalorder %s83, 0
      %p763 = por %p761, %p762
      %p764 = scmp.ne.s32.totalorder %s750, %s751
      %p765 = scmp.eq.s32.totalorder %s84, 3
      %p766 = por %p764, %p765
      %p768 = scmp.ne.s32.totalorder %s751, %s767
      %p769 = scmp.eq.s32.totalorder %s84, 0
      %p770 = por %p768, %p769
      %s771 = ssub.s32 %s86, %s93
      %s772 = ssub.s32 %s85, %s97
      %s773 = sor.u32 %s771, %s772
      %p774 = scmp.eq.s32.totalorder %s773, 0
      %s776 = sadd.s32 %s775, 1
      %s777 = scalar_select %p774, %s775, %s776
      %p780 = pneg %p774
      %p781 = scmp.eq.s32.totalorder %s78, 3
      %p782 = por %p780, %p781
      %p783 = scmp.ne.s32.totalorder %s775, %s778
      %p784 = scmp.eq.s32.totalorder %s78, 0
      %p785 = por %p783, %p784
      %p786 = scmp.ne.s32.totalorder %s775, %s778
      %p787 = scmp.eq.s32.totalorder %s83, 3
      %p788 = por %p786, %p787
      %p789 = scmp.ne.s32.totalorder %s778, %s779
      %p790 = scmp.eq.s32.totalorder %s83, 0
      %p791 = por %p789, %p790
      %p792 = scmp.ne.s32.totalorder %s778, %s779
      %p793 = scmp.eq.s32.totalorder %s84, 3
      %p794 = por %p792, %p793
      %p796 = scmp.ne.s32.totalorder %s779, %s795
      %p797 = scmp.eq.s32.totalorder %s84, 0
      %p798 = por %p796, %p797
      %p799 = scmp.le.s32.totalorder 1, %s78
      %p800 = scmp.lt.s32.totalorder %s78, 5
      %p801 = pnand %p799, %p800
      %p802 = pneg %p801
      // Predicated region
      $region9: #{transformer_forward.6} parent=5 // pred_check
        _
      $region10: #{transformer_forward.6} parent=5 // pred_check_branch
        %804 = sbr.rel (%p801) target = $region12
      $region11: #{transformer_forward.6} parent=5 // pred_region
        %s805 = ssub.s32 %s78, 1
        // Predicated region
        $region13: #{transformer_forward.6} parent=11 // pred_check
          %p806 = pneg %p163
        $region14: #{transformer_forward.6} parent=11 // pred_check_branch
          %808 = sbr.rel (%p806) target = $region16
        $region15: #{transformer_forward.6} parent=11 // pred_region
          %s810 = ssub.s32 128, 128
          %811 = vsyncadd [#allocation7], %s810
          %s813 = sshll.u32 [#allocation8], 4
          %s814 = int_to_ptr.vmem [resolvable:$true] %s813
          %816 = dma.hbm_to_vmem [thread:$0]  %s2, 128, %s814, [#allocation7]
        $region16: #{transformer_forward.6} parent=11 // pred_fallthru
          _
      $region12: #{transformer_forward.6} parent=5 // pred_fallthru
        _
      %p817 = scmp.lt.s32.totalorder %s78, 4
      // Predicated region
      $region17: #{transformer_forward.6} parent=5 // pred_check
        %p818 = pneg %p817
      $region18: #{transformer_forward.6} parent=5 // pred_check_branch
        %820 = sbr.rel (%p818) target = $region20
      $region19: #{transformer_forward.6} parent=5 // pred_region
        // Predicated region
        $region21: #{transformer_forward.6} parent=19 // pred_check
          %p821 = pneg %p110
        $region22: #{transformer_forward.6} parent=19 // pred_check_branch
          %823 = sbr.rel (%p821) target = $region24
        $region23: #{transformer_forward.6} parent=19 // pred_region
          %s824 = sand.u32 %s100, 1
          %s825 = scalar_lea.sflag [#allocation4], %s824
          %s826 = sand.u32 %s100, 1
          %s827 = smul.addr %s826, 8
          %s828 = scalar_lea.vmem [#allocation3], %s827
          %s830 = ssub.s32 128, 128
          %831 = vsyncadd %s825, %s830
          %s832 = smul.addr %s85, 128
          %s833 = scalar_lea.hbm %s0, %s832
          %s835 = sshll.u32 %s828, 4
          %s836 = int_to_ptr.vmem [resolvable:$true] %s835
          %838 = dma.hbm_to_vmem [thread:$0]  %s833, 128, %s836, %s825
        $region24: #{transformer_forward.6} parent=19 // pred_fallthru
          _
        // Predicated region
        $region25: #{transformer_forward.6} parent=19 // pred_check
          %p839 = pneg %p136
        $region26: #{transformer_forward.6} parent=19 // pred_check_branch
          %841 = sbr.rel (%p839) target = $region28
        $region27: #{transformer_forward.6} parent=19 // pred_region
          %s842 = sand.u32 %s78, 1
          %s843 = scalar_lea.sflag [#allocation7], %s842
          %s844 = sand.u32 %s126, 1
          %s845 = smul.addr %s844, 4
          %s846 = scalar_lea.vmem [#allocation6], %s845
          %s848 = ssub.s32 64, 64
          %849 = vsyncadd %s843, %s848
          %s850 = smul.addr %s85, 64
          %s851 = scalar_lea.hbm %s1, %s850
          %s853 = sshll.u32 %s846, 4
          %s854 = int_to_ptr.vmem [resolvable:$true] %s853
          %856 = dma.hbm_to_vmem [thread:$0]  %s851, 64, %s854, %s843
        $region28: #{transformer_forward.6} parent=19 // pred_fallthru
          _
        // Predicated region
        $region29: #{transformer_forward.6} parent=19 // pred_check
          %p857 = pneg %p183
        $region30: #{transformer_forward.6} parent=19 // pred_check_branch
          %859 = sbr.rel (%p857) target = $region32
        $region31: #{transformer_forward.6} parent=19 // pred_region
          %s860 = sand.u32 %s78, 1
          %s861 = scalar_lea.sflag [#allocation10], %s860
          %s862 = sand.u32 %s173, 1
          %s863 = scalar_lea.vmem [#allocation9], %s862
          %s865 = ssub.s32 16, 16
          %866 = vsyncadd %s861, %s865
          %s867 = smul.addr %s85, 16
          %s868 = scalar_lea.hbm %s3, %s867
          %s870 = sshll.u32 %s863, 4
          %s871 = int_to_ptr.vmem [resolvable:$true] %s870
          %873 = dma.hbm_to_vmem [thread:$0]  %s868, 16, %s871, %s861
        $region32: #{transformer_forward.6} parent=19 // pred_fallthru
          _
        // Predicated region
        $region33: #{transformer_forward.6} parent=19 // pred_check
          %p874 = pneg %p209
        $region34: #{transformer_forward.6} parent=19 // pred_check_branch
          %876 = sbr.rel (%p874) target = $region36
        $region35: #{transformer_forward.6} parent=19 // pred_region
          %s877 = sand.u32 %s78, 1
          %s878 = scalar_lea.sflag [#allocation10], %s877
          %s879 = sand.u32 %s199, 1
          %s880 = scalar_lea.vmem [#allocation11], %s879
          %s882 = ssub.s32 16, 16
          %883 = vsyncadd %s878, %s882
          %s884 = smul.addr %s86, 16
          %s885 = scalar_lea.hbm %s4, %s884
          %s887 = sshll.u32 %s880, 4
          %s888 = int_to_ptr.vmem [resolvable:$true] %s887
          %890 = dma.hbm_to_vmem [thread:$0]  %s885, 16, %s888, %s878
        $region36: #{transformer_forward.6} parent=19 // pred_fallthru
          _
        // Predicated region
        $region37: #{transformer_forward.6} parent=19 // pred_check
          %p891 = pneg %p235
        $region38: #{transformer_forward.6} parent=19 // pred_check_branch
          %893 = sbr.rel (%p891) target = $region40
        $region39: #{transformer_forward.6} parent=19 // pred_region
          %s894 = sand.u32 %s78, 1
          %s895 = scalar_lea.sflag [#allocation13], %s894
          %s896 = sand.u32 %s225, 1
          %s897 = scalar_lea.vmem [#allocation12], %s896
          %s899 = ssub.s32 16, 16
          %900 = vsyncadd %s895, %s899
          %s901 = smul.addr %s86, 16
          %s902 = scalar_lea.hbm %s5, %s901
          %s904 = sshll.u32 %s897, 4
          %s905 = int_to_ptr.vmem [resolvable:$true] %s904
          %907 = dma.hbm_to_vmem [thread:$0]  %s902, 16, %s905, %s895
        $region40: #{transformer_forward.6} parent=19 // pred_fallthru
          _
        // Predicated region
        $region41: #{transformer_forward.6} parent=19 // pred_check
          %p908 = pneg %p261
        $region42: #{transformer_forward.6} parent=19 // pred_check_branch
          %910 = sbr.rel (%p908) target = $region44
        $region43: #{transformer_forward.6} parent=19 // pred_region
          %s911 = sand.u32 %s78, 1
          %s912 = scalar_lea.sflag [#allocation13], %s911
          %s913 = sand.u32 %s251, 1
          %s914 = smul.addr %s913, 16
          %s915 = scalar_lea.vmem [#allocation14], %s914
          %s917 = ssub.s32 256, 256
          %918 = vsyncadd %s912, %s917
          %s919 = smul.addr %s86, 4
          %s920 = smul.addr %s919, 64
          %s921 = scalar_lea.hbm %s6, %s920
          %s922 = sshll.u32 %s915, 4
          %s923 = int_to_ptr.vmem [resolvable:$true] %s922
          %928 = dma.hbm_to_vmem [thread:$0]  %s921, 256, %s923, %s912, 64, 64, 4
        $region44: #{transformer_forward.6} parent=19 // pred_fallthru
          _
        // Predicated region
        $region45: #{transformer_forward.6} parent=19 // pred_check
          %p929 = pneg %p287
        $region46: #{transformer_forward.6} parent=19 // pred_check_branch
          %931 = sbr.rel (%p929) target = $region48
        $region47: #{transformer_forward.6} parent=19 // pred_region
          %s932 = sand.u32 %s78, 1
          %s933 = scalar_lea.sflag [#allocation16], %s932
          %s934 = sand.u32 %s277, 1
          %s935 = scalar_lea.vmem [#allocation15], %s934
          %s937 = ssub.s32 16, 16
          %938 = vsyncadd %s933, %s937
          %s939 = smul.addr %s86, 16
          %s940 = scalar_lea.hbm %s7, %s939
          %s942 = sshll.u32 %s935, 4
          %s943 = int_to_ptr.vmem [resolvable:$true] %s942
          %945 = dma.hbm_to_vmem [thread:$0]  %s940, 16, %s943, %s933
        $region48: #{transformer_forward.6} parent=19 // pred_fallthru
          _
        // Predicated region
        $region49: #{transformer_forward.6} parent=19 // pred_check
          %p946 = pneg %p313
        $region50: #{transformer_forward.6} parent=19 // pred_check_branch
          %948 = sbr.rel (%p946) target = $region52
        $region51: #{transformer_forward.6} parent=19 // pred_region
          %s949 = sand.u32 %s78, 1
          %s950 = scalar_lea.sflag [#allocation16], %s949
          %s951 = sand.u32 %s303, 1
          %s952 = smul.addr %s951, 16
          %s953 = scalar_lea.vmem [#allocation17], %s952
          %s955 = ssub.s32 256, 256
          %956 = vsyncadd %s950, %s955
          %s957 = smul.addr %s86, 4
          %s958 = smul.addr %s957, 64
          %s959 = scalar_lea.hbm %s8, %s958
          %s960 = sshll.u32 %s953, 4
          %s961 = int_to_ptr.vmem [resolvable:$true] %s960
          %966 = dma.hbm_to_vmem [thread:$0]  %s959, 256, %s961, %s950, 64, 64, 4
        $region52: #{transformer_forward.6} parent=19 // pred_fallthru
          _
        // Predicated region
        $region53: #{transformer_forward.6} parent=19 // pred_check
          %p967 = pneg %p339
        $region54: #{transformer_forward.6} parent=19 // pred_check_branch
          %969 = sbr.rel (%p967) target = $region56
        $region55: #{transformer_forward.6} parent=19 // pred_region
          %s970 = sand.u32 %s78, 1
          %s971 = scalar_lea.sflag [#allocation19], %s970
          %s972 = sand.u32 %s329, 1
          %s973 = scalar_lea.vmem [#allocation18], %s972
          %s975 = ssub.s32 16, 16
          %976 = vsyncadd %s971, %s975
          %s977 = smul.addr %s86, 16
          %s978 = scalar_lea.hbm %s9, %s977
          %s980 = sshll.u32 %s973, 4
          %s981 = int_to_ptr.vmem [resolvable:$true] %s980
          %983 = dma.hbm_to_vmem [thread:$0]  %s978, 16, %s981, %s971
        $region56: #{transformer_forward.6} parent=19 // pred_fallthru
          _
        // Predicated region
        $region57: #{transformer_forward.6} parent=19 // pred_check
          %p984 = pneg %p365
        $region58: #{transformer_forward.6} parent=19 // pred_check_branch
          %986 = sbr.rel (%p984) target = $region60
        $region59: #{transformer_forward.6} parent=19 // pred_region
          %s987 = sand.u32 %s78, 1
          %s988 = scalar_lea.sflag [#allocation19], %s987
          %s989 = sand.u32 %s355, 1
          %s990 = scalar_lea.vmem [#allocation20], %s989
          %s992 = ssub.s32 16, 16
          %993 = vsyncadd %s988, %s992
          %s994 = smul.addr %s86, 16
          %s995 = scalar_lea.hbm %s10, %s994
          %s997 = sshll.u32 %s990, 4
          %s998 = int_to_ptr.vmem [resolvable:$true] %s997
          %1000 = dma.hbm_to_vmem [thread:$0]  %s995, 16, %s998, %s988
        $region60: #{transformer_forward.6} parent=19 // pred_fallthru
          _
        // Predicated region
        $region61: #{transformer_forward.6} parent=19 // pred_check
          %p1001 = pneg %p391
        $region62: #{transformer_forward.6} parent=19 // pred_check_branch
          %1003 = sbr.rel (%p1001) target = $region64
        $region63: #{transformer_forward.6} parent=19 // pred_region
          %s1004 = sand.u32 %s78, 1
          %s1005 = scalar_lea.sflag [#allocation22], %s1004
          %s1006 = sand.u32 %s381, 1
          %s1007 = scalar_lea.vmem [#allocation21], %s1006
          %s1009 = ssub.s32 16, 16
          %1010 = vsyncadd %s1005, %s1009
          %s1011 = smul.addr %s86, 16
          %s1012 = scalar_lea.hbm %s11, %s1011
          %s1014 = sshll.u32 %s1007, 4
          %s1015 = int_to_ptr.vmem [resolvable:$true] %s1014
          %1017 = dma.hbm_to_vmem [thread:$0]  %s1012, 16, %s1015, %s1005
        $region64: #{transformer_forward.6} parent=19 // pred_fallthru
          _
        // Predicated region
        $region65: #{transformer_forward.6} parent=19 // pred_check
          %p1018 = pneg %p417
        $region66: #{transformer_forward.6} parent=19 // pred_check_branch
          %1020 = sbr.rel (%p1018) target = $region68
        $region67: #{transformer_forward.6} parent=19 // pred_region
          %s1021 = sand.u32 %s78, 1
          %s1022 = scalar_lea.sflag [#allocation22], %s1021
          %s1023 = sand.u32 %s407, 1
          %s1024 = smul.addr %s1023, 16
          %s1025 = scalar_lea.vmem [#allocation23], %s1024
          %s1027 = ssub.s32 256, 256
          %1028 = vsyncadd %s1022, %s1027
          %s1029 = smul.addr %s86, 4
          %s1030 = smul.addr %s1029, 64
          %s1031 = scalar_lea.hbm %s12, %s1030
          %s1032 = sshll.u32 %s1025, 4
          %s1033 = int_to_ptr.vmem [resolvable:$true] %s1032
          %1038 = dma.hbm_to_vmem [thread:$0]  %s1031, 256, %s1033, %s1022, 64, 64, 4
        $region68: #{transformer_forward.6} parent=19 // pred_fallthru
          _
        // Predicated region
        $region69: #{transformer_forward.6} parent=19 // pred_check
          %p1039 = pneg %p443
        $region70: #{transformer_forward.6} parent=19 // pred_check_branch
          %1041 = sbr.rel (%p1039) target = $region72
        $region71: #{transformer_forward.6} parent=19 // pred_region
          %s1042 = sand.u32 %s78, 1
          %s1043 = scalar_lea.sflag [#allocation25], %s1042
          %s1044 = sand.u32 %s433, 1
          %s1045 = scalar_lea.vmem [#allocation24], %s1044
          %s1047 = ssub.s32 16, 16
          %1048 = vsyncadd %s1043, %s1047
          %s1049 = smul.addr %s86, 16
          %s1050 = scalar_lea.hbm %s13, %s1049
          %s1052 = sshll.u32 %s1045, 4
          %s1053 = int_to_ptr.vmem [resolvable:$true] %s1052
          %1055 = dma.hbm_to_vmem [thread:$0]  %s1050, 16, %s1053, %s1043
        $region72: #{transformer_forward.6} parent=19 // pred_fallthru
          _
        // Predicated region
        $region73: #{transformer_forward.6} parent=19 // pred_check
          %p1056 = pneg %p469
        $region74: #{transformer_forward.6} parent=19 // pred_check_branch
          %1058 = sbr.rel (%p1056) target = $region76
        $region75: #{transformer_forward.6} parent=19 // pred_region
          %s1059 = sand.u32 %s78, 1
          %s1060 = scalar_lea.sflag [#allocation25], %s1059
          %s1061 = sand.u32 %s459, 1
          %s1062 = smul.addr %s1061, 16
          %s1063 = scalar_lea.vmem [#allocation26], %s1062
          %s1065 = ssub.s32 256, 256
          %1066 = vsyncadd %s1060, %s1065
          %s1067 = smul.addr %s86, 4
          %s1068 = smul.addr %s1067, 64
          %s1069 = scalar_lea.hbm %s14, %s1068
          %s1070 = sshll.u32 %s1063, 4
          %s1071 = int_to_ptr.vmem [resolvable:$true] %s1070
          %1076 = dma.hbm_to_vmem [thread:$0]  %s1069, 256, %s1071, %s1060, 64, 64, 4
        $region76: #{transformer_forward.6} parent=19 // pred_fallthru
          _
        // Predicated region
        $region77: #{transformer_forward.6} parent=19 // pred_check
          %p1077 = pneg %p495
        $region78: #{transformer_forward.6} parent=19 // pred_check_branch
          %1079 = sbr.rel (%p1077) target = $region80
        $region79: #{transformer_forward.6} parent=19 // pred_region
          %s1080 = sand.u32 %s78, 1
          %s1081 = scalar_lea.sflag [#allocation28], %s1080
          %s1082 = sand.u32 %s485, 1
          %s1083 = scalar_lea.vmem [#allocation27], %s1082
          %s1085 = ssub.s32 16, 16
          %1086 = vsyncadd %s1081, %s1085
          %s1087 = smul.addr %s86, 16
          %s1088 = scalar_lea.hbm %s15, %s1087
          %s1090 = sshll.u32 %s1083, 4
          %s1091 = int_to_ptr.vmem [resolvable:$true] %s1090
          %1093 = dma.hbm_to_vmem [thread:$0]  %s1088, 16, %s1091, %s1081
        $region80: #{transformer_forward.6} parent=19 // pred_fallthru
          _
        // Predicated region
        $region81: #{transformer_forward.6} parent=19 // pred_check
          %p1094 = pneg %p521
        $region82: #{transformer_forward.6} parent=19 // pred_check_branch
          %1096 = sbr.rel (%p1094) target = $region84
        $region83: #{transformer_forward.6} parent=19 // pred_region
          %s1097 = sand.u32 %s78, 1
          %s1098 = scalar_lea.sflag [#allocation28], %s1097
          %s1099 = sand.u32 %s511, 1
          %s1100 = smul.addr %s1099, 16
          %s1101 = scalar_lea.vmem [#allocation29], %s1100
          %s1103 = ssub.s32 256, 256
          %1104 = vsyncadd %s1098, %s1103
          %s1105 = smul.addr %s86, 4
          %s1106 = smul.addr %s1105, 64
          %s1107 = scalar_lea.hbm %s16, %s1106
          %s1108 = sshll.u32 %s1101, 4
          %s1109 = int_to_ptr.vmem [resolvable:$true] %s1108
          %1114 = dma.hbm_to_vmem [thread:$0]  %s1107, 256, %s1109, %s1098, 64, 64, 4
        $region84: #{transformer_forward.6} parent=19 // pred_fallthru
          _
        // Predicated region
        $region85: #{transformer_forward.6} parent=19 // pred_check
          %p1115 = pneg %p547
        $region86: #{transformer_forward.6} parent=19 // pred_check_branch
          %1117 = sbr.rel (%p1115) target = $region88
        $region87: #{transformer_forward.6} parent=19 // pred_region
          %s1118 = sand.u32 %s78, 1
          %s1119 = scalar_lea.sflag [#allocation31], %s1118
          %s1120 = sand.u32 %s537, 1
          %s1121 = scalar_lea.vmem [#allocation30], %s1120
          %s1123 = ssub.s32 16, 16
          %1124 = vsyncadd %s1119, %s1123
          %s1125 = smul.addr %s86, 16
          %s1126 = scalar_lea.hbm %s17, %s1125
          %s1128 = sshll.u32 %s1121, 4
          %s1129 = int_to_ptr.vmem [resolvable:$true] %s1128
          %1131 = dma.hbm_to_vmem [thread:$0]  %s1126, 16, %s1129, %s1119
        $region88: #{transformer_forward.6} parent=19 // pred_fallthru
          _
        // Predicated region
        $region89: #{transformer_forward.6} parent=19 // pred_check
          %p1132 = pneg %p573
        $region90: #{transformer_forward.6} parent=19 // pred_check_branch
          %1134 = sbr.rel (%p1132) target = $region92
        $region91: #{transformer_forward.6} parent=19 // pred_region
          %s1135 = sand.u32 %s78, 1
          %s1136 = scalar_lea.sflag [#allocation31], %s1135
          %s1137 = sand.u32 %s563, 1
          %s1138 = scalar_lea.vmem [#allocation32], %s1137
          %s1140 = ssub.s32 16, 16
          %1141 = vsyncadd %s1136, %s1140
          %s1142 = smul.addr %s86, 16
          %s1143 = scalar_lea.hbm %s18, %s1142
          %s1145 = sshll.u32 %s1138, 4
          %s1146 = int_to_ptr.vmem [resolvable:$true] %s1145
          %1148 = dma.hbm_to_vmem [thread:$0]  %s1143, 16, %s1146, %s1136
        $region92: #{transformer_forward.6} parent=19 // pred_fallthru
          _
        // Predicated region
        $region93: #{transformer_forward.6} parent=19 // pred_check
          %p1149 = pneg %p599
        $region94: #{transformer_forward.6} parent=19 // pred_check_branch
          %1151 = sbr.rel (%p1149) target = $region96
        $region95: #{transformer_forward.6} parent=19 // pred_region
          %s1152 = sand.u32 %s78, 1
          %s1153 = scalar_lea.sflag [#allocation34], %s1152
          %s1154 = sand.u32 %s589, 1
          %s1155 = scalar_lea.vmem [#allocation33], %s1154
          %s1157 = ssub.s32 16, 16
          %1158 = vsyncadd %s1153, %s1157
          %s1159 = smul.addr %s86, 16
          %s1160 = scalar_lea.hbm %s19, %s1159
          %s1162 = sshll.u32 %s1155, 4
          %s1163 = int_to_ptr.vmem [resolvable:$true] %s1162
          %1165 = dma.hbm_to_vmem [thread:$0]  %s1160, 16, %s1163, %s1153
        $region96: #{transformer_forward.6} parent=19 // pred_fallthru
          _
        // Predicated region
        $region97: #{transformer_forward.6} parent=19 // pred_check
          %p1166 = pneg %p625
        $region98: #{transformer_forward.6} parent=19 // pred_check_branch
          %1168 = sbr.rel (%p1166) target = $region100
        $region99: #{transformer_forward.6} parent=19 // pred_region
          %s1169 = sand.u32 %s78, 1
          %s1170 = scalar_lea.sflag [#allocation34], %s1169
          %s1171 = sand.u32 %s615, 1
          %s1172 = smul.addr %s1171, 16
          %s1173 = scalar_lea.vmem [#allocation35], %s1172
          %s1175 = ssub.s32 256, 256
          %1176 = vsyncadd %s1170, %s1175
          %s1177 = smul.addr %s86, 4
          %s1178 = smul.addr %s1177, 64
          %s1179 = scalar_lea.hbm %s20, %s1178
          %s1180 = sshll.u32 %s1173, 4
          %s1181 = int_to_ptr.vmem [resolvable:$true] %s1180
          %1186 = dma.hbm_to_vmem [thread:$0]  %s1179, 256, %s1181, %s1170, 64, 64, 4
        $region100: #{transformer_forward.6} parent=19 // pred_fallthru
          _
        // Predicated region
        $region101: #{transformer_forward.6} parent=19 // pred_check
          %p1187 = pneg %p651
        $region102: #{transformer_forward.6} parent=19 // pred_check_branch
          %1189 = sbr.rel (%p1187) target = $region104
        $region103: #{transformer_forward.6} parent=19 // pred_region
          %s1190 = sand.u32 %s78, 1
          %s1191 = scalar_lea.sflag [#allocation37], %s1190
          %s1192 = sand.u32 %s641, 1
          %s1193 = scalar_lea.vmem [#allocation36], %s1192
          %s1195 = ssub.s32 16, 16
          %1196 = vsyncadd %s1191, %s1195
          %s1197 = smul.addr %s86, 16
          %s1198 = scalar_lea.hbm %s21, %s1197
          %s1200 = sshll.u32 %s1193, 4
          %s1201 = int_to_ptr.vmem [resolvable:$true] %s1200
          %1203 = dma.hbm_to_vmem [thread:$0]  %s1198, 16, %s1201, %s1191
        $region104: #{transformer_forward.6} parent=19 // pred_fallthru
          _
        // Predicated region
        $region105: #{transformer_forward.6} parent=19 // pred_check
          %p1204 = pneg %p677
        $region106: #{transformer_forward.6} parent=19 // pred_check_branch
          %1206 = sbr.rel (%p1204) target = $region108
        $region107: #{transformer_forward.6} parent=19 // pred_region
          %s1207 = sand.u32 %s78, 1
          %s1208 = scalar_lea.sflag [#allocation37], %s1207
          %s1209 = sand.u32 %s667, 1
          %s1210 = smul.addr %s1209, 32
          %s1211 = scalar_lea.vmem [#allocation38], %s1210
          %s1213 = ssub.s32 512, 512
          %1214 = vsyncadd %s1208, %s1213
          %s1215 = smul.addr %s86, 8
          %s1216 = smul.addr %s1215, 64
          %s1217 = scalar_lea.hbm %s22, %s1216
          %s1218 = sshll.u32 %s1211, 4
          %s1219 = int_to_ptr.vmem [resolvable:$true] %s1218
          %1224 = dma.hbm_to_vmem [thread:$0]  %s1217, 512, %s1219, %s1208, 64, 64, 4
        $region108: #{transformer_forward.6} parent=19 // pred_fallthru
          _
        // Predicated region
        $region109: #{transformer_forward.6} parent=19 // pred_check
          %p1225 = pneg %p703
        $region110: #{transformer_forward.6} parent=19 // pred_check_branch
          %1227 = sbr.rel (%p1225) target = $region112
        $region111: #{transformer_forward.6} parent=19 // pred_region
          %s1228 = sand.u32 %s693, 1
          %s1229 = scalar_lea.sflag [#allocation40], %s1228
          %s1230 = sand.u32 %s693, 1
          %s1231 = scalar_lea.vmem [#allocation39], %s1230
          %s1233 = ssub.s32 16, 16
          %1234 = vsyncadd %s1229, %s1233
          %s1235 = smul.addr %s86, 16
          %s1236 = scalar_lea.hbm %s23, %s1235
          %s1238 = sshll.u32 %s1231, 4
          %s1239 = int_to_ptr.vmem [resolvable:$true] %s1238
          %1241 = dma.hbm_to_vmem [thread:$0]  %s1236, 16, %s1239, %s1229
        $region112: #{transformer_forward.6} parent=19 // pred_fallthru
          _
      $region20: #{transformer_forward.6} parent=5 // pred_fallthru
        _
      %p1242 = scmp.le.s32.totalorder 1, %s78
      %p1243 = scmp.lt.s32.totalorder %s78, 5
      %p1244 = pnand %p1242, %p1243
      %p1245 = pneg %p1244
      // Predicated region
      $region113: #{transformer_forward.6} parent=5 // pred_check
        _
      $region114: #{transformer_forward.6} parent=5 // pred_check_branch
        %1247 = sbr.rel (%p1244) target = $region116
      $region115: #{transformer_forward.6} parent=5 // pred_region
        %s1248 = ssub.s32 %s78, 1
        %s1249 = sand.u32 %s103, 1
        %s1250 = scalar_lea.sflag [#allocation4], %s1249
        %s1251 = sand.u32 %s103, 1
        %s1252 = smul.addr %s1251, 8
        %s1253 = scalar_lea.vmem [#allocation3], %s1252
        // Predicated region
        $region117: #{transformer_forward.6} parent=115 // pred_check
          %p1254 = pneg %p116
        $region118: #{transformer_forward.6} parent=115 // pred_check_branch
          %1256 = sbr.rel (%p1254) target = $region120
        $region119: #{transformer_forward.6} parent=115 // pred_region
          %1257 = dma.done %s1250, 128
        $region120: #{transformer_forward.6} parent=115 // pred_fallthru
          _
        %s1258 = sand.u32 %s83, 1
        %s1259 = scalar_lea.sflag [#allocation7], %s1258
        %s1260 = sand.u32 %s129, 1
        %s1261 = smul.addr %s1260, 4
        %s1262 = scalar_lea.vmem [#allocation6], %s1261
        // Predicated region
        $region121: #{transformer_forward.6} parent=115 // pred_check
          %p1263 = pneg %p142
        $region122: #{transformer_forward.6} parent=115 // pred_check_branch
          %1265 = sbr.rel (%p1263) target = $region124
        $region123: #{transformer_forward.6} parent=115 // pred_region
          %1266 = dma.done %s1259, 64
        $region124: #{transformer_forward.6} parent=115 // pred_fallthru
          _
        // Predicated region
        $region125: #{transformer_forward.6} parent=115 // pred_check
          %p1267 = pneg %p163
        $region126: #{transformer_forward.6} parent=115 // pred_check_branch
          %1269 = sbr.rel (%p1267) target = $region128
        $region127: #{transformer_forward.6} parent=115 // pred_region
          %1270 = dma.done [#allocation7], 128
        $region128: #{transformer_forward.6} parent=115 // pred_fallthru
          _
        %s1271 = sand.u32 %s83, 1
        %s1272 = scalar_lea.sflag [#allocation10], %s1271
        %s1273 = sand.u32 %s176, 1
        %s1274 = scalar_lea.vmem [#allocation9], %s1273
        // Predicated region
        $region129: #{transformer_forward.6} parent=115 // pred_check
          %p1275 = pneg %p189
        $region130: #{transformer_forward.6} parent=115 // pred_check_branch
          %1277 = sbr.rel (%p1275) target = $region132
        $region131: #{transformer_forward.6} parent=115 // pred_region
          %1278 = dma.done %s1272, 16
        $region132: #{transformer_forward.6} parent=115 // pred_fallthru
          _
        %s1279 = sand.u32 %s83, 1
        %s1280 = scalar_lea.sflag [#allocation10], %s1279
        %s1281 = sand.u32 %s202, 1
        %s1282 = scalar_lea.vmem [#allocation11], %s1281
        // Predicated region
        $region133: #{transformer_forward.6} parent=115 // pred_check
          %p1283 = pneg %p215
        $region134: #{transformer_forward.6} parent=115 // pred_check_branch
          %1285 = sbr.rel (%p1283) target = $region136
        $region135: #{transformer_forward.6} parent=115 // pred_region
          %1286 = dma.done %s1280, 16
        $region136: #{transformer_forward.6} parent=115 // pred_fallthru
          _
        %s1287 = sand.u32 %s83, 1
        %s1288 = scalar_lea.sflag [#allocation13], %s1287
        %s1289 = sand.u32 %s228, 1
        %s1290 = scalar_lea.vmem [#allocation12], %s1289
        // Predicated region
        $region137: #{transformer_forward.6} parent=115 // pred_check
          %p1291 = pneg %p241
        $region138: #{transformer_forward.6} parent=115 // pred_check_branch
          %1293 = sbr.rel (%p1291) target = $region140
        $region139: #{transformer_forward.6} parent=115 // pred_region
          %1294 = dma.done %s1288, 16
        $region140: #{transformer_forward.6} parent=115 // pred_fallthru
          _
        %s1295 = sand.u32 %s83, 1
        %s1296 = scalar_lea.sflag [#allocation13], %s1295
        %s1297 = sand.u32 %s254, 1
        %s1298 = smul.addr %s1297, 16
        %s1299 = scalar_lea.vmem [#allocation14], %s1298
        // Predicated region
        $region141: #{transformer_forward.6} parent=115 // pred_check
          %p1300 = pneg %p267
        $region142: #{transformer_forward.6} parent=115 // pred_check_branch
          %1302 = sbr.rel (%p1300) target = $region144
        $region143: #{transformer_forward.6} parent=115 // pred_region
          %1303 = dma.done %s1296, 256
        $region144: #{transformer_forward.6} parent=115 // pred_fallthru
          _
        %s1304 = sand.u32 %s83, 1
        %s1305 = scalar_lea.sflag [#allocation16], %s1304
        %s1306 = sand.u32 %s280, 1
        %s1307 = scalar_lea.vmem [#allocation15], %s1306
        // Predicated region
        $region145: #{transformer_forward.6} parent=115 // pred_check
          %p1308 = pneg %p293
        $region146: #{transformer_forward.6} parent=115 // pred_check_branch
          %1310 = sbr.rel (%p1308) target = $region148
        $region147: #{transformer_forward.6} parent=115 // pred_region
          %1311 = dma.done %s1305, 16
        $region148: #{transformer_forward.6} parent=115 // pred_fallthru
          _
        %s1312 = sand.u32 %s83, 1
        %s1313 = scalar_lea.sflag [#allocation16], %s1312
        %s1314 = sand.u32 %s306, 1
        %s1315 = smul.addr %s1314, 16
        %s1316 = scalar_lea.vmem [#allocation17], %s1315
        // Predicated region
        $region149: #{transformer_forward.6} parent=115 // pred_check
          %p1317 = pneg %p319
        $region150: #{transformer_forward.6} parent=115 // pred_check_branch
          %1319 = sbr.rel (%p1317) target = $region152
        $region151: #{transformer_forward.6} parent=115 // pred_region
          %1320 = dma.done %s1313, 256
        $region152: #{transformer_forward.6} parent=115 // pred_fallthru
          _
        %s1321 = sand.u32 %s83, 1
        %s1322 = scalar_lea.sflag [#allocation19], %s1321
        %s1323 = sand.u32 %s332, 1
        %s1324 = scalar_lea.vmem [#allocation18], %s1323
        // Predicated region
        $region153: #{transformer_forward.6} parent=115 // pred_check
          %p1325 = pneg %p345
        $region154: #{transformer_forward.6} parent=115 // pred_check_branch
          %1327 = sbr.rel (%p1325) target = $region156
        $region155: #{transformer_forward.6} parent=115 // pred_region
          %1328 = dma.done %s1322, 16
        $region156: #{transformer_forward.6} parent=115 // pred_fallthru
          _
        %s1329 = sand.u32 %s83, 1
        %s1330 = scalar_lea.sflag [#allocation19], %s1329
        %s1331 = sand.u32 %s358, 1
        %s1332 = scalar_lea.vmem [#allocation20], %s1331
        // Predicated region
        $region157: #{transformer_forward.6} parent=115 // pred_check
          %p1333 = pneg %p371
        $region158: #{transformer_forward.6} parent=115 // pred_check_branch
          %1335 = sbr.rel (%p1333) target = $region160
        $region159: #{transformer_forward.6} parent=115 // pred_region
          %1336 = dma.done %s1330, 16
        $region160: #{transformer_forward.6} parent=115 // pred_fallthru
          _
        %s1337 = sand.u32 %s83, 1
        %s1338 = scalar_lea.sflag [#allocation22], %s1337
        %s1339 = sand.u32 %s384, 1
        %s1340 = scalar_lea.vmem [#allocation21], %s1339
        // Predicated region
        $region161: #{transformer_forward.6} parent=115 // pred_check
          %p1341 = pneg %p397
        $region162: #{transformer_forward.6} parent=115 // pred_check_branch
          %1343 = sbr.rel (%p1341) target = $region164
        $region163: #{transformer_forward.6} parent=115 // pred_region
          %1344 = dma.done %s1338, 16
        $region164: #{transformer_forward.6} parent=115 // pred_fallthru
          _
        %s1345 = sand.u32 %s83, 1
        %s1346 = scalar_lea.sflag [#allocation22], %s1345
        %s1347 = sand.u32 %s410, 1
        %s1348 = smul.addr %s1347, 16
        %s1349 = scalar_lea.vmem [#allocation23], %s1348
        // Predicated region
        $region165: #{transformer_forward.6} parent=115 // pred_check
          %p1350 = pneg %p423
        $region166: #{transformer_forward.6} parent=115 // pred_check_branch
          %1352 = sbr.rel (%p1350) target = $region168
        $region167: #{transformer_forward.6} parent=115 // pred_region
          %1353 = dma.done %s1346, 256
        $region168: #{transformer_forward.6} parent=115 // pred_fallthru
          _
        %s1354 = sand.u32 %s83, 1
        %s1355 = scalar_lea.sflag [#allocation25], %s1354
        %s1356 = sand.u32 %s436, 1
        %s1357 = scalar_lea.vmem [#allocation24], %s1356
        // Predicated region
        $region169: #{transformer_forward.6} parent=115 // pred_check
          %p1358 = pneg %p449
        $region170: #{transformer_forward.6} parent=115 // pred_check_branch
          %1360 = sbr.rel (%p1358) target = $region172
        $region171: #{transformer_forward.6} parent=115 // pred_region
          %1361 = dma.done %s1355, 16
        $region172: #{transformer_forward.6} parent=115 // pred_fallthru
          _
        %s1362 = sand.u32 %s83, 1
        %s1363 = scalar_lea.sflag [#allocation25], %s1362
        %s1364 = sand.u32 %s462, 1
        %s1365 = smul.addr %s1364, 16
        %s1366 = scalar_lea.vmem [#allocation26], %s1365
        // Predicated region
        $region173: #{transformer_forward.6} parent=115 // pred_check
          %p1367 = pneg %p475
        $region174: #{transformer_forward.6} parent=115 // pred_check_branch
          %1369 = sbr.rel (%p1367) target = $region176
        $region175: #{transformer_forward.6} parent=115 // pred_region
          %1370 = dma.done %s1363, 256
        $region176: #{transformer_forward.6} parent=115 // pred_fallthru
          _
        %s1371 = sand.u32 %s83, 1
        %s1372 = scalar_lea.sflag [#allocation28], %s1371
        %s1373 = sand.u32 %s488, 1
        %s1374 = scalar_lea.vmem [#allocation27], %s1373
        // Predicated region
        $region177: #{transformer_forward.6} parent=115 // pred_check
          %p1375 = pneg %p501
        $region178: #{transformer_forward.6} parent=115 // pred_check_branch
          %1377 = sbr.rel (%p1375) target = $region180
        $region179: #{transformer_forward.6} parent=115 // pred_region
          %1378 = dma.done %s1372, 16
        $region180: #{transformer_forward.6} parent=115 // pred_fallthru
          _
        %s1379 = sand.u32 %s83, 1
        %s1380 = scalar_lea.sflag [#allocation28], %s1379
        %s1381 = sand.u32 %s514, 1
        %s1382 = smul.addr %s1381, 16
        %s1383 = scalar_lea.vmem [#allocation29], %s1382
        // Predicated region
        $region181: #{transformer_forward.6} parent=115 // pred_check
          %p1384 = pneg %p527
        $region182: #{transformer_forward.6} parent=115 // pred_check_branch
          %1386 = sbr.rel (%p1384) target = $region184
        $region183: #{transformer_forward.6} parent=115 // pred_region
          %1387 = dma.done %s1380, 256
        $region184: #{transformer_forward.6} parent=115 // pred_fallthru
          _
        %s1388 = sand.u32 %s83, 1
        %s1389 = scalar_lea.sflag [#allocation31], %s1388
        %s1390 = sand.u32 %s540, 1
        %s1391 = scalar_lea.vmem [#allocation30], %s1390
        // Predicated region
        $region185: #{transformer_forward.6} parent=115 // pred_check
          %p1392 = pneg %p553
        $region186: #{transformer_forward.6} parent=115 // pred_check_branch
          %1394 = sbr.rel (%p1392) target = $region188
        $region187: #{transformer_forward.6} parent=115 // pred_region
          %1395 = dma.done %s1389, 16
        $region188: #{transformer_forward.6} parent=115 // pred_fallthru
          _
        %s1396 = sand.u32 %s83, 1
        %s1397 = scalar_lea.sflag [#allocation31], %s1396
        %s1398 = sand.u32 %s566, 1
        %s1399 = scalar_lea.vmem [#allocation32], %s1398
        // Predicated region
        $region189: #{transformer_forward.6} parent=115 // pred_check
          %p1400 = pneg %p579
        $region190: #{transformer_forward.6} parent=115 // pred_check_branch
          %1402 = sbr.rel (%p1400) target = $region192
        $region191: #{transformer_forward.6} parent=115 // pred_region
          %1403 = dma.done %s1397, 16
        $region192: #{transformer_forward.6} parent=115 // pred_fallthru
          _
        %s1404 = sand.u32 %s83, 1
        %s1405 = scalar_lea.sflag [#allocation34], %s1404
        %s1406 = sand.u32 %s592, 1
        %s1407 = scalar_lea.vmem [#allocation33], %s1406
        // Predicated region
        $region193: #{transformer_forward.6} parent=115 // pred_check
          %p1408 = pneg %p605
        $region194: #{transformer_forward.6} parent=115 // pred_check_branch
          %1410 = sbr.rel (%p1408) target = $region196
        $region195: #{transformer_forward.6} parent=115 // pred_region
          %1411 = dma.done %s1405, 16
        $region196: #{transformer_forward.6} parent=115 // pred_fallthru
          _
        %s1412 = sand.u32 %s83, 1
        %s1413 = scalar_lea.sflag [#allocation34], %s1412
        %s1414 = sand.u32 %s618, 1
        %s1415 = smul.addr %s1414, 16
        %s1416 = scalar_lea.vmem [#allocation35], %s1415
        // Predicated region
        $region197: #{transformer_forward.6} parent=115 // pred_check
          %p1417 = pneg %p631
        $region198: #{transformer_forward.6} parent=115 // pred_check_branch
          %1419 = sbr.rel (%p1417) target = $region200
        $region199: #{transformer_forward.6} parent=115 // pred_region
          %1420 = dma.done %s1413, 256
        $region200: #{transformer_forward.6} parent=115 // pred_fallthru
          _
        %s1421 = sand.u32 %s83, 1
        %s1422 = scalar_lea.sflag [#allocation37], %s1421
        %s1423 = sand.u32 %s644, 1
        %s1424 = scalar_lea.vmem [#allocation36], %s1423
        // Predicated region
        $region201: #{transformer_forward.6} parent=115 // pred_check
          %p1425 = pneg %p657
        $region202: #{transformer_forward.6} parent=115 // pred_check_branch
          %1427 = sbr.rel (%p1425) target = $region204
        $region203: #{transformer_forward.6} parent=115 // pred_region
          %1428 = dma.done %s1422, 16
        $region204: #{transformer_forward.6} parent=115 // pred_fallthru
          _
        %s1429 = sand.u32 %s83, 1
        %s1430 = scalar_lea.sflag [#allocation37], %s1429
        %s1431 = sand.u32 %s670, 1
        %s1432 = smul.addr %s1431, 32
        %s1433 = scalar_lea.vmem [#allocation38], %s1432
        // Predicated region
        $region205: #{transformer_forward.6} parent=115 // pred_check
          %p1434 = pneg %p683
        $region206: #{transformer_forward.6} parent=115 // pred_check_branch
          %1436 = sbr.rel (%p1434) target = $region208
        $region207: #{transformer_forward.6} parent=115 // pred_region
          %1437 = dma.done %s1430, 512
        $region208: #{transformer_forward.6} parent=115 // pred_fallthru
          _
        %s1438 = sand.u32 %s696, 1
        %s1439 = scalar_lea.sflag [#allocation40], %s1438
        %s1440 = sand.u32 %s696, 1
        %s1441 = scalar_lea.vmem [#allocation39], %s1440
        // Predicated region
        $region209: #{transformer_forward.6} parent=115 // pred_check
          %p1442 = pneg %p709
        $region210: #{transformer_forward.6} parent=115 // pred_check_branch
          %1444 = sbr.rel (%p1442) target = $region212
        $region211: #{transformer_forward.6} parent=115 // pred_region
          %1445 = dma.done %s1439, 16
        $region212: #{transformer_forward.6} parent=115 // pred_fallthru
          _
        %s1446 = sand.u32 %s103, 1
        %s1447 = scalar_lea.sflag [#allocation4], %s1446
        %s1448 = sand.u32 %s103, 1
        %s1449 = smul.addr %s1448, 8
        %s1450 = scalar_lea.vmem [#allocation3], %s1449
        %p1451 = pneg %p116
        %p1452 = pneg %p113
        %s1453 = sand.u32 %s83, 1
        %s1454 = scalar_lea.sflag [#allocation7], %s1453
        %s1455 = sand.u32 %s129, 1
        %s1456 = smul.addr %s1455, 4
        %s1457 = scalar_lea.vmem [#allocation6], %s1456
        %p1458 = pneg %p142
        %p1459 = pneg %p139
        %p1460 = pneg %p163
        %p1461 = pneg %p160
        %s1462 = sand.u32 %s83, 1
        %s1463 = scalar_lea.sflag [#allocation10], %s1462
        %s1464 = sand.u32 %s176, 1
        %s1465 = scalar_lea.vmem [#allocation9], %s1464
        %p1466 = pneg %p189
        %p1467 = pneg %p186
        %s1468 = sand.u32 %s83, 1
        %s1469 = scalar_lea.sflag [#allocation10], %s1468
        %s1470 = sand.u32 %s202, 1
        %s1471 = scalar_lea.vmem [#allocation11], %s1470
        %p1472 = pneg %p215
        %p1473 = pneg %p212
        %s1474 = sand.u32 %s83, 1
        %s1475 = scalar_lea.sflag [#allocation13], %s1474
        %s1476 = sand.u32 %s228, 1
        %s1477 = scalar_lea.vmem [#allocation12], %s1476
        %p1478 = pneg %p241
        %p1479 = pneg %p238
        %s1480 = sand.u32 %s83, 1
        %s1481 = scalar_lea.sflag [#allocation13], %s1480
        %s1482 = sand.u32 %s254, 1
        %s1483 = smul.addr %s1482, 16
        %s1484 = scalar_lea.vmem [#allocation14], %s1483
        %p1485 = pneg %p267
        %p1486 = pneg %p264
        %s1487 = sand.u32 %s83, 1
        %s1488 = scalar_lea.sflag [#allocation16], %s1487
        %s1489 = sand.u32 %s280, 1
        %s1490 = scalar_lea.vmem [#allocation15], %s1489
        %p1491 = pneg %p293
        %p1492 = pneg %p290
        %s1493 = sand.u32 %s83, 1
        %s1494 = scalar_lea.sflag [#allocation16], %s1493
        %s1495 = sand.u32 %s306, 1
        %s1496 = smul.addr %s1495, 16
        %s1497 = scalar_lea.vmem [#allocation17], %s1496
        %p1498 = pneg %p319
        %p1499 = pneg %p316
        %s1500 = sand.u32 %s83, 1
        %s1501 = scalar_lea.sflag [#allocation19], %s1500
        %s1502 = sand.u32 %s332, 1
        %s1503 = scalar_lea.vmem [#allocation18], %s1502
        %p1504 = pneg %p345
        %p1505 = pneg %p342
        %s1506 = sand.u32 %s83, 1
        %s1507 = scalar_lea.sflag [#allocation19], %s1506
        %s1508 = sand.u32 %s358, 1
        %s1509 = scalar_lea.vmem [#allocation20], %s1508
        %p1510 = pneg %p371
        %p1511 = pneg %p368
        %s1512 = sand.u32 %s83, 1
        %s1513 = scalar_lea.sflag [#allocation22], %s1512
        %s1514 = sand.u32 %s384, 1
        %s1515 = scalar_lea.vmem [#allocation21], %s1514
        %p1516 = pneg %p397
        %p1517 = pneg %p394
        %s1518 = sand.u32 %s83, 1
        %s1519 = scalar_lea.sflag [#allocation22], %s1518
        %s1520 = sand.u32 %s410, 1
        %s1521 = smul.addr %s1520, 16
        %s1522 = scalar_lea.vmem [#allocation23], %s1521
        %p1523 = pneg %p423
        %p1524 = pneg %p420
        %s1525 = sand.u32 %s83, 1
        %s1526 = scalar_lea.sflag [#allocation25], %s1525
        %s1527 = sand.u32 %s436, 1
        %s1528 = scalar_lea.vmem [#allocation24], %s1527
        %p1529 = pneg %p449
        %p1530 = pneg %p446
        %s1531 = sand.u32 %s83, 1
        %s1532 = scalar_lea.sflag [#allocation25], %s1531
        %s1533 = sand.u32 %s462, 1
        %s1534 = smul.addr %s1533, 16
        %s1535 = scalar_lea.vmem [#allocation26], %s1534
        %p1536 = pneg %p475
        %p1537 = pneg %p472
        %s1538 = sand.u32 %s83, 1
        %s1539 = scalar_lea.sflag [#allocation28], %s1538
        %s1540 = sand.u32 %s488, 1
        %s1541 = scalar_lea.vmem [#allocation27], %s1540
        %p1542 = pneg %p501
        %p1543 = pneg %p498
        %s1544 = sand.u32 %s83, 1
        %s1545 = scalar_lea.sflag [#allocation28], %s1544
        %s1546 = sand.u32 %s514, 1
        %s1547 = smul.addr %s1546, 16
        %s1548 = scalar_lea.vmem [#allocation29], %s1547
        %p1549 = pneg %p527
        %p1550 = pneg %p524
        %s1551 = sand.u32 %s83, 1
        %s1552 = scalar_lea.sflag [#allocation31], %s1551
        %s1553 = sand.u32 %s540, 1
        %s1554 = scalar_lea.vmem [#allocation30], %s1553
        %p1555 = pneg %p553
        %p1556 = pneg %p550
        %s1557 = sand.u32 %s83, 1
        %s1558 = scalar_lea.sflag [#allocation31], %s1557
        %s1559 = sand.u32 %s566, 1
        %s1560 = scalar_lea.vmem [#allocation32], %s1559
        %p1561 = pneg %p579
        %p1562 = pneg %p576
        %s1563 = sand.u32 %s83, 1
        %s1564 = scalar_lea.sflag [#allocation34], %s1563
        %s1565 = sand.u32 %s592, 1
        %s1566 = scalar_lea.vmem [#allocation33], %s1565
        %p1567 = pneg %p605
        %p1568 = pneg %p602
        %s1569 = sand.u32 %s83, 1
        %s1570 = scalar_lea.sflag [#allocation34], %s1569
        %s1571 = sand.u32 %s618, 1
        %s1572 = smul.addr %s1571, 16
        %s1573 = scalar_lea.vmem [#allocation35], %s1572
        %p1574 = pneg %p631
        %p1575 = pneg %p628
        %s1576 = sand.u32 %s83, 1
        %s1577 = scalar_lea.sflag [#allocation37], %s1576
        %s1578 = sand.u32 %s644, 1
        %s1579 = scalar_lea.vmem [#allocation36], %s1578
        %p1580 = pneg %p657
        %p1581 = pneg %p654
        %s1582 = sand.u32 %s83, 1
        %s1583 = scalar_lea.sflag [#allocation37], %s1582
        %s1584 = sand.u32 %s670, 1
        %s1585 = smul.addr %s1584, 32
        %s1586 = scalar_lea.vmem [#allocation38], %s1585
        %p1587 = pneg %p683
        %p1588 = pneg %p680
        %s1589 = sand.u32 %s696, 1
        %s1590 = scalar_lea.sflag [#allocation40], %s1589
        %s1591 = sand.u32 %s696, 1
        %s1592 = scalar_lea.vmem [#allocation39], %s1591
        %p1593 = pneg %p709
        %p1594 = pneg %p706
        %p1595 = pneg %p735
        %p1596 = pneg %p732
        %s1597 = sand.u32 %s722, 1
        %s1598 = scalar_lea.sflag [#allocation5], %s1597
        %s1599 = sand.u32 %s722, 1
        %s1600 = smul.addr %s1599, 8
        %s1601 = scalar_lea.vmem [#allocation41], %s1600
        %p1602 = pneg %p763
        %p1603 = pneg %p760
        %s1604 = sand.u32 %s83, 1
        %s1605 = scalar_lea.sflag [#allocation43], %s1604
        %s1606 = sand.u32 %s750, 1
        %s1607 = smul.addr %s1606, 32
        %s1608 = scalar_lea.vmem [#allocation42], %s1607
        %p1609 = pneg %p791
        %p1610 = pneg %p788
        %s1611 = sand.u32 %s83, 1
        %s1612 = scalar_lea.sflag [#allocation43], %s1611
        %s1613 = sand.u32 %s778, 1
        %s1614 = smul.addr %s1613, 32
        %s1615 = scalar_lea.vmem [#allocation44], %s1614
        %p1617 = scmp.eq.s32.totalorder %s88, 0
        // Predicated region
        $region213: #{transformer_forward.6} parent=115 // pred_check
          %p1618 = pneg %p1617
        $region214: #{transformer_forward.6} parent=115 // pred_check_branch
          %1620 = sbr.rel (%p1618) target = $region216
        $region215: #{transformer_forward.6} parent=115 // pred_region
          %v1621 = vld [vmem:[%s1253] sm:$0xff]
          %vm1622 = vcmask 261120
          %1623 = vst.msk [vmem:[#allocation2] sm:$0xff] %vm1622, %v1621
        $region216: #{transformer_forward.6} parent=115 // pred_fallthru
          _
        %v1624 = vld [vmem:[#allocation2] sm:$0xff]
        %v1625 = vld [vmem:[%s1262] sm:$0xf]
        %v1626 = vld [vmem:[#allocation8] sm:$0xff]
        %v1627 = vld [vmem:[%s1274] sm:$0x1]
        %v1628 = vld [vmem:[%s1282] sm:$0x1]
        %v1629 = vld [vmem:[%s1290] sm:$0x1]
        %vm1630 = vcmask 261120
        %v1631 = vsel %vm1630, %v1624, 0.0
        %1632 = vadd.xlane.f32.xlu0 %v1631
        %v1633 = vpop.xlane.xlu0 %1632
        %v1634 = vrcp.pop 32.0
        %v1635 = vmul.f32 %v1633, %v1634
        %v1636 = vsub.f32 %v1624, %v1635
        %v1637 = vmul.f32 %v1636, %v1636
        %v1638 = vsel %vm1630, %v1637, 0.0
        %1639 = vadd.xlane.f32.xlu0 %v1638
        %v1640 = vpop.xlane.xlu0 %1639
        %v1641 = vmul.f32 %v1640, %v1634
        %v1642 = vadd.f32 %v1641, 1e-06
        %v1643 = vrsqrt.pop %v1642
        %v1644 = vmul.f32 %v1636, %v1643
        %v1646 = vlaneseq
        %v1647 = vshrl.u32 %v1646, 7
        %v1648 = vsub.s32 0, %v1647
        %v1649 = vrot.slane %v1628, %v1648
        %v1651 = vmul.f32 %v1644, %v1649
        %v1653 = vlaneseq
        %v1654 = vshrl.u32 %v1653, 7
        %v1655 = vsub.s32 0, %v1654
        %v1656 = vrot.slane %v1629, %v1655
        %v1658 = vadd.f32 %v1651, %v1656
        %v1659 = vpack.c.bf16 %v1658, %v1658
        %v1660 = vld [vmem:[%s1299] sm:$0xf]
        %v1661 = vld [vmem:[%s1299 + $0x4] sm:$0xf]
        %v1662 = vld [vmem:[%s1299 + $0x8] sm:$0xf]
        %v1663 = vld [vmem:[%s1299 + $0xc] sm:$0xf]
        %v1664 = vld [vmem:[%s1307] sm:$0x1]
        %v1665 = vld [vmem:[%s1316] sm:$0xf]
        %v1666 = vld [vmem:[%s1316 + $0x4] sm:$0xf]
        %v1667 = vld [vmem:[%s1316 + $0x8] sm:$0xf]
        %v1668 = vld [vmem:[%s1316 + $0xc] sm:$0xf]
        %v1669 = vld [vmem:[%s1324] sm:$0x1]
        %v1671 = vlaneseq
        %v1672 = vshrl.u32 %v1671, 7
        %v1673 = vsub.s32 0, %v1672
        %v1674 = vrot.slane %v1664, %v1673
        %v1680 = vunpack.c.l.b16 %v1660
        %v1681 = vunpack.c.l.b16 %v1661
        %v1682 = vunpack.c.l.b16 %v1662
        %v1683 = vunpack.c.l.b16 %v1663
        %v1684 = vpack.c.b16 %v1681, %v1680
        %v1685 = vpack.c.b16 %v1683, %v1682
        %v1689 = vsel %vm1630, %v1659, 0
        %1691 = vmatprep.subr.bf16.mxu0 0
        %1692 = vmatpush1.bf16.msra.mxu0 %v1684
        %1693 = vmatprep.subr.bf16.mxu0 0
        %1694 = vmatpush1.bf16.msra.mxu0 %v1685
        %1695 = vmatprep.subr.bf16.mxu0 0
        %1696 = vmatpush1.bf16.msra.mxu0 0
        %1697 = vmatprep.subr.bf16.mxu0 0
        %1698 = vmatpush1.bf16.msra.mxu0 0
        %1699 = vmatprep.subr.bf16.mxu0 0
        %1700 = vmatpush1.bf16.msra.mxu0 0
        %1701 = vmatprep.subr.bf16.mxu0 0
        %1702 = vmatpush1.bf16.msra.mxu0 0
        %1703 = vmatprep.subr.bf16.mxu0 0
        %1704 = vmatpush1.bf16.msra.mxu0 0
        %1705 = vmatprep.subr.bf16.mxu0 0
        %1706 = vmatpush1.bf16.msra.mxu0 0
        %1707 = vmatprep.subr.bf16.mxu0 0
        %1708 = vmatpush1.bf16.msra.mxu0 0
        %1709 = vmatprep.subr.bf16.mxu0 0
        %1710 = vmatpush1.bf16.msra.mxu0 0
        %1711 = vmatprep.subr.bf16.mxu0 0
        %1712 = vmatpush1.bf16.msra.mxu0 0
        %1713 = vmatprep.subr.bf16.mxu0 0
        %1714 = vmatpush1.bf16.msra.mxu0 0
        %1715 = vmatprep.subr.bf16.mxu0 0
        %1716 = vmatpush1.bf16.msra.mxu0 0
        %1717 = vmatprep.subr.bf16.mxu0 0
        %1718 = vmatpush1.bf16.msra.mxu0 0
        %1719 = vmatprep.subr.bf16.mxu0 0
        %1720 = vmatpush1.bf16.msra.mxu0 0
        %1721 = vmatprep.subr.bf16.mxu0 0
        %1722 = vmatpush1.bf16.msra.mxu0 0
        %1723 = vmatprep.mubr.bf16.mxu0 0
        %1724 = vmatmul.mubr.bf16.gmra.mrb[0].mxu0 %v1689
        %v1725 = vpop.f32.mrb[0].mxu0
        %v1726 = vadd.f32 %v1674, %v1725
        %v1727 = vpop.f32.mrb[0].mxu0
        %v1728 = vpop.f32.mrb[0].mxu0
        %v1729 = vpop.f32.mrb[0].mxu0
        %1730 = vdwg.mxu0
        %v1731 = vpack.c.bf16 %v1726, %v1726
        %1733 = vrot.lane.b32.xlu0 %v1731, 120
        %v1734 = vpop.permute.xlu0 %1733
        %1735 = vrot.lane.b32.xlu0 %v1731, 112
        %v1736 = vpop.permute.xlu0 %1735
        %1737 = vrot.lane.b32.xlu0 %v1731, 104
        %v1738 = vpop.permute.xlu0 %1737
        %1739 = vrot.lane.b32.xlu0 %v1731, 96
        %v1740 = vpop.permute.xlu0 %1739
        %vm1741 = vcmask 64512
        %v1743 = vsel %vm1741, %v1731, 0
        %v1746 = vsel %vm1741, %v1740, 0
        %1748 = vmatprep.subr.bf16.mxu0 0
        %1749 = vmatpush1.bf16.xpose.msra.mxu0 %v1746
        %1750 = vmatprep.subr.bf16.mxu0 0
        %1751 = vmatpush1.bf16.xpose.msra.mxu0 0
        %1752 = vmatprep.subr.bf16.mxu0 0
        %1753 = vmatpush1.bf16.xpose.msra.mxu0 0
        %1754 = vmatprep.subr.bf16.mxu0 0
        %1755 = vmatpush1.bf16.xpose.msra.mxu0 0
        %1756 = vmatprep.subr.bf16.mxu0 0
        %1757 = vmatpush1.bf16.xpose.msra.mxu0 0
        %1758 = vmatprep.subr.bf16.mxu0 0
        %1759 = vmatpush1.bf16.xpose.msra.mxu0 0
        %1760 = vmatprep.subr.bf16.mxu0 0
        %1761 = vmatpush1.bf16.xpose.msra.mxu0 0
        %1762 = vmatprep.subr.bf16.mxu0 0
        %1763 = vmatpush1.bf16.xpose.msra.mxu0 0
        %1764 = vmatprep.subr.bf16.mxu0 0
        %1765 = vmatpush1.bf16.xpose.msra.mxu0 0
        %1766 = vmatprep.subr.bf16.mxu0 0
        %1767 = vmatpush1.bf16.xpose.msra.mxu0 0
        %1768 = vmatprep.subr.bf16.mxu0 0
        %1769 = vmatpush1.bf16.xpose.msra.mxu0 0
        %1770 = vmatprep.subr.bf16.mxu0 0
        %1771 = vmatpush1.bf16.xpose.msra.mxu0 0
        %1772 = vmatprep.subr.bf16.mxu0 0
        %1773 = vmatpush1.bf16.xpose.msra.mxu0 0
        %1774 = vmatprep.subr.bf16.mxu0 0
        %1775 = vmatpush1.bf16.xpose.msra.mxu0 0
        %1776 = vmatprep.subr.bf16.mxu0 0
        %1777 = vmatpush1.bf16.xpose.msra.mxu0 0
        %1778 = vmatprep.subr.bf16.mxu0 0
        %1779 = vmatpush1.bf16.xpose.msra.mxu0 0
        %1780 = vmatprep.mubr.bf16.mxu0 0
        %1781 = vmatmul.mubr.bf16.gmra.mrb[0].mxu0 %v1743
        %v1782 = vpop.f32.mrb[0].mxu0
        %v1783 = vadd.f32 0.0, %v1782
        %v1784 = vpop.f32.mrb[0].mxu0
        %v1785 = vpop.f32.mrb[0].mxu0
        %v1786 = vpop.f32.mrb[0].mxu0
        %1787 = vdwg.mxu0
        %1788 = vrot.lane.b32.xlu0 %v1734, 96
        %v1789 = vpop.permute.xlu0 %1788
        %v1791 = vsel %vm1741, %v1734, 0
        %v1794 = vsel %vm1741, %v1789, 0
        %1796 = vmatprep.subr.bf16.mxu0 0
        %1797 = vmatpush1.bf16.xpose.msra.mxu0 %v1794
        %1798 = vmatprep.subr.bf16.mxu0 0
        %1799 = vmatpush1.bf16.xpose.msra.mxu0 0
        %1800 = vmatprep.subr.bf16.mxu0 0
        %1801 = vmatpush1.bf16.xpose.msra.mxu0 0
        %1802 = vmatprep.subr.bf16.mxu0 0
        %1803 = vmatpush1.bf16.xpose.msra.mxu0 0
        %1804 = vmatprep.subr.bf16.mxu0 0
        %1805 = vmatpush1.bf16.xpose.msra.mxu0 0
        %1806 = vmatprep.subr.bf16.mxu0 0
        %1807 = vmatpush1.bf16.xpose.msra.mxu0 0
        %1808 = vmatprep.subr.bf16.mxu0 0
        %1809 = vmatpush1.bf16.xpose.msra.mxu0 0
        %1810 = vmatprep.subr.bf16.mxu0 0
        %1811 = vmatpush1.bf16.xpose.msra.mxu0 0
        %1812 = vmatprep.subr.bf16.mxu0 0
        %1813 = vmatpush1.bf16.xpose.msra.mxu0 0
        %1814 = vmatprep.subr.bf16.mxu0 0
        %1815 = vmatpush1.bf16.xpose.msra.mxu0 0
        %1816 = vmatprep.subr.bf16.mxu0 0
        %1817 = vmatpush1.bf16.xpose.msra.mxu0 0
        %1818 = vmatprep.subr.bf16.mxu0 0
        %1819 = vmatpush1.bf16.xpose.msra.mxu0 0
        %1820 = vmatprep.subr.bf16.mxu0 0
        %1821 = vmatpush1.bf16.xpose.msra.mxu0 0
        %1822 = vmatprep.subr.bf16.mxu0 0
        %1823 = vmatpush1.bf16.xpose.msra.mxu0 0
        %1824 = vmatprep.subr.bf16.mxu0 0
        %1825 = vmatpush1.bf16.xpose.msra.mxu0 0
        %1826 = vmatprep.subr.bf16.mxu0 0
        %1827 = vmatpush1.bf16.xpose.msra.mxu0 0
        %1828 = vmatprep.mubr.bf16.mxu0 0
        %1829 = vmatmul.mubr.bf16.gmra.mrb[0].mxu0 %v1791
        %v1830 = vpop.f32.mrb[0].mxu0
        %v1831 = vadd.f32 0.0, %v1830
        %v1832 = vpop.f32.mrb[0].mxu0
        %v1833 = vpop.f32.mrb[0].mxu0
        %v1834 = vpop.f32.mrb[0].mxu0
        %1835 = vdwg.mxu0
        %1836 = vrot.lane.b32.xlu0 %v1736, 96
        %v1837 = vpop.permute.xlu0 %1836
        %v1839 = vsel %vm1741, %v1736, 0
        %v1842 = vsel %vm1741, %v1837, 0
        %1844 = vmatprep.subr.bf16.mxu0 0
        %1845 = vmatpush1.bf16.xpose.msra.mxu0 %v1842
        %1846 = vmatprep.subr.bf16.mxu0 0
        %1847 = vmatpush1.bf16.xpose.msra.mxu0 0
        %1848 = vmatprep.subr.bf16.mxu0 0
        %1849 = vmatpush1.bf16.xpose.msra.mxu0 0
        %1850 = vmatprep.subr.bf16.mxu0 0
        %1851 = vmatpush1.bf16.xpose.msra.mxu0 0
        %1852 = vmatprep.subr.bf16.mxu0 0
        %1853 = vmatpush1.bf16.xpose.msra.mxu0 0
        %1854 = vmatprep.subr.bf16.mxu0 0
        %1855 = vmatpush1.bf16.xpose.msra.mxu0 0
        %1856 = vmatprep.subr.bf16.mxu0 0
        %1857 = vmatpush1.bf16.xpose.msra.mxu0 0
        %1858 = vmatprep.subr.bf16.mxu0 0
        %1859 = vmatpush1.bf16.xpose.msra.mxu0 0
        %1860 = vmatprep.subr.bf16.mxu0 0
        %1861 = vmatpush1.bf16.xpose.msra.mxu0 0
        %1862 = vmatprep.subr.bf16.mxu0 0
        %1863 = vmatpush1.bf16.xpose.msra.mxu0 0
        %1864 = vmatprep.subr.bf16.mxu0 0
        %1865 = vmatpush1.bf16.xpose.msra.mxu0 0
        %1866 = vmatprep.subr.bf16.mxu0 0
        %1867 = vmatpush1.bf16.xpose.msra.mxu0 0
        %1868 = vmatprep.subr.bf16.mxu0 0
        %1869 = vmatpush1.bf16.xpose.msra.mxu0 0
        %1870 = vmatprep.subr.bf16.mxu0 0
        %1871 = vmatpush1.bf16.xpose.msra.mxu0 0
        %1872 = vmatprep.subr.bf16.mxu0 0
        %1873 = vmatpush1.bf16.xpose.msra.mxu0 0
        %1874 = vmatprep.subr.bf16.mxu0 0
        %1875 = vmatpush1.bf16.xpose.msra.mxu0 0
        %1876 = vmatprep.mubr.bf16.mxu0 0
        %1877 = vmatmul.mubr.bf16.gmra.mrb[0].mxu0 %v1839
        %v1878 = vpop.f32.mrb[0].mxu0
        %v1879 = vadd.f32 0.0, %v1878
        %v1880 = vpop.f32.mrb[0].mxu0
        %v1881 = vpop.f32.mrb[0].mxu0
        %v1882 = vpop.f32.mrb[0].mxu0
        %1883 = vdwg.mxu0
        %1884 = vrot.lane.b32.xlu0 %v1738, 96
        %v1885 = vpop.permute.xlu0 %1884
        %v1887 = vsel %vm1741, %v1738, 0
        %v1890 = vsel %vm1741, %v1885, 0
        %1892 = vmatprep.subr.bf16.mxu0 0
        %1893 = vmatpush1.bf16.xpose.msra.mxu0 %v1890
        %1894 = vmatprep.subr.bf16.mxu0 0
        %1895 = vmatpush1.bf16.xpose.msra.mxu0 0
        %1896 = vmatprep.subr.bf16.mxu0 0
        %1897 = vmatpush1.bf16.xpose.msra.mxu0 0
        %1898 = vmatprep.subr.bf16.mxu0 0
        %1899 = vmatpush1.bf16.xpose.msra.mxu0 0
        %1900 = vmatprep.subr.bf16.mxu0 0
        %1901 = vmatpush1.bf16.xpose.msra.mxu0 0
        %1902 = vmatprep.subr.bf16.mxu0 0
        %1903 = vmatpush1.bf16.xpose.msra.mxu0 0
        %1904 = vmatprep.subr.bf16.mxu0 0
        %1905 = vmatpush1.bf16.xpose.msra.mxu0 0
        %1906 = vmatprep.subr.bf16.mxu0 0
        %1907 = vmatpush1.bf16.xpose.msra.mxu0 0
        %1908 = vmatprep.subr.bf16.mxu0 0
        %1909 = vmatpush1.bf16.xpose.msra.mxu0 0
        %1910 = vmatprep.subr.bf16.mxu0 0
        %1911 = vmatpush1.bf16.xpose.msra.mxu0 0
        %1912 = vmatprep.subr.bf16.mxu0 0
        %1913 = vmatpush1.bf16.xpose.msra.mxu0 0
        %1914 = vmatprep.subr.bf16.mxu0 0
        %1915 = vmatpush1.bf16.xpose.msra.mxu0 0
        %1916 = vmatprep.subr.bf16.mxu0 0
        %1917 = vmatpush1.bf16.xpose.msra.mxu0 0
        %1918 = vmatprep.subr.bf16.mxu0 0
        %1919 = vmatpush1.bf16.xpose.msra.mxu0 0
        %1920 = vmatprep.subr.bf16.mxu0 0
        %1921 = vmatpush1.bf16.xpose.msra.mxu0 0
        %1922 = vmatprep.subr.bf16.mxu0 0
        %1923 = vmatpush1.bf16.xpose.msra.mxu0 0
        %1924 = vmatprep.mubr.bf16.mxu0 0
        %1925 = vmatmul.mubr.bf16.gmra.mrb[0].mxu0 %v1887
        %v1926 = vpop.f32.mrb[0].mxu0
        %v1927 = vadd.f32 0.0, %v1926
        %v1928 = vpop.f32.mrb[0].mxu0
        %v1929 = vpop.f32.mrb[0].mxu0
        %v1930 = vpop.f32.mrb[0].mxu0
        %1931 = vdwg.mxu0
        %v1932 = vmul.f32 %v1783, 0.35355338
        %v1933 = vmul.f32 %v1831, 0.35355338
        %v1934 = vmul.f32 %v1879, 0.35355338
        %v1935 = vmul.f32 %v1927, 0.35355338
        %v1936 = vadd.f32 %v1932, %v1626
        %v1937 = vadd.f32 %v1933, %v1626
        %v1938 = vadd.f32 %v1934, %v1626
        %v1939 = vadd.f32 %v1935, %v1626
        %v1940 = vsel %vm1741, %v1936, -inf
        %1941 = vmax.xlane.f32.xlu0 %v1940
        %v1942 = vpop.xlane.xlu0 %1941
        %v1943 = vsel %vm1741, %v1937, -inf
        %1944 = vmax.xlane.f32.xlu0 %v1943
        %v1945 = vpop.xlane.xlu0 %1944
        %v1946 = vsel %vm1741, %v1938, -inf
        %1947 = vmax.xlane.f32.xlu0 %v1946
        %v1948 = vpop.xlane.xlu0 %1947
        %v1949 = vsel %vm1741, %v1939, -inf
        %1950 = vmax.xlane.f32.xlu0 %v1949
        %v1951 = vpop.xlane.xlu0 %1950
        %v1952 = vsub.f32 %v1936, %v1942
        %v1953 = vsub.f32 %v1937, %v1945
        %v1954 = vsub.f32 %v1938, %v1948
        %v1955 = vsub.f32 %v1939, %v1951
        %v1956 = vmul.f32 %v1952, 1.442695
        %v1957 = vpow.pop %v1956
        %v1958 = vmul.f32 %v1953, 1.442695
        %v1959 = vpow.pop %v1958
        %v1960 = vmul.f32 %v1954, 1.442695
        %v1961 = vpow.pop %v1960
        %v1962 = vmul.f32 %v1955, 1.442695
        %v1963 = vpow.pop %v1962
        %v1964 = vsel %vm1741, %v1957, 0.0
        %1965 = vadd.xlane.f32.xlu0 %v1964
        %v1966 = vpop.xlane.xlu0 %1965
        %v1967 = vsel %vm1741, %v1959, 0.0
        %1968 = vadd.xlane.f32.xlu0 %v1967
        %v1969 = vpop.xlane.xlu0 %1968
        %v1970 = vsel %vm1741, %v1961, 0.0
        %1971 = vadd.xlane.f32.xlu0 %v1970
        %v1972 = vpop.xlane.xlu0 %1971
        %v1973 = vsel %vm1741, %v1963, 0.0
        %1974 = vadd.xlane.f32.xlu0 %v1973
        %v1975 = vpop.xlane.xlu0 %1974
        %v1976 = vrcp.pop %v1966
        %v1977 = vrcp.pop %v1969
        %v1978 = vrcp.pop %v1972
        %v1979 = vrcp.pop %v1975
        %v1980 = vmul.f32 %v1957, %v1976
        %v1981 = vmul.f32 %v1959, %v1977
        %v1982 = vmul.f32 %v1961, %v1978
        %v1983 = vmul.f32 %v1963, %v1979
        %v1984 = vpack.c.bf16 %v1980, %v1980
        %v1985 = vpack.c.bf16 %v1981, %v1981
        %v1986 = vpack.c.bf16 %v1982, %v1982
        %v1987 = vpack.c.bf16 %v1983, %v1983
        %1988 = vrot.lane.b32.xlu0 %v1731, 64
        %v1989 = vpop.permute.xlu0 %1988
        %v1991 = vsel %vm1741, %v1984, 0
        %vm1993 = vcmask 1043456
        %v1995 = vsel %vm1993, %v1989, 0
        %1997 = vmatprep.subr.bf16.mxu0 0
        %1998 = vmatpush1.bf16.msra.mxu0 %v1995
        %1999 = vmatprep.subr.bf16.mxu0 0
        %2000 = vmatpush1.bf16.msra.mxu0 0
        %2001 = vmatprep.subr.bf16.mxu0 0
        %2002 = vmatpush1.bf16.msra.mxu0 0
        %2003 = vmatprep.subr.bf16.mxu0 0
        %2004 = vmatpush1.bf16.msra.mxu0 0
        %2005 = vmatprep.subr.bf16.mxu0 0
        %2006 = vmatpush1.bf16.msra.mxu0 0
        %2007 = vmatprep.subr.bf16.mxu0 0
        %2008 = vmatpush1.bf16.msra.mxu0 0
        %2009 = vmatprep.subr.bf16.mxu0 0
        %2010 = vmatpush1.bf16.msra.mxu0 0
        %2011 = vmatprep.subr.bf16.mxu0 0
        %2012 = vmatpush1.bf16.msra.mxu0 0
        %2013 = vmatprep.subr.bf16.mxu0 0
        %2014 = vmatpush1.bf16.msra.mxu0 0
        %2015 = vmatprep.subr.bf16.mxu0 0
        %2016 = vmatpush1.bf16.msra.mxu0 0
        %2017 = vmatprep.subr.bf16.mxu0 0
        %2018 = vmatpush1.bf16.msra.mxu0 0
        %2019 = vmatprep.subr.bf16.mxu0 0
        %2020 = vmatpush1.bf16.msra.mxu0 0
        %2021 = vmatprep.subr.bf16.mxu0 0
        %2022 = vmatpush1.bf16.msra.mxu0 0
        %2023 = vmatprep.subr.bf16.mxu0 0
        %2024 = vmatpush1.bf16.msra.mxu0 0
        %2025 = vmatprep.subr.bf16.mxu0 0
        %2026 = vmatpush1.bf16.msra.mxu0 0
        %2027 = vmatprep.subr.bf16.mxu0 0
        %2028 = vmatpush1.bf16.msra.mxu0 0
        %2029 = vmatprep.mubr.bf16.mxu0 0
        %2030 = vmatmul.mubr.bf16.gmra.mrb[0].mxu0 %v1991
        %v2031 = vpop.f32.mrb[0].mxu0
        %v2032 = vadd.f32 0.0, %v2031
        %v2033 = vpop.f32.mrb[0].mxu0
        %v2034 = vpop.f32.mrb[0].mxu0
        %v2035 = vpop.f32.mrb[0].mxu0
        %2036 = vdwg.mxu0
        %2037 = vrot.lane.b32.xlu0 %v1734, 64
        %v2038 = vpop.permute.xlu0 %2037
        %v2040 = vsel %vm1741, %v1985, 0
        %v2043 = vsel %vm1993, %v2038, 0
        %2045 = vmatprep.subr.bf16.mxu0 0
        %2046 = vmatpush1.bf16.msra.mxu0 %v2043
        %2047 = vmatprep.subr.bf16.mxu0 0
        %2048 = vmatpush1.bf16.msra.mxu0 0
        %2049 = vmatprep.subr.bf16.mxu0 0
        %2050 = vmatpush1.bf16.msra.mxu0 0
        %2051 = vmatprep.subr.bf16.mxu0 0
        %2052 = vmatpush1.bf16.msra.mxu0 0
        %2053 = vmatprep.subr.bf16.mxu0 0
        %2054 = vmatpush1.bf16.msra.mxu0 0
        %2055 = vmatprep.subr.bf16.mxu0 0
        %2056 = vmatpush1.bf16.msra.mxu0 0
        %2057 = vmatprep.subr.bf16.mxu0 0
        %2058 = vmatpush1.bf16.msra.mxu0 0
        %2059 = vmatprep.subr.bf16.mxu0 0
        %2060 = vmatpush1.bf16.msra.mxu0 0
        %2061 = vmatprep.subr.bf16.mxu0 0
        %2062 = vmatpush1.bf16.msra.mxu0 0
        %2063 = vmatprep.subr.bf16.mxu0 0
        %2064 = vmatpush1.bf16.msra.mxu0 0
        %2065 = vmatprep.subr.bf16.mxu0 0
        %2066 = vmatpush1.bf16.msra.mxu0 0
        %2067 = vmatprep.subr.bf16.mxu0 0
        %2068 = vmatpush1.bf16.msra.mxu0 0
        %2069 = vmatprep.subr.bf16.mxu0 0
        %2070 = vmatpush1.bf16.msra.mxu0 0
        %2071 = vmatprep.subr.bf16.mxu0 0
        %2072 = vmatpush1.bf16.msra.mxu0 0
        %2073 = vmatprep.subr.bf16.mxu0 0
        %2074 = vmatpush1.bf16.msra.mxu0 0
        %2075 = vmatprep.subr.bf16.mxu0 0
        %2076 = vmatpush1.bf16.msra.mxu0 0
        %2077 = vmatprep.mubr.bf16.mxu0 0
        %2078 = vmatmul.mubr.bf16.gmra.mrb[0].mxu0 %v2040
        %v2079 = vpop.f32.mrb[0].mxu0
        %v2080 = vadd.f32 0.0, %v2079
        %v2081 = vpop.f32.mrb[0].mxu0
        %v2082 = vpop.f32.mrb[0].mxu0
        %v2083 = vpop.f32.mrb[0].mxu0
        %2084 = vdwg.mxu0
        %2085 = vrot.lane.b32.xlu0 %v1736, 64
        %v2086 = vpop.permute.xlu0 %2085
        %v2088 = vsel %vm1741, %v1986, 0
        %v2091 = vsel %vm1993, %v2086, 0
        %2093 = vmatprep.subr.bf16.mxu0 0
        %2094 = vmatpush1.bf16.msra.mxu0 %v2091
        %2095 = vmatprep.subr.bf16.mxu0 0
        %2096 = vmatpush1.bf16.msra.mxu0 0
        %2097 = vmatprep.subr.bf16.mxu0 0
        %2098 = vmatpush1.bf16.msra.mxu0 0
        %2099 = vmatprep.subr.bf16.mxu0 0
        %2100 = vmatpush1.bf16.msra.mxu0 0
        %2101 = vmatprep.subr.bf16.mxu0 0
        %2102 = vmatpush1.bf16.msra.mxu0 0
        %2103 = vmatprep.subr.bf16.mxu0 0
        %2104 = vmatpush1.bf16.msra.mxu0 0
        %2105 = vmatprep.subr.bf16.mxu0 0
        %2106 = vmatpush1.bf16.msra.mxu0 0
        %2107 = vmatprep.subr.bf16.mxu0 0
        %2108 = vmatpush1.bf16.msra.mxu0 0
        %2109 = vmatprep.subr.bf16.mxu0 0
        %2110 = vmatpush1.bf16.msra.mxu0 0
        %2111 = vmatprep.subr.bf16.mxu0 0
        %2112 = vmatpush1.bf16.msra.mxu0 0
        %2113 = vmatprep.subr.bf16.mxu0 0
        %2114 = vmatpush1.bf16.msra.mxu0 0
        %2115 = vmatprep.subr.bf16.mxu0 0
        %2116 = vmatpush1.bf16.msra.mxu0 0
        %2117 = vmatprep.subr.bf16.mxu0 0
        %2118 = vmatpush1.bf16.msra.mxu0 0
        %2119 = vmatprep.subr.bf16.mxu0 0
        %2120 = vmatpush1.bf16.msra.mxu0 0
        %2121 = vmatprep.subr.bf16.mxu0 0
        %2122 = vmatpush1.bf16.msra.mxu0 0
        %2123 = vmatprep.subr.bf16.mxu0 0
        %2124 = vmatpush1.bf16.msra.mxu0 0
        %2125 = vmatprep.mubr.bf16.mxu0 0
        %2126 = vmatmul.mubr.bf16.gmra.mrb[0].mxu0 %v2088
        %v2127 = vpop.f32.mrb[0].mxu0
        %v2128 = vadd.f32 0.0, %v2127
        %v2129 = vpop.f32.mrb[0].mxu0
        %v2130 = vpop.f32.mrb[0].mxu0
        %v2131 = vpop.f32.mrb[0].mxu0
        %2132 = vdwg.mxu0
        %2133 = vrot.lane.b32.xlu0 %v1738, 64
        %v2134 = vpop.permute.xlu0 %2133
        %v2136 = vsel %vm1741, %v1987, 0
        %v2139 = vsel %vm1993, %v2134, 0
        %2141 = vmatprep.subr.bf16.mxu0 0
        %2142 = vmatpush1.bf16.msra.mxu0 %v2139
        %2143 = vmatprep.subr.bf16.mxu0 0
        %2144 = vmatpush1.bf16.msra.mxu0 0
        %2145 = vmatprep.subr.bf16.mxu0 0
        %2146 = vmatpush1.bf16.msra.mxu0 0
        %2147 = vmatprep.subr.bf16.mxu0 0
        %2148 = vmatpush1.bf16.msra.mxu0 0
        %2149 = vmatprep.subr.bf16.mxu0 0
        %2150 = vmatpush1.bf16.msra.mxu0 0
        %2151 = vmatprep.subr.bf16.mxu0 0
        %2152 = vmatpush1.bf16.msra.mxu0 0
        %2153 = vmatprep.subr.bf16.mxu0 0
        %2154 = vmatpush1.bf16.msra.mxu0 0
        %2155 = vmatprep.subr.bf16.mxu0 0
        %2156 = vmatpush1.bf16.msra.mxu0 0
        %2157 = vmatprep.subr.bf16.mxu0 0
        %2158 = vmatpush1.bf16.msra.mxu0 0
        %2159 = vmatprep.subr.bf16.mxu0 0
        %2160 = vmatpush1.bf16.msra.mxu0 0
        %2161 = vmatprep.subr.bf16.mxu0 0
        %2162 = vmatpush1.bf16.msra.mxu0 0
        %2163 = vmatprep.subr.bf16.mxu0 0
        %2164 = vmatpush1.bf16.msra.mxu0 0
        %2165 = vmatprep.subr.bf16.mxu0 0
        %2166 = vmatpush1.bf16.msra.mxu0 0
        %2167 = vmatprep.subr.bf16.mxu0 0
        %2168 = vmatpush1.bf16.msra.mxu0 0
        %2169 = vmatprep.subr.bf16.mxu0 0
        %2170 = vmatpush1.bf16.msra.mxu0 0
        %2171 = vmatprep.subr.bf16.mxu0 0
        %2172 = vmatpush1.bf16.msra.mxu0 0
        %2173 = vmatprep.mubr.bf16.mxu0 0
        %2174 = vmatmul.mubr.bf16.gmra.mrb[0].mxu0 %v2136
        %v2175 = vpop.f32.mrb[0].mxu0
        %v2176 = vadd.f32 0.0, %v2175
        %v2177 = vpop.f32.mrb[0].mxu0
        %v2178 = vpop.f32.mrb[0].mxu0
        %v2179 = vpop.f32.mrb[0].mxu0
        %2180 = vdwg.mxu0
        %2182 = vrot.lane.b32.xlu0 %v2080, 8
        %v2183 = vpop.permute.xlu0 %2182
        %2186 = vrot.lane.b32.xlu0 %v2128, 16
        %v2187 = vpop.permute.xlu0 %2186
        %2190 = vrot.lane.b32.xlu0 %v2176, 24
        %v2191 = vpop.permute.xlu0 %2190
        %v2193 = vsel %vm1741, %v2032, %v2183
        %vm2194 = vcmask 130048
        %v2195 = vsel %vm2194, %v2193, %v2187
        %vm2196 = vcmask 195584
        %v2197 = vsel %vm2196, %v2195, %v2191
        %v2198 = vpack.c.bf16 %v2197, %v2197
        %v2200 = vlaneseq
        %v2201 = vshrl.u32 %v2200, 7
        %v2202 = vsub.s32 0, %v2201
        %v2203 = vrot.slane %v1669, %v2202
        %v2209 = vunpack.c.l.b16 %v1665
        %v2210 = vunpack.c.l.b16 %v1666
        %v2211 = vunpack.c.l.b16 %v1667
        %v2212 = vunpack.c.l.b16 %v1668
        %v2213 = vpack.c.b16 %v2210, %v2209
        %v2214 = vpack.c.b16 %v2212, %v2211
        %v2218 = vsel %vm1630, %v2198, 0
        %2220 = vmatprep.subr.bf16.mxu0 0
        %2221 = vmatpush1.bf16.msra.mxu0 %v2213
        %2222 = vmatprep.subr.bf16.mxu0 0
        %2223 = vmatpush1.bf16.msra.mxu0 %v2214
        %2224 = vmatprep.subr.bf16.mxu0 0
        %2225 = vmatpush1.bf16.msra.mxu0 0
        %2226 = vmatprep.subr.bf16.mxu0 0
        %2227 = vmatpush1.bf16.msra.mxu0 0
        %2228 = vmatprep.subr.bf16.mxu0 0
        %2229 = vmatpush1.bf16.msra.mxu0 0
        %2230 = vmatprep.subr.bf16.mxu0 0
        %2231 = vmatpush1.bf16.msra.mxu0 0
        %2232 = vmatprep.subr.bf16.mxu0 0
        %2233 = vmatpush1.bf16.msra.mxu0 0
        %2234 = vmatprep.subr.bf16.mxu0 0
        %2235 = vmatpush1.bf16.msra.mxu0 0
        %2236 = vmatprep.subr.bf16.mxu0 0
        %2237 = vmatpush1.bf16.msra.mxu0 0
        %2238 = vmatprep.subr.bf16.mxu0 0
        %2239 = vmatpush1.bf16.msra.mxu0 0
        %2240 = vmatprep.subr.bf16.mxu0 0
        %2241 = vmatpush1.bf16.msra.mxu0 0
        %2242 = vmatprep.subr.bf16.mxu0 0
        %2243 = vmatpush1.bf16.msra.mxu0 0
        %2244 = vmatprep.subr.bf16.mxu0 0
        %2245 = vmatpush1.bf16.msra.mxu0 0
        %2246 = vmatprep.subr.bf16.mxu0 0
        %2247 = vmatpush1.bf16.msra.mxu0 0
        %2248 = vmatprep.subr.bf16.mxu0 0
        %2249 = vmatpush1.bf16.msra.mxu0 0
        %2250 = vmatprep.subr.bf16.mxu0 0
        %2251 = vmatpush1.bf16.msra.mxu0 0
        %2252 = vmatprep.mubr.bf16.mxu0 0
        %2253 = vmatmul.mubr.bf16.gmra.mrb[0].mxu0 %v2218
        %v2254 = vpop.f32.mrb[0].mxu0
        %v2255 = vadd.f32 %v2203, %v2254
        %v2256 = vpop.f32.mrb[0].mxu0
        %v2257 = vpop.f32.mrb[0].mxu0
        %v2258 = vpop.f32.mrb[0].mxu0
        %2259 = vdwg.mxu0
        %2260 = vst.msk [vmem:[%s1608] sm:$0xff] %vm1741, %v1980
        %2261 = vst.msk [vmem:[%s1608 + $0x8] sm:$0xff] %vm1741, %v1981
        %2262 = vst.msk [vmem:[%s1608 + $0x10] sm:$0xff] %vm1741, %v1982
        %2263 = vst.msk [vmem:[%s1608 + $0x18] sm:$0xff] %vm1741, %v1983
        %v2264 = vadd.f32 %v1624, %v2255
        %v2265 = vld [vmem:[%s1332] sm:$0x1]
        %v2266 = vld [vmem:[%s1340] sm:$0x1]
        %v2267 = vsel %vm1630, %v2264, 0.0
        %2268 = vadd.xlane.f32.xlu0 %v2267
        %v2269 = vpop.xlane.xlu0 %2268
        %v2270 = vmul.f32 %v2269, %v1634
        %v2271 = vsub.f32 %v2264, %v2270
        %v2272 = vmul.f32 %v2271, %v2271
        %v2273 = vsel %vm1630, %v2272, 0.0
        %2274 = vadd.xlane.f32.xlu0 %v2273
        %v2275 = vpop.xlane.xlu0 %2274
        %v2276 = vmul.f32 %v2275, %v1634
        %v2277 = vadd.f32 %v2276, 1e-06
        %v2278 = vrsqrt.pop %v2277
        %v2279 = vmul.f32 %v2271, %v2278
        %v2281 = vlaneseq
        %v2282 = vshrl.u32 %v2281, 7
        %v2283 = vsub.s32 0, %v2282
        %v2284 = vrot.slane %v2265, %v2283
        %v2286 = vmul.f32 %v2279, %v2284
        %v2288 = vlaneseq
        %v2289 = vshrl.u32 %v2288, 7
        %v2290 = vsub.s32 0, %v2289
        %v2291 = vrot.slane %v2266, %v2290
        %v2293 = vadd.f32 %v2286, %v2291
        %v2294 = vpack.c.bf16 %v2293, %v2293
        %v2295 = vld [vmem:[%s1349] sm:$0xf]
        %v2296 = vld [vmem:[%s1349 + $0x4] sm:$0xf]
        %v2297 = vld [vmem:[%s1349 + $0x8] sm:$0xf]
        %v2298 = vld [vmem:[%s1349 + $0xc] sm:$0xf]
        %v2299 = vld [vmem:[%s1357] sm:$0x1]
        %v2300 = vld [vmem:[%s1366] sm:$0xf]
        %v2301 = vld [vmem:[%s1366 + $0x4] sm:$0xf]
        %v2302 = vld [vmem:[%s1366 + $0x8] sm:$0xf]
        %v2303 = vld [vmem:[%s1366 + $0xc] sm:$0xf]
        %v2304 = vld [vmem:[%s1374] sm:$0x1]
        %v2305 = vld [vmem:[%s1383] sm:$0xf]
        %v2306 = vld [vmem:[%s1383 + $0x4] sm:$0xf]
        %v2307 = vld [vmem:[%s1383 + $0x8] sm:$0xf]
        %v2308 = vld [vmem:[%s1383 + $0xc] sm:$0xf]
        %v2309 = vld [vmem:[%s1391] sm:$0x1]
        %v2311 = vlaneseq
        %v2312 = vshrl.u32 %v2311, 7
        %v2313 = vsub.s32 0, %v2312
        %v2314 = vrot.slane %v2299, %v2313
        %v2320 = vunpack.c.l.b16 %v2295
        %v2321 = vunpack.c.l.b16 %v2296
        %v2322 = vunpack.c.l.b16 %v2297
        %v2323 = vunpack.c.l.b16 %v2298
        %v2324 = vpack.c.b16 %v2321, %v2320
        %v2325 = vpack.c.b16 %v2323, %v2322
        %v2329 = vsel %vm1630, %v2294, 0
        %2331 = vmatprep.subr.bf16.mxu0 0
        %2332 = vmatpush1.bf16.msra.mxu0 %v2324
        %2333 = vmatprep.subr.bf16.mxu0 0
        %2334 = vmatpush1.bf16.msra.mxu0 %v2325
        %2335 = vmatprep.subr.bf16.mxu0 0
        %2336 = vmatpush1.bf16.msra.mxu0 0
        %2337 = vmatprep.subr.bf16.mxu0 0
        %2338 = vmatpush1.bf16.msra.mxu0 0
        %2339 = vmatprep.subr.bf16.mxu0 0
        %2340 = vmatpush1.bf16.msra.mxu0 0
        %2341 = vmatprep.subr.bf16.mxu0 0
        %2342 = vmatpush1.bf16.msra.mxu0 0
        %2343 = vmatprep.subr.bf16.mxu0 0
        %2344 = vmatpush1.bf16.msra.mxu0 0
        %2345 = vmatprep.subr.bf16.mxu0 0
        %2346 = vmatpush1.bf16.msra.mxu0 0
        %2347 = vmatprep.subr.bf16.mxu0 0
        %2348 = vmatpush1.bf16.msra.mxu0 0
        %2349 = vmatprep.subr.bf16.mxu0 0
        %2350 = vmatpush1.bf16.msra.mxu0 0
        %2351 = vmatprep.subr.bf16.mxu0 0
        %2352 = vmatpush1.bf16.msra.mxu0 0
        %2353 = vmatprep.subr.bf16.mxu0 0
        %2354 = vmatpush1.bf16.msra.mxu0 0
        %2355 = vmatprep.subr.bf16.mxu0 0
        %2356 = vmatpush1.bf16.msra.mxu0 0
        %2357 = vmatprep.subr.bf16.mxu0 0
        %2358 = vmatpush1.bf16.msra.mxu0 0
        %2359 = vmatprep.subr.bf16.mxu0 0
        %2360 = vmatpush1.bf16.msra.mxu0 0
        %2361 = vmatprep.subr.bf16.mxu0 0
        %2362 = vmatpush1.bf16.msra.mxu0 0
        %2363 = vmatprep.mubr.bf16.mxu0 0
        %2364 = vmatmul.mubr.bf16.gmra.mrb[0].mxu0 %v2329
        %v2365 = vpop.f32.mrb[0].mxu0
        %v2366 = vadd.f32 %v2314, %v2365
        %v2367 = vpop.f32.mrb[0].mxu0
        %v2368 = vpop.f32.mrb[0].mxu0
        %v2369 = vpop.f32.mrb[0].mxu0
        %2370 = vdwg.mxu0
        %v2372 = vlaneseq
        %v2373 = vshrl.u32 %v2372, 7
        %v2374 = vsub.s32 0, %v2373
        %v2375 = vrot.slane %v2304, %v2374
        %v2381 = vunpack.c.l.b16 %v2300
        %v2382 = vunpack.c.l.b16 %v2301
        %v2383 = vunpack.c.l.b16 %v2302
        %v2384 = vunpack.c.l.b16 %v2303
        %v2385 = vpack.c.b16 %v2382, %v2381
        %v2386 = vpack.c.b16 %v2384, %v2383
        %v2390 = vsel %vm1630, %v1625, 0
        %2392 = vmatprep.subr.bf16.mxu0 0
        %2393 = vmatpush1.bf16.msra.mxu0 %v2385
        %2394 = vmatprep.subr.bf16.mxu0 0
        %2395 = vmatpush1.bf16.msra.mxu0 %v2386
        %2396 = vmatprep.subr.bf16.mxu0 0
        %2397 = vmatpush1.bf16.msra.mxu0 0
        %2398 = vmatprep.subr.bf16.mxu0 0
        %2399 = vmatpush1.bf16.msra.mxu0 0
        %2400 = vmatprep.subr.bf16.mxu0 0
        %2401 = vmatpush1.bf16.msra.mxu0 0
        %2402 = vmatprep.subr.bf16.mxu0 0
        %2403 = vmatpush1.bf16.msra.mxu0 0
        %2404 = vmatprep.subr.bf16.mxu0 0
        %2405 = vmatpush1.bf16.msra.mxu0 0
        %2406 = vmatprep.subr.bf16.mxu0 0
        %2407 = vmatpush1.bf16.msra.mxu0 0
        %2408 = vmatprep.subr.bf16.mxu0 0
        %2409 = vmatpush1.bf16.msra.mxu0 0
        %2410 = vmatprep.subr.bf16.mxu0 0
        %2411 = vmatpush1.bf16.msra.mxu0 0
        %2412 = vmatprep.subr.bf16.mxu0 0
        %2413 = vmatpush1.bf16.msra.mxu0 0
        %2414 = vmatprep.subr.bf16.mxu0 0
        %2415 = vmatpush1.bf16.msra.mxu0 0
        %2416 = vmatprep.subr.bf16.mxu0 0
        %2417 = vmatpush1.bf16.msra.mxu0 0
        %2418 = vmatprep.subr.bf16.mxu0 0
        %2419 = vmatpush1.bf16.msra.mxu0 0
        %2420 = vmatprep.subr.bf16.mxu0 0
        %2421 = vmatpush1.bf16.msra.mxu0 0
        %2422 = vmatprep.subr.bf16.mxu0 0
        %2423 = vmatpush1.bf16.msra.mxu0 0
        %2424 = vmatprep.mubr.bf16.mxu0 0
        %2425 = vmatmul.mubr.bf16.gmra.mrb[0].mxu0 %v2390
        %v2426 = vpop.f32.mrb[0].mxu0
        %v2427 = vadd.f32 %v2375, %v2426
        %v2428 = vpop.f32.mrb[0].mxu0
        %v2429 = vpop.f32.mrb[0].mxu0
        %v2430 = vpop.f32.mrb[0].mxu0
        %2431 = vdwg.mxu0
        %v2432 = vpack.c.bf16 %v2427, %v2427
        %v2433 = vpack.c.bf16 %v2366, %v2366
        %2435 = vrot.lane.b32.xlu0 %v2433, 120
        %v2436 = vpop.permute.xlu0 %2435
        %2437 = vrot.lane.b32.xlu0 %v2433, 112
        %v2438 = vpop.permute.xlu0 %2437
        %2439 = vrot.lane.b32.xlu0 %v2433, 104
        %v2440 = vpop.permute.xlu0 %2439
        %2442 = vrot.lane.b32.xlu0 %v2432, 120
        %v2443 = vpop.permute.xlu0 %2442
        %2444 = vrot.lane.b32.xlu0 %v2432, 112
        %v2445 = vpop.permute.xlu0 %2444
        %2446 = vrot.lane.b32.xlu0 %v2432, 104
        %v2447 = vpop.permute.xlu0 %2446
        %v2449 = vsel %vm1741, %v2433, 0
        %v2452 = vsel %vm1741, %v2432, 0
        %2454 = vmatprep.subr.bf16.mxu0 0
        %2455 = vmatpush1.bf16.xpose.msra.mxu0 %v2452
        %2456 = vmatprep.subr.bf16.mxu0 0
        %2457 = vmatpush1.bf16.xpose.msra.mxu0 0
        %2458 = vmatprep.subr.bf16.mxu0 0
        %2459 = vmatpush1.bf16.xpose.msra.mxu0 0
        %2460 = vmatprep.subr.bf16.mxu0 0
        %2461 = vmatpush1.bf16.xpose.msra.mxu0 0
        %2462 = vmatprep.subr.bf16.mxu0 0
        %2463 = vmatpush1.bf16.xpose.msra.mxu0 0
        %2464 = vmatprep.subr.bf16.mxu0 0
        %2465 = vmatpush1.bf16.xpose.msra.mxu0 0
        %2466 = vmatprep.subr.bf16.mxu0 0
        %2467 = vmatpush1.bf16.xpose.msra.mxu0 0
        %2468 = vmatprep.subr.bf16.mxu0 0
        %2469 = vmatpush1.bf16.xpose.msra.mxu0 0
        %2470 = vmatprep.subr.bf16.mxu0 0
        %2471 = vmatpush1.bf16.xpose.msra.mxu0 0
        %2472 = vmatprep.subr.bf16.mxu0 0
        %2473 = vmatpush1.bf16.xpose.msra.mxu0 0
        %2474 = vmatprep.subr.bf16.mxu0 0
        %2475 = vmatpush1.bf16.xpose.msra.mxu0 0
        %2476 = vmatprep.subr.bf16.mxu0 0
        %2477 = vmatpush1.bf16.xpose.msra.mxu0 0
        %2478 = vmatprep.subr.bf16.mxu0 0
        %2479 = vmatpush1.bf16.xpose.msra.mxu0 0
        %2480 = vmatprep.subr.bf16.mxu0 0
        %2481 = vmatpush1.bf16.xpose.msra.mxu0 0
        %2482 = vmatprep.subr.bf16.mxu0 0
        %2483 = vmatpush1.bf16.xpose.msra.mxu0 0
        %2484 = vmatprep.subr.bf16.mxu0 0
        %2485 = vmatpush1.bf16.xpose.msra.mxu0 0
        %2486 = vmatprep.mubr.bf16.mxu0 0
        %2487 = vmatmul.mubr.bf16.gmra.mrb[0].mxu0 %v2449
        %v2488 = vpop.f32.mrb[0].mxu0
        %v2489 = vadd.f32 0.0, %v2488
        %v2490 = vpop.f32.mrb[0].mxu0
        %v2491 = vpop.f32.mrb[0].mxu0
        %v2492 = vpop.f32.mrb[0].mxu0
        %2493 = vdwg.mxu0
        %v2495 = vsel %vm1741, %v2436, 0
        %v2498 = vsel %vm1741, %v2443, 0
        %2500 = vmatprep.subr.bf16.mxu0 0
        %2501 = vmatpush1.bf16.xpose.msra.mxu0 %v2498
        %2502 = vmatprep.subr.bf16.mxu0 0
        %2503 = vmatpush1.bf16.xpose.msra.mxu0 0
        %2504 = vmatprep.subr.bf16.mxu0 0
        %2505 = vmatpush1.bf16.xpose.msra.mxu0 0
        %2506 = vmatprep.subr.bf16.mxu0 0
        %2507 = vmatpush1.bf16.xpose.msra.mxu0 0
        %2508 = vmatprep.subr.bf16.mxu0 0
        %2509 = vmatpush1.bf16.xpose.msra.mxu0 0
        %2510 = vmatprep.subr.bf16.mxu0 0
        %2511 = vmatpush1.bf16.xpose.msra.mxu0 0
        %2512 = vmatprep.subr.bf16.mxu0 0
        %2513 = vmatpush1.bf16.xpose.msra.mxu0 0
        %2514 = vmatprep.subr.bf16.mxu0 0
        %2515 = vmatpush1.bf16.xpose.msra.mxu0 0
        %2516 = vmatprep.subr.bf16.mxu0 0
        %2517 = vmatpush1.bf16.xpose.msra.mxu0 0
        %2518 = vmatprep.subr.bf16.mxu0 0
        %2519 = vmatpush1.bf16.xpose.msra.mxu0 0
        %2520 = vmatprep.subr.bf16.mxu0 0
        %2521 = vmatpush1.bf16.xpose.msra.mxu0 0
        %2522 = vmatprep.subr.bf16.mxu0 0
        %2523 = vmatpush1.bf16.xpose.msra.mxu0 0
        %2524 = vmatprep.subr.bf16.mxu0 0
        %2525 = vmatpush1.bf16.xpose.msra.mxu0 0
        %2526 = vmatprep.subr.bf16.mxu0 0
        %2527 = vmatpush1.bf16.xpose.msra.mxu0 0
        %2528 = vmatprep.subr.bf16.mxu0 0
        %2529 = vmatpush1.bf16.xpose.msra.mxu0 0
        %2530 = vmatprep.subr.bf16.mxu0 0
        %2531 = vmatpush1.bf16.xpose.msra.mxu0 0
        %2532 = vmatprep.mubr.bf16.mxu0 0
        %2533 = vmatmul.mubr.bf16.gmra.mrb[0].mxu0 %v2495
        %v2534 = vpop.f32.mrb[0].mxu0
        %v2535 = vadd.f32 0.0, %v2534
        %v2536 = vpop.f32.mrb[0].mxu0
        %v2537 = vpop.f32.mrb[0].mxu0
        %v2538 = vpop.f32.mrb[0].mxu0
        %2539 = vdwg.mxu0
        %v2541 = vsel %vm1741, %v2438, 0
        %v2544 = vsel %vm1741, %v2445, 0
        %2546 = vmatprep.subr.bf16.mxu0 0
        %2547 = vmatpush1.bf16.xpose.msra.mxu0 %v2544
        %2548 = vmatprep.subr.bf16.mxu0 0
        %2549 = vmatpush1.bf16.xpose.msra.mxu0 0
        %2550 = vmatprep.subr.bf16.mxu0 0
        %2551 = vmatpush1.bf16.xpose.msra.mxu0 0
        %2552 = vmatprep.subr.bf16.mxu0 0
        %2553 = vmatpush1.bf16.xpose.msra.mxu0 0
        %2554 = vmatprep.subr.bf16.mxu0 0
        %2555 = vmatpush1.bf16.xpose.msra.mxu0 0
        %2556 = vmatprep.subr.bf16.mxu0 0
        %2557 = vmatpush1.bf16.xpose.msra.mxu0 0
        %2558 = vmatprep.subr.bf16.mxu0 0
        %2559 = vmatpush1.bf16.xpose.msra.mxu0 0
        %2560 = vmatprep.subr.bf16.mxu0 0
        %2561 = vmatpush1.bf16.xpose.msra.mxu0 0
        %2562 = vmatprep.subr.bf16.mxu0 0
        %2563 = vmatpush1.bf16.xpose.msra.mxu0 0
        %2564 = vmatprep.subr.bf16.mxu0 0
        %2565 = vmatpush1.bf16.xpose.msra.mxu0 0
        %2566 = vmatprep.subr.bf16.mxu0 0
        %2567 = vmatpush1.bf16.xpose.msra.mxu0 0
        %2568 = vmatprep.subr.bf16.mxu0 0
        %2569 = vmatpush1.bf16.xpose.msra.mxu0 0
        %2570 = vmatprep.subr.bf16.mxu0 0
        %2571 = vmatpush1.bf16.xpose.msra.mxu0 0
        %2572 = vmatprep.subr.bf16.mxu0 0
        %2573 = vmatpush1.bf16.xpose.msra.mxu0 0
        %2574 = vmatprep.subr.bf16.mxu0 0
        %2575 = vmatpush1.bf16.xpose.msra.mxu0 0
        %2576 = vmatprep.subr.bf16.mxu0 0
        %2577 = vmatpush1.bf16.xpose.msra.mxu0 0
        %2578 = vmatprep.mubr.bf16.mxu0 0
        %2579 = vmatmul.mubr.bf16.gmra.mrb[0].mxu0 %v2541
        %v2580 = vpop.f32.mrb[0].mxu0
        %v2581 = vadd.f32 0.0, %v2580
        %v2582 = vpop.f32.mrb[0].mxu0
        %v2583 = vpop.f32.mrb[0].mxu0
        %v2584 = vpop.f32.mrb[0].mxu0
        %2585 = vdwg.mxu0
        %v2587 = vsel %vm1741, %v2440, 0
        %v2590 = vsel %vm1741, %v2447, 0
        %2592 = vmatprep.subr.bf16.mxu0 0
        %2593 = vmatpush1.bf16.xpose.msra.mxu0 %v2590
        %2594 = vmatprep.subr.bf16.mxu0 0
        %2595 = vmatpush1.bf16.xpose.msra.mxu0 0
        %2596 = vmatprep.subr.bf16.mxu0 0
        %2597 = vmatpush1.bf16.xpose.msra.mxu0 0
        %2598 = vmatprep.subr.bf16.mxu0 0
        %2599 = vmatpush1.bf16.xpose.msra.mxu0 0
        %2600 = vmatprep.subr.bf16.mxu0 0
        %2601 = vmatpush1.bf16.xpose.msra.mxu0 0
        %2602 = vmatprep.subr.bf16.mxu0 0
        %2603 = vmatpush1.bf16.xpose.msra.mxu0 0
        %2604 = vmatprep.subr.bf16.mxu0 0
        %2605 = vmatpush1.bf16.xpose.msra.mxu0 0
        %2606 = vmatprep.subr.bf16.mxu0 0
        %2607 = vmatpush1.bf16.xpose.msra.mxu0 0
        %2608 = vmatprep.subr.bf16.mxu0 0
        %2609 = vmatpush1.bf16.xpose.msra.mxu0 0
        %2610 = vmatprep.subr.bf16.mxu0 0
        %2611 = vmatpush1.bf16.xpose.msra.mxu0 0
        %2612 = vmatprep.subr.bf16.mxu0 0
        %2613 = vmatpush1.bf16.xpose.msra.mxu0 0
        %2614 = vmatprep.subr.bf16.mxu0 0
        %2615 = vmatpush1.bf16.xpose.msra.mxu0 0
        %2616 = vmatprep.subr.bf16.mxu0 0
        %2617 = vmatpush1.bf16.xpose.msra.mxu0 0
        %2618 = vmatprep.subr.bf16.mxu0 0
        %2619 = vmatpush1.bf16.xpose.msra.mxu0 0
        %2620 = vmatprep.subr.bf16.mxu0 0
        %2621 = vmatpush1.bf16.xpose.msra.mxu0 0
        %2622 = vmatprep.subr.bf16.mxu0 0
        %2623 = vmatpush1.bf16.xpose.msra.mxu0 0
        %2624 = vmatprep.mubr.bf16.mxu0 0
        %2625 = vmatmul.mubr.bf16.gmra.mrb[0].mxu0 %v2587
        %v2626 = vpop.f32.mrb[0].mxu0
        %v2627 = vadd.f32 0.0, %v2626
        %v2628 = vpop.f32.mrb[0].mxu0
        %v2629 = vpop.f32.mrb[0].mxu0
        %v2630 = vpop.f32.mrb[0].mxu0
        %2631 = vdwg.mxu0
        %v2632 = vmul.f32 %v2489, 0.35355338
        %v2633 = vmul.f32 %v2535, 0.35355338
        %v2634 = vmul.f32 %v2581, 0.35355338
        %v2635 = vmul.f32 %v2627, 0.35355338
        %v2637 = vlaneseq
        %v2638 = vshrl.u32 %v2637, 7
        %v2639 = vsub.s32 0, %v2638
        %v2640 = vrot.slane %v1627, %v2639
        %v2642 = vadd.f32 %v2632, %v2640
        %v2643 = vadd.f32 %v2633, %v2640
        %v2644 = vadd.f32 %v2634, %v2640
        %v2645 = vadd.f32 %v2635, %v2640
        %v2646 = vsel %vm1741, %v2642, -inf
        %2647 = vmax.xlane.f32.xlu0 %v2646
        %v2648 = vpop.xlane.xlu0 %2647
        %v2649 = vsel %vm1741, %v2643, -inf
        %2650 = vmax.xlane.f32.xlu0 %v2649
        %v2651 = vpop.xlane.xlu0 %2650
        %v2652 = vsel %vm1741, %v2644, -inf
        %2653 = vmax.xlane.f32.xlu0 %v2652
        %v2654 = vpop.xlane.xlu0 %2653
        %v2655 = vsel %vm1741, %v2645, -inf
        %2656 = vmax.xlane.f32.xlu0 %v2655
        %v2657 = vpop.xlane.xlu0 %2656
        %v2658 = vsub.f32 %v2642, %v2648
        %v2659 = vsub.f32 %v2643, %v2651
        %v2660 = vsub.f32 %v2644, %v2654
        %v2661 = vsub.f32 %v2645, %v2657
        %v2662 = vmul.f32 %v2658, 1.442695
        %v2663 = vpow.pop %v2662
        %v2664 = vmul.f32 %v2659, 1.442695
        %v2665 = vpow.pop %v2664
        %v2666 = vmul.f32 %v2660, 1.442695
        %v2667 = vpow.pop %v2666
        %v2668 = vmul.f32 %v2661, 1.442695
        %v2669 = vpow.pop %v2668
        %v2670 = vsel %vm1741, %v2663, 0.0
        %2671 = vadd.xlane.f32.xlu0 %v2670
        %v2672 = vpop.xlane.xlu0 %2671
        %v2673 = vsel %vm1741, %v2665, 0.0
        %2674 = vadd.xlane.f32.xlu0 %v2673
        %v2675 = vpop.xlane.xlu0 %2674
        %v2676 = vsel %vm1741, %v2667, 0.0
        %2677 = vadd.xlane.f32.xlu0 %v2676
        %v2678 = vpop.xlane.xlu0 %2677
        %v2679 = vsel %vm1741, %v2669, 0.0
        %2680 = vadd.xlane.f32.xlu0 %v2679
        %v2681 = vpop.xlane.xlu0 %2680
        %v2682 = vrcp.pop %v2672
        %v2683 = vrcp.pop %v2675
        %v2684 = vrcp.pop %v2678
        %v2685 = vrcp.pop %v2681
        %v2686 = vmul.f32 %v2663, %v2682
        %v2687 = vmul.f32 %v2665, %v2683
        %v2688 = vmul.f32 %v2667, %v2684
        %v2689 = vmul.f32 %v2669, %v2685
        %v2690 = vpack.c.bf16 %v2686, %v2686
        %v2691 = vpack.c.bf16 %v2687, %v2687
        %v2692 = vpack.c.bf16 %v2688, %v2688
        %v2693 = vpack.c.bf16 %v2689, %v2689
        %2694 = vrot.lane.b32.xlu0 %v2432, 96
        %v2695 = vpop.permute.xlu0 %2694
        %v2697 = vsel %vm1741, %v2690, 0
        %v2700 = vsel %vm1993, %v2695, 0
        %2702 = vmatprep.subr.bf16.mxu0 0
        %2703 = vmatpush1.bf16.msra.mxu0 %v2700
        %2704 = vmatprep.subr.bf16.mxu0 0
        %2705 = vmatpush1.bf16.msra.mxu0 0
        %2706 = vmatprep.subr.bf16.mxu0 0
        %2707 = vmatpush1.bf16.msra.mxu0 0
        %2708 = vmatprep.subr.bf16.mxu0 0
        %2709 = vmatpush1.bf16.msra.mxu0 0
        %2710 = vmatprep.subr.bf16.mxu0 0
        %2711 = vmatpush1.bf16.msra.mxu0 0
        %2712 = vmatprep.subr.bf16.mxu0 0
        %2713 = vmatpush1.bf16.msra.mxu0 0
        %2714 = vmatprep.subr.bf16.mxu0 0
        %2715 = vmatpush1.bf16.msra.mxu0 0
        %2716 = vmatprep.subr.bf16.mxu0 0
        %2717 = vmatpush1.bf16.msra.mxu0 0
        %2718 = vmatprep.subr.bf16.mxu0 0
        %2719 = vmatpush1.bf16.msra.mxu0 0
        %2720 = vmatprep.subr.bf16.mxu0 0
        %2721 = vmatpush1.bf16.msra.mxu0 0
        %2722 = vmatprep.subr.bf16.mxu0 0
        %2723 = vmatpush1.bf16.msra.mxu0 0
        %2724 = vmatprep.subr.bf16.mxu0 0
        %2725 = vmatpush1.bf16.msra.mxu0 0
        %2726 = vmatprep.subr.bf16.mxu0 0
        %2727 = vmatpush1.bf16.msra.mxu0 0
        %2728 = vmatprep.subr.bf16.mxu0 0
        %2729 = vmatpush1.bf16.msra.mxu0 0
        %2730 = vmatprep.subr.bf16.mxu0 0
        %2731 = vmatpush1.bf16.msra.mxu0 0
        %2732 = vmatprep.subr.bf16.mxu0 0
        %2733 = vmatpush1.bf16.msra.mxu0 0
        %2734 = vmatprep.mubr.bf16.mxu0 0
        %2735 = vmatmul.mubr.bf16.gmra.mrb[0].mxu0 %v2697
        %v2736 = vpop.f32.mrb[0].mxu0
        %v2737 = vadd.f32 0.0, %v2736
        %v2738 = vpop.f32.mrb[0].mxu0
        %v2739 = vpop.f32.mrb[0].mxu0
        %v2740 = vpop.f32.mrb[0].mxu0
        %2741 = vdwg.mxu0
        %2742 = vrot.lane.b32.xlu0 %v2443, 96
        %v2743 = vpop.permute.xlu0 %2742
        %v2745 = vsel %vm1741, %v2691, 0
        %v2748 = vsel %vm1993, %v2743, 0
        %2750 = vmatprep.subr.bf16.mxu0 0
        %2751 = vmatpush1.bf16.msra.mxu0 %v2748
        %2752 = vmatprep.subr.bf16.mxu0 0
        %2753 = vmatpush1.bf16.msra.mxu0 0
        %2754 = vmatprep.subr.bf16.mxu0 0
        %2755 = vmatpush1.bf16.msra.mxu0 0
        %2756 = vmatprep.subr.bf16.mxu0 0
        %2757 = vmatpush1.bf16.msra.mxu0 0
        %2758 = vmatprep.subr.bf16.mxu0 0
        %2759 = vmatpush1.bf16.msra.mxu0 0
        %2760 = vmatprep.subr.bf16.mxu0 0
        %2761 = vmatpush1.bf16.msra.mxu0 0
        %2762 = vmatprep.subr.bf16.mxu0 0
        %2763 = vmatpush1.bf16.msra.mxu0 0
        %2764 = vmatprep.subr.bf16.mxu0 0
        %2765 = vmatpush1.bf16.msra.mxu0 0
        %2766 = vmatprep.subr.bf16.mxu0 0
        %2767 = vmatpush1.bf16.msra.mxu0 0
        %2768 = vmatprep.subr.bf16.mxu0 0
        %2769 = vmatpush1.bf16.msra.mxu0 0
        %2770 = vmatprep.subr.bf16.mxu0 0
        %2771 = vmatpush1.bf16.msra.mxu0 0
        %2772 = vmatprep.subr.bf16.mxu0 0
        %2773 = vmatpush1.bf16.msra.mxu0 0
        %2774 = vmatprep.subr.bf16.mxu0 0
        %2775 = vmatpush1.bf16.msra.mxu0 0
        %2776 = vmatprep.subr.bf16.mxu0 0
        %2777 = vmatpush1.bf16.msra.mxu0 0
        %2778 = vmatprep.subr.bf16.mxu0 0
        %2779 = vmatpush1.bf16.msra.mxu0 0
        %2780 = vmatprep.subr.bf16.mxu0 0
        %2781 = vmatpush1.bf16.msra.mxu0 0
        %2782 = vmatprep.mubr.bf16.mxu0 0
        %2783 = vmatmul.mubr.bf16.gmra.mrb[0].mxu0 %v2745
        %v2784 = vpop.f32.mrb[0].mxu0
        %v2785 = vadd.f32 0.0, %v2784
        %v2786 = vpop.f32.mrb[0].mxu0
        %v2787 = vpop.f32.mrb[0].mxu0
        %v2788 = vpop.f32.mrb[0].mxu0
        %2789 = vdwg.mxu0
        %2790 = vrot.lane.b32.xlu0 %v2445, 96
        %v2791 = vpop.permute.xlu0 %2790
        %v2793 = vsel %vm1741, %v2692, 0
        %v2796 = vsel %vm1993, %v2791, 0
        %2798 = vmatprep.subr.bf16.mxu0 0
        %2799 = vmatpush1.bf16.msra.mxu0 %v2796
        %2800 = vmatprep.subr.bf16.mxu0 0
        %2801 = vmatpush1.bf16.msra.mxu0 0
        %2802 = vmatprep.subr.bf16.mxu0 0
        %2803 = vmatpush1.bf16.msra.mxu0 0
        %2804 = vmatprep.subr.bf16.mxu0 0
        %2805 = vmatpush1.bf16.msra.mxu0 0
        %2806 = vmatprep.subr.bf16.mxu0 0
        %2807 = vmatpush1.bf16.msra.mxu0 0
        %2808 = vmatprep.subr.bf16.mxu0 0
        %2809 = vmatpush1.bf16.msra.mxu0 0
        %2810 = vmatprep.subr.bf16.mxu0 0
        %2811 = vmatpush1.bf16.msra.mxu0 0
        %2812 = vmatprep.subr.bf16.mxu0 0
        %2813 = vmatpush1.bf16.msra.mxu0 0
        %2814 = vmatprep.subr.bf16.mxu0 0
        %2815 = vmatpush1.bf16.msra.mxu0 0
        %2816 = vmatprep.subr.bf16.mxu0 0
        %2817 = vmatpush1.bf16.msra.mxu0 0
        %2818 = vmatprep.subr.bf16.mxu0 0
        %2819 = vmatpush1.bf16.msra.mxu0 0
        %2820 = vmatprep.subr.bf16.mxu0 0
        %2821 = vmatpush1.bf16.msra.mxu0 0
        %2822 = vmatprep.subr.bf16.mxu0 0
        %2823 = vmatpush1.bf16.msra.mxu0 0
        %2824 = vmatprep.subr.bf16.mxu0 0
        %2825 = vmatpush1.bf16.msra.mxu0 0
        %2826 = vmatprep.subr.bf16.mxu0 0
        %2827 = vmatpush1.bf16.msra.mxu0 0
        %2828 = vmatprep.subr.bf16.mxu0 0
        %2829 = vmatpush1.bf16.msra.mxu0 0
        %2830 = vmatprep.mubr.bf16.mxu0 0
        %2831 = vmatmul.mubr.bf16.gmra.mrb[0].mxu0 %v2793
        %v2832 = vpop.f32.mrb[0].mxu0
        %v2833 = vadd.f32 0.0, %v2832
        %v2834 = vpop.f32.mrb[0].mxu0
        %v2835 = vpop.f32.mrb[0].mxu0
        %v2836 = vpop.f32.mrb[0].mxu0
        %2837 = vdwg.mxu0
        %2838 = vrot.lane.b32.xlu0 %v2447, 96
        %v2839 = vpop.permute.xlu0 %2838
        %v2841 = vsel %vm1741, %v2693, 0
        %v2844 = vsel %vm1993, %v2839, 0
        %2846 = vmatprep.subr.bf16.mxu0 0
        %2847 = vmatpush1.bf16.msra.mxu0 %v2844
        %2848 = vmatprep.subr.bf16.mxu0 0
        %2849 = vmatpush1.bf16.msra.mxu0 0
        %2850 = vmatprep.subr.bf16.mxu0 0
        %2851 = vmatpush1.bf16.msra.mxu0 0
        %2852 = vmatprep.subr.bf16.mxu0 0
        %2853 = vmatpush1.bf16.msra.mxu0 0
        %2854 = vmatprep.subr.bf16.mxu0 0
        %2855 = vmatpush1.bf16.msra.mxu0 0
        %2856 = vmatprep.subr.bf16.mxu0 0
        %2857 = vmatpush1.bf16.msra.mxu0 0
        %2858 = vmatprep.subr.bf16.mxu0 0
        %2859 = vmatpush1.bf16.msra.mxu0 0
        %2860 = vmatprep.subr.bf16.mxu0 0
        %2861 = vmatpush1.bf16.msra.mxu0 0
        %2862 = vmatprep.subr.bf16.mxu0 0
        %2863 = vmatpush1.bf16.msra.mxu0 0
        %2864 = vmatprep.subr.bf16.mxu0 0
        %2865 = vmatpush1.bf16.msra.mxu0 0
        %2866 = vmatprep.subr.bf16.mxu0 0
        %2867 = vmatpush1.bf16.msra.mxu0 0
        %2868 = vmatprep.subr.bf16.mxu0 0
        %2869 = vmatpush1.bf16.msra.mxu0 0
        %2870 = vmatprep.subr.bf16.mxu0 0
        %2871 = vmatpush1.bf16.msra.mxu0 0
        %2872 = vmatprep.subr.bf16.mxu0 0
        %2873 = vmatpush1.bf16.msra.mxu0 0
        %2874 = vmatprep.subr.bf16.mxu0 0
        %2875 = vmatpush1.bf16.msra.mxu0 0
        %2876 = vmatprep.subr.bf16.mxu0 0
        %2877 = vmatpush1.bf16.msra.mxu0 0
        %2878 = vmatprep.mubr.bf16.mxu0 0
        %2879 = vmatmul.mubr.bf16.gmra.mrb[0].mxu0 %v2841
        %v2880 = vpop.f32.mrb[0].mxu0
        %v2881 = vadd.f32 0.0, %v2880
        %v2882 = vpop.f32.mrb[0].mxu0
        %v2883 = vpop.f32.mrb[0].mxu0
        %v2884 = vpop.f32.mrb[0].mxu0
        %2885 = vdwg.mxu0
        %2887 = vrot.lane.b32.xlu0 %v2785, 8
        %v2888 = vpop.permute.xlu0 %2887
        %2891 = vrot.lane.b32.xlu0 %v2833, 16
        %v2892 = vpop.permute.xlu0 %2891
        %2895 = vrot.lane.b32.xlu0 %v2881, 24
        %v2896 = vpop.permute.xlu0 %2895
        %v2898 = vsel %vm1741, %v2737, %v2888
        %v2899 = vsel %vm2194, %v2898, %v2892
        %v2900 = vsel %vm2196, %v2899, %v2896
        %v2901 = vpack.c.bf16 %v2900, %v2900
        %v2903 = vlaneseq
        %v2904 = vshrl.u32 %v2903, 7
        %v2905 = vsub.s32 0, %v2904
        %v2906 = vrot.slane %v2309, %v2905
        %v2912 = vunpack.c.l.b16 %v2305
        %v2913 = vunpack.c.l.b16 %v2306
        %v2914 = vunpack.c.l.b16 %v2307
        %v2915 = vunpack.c.l.b16 %v2308
        %v2916 = vpack.c.b16 %v2913, %v2912
        %v2917 = vpack.c.b16 %v2915, %v2914
        %v2921 = vsel %vm1630, %v2901, 0
        %2923 = vmatprep.subr.bf16.mxu0 0
        %2924 = vmatpush1.bf16.msra.mxu0 %v2916
        %2925 = vmatprep.subr.bf16.mxu0 0
        %2926 = vmatpush1.bf16.msra.mxu0 %v2917
        %2927 = vmatprep.subr.bf16.mxu0 0
        %2928 = vmatpush1.bf16.msra.mxu0 0
        %2929 = vmatprep.subr.bf16.mxu0 0
        %2930 = vmatpush1.bf16.msra.mxu0 0
        %2931 = vmatprep.subr.bf16.mxu0 0
        %2932 = vmatpush1.bf16.msra.mxu0 0
        %2933 = vmatprep.subr.bf16.mxu0 0
        %2934 = vmatpush1.bf16.msra.mxu0 0
        %2935 = vmatprep.subr.bf16.mxu0 0
        %2936 = vmatpush1.bf16.msra.mxu0 0
        %2937 = vmatprep.subr.bf16.mxu0 0
        %2938 = vmatpush1.bf16.msra.mxu0 0
        %2939 = vmatprep.subr.bf16.mxu0 0
        %2940 = vmatpush1.bf16.msra.mxu0 0
        %2941 = vmatprep.subr.bf16.mxu0 0
        %2942 = vmatpush1.bf16.msra.mxu0 0
        %2943 = vmatprep.subr.bf16.mxu0 0
        %2944 = vmatpush1.bf16.msra.mxu0 0
        %2945 = vmatprep.subr.bf16.mxu0 0
        %2946 = vmatpush1.bf16.msra.mxu0 0
        %2947 = vmatprep.subr.bf16.mxu0 0
        %2948 = vmatpush1.bf16.msra.mxu0 0
        %2949 = vmatprep.subr.bf16.mxu0 0
        %2950 = vmatpush1.bf16.msra.mxu0 0
        %2951 = vmatprep.subr.bf16.mxu0 0
        %2952 = vmatpush1.bf16.msra.mxu0 0
        %2953 = vmatprep.subr.bf16.mxu0 0
        %2954 = vmatpush1.bf16.msra.mxu0 0
        %2955 = vmatprep.mubr.bf16.mxu0 0
        %2956 = vmatmul.mubr.bf16.gmra.mrb[0].mxu0 %v2921
        %v2957 = vpop.f32.mrb[0].mxu0
        %v2958 = vadd.f32 %v2906, %v2957
        %v2959 = vpop.f32.mrb[0].mxu0
        %v2960 = vpop.f32.mrb[0].mxu0
        %v2961 = vpop.f32.mrb[0].mxu0
        %2962 = vdwg.mxu0
        %2963 = vst.msk [vmem:[%s1615] sm:$0xff] %vm1741, %v2686
        %2964 = vst.msk [vmem:[%s1615 + $0x8] sm:$0xff] %vm1741, %v2687
        %2965 = vst.msk [vmem:[%s1615 + $0x10] sm:$0xff] %vm1741, %v2688
        %2966 = vst.msk [vmem:[%s1615 + $0x18] sm:$0xff] %vm1741, %v2689
        %v2967 = vadd.f32 %v2264, %v2958
        %v2968 = vld [vmem:[%s1399] sm:$0x1]
        %v2969 = vld [vmem:[%s1407] sm:$0x1]
        %v2970 = vsel %vm1630, %v2967, 0.0
        %2971 = vadd.xlane.f32.xlu0 %v2970
        %v2972 = vpop.xlane.xlu0 %2971
        %v2973 = vmul.f32 %v2972, %v1634
        %v2974 = vsub.f32 %v2967, %v2973
        %v2975 = vmul.f32 %v2974, %v2974
        %v2976 = vsel %vm1630, %v2975, 0.0
        %2977 = vadd.xlane.f32.xlu0 %v2976
        %v2978 = vpop.xlane.xlu0 %2977
        %v2979 = vmul.f32 %v2978, %v1634
        %v2980 = vadd.f32 %v2979, 1e-06
        %v2981 = vrsqrt.pop %v2980
        %v2982 = vmul.f32 %v2974, %v2981
        %v2984 = vlaneseq
        %v2985 = vshrl.u32 %v2984, 7
        %v2986 = vsub.s32 0, %v2985
        %v2987 = vrot.slane %v2968, %v2986
        %v2989 = vmul.f32 %v2982, %v2987
        %v2991 = vlaneseq
        %v2992 = vshrl.u32 %v2991, 7
        %v2993 = vsub.s32 0, %v2992
        %v2994 = vrot.slane %v2969, %v2993
        %v2996 = vadd.f32 %v2989, %v2994
        %v2997 = vpack.c.bf16 %v2996, %v2996
        %v2998 = vld [vmem:[%s1416] sm:$0xf]
        %v2999 = vld [vmem:[%s1416 + $0x4] sm:$0xf]
        %v3000 = vld [vmem:[%s1416 + $0x8] sm:$0xf]
        %v3001 = vld [vmem:[%s1416 + $0xc] sm:$0xf]
        %v3002 = vld [vmem:[%s1424] sm:$0x1]
        %v3003 = vld [vmem:[%s1433] sm:$0xf]
        %v3004 = vld [vmem:[%s1433 + $0x4] sm:$0xf]
        %v3005 = vld [vmem:[%s1433 + $0x8] sm:$0xf]
        %v3006 = vld [vmem:[%s1433 + $0xc] sm:$0xf]
        %v3007 = vld [vmem:[%s1433 + $0x10] sm:$0xf]
        %v3008 = vld [vmem:[%s1433 + $0x14] sm:$0xf]
        %v3009 = vld [vmem:[%s1433 + $0x18] sm:$0xf]
        %v3010 = vld [vmem:[%s1433 + $0x1c] sm:$0xf]
        %v3011 = vld [vmem:[%s1441] sm:$0x1]
        %v3013 = vlaneseq
        %v3014 = vshrl.u32 %v3013, 7
        %v3015 = vsub.s32 0, %v3014
        %v3016 = vrot.slane %v3002, %v3015
        %v3022 = vunpack.c.l.b16 %v2998
        %v3023 = vunpack.c.l.b16 %v2999
        %v3024 = vunpack.c.l.b16 %v3000
        %v3025 = vunpack.c.l.b16 %v3001
        %v3026 = vpack.c.b16 %v3023, %v3022
        %v3027 = vpack.c.b16 %v3025, %v3024
        %v3031 = vsel %vm1630, %v2997, 0
        %3033 = vmatprep.subr.bf16.mxu0 0
        %3034 = vmatpush1.bf16.msra.mxu0 %v3026
        %3035 = vmatprep.subr.bf16.mxu0 0
        %3036 = vmatpush1.bf16.msra.mxu0 %v3027
        %3037 = vmatprep.subr.bf16.mxu0 0
        %3038 = vmatpush1.bf16.msra.mxu0 0
        %3039 = vmatprep.subr.bf16.mxu0 0
        %3040 = vmatpush1.bf16.msra.mxu0 0
        %3041 = vmatprep.subr.bf16.mxu0 0
        %3042 = vmatpush1.bf16.msra.mxu0 0
        %3043 = vmatprep.subr.bf16.mxu0 0
        %3044 = vmatpush1.bf16.msra.mxu0 0
        %3045 = vmatprep.subr.bf16.mxu0 0
        %3046 = vmatpush1.bf16.msra.mxu0 0
        %3047 = vmatprep.subr.bf16.mxu0 0
        %3048 = vmatpush1.bf16.msra.mxu0 0
        %3049 = vmatprep.subr.bf16.mxu0 0
        %3050 = vmatpush1.bf16.msra.mxu0 0
        %3051 = vmatprep.subr.bf16.mxu0 0
        %3052 = vmatpush1.bf16.msra.mxu0 0
        %3053 = vmatprep.subr.bf16.mxu0 0
        %3054 = vmatpush1.bf16.msra.mxu0 0
        %3055 = vmatprep.subr.bf16.mxu0 0
        %3056 = vmatpush1.bf16.msra.mxu0 0
        %3057 = vmatprep.subr.bf16.mxu0 0
        %3058 = vmatpush1.bf16.msra.mxu0 0
        %3059 = vmatprep.subr.bf16.mxu0 0
        %3060 = vmatpush1.bf16.msra.mxu0 0
        %3061 = vmatprep.subr.bf16.mxu0 0
        %3062 = vmatpush1.bf16.msra.mxu0 0
        %3063 = vmatprep.subr.bf16.mxu0 0
        %3064 = vmatpush1.bf16.msra.mxu0 0
        %3065 = vmatprep.mubr.bf16.mxu0 0
        %3066 = vmatmul.mubr.bf16.gmra.mrb[0].mxu0 %v3031
        %v3067 = vpop.f32.mrb[0].mxu0
        %v3068 = vadd.f32 %v3016, %v3067
        %v3069 = vpop.f32.mrb[0].mxu0
        %v3070 = vpop.f32.mrb[0].mxu0
        %v3071 = vpop.f32.mrb[0].mxu0
        %3072 = vdwg.mxu0
        %v3073 = vmax.f32 %v3068, 0.0
        %v3074 = vpack.c.bf16 %v3073, %v3073
        %v3076 = vlaneseq
        %v3077 = vshrl.u32 %v3076, 7
        %v3078 = vsub.s32 0, %v3077
        %v3079 = vrot.slane %v3011, %v3078
        %v3089 = vunpack.c.l.b16 %v3003
        %v3090 = vunpack.c.l.b16 %v3004
        %v3091 = vunpack.c.l.b16 %v3005
        %v3092 = vunpack.c.l.b16 %v3006
        %v3093 = vunpack.c.l.b16 %v3007
        %v3094 = vunpack.c.l.b16 %v3008
        %v3095 = vunpack.c.l.b16 %v3009
        %v3096 = vunpack.c.l.b16 %v3010
        %v3097 = vpack.c.b16 %v3090, %v3089
        %v3098 = vpack.c.b16 %v3092, %v3091
        %v3099 = vpack.c.b16 %v3094, %v3093
        %v3100 = vpack.c.b16 %v3096, %v3095
        %vm3105 = vcmask 523264
        %v3107 = vsel %vm3105, %v3074, 0
        %3109 = vmatprep.subr.bf16.mxu0 0
        %3110 = vmatpush1.bf16.msra.mxu0 %v3097
        %3111 = vmatprep.subr.bf16.mxu0 0
        %3112 = vmatpush1.bf16.msra.mxu0 %v3098
        %3113 = vmatprep.subr.bf16.mxu0 0
        %3114 = vmatpush1.bf16.msra.mxu0 %v3099
        %3115 = vmatprep.subr.bf16.mxu0 0
        %3116 = vmatpush1.bf16.msra.mxu0 %v3100
        %3117 = vmatprep.subr.bf16.mxu0 0
        %3118 = vmatpush1.bf16.msra.mxu0 0
        %3119 = vmatprep.subr.bf16.mxu0 0
        %3120 = vmatpush1.bf16.msra.mxu0 0
        %3121 = vmatprep.subr.bf16.mxu0 0
        %3122 = vmatpush1.bf16.msra.mxu0 0
        %3123 = vmatprep.subr.bf16.mxu0 0
        %3124 = vmatpush1.bf16.msra.mxu0 0
        %3125 = vmatprep.subr.bf16.mxu0 0
        %3126 = vmatpush1.bf16.msra.mxu0 0
        %3127 = vmatprep.subr.bf16.mxu0 0
        %3128 = vmatpush1.bf16.msra.mxu0 0
        %3129 = vmatprep.subr.bf16.mxu0 0
        %3130 = vmatpush1.bf16.msra.mxu0 0
        %3131 = vmatprep.subr.bf16.mxu0 0
        %3132 = vmatpush1.bf16.msra.mxu0 0
        %3133 = vmatprep.subr.bf16.mxu0 0
        %3134 = vmatpush1.bf16.msra.mxu0 0
        %3135 = vmatprep.subr.bf16.mxu0 0
        %3136 = vmatpush1.bf16.msra.mxu0 0
        %3137 = vmatprep.subr.bf16.mxu0 0
        %3138 = vmatpush1.bf16.msra.mxu0 0
        %3139 = vmatprep.subr.bf16.mxu0 0
        %3140 = vmatpush1.bf16.msra.mxu0 0
        %3141 = vmatprep.mubr.bf16.mxu0 0
        %3142 = vmatmul.mubr.bf16.gmra.mrb[0].mxu0 %v3107
        %v3143 = vpop.f32.mrb[0].mxu0
        %v3144 = vadd.f32 %v3079, %v3143
        %v3145 = vpop.f32.mrb[0].mxu0
        %v3146 = vpop.f32.mrb[0].mxu0
        %v3147 = vpop.f32.mrb[0].mxu0
        %3148 = vdwg.mxu0
        %v3149 = vadd.f32 %v2967, %v3144
        %3150 = vst.msk [vmem:[#allocation2] sm:$0xff] %vm1630, %v3149
        %p3151 = scmp.eq.s32.totalorder %s88, 1
        // Predicated region
        $region217: #{transformer_forward.6} parent=115 // pred_check
          %p3152 = pneg %p3151
        $region218: #{transformer_forward.6} parent=115 // pred_check_branch
          %3154 = sbr.rel (%p3152) target = $region220
        $region219: #{transformer_forward.6} parent=115 // pred_region
          %3155 = vst.msk [vmem:[%s1601] sm:$0xff] %vm1630, %v3149
        $region220: #{transformer_forward.6} parent=115 // pred_fallthru
          _
        %s3156 = sand.u32 %s722, 1
        %s3157 = scalar_lea.sflag [#allocation5], %s3156
        %s3158 = sand.u32 %s722, 1
        %s3159 = smul.addr %s3158, 8
        %s3160 = scalar_lea.vmem [#allocation41], %s3159
        %s3161 = sand.u32 %s83, 1
        %s3162 = scalar_lea.sflag [#allocation43], %s3161
        %s3163 = sand.u32 %s750, 1
        %s3164 = smul.addr %s3163, 32
        %s3165 = scalar_lea.vmem [#allocation42], %s3164
        %s3166 = sand.u32 %s83, 1
        %s3167 = scalar_lea.sflag [#allocation43], %s3166
        %s3168 = sand.u32 %s778, 1
        %s3169 = smul.addr %s3168, 32
        %s3170 = scalar_lea.vmem [#allocation44], %s3169
        // Predicated region
        $region221: #{transformer_forward.6} parent=115 // pred_check
          %p3171 = pneg %p732
        $region222: #{transformer_forward.6} parent=115 // pred_check_branch
          %3173 = sbr.rel (%p3171) target = $region224
        $region223: #{transformer_forward.6} parent=115 // pred_region
          %s3175 = ssub.s32 128, 128
          %3176 = vsyncadd %s3157, %s3175
          %s3177 = smul.addr %s87, 128
          %s3178 = scalar_lea.hbm %s24, %s3177
          %s3180 = sshll.u32 %s3160, 4
          %s3181 = int_to_ptr.vmem [resolvable:$true] %s3180
          %3183 = dma.vmem_to_hbm [thread:$0]  %s3181, 128, %s3178, %s3157
        $region224: #{transformer_forward.6} parent=115 // pred_fallthru
          _
        // Predicated region
        $region225: #{transformer_forward.6} parent=115 // pred_check
          %p3184 = pneg %p760
        $region226: #{transformer_forward.6} parent=115 // pred_check_branch
          %3186 = sbr.rel (%p3184) target = $region228
        $region227: #{transformer_forward.6} parent=115 // pred_region
          %s3188 = ssub.s32 512, 512
          %3189 = vsyncadd %s3162, %s3188
          %s3190 = smul.addr %s87, 4
          %s3191 = smul.addr %s88, 8
          %s3192 = sadd.s32 %s3190, %s3191
          %s3193 = smul.addr %s3192, 128
          %s3194 = scalar_lea.hbm %s25, %s3193
          %s3195 = sshll.u32 %s3165, 4
          %s3196 = int_to_ptr.vmem [resolvable:$true] %s3195
          %3201 = dma.vmem_to_hbm [thread:$0]  %s3196, 512, %s3194, %s3162, 128, 128, 8
        $region228: #{transformer_forward.6} parent=115 // pred_fallthru
          _
        // Predicated region
        $region229: #{transformer_forward.6} parent=115 // pred_check
          %p3202 = pneg %p788
        $region230: #{transformer_forward.6} parent=115 // pred_check_branch
          %3204 = sbr.rel (%p3202) target = $region232
        $region231: #{transformer_forward.6} parent=115 // pred_region
          %s3206 = ssub.s32 512, 512
          %3207 = vsyncadd %s3167, %s3206
          %s3208 = smul.addr %s87, 4
          %s3209 = smul.addr %s88, 8
          %s3210 = sadd.s32 %s3208, %s3209
          %s3211 = smul.addr %s3210, 128
          %s3212 = scalar_lea.hbm %s26, %s3211
          %s3213 = sshll.u32 %s3170, 4
          %s3214 = int_to_ptr.vmem [resolvable:$true] %s3213
          %3219 = dma.vmem_to_hbm [thread:$0]  %s3214, 512, %s3212, %s3167, 128, 128, 8
        $region232: #{transformer_forward.6} parent=115 // pred_fallthru
          _
      $region116: #{transformer_forward.6} parent=5 // pred_fallthru
        _
      %p3220 = scmp.le.s32.totalorder 2, %s78
      // Predicated region
      $region233: #{transformer_forward.6} parent=5 // pred_check
        %p3221 = pneg %p3220
      $region234: #{transformer_forward.6} parent=5 // pred_check_branch
        %3223 = sbr.rel (%p3221) target = $region236
      $region235: #{transformer_forward.6} parent=5 // pred_region
        %s3224 = ssub.s32 %s78, 2
        // Predicated region
        $region237: #{transformer_forward.6} parent=235 // pred_check
          %p3225 = pneg %p738
        $region238: #{transformer_forward.6} parent=235 // pred_check_branch
          %3227 = sbr.rel (%p3225) target = $region240
        $region239: #{transformer_forward.6} parent=235 // pred_region
          %s3228 = sand.u32 %s723, 1
          %s3229 = scalar_lea.sflag [#allocation5], %s3228
          %s3230 = sand.u32 %s723, 1
          %s3231 = smul.addr %s3230, 8
          %s3232 = scalar_lea.vmem [#allocation41], %s3231
          %3233 = dma.done %s3229, 128
        $region240: #{transformer_forward.6} parent=235 // pred_fallthru
          _
        // Predicated region
        $region241: #{transformer_forward.6} parent=235 // pred_check
          %p3234 = pneg %p766
        $region242: #{transformer_forward.6} parent=235 // pred_check_branch
          %3236 = sbr.rel (%p3234) target = $region244
        $region243: #{transformer_forward.6} parent=235 // pred_region
          %s3237 = sand.u32 %s84, 1
          %s3238 = scalar_lea.sflag [#allocation43], %s3237
          %s3239 = sand.u32 %s751, 1
          %s3240 = smul.addr %s3239, 32
          %s3241 = scalar_lea.vmem [#allocation42], %s3240
          %3242 = dma.done %s3238, 512
        $region244: #{transformer_forward.6} parent=235 // pred_fallthru
          _
        // Predicated region
        $region245: #{transformer_forward.6} parent=235 // pred_check
          %p3243 = pneg %p794
        $region246: #{transformer_forward.6} parent=235 // pred_check_branch
          %3245 = sbr.rel (%p3243) target = $region248
        $region247: #{transformer_forward.6} parent=235 // pred_region
          %s3246 = sand.u32 %s84, 1
          %s3247 = scalar_lea.sflag [#allocation43], %s3246
          %s3248 = sand.u32 %s779, 1
          %s3249 = smul.addr %s3248, 32
          %s3250 = scalar_lea.vmem [#allocation44], %s3249
          %3251 = dma.done %s3247, 512
        $region248: #{transformer_forward.6} parent=235 // pred_fallthru
          _
      $region236: #{transformer_forward.6} parent=5 // pred_fallthru
        _
    $region6: #{transformer_forward.6} parent=1 // loop_footer
      %s82 = sadd.s32 1, %s78
    $region7: #{transformer_forward.6} parent=1 // loop_footer_branch
      %77 = sbr.rel target = $region3
    $region8: #{transformer_forward.6} parent=1 // loop_exit
      _
    %3252 = vsyncpa [#allocation4], 1
    %s3253 = scalar_lea.sflag [#allocation4], 1
    %3254 = vsyncpa %s3253, 1
    %3255 = vsyncpa [#allocation7], 1
    %s3256 = scalar_lea.sflag [#allocation7], 1
    %3257 = vsyncpa %s3256, 1
    %3258 = vsyncpa [#allocation10], 1
    %s3259 = scalar_lea.sflag [#allocation10], 1
    %3260 = vsyncpa %s3259, 1
    %3261 = vsyncpa [#allocation13], 1
    %s3262 = scalar_lea.sflag [#allocation13], 1
    %3263 = vsyncpa %s3262, 1
    %3264 = vsyncpa [#allocation16], 1
    %s3265 = scalar_lea.sflag [#allocation16], 1
    %3266 = vsyncpa %s3265, 1
    %3267 = vsyncpa [#allocation19], 1
    %s3268 = scalar_lea.sflag [#allocation19], 1
    %3269 = vsyncpa %s3268, 1
    %3270 = vsyncpa [#allocation22], 1
    %s3271 = scalar_lea.sflag [#allocation22], 1
    %3272 = vsyncpa %s3271, 1
    %3273 = vsyncpa [#allocation25], 1
    %s3274 = scalar_lea.sflag [#allocation25], 1
    %3275 = vsyncpa %s3274, 1
    %3276 = vsyncpa [#allocation28], 1
    %s3277 = scalar_lea.sflag [#allocation28], 1
    %3278 = vsyncpa %s3277, 1
    %3279 = vsyncpa [#allocation31], 1
    %s3280 = scalar_lea.sflag [#allocation31], 1
    %3281 = vsyncpa %s3280, 1
    %3282 = vsyncpa [#allocation34], 1
    %s3283 = scalar_lea.sflag [#allocation34], 1
    %3284 = vsyncpa %s3283, 1
    %3285 = vsyncpa [#allocation37], 1
    %s3286 = scalar_lea.sflag [#allocation37], 1
    %3287 = vsyncpa %s3286, 1
    %3288 = vsyncpa [#allocation40], 1
    %s3289 = scalar_lea.sflag [#allocation40], 1
    %3290 = vsyncpa %s3289, 1
    %3291 = vsyncpa [#allocation5], 1
    %s3292 = scalar_lea.sflag [#allocation5], 1
    %3293 = vsyncpa %s3292, 1
    %3294 = vsyncpa [#allocation43], 1
    %s3295 = scalar_lea.sflag [#allocation43], 1
    %3296 = vsyncpa %s3295, 1

</llo_original>
